<compile_context>
chip_gen: v6e
topology: v6e:2x2x1
jax: 0.10.0
libtpu: 0.0.40
codegen_flags: <defaults>
</compile_context>

<pallas_src>
import functools
from collections import OrderedDict

import jax
import jax.numpy as jnp
import numpy as np
from jax.experimental import pallas as pl
from jax.experimental.pallas import tpu as pltpu


# ---------------------------------------------------------------------------
# fused per-level Pallas kernel
# ---------------------------------------------------------------------------

def _round_up(v, m):
    return -(-v // m) * m


def _make_level_kernel(*, HW, W, C, P, has_td, has_mask, soft_val):
    """Fused FPN level on one flattened NHWC image (rows = H*W, lanes = C):

        inner = x @ Wi + bi                      (1x1 lateral conv, bf16 in / f32 acc)
        last  = inner (+ top_down)               (top-down add)
        y     = soft-mask * last                 (optional, levels 0/1)
        out   = conv3x3(y) + bl                  (9 shifted MXU matmuls on VMEM scratch)
    """
    f32 = jnp.float32
    bf16 = jnp.bfloat16

    def kernel(*refs):
        i = 0
        x_ref = refs[i]; i += 1
        td_ref = None
        m_ref = None
        if has_td:
            td_ref = refs[i]; i += 1
        if has_mask:
            m_ref = refs[i]; i += 1
        wi_ref, bi_ref, wl_ref, bl_ref = refs[i:i + 4]; i += 4
        last_ref, out_ref = refs[i:i + 2]; i += 2
        ybuf = refs[i]                                         # [HW + 2P, C] f32 scratch

        # ---- 1x1 lateral conv (+ top-down add) ----
        x = x_ref[0]                                           # [HW, Cin] f32
        inner = jnp.dot(x.astype(bf16), wi_ref[...].astype(bf16),
                        preferred_element_type=f32)
        inner = inner + bi_ref[...]                            # [1, C] broadcast
        last = (inner + td_ref[0]) if has_td else inner
        last_ref[0] = last.astype(last_ref.dtype)

        # ---- optional FPN mask (mask carried as [HW, 1], broadcast over lanes) ----
        if has_mask:
            m = m_ref[0]                                       # [HW, 1] f32
            m = jnp.where(m == 0.0, jnp.asarray(soft_val, m.dtype), m)
            y = last * m
        else:
            y = last

        # ---- 3x3 "same" conv: stage image with a zero halo, 9 shifted matmuls ----
        ybuf[...] = jnp.zeros_like(ybuf)
        ybuf[pl.ds(P, HW), :] = y
        col = jax.lax.broadcasted_iota(jnp.int32, (HW, 1), 0) % W
        not_first = col != 0          # valid source for dx = -1 taps
        not_last = col != (W - 1)     # valid source for dx = +1 taps

        acc = jnp.zeros((HW, C), f32)
        for k in range(9):            # unrolled: tap (dy, dx)
            dy, dx = k // 3 - 1, k % 3 - 1
            ysh = ybuf[pl.ds(P + dy * W + dx, HW), :]
            contrib = jnp.dot(ysh.astype(bf16), wl_ref[k].astype(bf16),
                              preferred_element_type=f32)
            if dx == -1:
                contrib = jnp.where(not_first, contrib, 0.0)
            elif dx == 1:
                contrib = jnp.where(not_last, contrib, 0.0)
            acc = acc + contrib
        out_ref[0] = (acc + bl_ref[...]).astype(out_ref.dtype)

    return kernel


def fpn_level_pallas(x_flat, td_flat, m_flat, wi, bi, wl9, bl, *, W, soft_val):
    """One fused pallas_call per pyramid level.  Inputs are flattened NHWC images.

    x_flat : [N, H*W, Cin]  level feature
    td_flat: [N, H*W, C]    upsampled previous last_inner (or None for the top level)
    m_flat : [N, H*W, 1]    resized mask (or None)
    Returns (last_inner_flat, layer_out_flat), both [N, H*W, C].
    """
    N, HW, Cin = x_flat.shape
    C = wi.shape[1]
    P = _round_up(W + 1, 8)           # zero-halo rows on each side of the flattened image
    has_td = td_flat is not None
    has_mask = m_flat is not None

    kernel = _make_level_kernel(HW=HW, W=W, C=C, P=P, has_td=has_td,
                                has_mask=has_mask, soft_val=float(soft_val))

    args = [x_flat]
    in_specs = [pl.BlockSpec((1, HW, Cin), lambda n: (n, 0, 0))]
    if has_td:
        args.append(td_flat)
        in_specs.append(pl.BlockSpec((1, HW, C), lambda n: (n, 0, 0)))
    if has_mask:
        args.append(m_flat)
        in_specs.append(pl.BlockSpec((1, HW, 1), lambda n: (n, 0, 0)))
    args += [wi, bi.reshape(1, C), wl9, bl.reshape(1, C)]
    in_specs += [
        pl.BlockSpec((Cin, C), lambda n: (0, 0)),
        pl.BlockSpec((1, C), lambda n: (0, 0)),
        pl.BlockSpec((9, C, C), lambda n: (0, 0, 0)),
        pl.BlockSpec((1, C), lambda n: (0, 0)),
    ]
    out_shape = (jax.ShapeDtypeStruct((N, HW, C), x_flat.dtype),
                 jax.ShapeDtypeStruct((N, HW, C), x_flat.dtype))
    out_specs = (pl.BlockSpec((1, HW, C), lambda n: (n, 0, 0)),
                 pl.BlockSpec((1, HW, C), lambda n: (n, 0, 0)))

    return pl.pallas_call(
        kernel,
        grid=(N,),
        in_specs=in_specs,
        out_specs=out_specs,
        out_shape=out_shape,
        scratch_shapes=[pltpu.VMEM((HW + 2 * P, C), jnp.float32)],
        compiler_params=pltpu.CompilerParams(
            dimension_semantics=("parallel",),            # shard batch across TCs (v7x)
            vmem_limit_bytes=32 * 1024 * 1024),
    )(*args)


# ---------------------------------------------------------------------------
# wrapper-side glue (no gathers on the hot path)
# ---------------------------------------------------------------------------

def nearest_resize_nhwc(x, out_h, out_w):
    """torch F.interpolate(mode='nearest'): src = floor(dst * in / out)."""
    n, h, w, c = x.shape
    if out_h == h and out_w == w:
        return x
    if out_h % h == 0 and out_w % w == 0:
        # integer nearest up-sample == interleaved repeat (broadcast+reshape, no gather)
        x = jnp.repeat(x, out_h // h, axis=1)
        x = jnp.repeat(x, out_w // w, axis=2)
        return x
    if h % out_h == 0 and w % out_w == 0:
        # integer nearest down-sample == strided subsample (no gather)
        return x[:, ::h // out_h, ::w // out_w, :]
    # TODO(synk): general non-integer ratio falls back to a gather.
    rows = (jnp.arange(out_h) * h) // out_h
    cols = (jnp.arange(out_w) * w) // out_w
    return x[:, rows][:, :, cols]


@functools.partial(jax.jit, static_argnames=("soft_val",))
def fpn_forward_pallas(params, feats_nchw, masks_nchw, soft_val=1.0):
    names = list(feats_nchw.keys())
    xs = [jnp.transpose(v, (0, 2, 3, 1)) for v in feats_nchw.values()]   # -> NHWC
    mask = jnp.transpose(masks_nchw, (0, 2, 3, 1))                       # [N, Hm, Wm, 1]
    N = xs[0].shape[0]
    shapes = [(x.shape[1], x.shape[2]) for x in xs]

    inner_w, inner_b = params["inner_w"], params["inner_b"]
    layer_w, layer_b = params["layer_w"], params["layer_b"]
    C = inner_w[0].shape[1]
    layer_w9 = [w.reshape(9, C, C) for w in layer_w]                     # HWIO -> (9, C, C)

    def flat(t):
        n, h, w, c = t.shape
        return t.reshape(n, h * w, c)

    # deepest level: lateral conv + output conv (no top-down, no mask)
    L = len(xs) - 1
    H, W = shapes[L]
    last_flat, out_flat = fpn_level_pallas(
        flat(xs[L]), None, None, inner_w[L], inner_b[L], layer_w9[L], layer_b[L],
        W=W, soft_val=soft_val)
    results = [out_flat]
    last_hw = (H, W)

    for idx in range(L - 1, -1, -1):
        H, W = shapes[idx]
        td = flat(nearest_resize_nhwc(
            last_flat.reshape(N, last_hw[0], last_hw[1], C), H, W))
        m_flat = None
        if idx <= 1:                                       # mask only for levels 0 and 1
            m_flat = flat(nearest_resize_nhwc(mask, H, W))
        last_flat, out_flat = fpn_level_pallas(
            flat(xs[idx]), td, m_flat, inner_w[idx], inner_b[idx],
            layer_w9[idx], layer_b[idx], W=W, soft_val=soft_val)
        results.insert(0, out_flat)
        last_hw = (H, W)

    out = OrderedDict()
    for k, r, (H, W) in zip(names, results, shapes):
        out[k] = jnp.transpose(r.reshape(N, H, W, C), (0, 3, 1, 2))      # back to NCHW
    return out


# ---------------------------------------------------------------------------
# pure-JAX reference (same bf16-in/f32-acc arithmetic) for cross-check
# ---------------------------------------------------------------------------

def _ref_conv1x1(x, w, b):
    return jnp.einsum('nhwc,co->nhwo', x.astype(jnp.bfloat16), w.astype(jnp.bfloat16),
                      preferred_element_type=jnp.float32) + b


def _ref_conv3x3(x, w, b):          # w: [3, 3, C, Co]
    n, H, W, _ = x.shape
    xb = jnp.pad(x.astype(jnp.bfloat16), ((0, 0), (1, 1), (1, 1), (0, 0)))
    acc = jnp.zeros((n, H, W, w.shape[3]), jnp.float32)
    for dy in range(3):
        for dx in range(3):
            acc = acc + jnp.einsum('nhwc,co->nhwo', xb[:, dy:dy + H, dx:dx + W, :],
                                   w[dy, dx].astype(jnp.bfloat16),
                                   preferred_element_type=jnp.float32)
    return acc + b


def fpn_forward_ref(params, feats_nchw, masks_nchw, soft_val=1.0):
    names = list(feats_nchw.keys())
    xs = [jnp.transpose(v, (0, 2, 3, 1)) for v in feats_nchw.values()]
    mask = jnp.transpose(masks_nchw, (0, 2, 3, 1))
    inner_w, inner_b = params["inner_w"], params["inner_b"]
    layer_w, layer_b = params["layer_w"], params["layer_b"]

    last_inner = _ref_conv1x1(xs[-1], inner_w[-1], inner_b[-1])
    results = [_ref_conv3x3(last_inner, layer_w[-1], layer_b[-1])]
    for idx in range(len(xs) - 2, -1, -1):
        lateral = _ref_conv1x1(xs[idx], inner_w[idx], inner_b[idx])
        h, w = lateral.shape[1:3]
        top_down = nearest_resize_nhwc(last_inner, h, w)
        last_inner = lateral + top_down
        if idx <= 1:
            m = nearest_resize_nhwc(mask, h, w)
            m = jnp.where(m == 0.0, jnp.asarray(soft_val, m.dtype), m)
            y = m * last_inner
        else:
            y = last_inner
        results.insert(0, _ref_conv3x3(y, layer_w[idx], layer_b[idx]))
    return OrderedDict(
        (k, jnp.transpose(v, (0, 3, 1, 2))) for k, v in zip(names, results))


# ---------------------------------------------------------------------------
# parameter init (matches nn.init.kaiming_uniform_(a=1), bias=0)
# ---------------------------------------------------------------------------

def kaiming_uniform(key, shape, fan_in, a=1.0):
    gain = np.sqrt(2.0 / (1.0 + a * a))
    bound = gain * np.sqrt(3.0 / fan_in)
    return jax.random.uniform(key, shape, jnp.float32, -bound, bound)


def init_params(key, in_channels_list, out_channels):
    inner_w, inner_b, layer_w, layer_b = [], [], [], []
    for cin in in_channels_list:
        key, k1, k2 = jax.random.split(key, 3)
        inner_w.append(kaiming_uniform(k1, (cin, out_channels), fan_in=cin))
        inner_b.append(jnp.zeros((out_channels,), jnp.float32))
        layer_w.append(kaiming_uniform(k2, (3, 3, out_channels, out_channels),
                                       fan_in=9 * out_channels))
        layer_b.append(jnp.zeros((out_channels,), jnp.float32))
    return {"inner_w": inner_w, "inner_b": inner_b,
            "layer_w": layer_w, "layer_b": layer_b}


# ---------------------------------------------------------------------------
# main
# ---------------------------------------------------------------------------

if __name__ == "__main__":
    key = jax.random.PRNGKey(0)

    in_channels_list = [4, 8, 16, 32]
    out_channels = 16
    batch = 2
    spatials = [16, 8, 4, 2]          # increasing depth order (FPN convention)
    soft_val = 0.5

    key, pk = jax.random.split(key)
    params = init_params(pk, in_channels_list, out_channels)

    feats = OrderedDict()
    for i, (c, s) in enumerate(zip(in_channels_list, spatials)):
        key, fk = jax.random.split(key)
        feats[f"feat{i}"] = jax.random.normal(fk, (batch, c, s, s), jnp.float32)

    key, mk = jax.random.split(key)
    masks = jax.random.bernoulli(mk, 0.5, (batch, 1, 16, 16)).astype(jnp.float32)

    out = fpn_forward_pallas(params, feats, masks, soft_val=soft_val)
    out = jax.tree_util.tree_map(jax.block_until_ready, out)

    ref = fpn_forward_ref(params, feats, masks, soft_val=soft_val)
    for k in out:
        np.testing.assert_allclose(np.asarray(out[k]), np.asarray(ref[k]),
                                   rtol=2e-2, atol=2e-2)

    print("KERNEL_OK")
</pallas_src>

<mosaic_0001>
module attributes {stable_mosaic.version = 11 : i64} {
  func.func @kernel(%arg0: i32, %arg1: memref<1x4x32xf32, #tpu.memory_space<vmem>>, %arg2: memref<32x16xf32, #tpu.memory_space<vmem>>, %arg3: memref<1x16xf32, #tpu.memory_space<vmem>>, %arg4: memref<9x16x16xf32, #tpu.memory_space<vmem>>, %arg5: memref<1x16xf32, #tpu.memory_space<vmem>>, %arg6: memref<1x4x16xf32, #tpu.memory_space<vmem>>, %arg7: memref<1x4x16xf32, #tpu.memory_space<vmem>>, %arg8: memref<20x16xf32, #tpu.memory_space<vmem>>) attributes {dimension_semantics = [#tpu.dimension_semantics<parallel>], iteration_bounds = array<i64: 2>, scalar_prefetch = 0 : i64, scratch_operands = 1 : i64, tpu.core_type = #tpu.core_type<tc>, window_params = [{transform_indices = @transform_0, window_bounds = array<i64: 1, 4, 32>}, {pipeline_mode = #tpu.pipeline_mode<synchronous>, transform_indices = @transform_1, window_bounds = array<i64: 32, 16>}, {pipeline_mode = #tpu.pipeline_mode<synchronous>, transform_indices = @transform_2, window_bounds = array<i64: 1, 16>}, {pipeline_mode = #tpu.pipeline_mode<synchronous>, transform_indices = @transform_3, window_bounds = array<i64: 9, 16, 16>}, {pipeline_mode = #tpu.pipeline_mode<synchronous>, transform_indices = @transform_4, window_bounds = array<i64: 1, 16>}, {transform_indices = @transform_5, window_bounds = array<i64: 1, 4, 16>}, {transform_indices = @transform_6, window_bounds = array<i64: 1, 4, 16>}]} {
    %c0 = arith.constant 0 : index
    %c0_0 = arith.constant 0 : index
    %c0_1 = arith.constant 0 : index
    %0 = vector.load %arg1[%c0, %c0_0, %c0_1] : memref<1x4x32xf32, #tpu.memory_space<vmem>>, vector<1x4x32xf32>
    %1 = vector.shape_cast %0 : vector<1x4x32xf32> to vector<4x32xf32>
    %2 = arith.truncf %1 : vector<4x32xf32> to vector<4x32xbf16>
    %c0_2 = arith.constant 0 : index
    %c0_3 = arith.constant 0 : index
    %3 = vector.load %arg2[%c0_2, %c0_3] : memref<32x16xf32, #tpu.memory_space<vmem>>, vector<32x16xf32>
    %4 = arith.truncf %3 : vector<32x16xf32> to vector<32x16xbf16>
    %cst = arith.constant dense<0.000000e+00> : vector<4x16xf32>
    %5 = tpu.matmul %2, %4, %cst {dimension_numbers = #tpu.dot_dimension_numbers<[1], [0], [0], [1], [0, 0, 1, 1], [], []>} : vector<4x32xbf16>, vector<32x16xbf16>, vector<4x16xf32> -> vector<4x16xf32>
    %c0_4 = arith.constant 0 : index
    %c0_5 = arith.constant 0 : index
    %6 = vector.load %arg3[%c0_4, %c0_5] : memref<1x16xf32, #tpu.memory_space<vmem>>, vector<1x16xf32>
    %7 = vector.broadcast %6 : vector<1x16xf32> to vector<4x16xf32>
    %8 = arith.addf %5, %7 : vector<4x16xf32>
    %c0_6 = arith.constant 0 : index
    %c0_7 = arith.constant 0 : index
    %c0_8 = arith.constant 0 : index
    %9 = vector.load %arg6[%c0_6, %c0_7, %c0_8] : memref<1x4x16xf32, #tpu.memory_space<vmem>>, vector<1x4x16xf32>
    %10 = vector.shape_cast %9 : vector<1x4x16xf32> to vector<4x16xf32>
    %11 = vector.shape_cast %8 : vector<4x16xf32> to vector<1x4x16xf32>
    tpu.vector_store %arg6[%c0_6, %c0_7, %c0_8], %11 {strides = array<i32>} : memref<1x4x16xf32, #tpu.memory_space<vmem>>, vector<1x4x16xf32>,
    %cst_9 = arith.constant 0.000000e+00 : f32
    %12 = vector.broadcast %cst_9 : f32 to vector<20x16xf32>
    %c0_10 = arith.constant 0 : index
    %c0_11 = arith.constant 0 : index
    %13 = vector.load %arg8[%c0_10, %c0_11] : memref<20x16xf32, #tpu.memory_space<vmem>>, vector<20x16xf32>
    tpu.vector_store %arg8[%c0_10, %c0_11], %12 {strides = array<i32>} : memref<20x16xf32, #tpu.memory_space<vmem>>, vector<20x16xf32>,
    %c8 = arith.constant 8 : index
    %c0_12 = arith.constant 0 : index
    %14 = vector.load %arg8[%c8, %c0_12] : memref<20x16xf32, #tpu.memory_space<vmem>>, vector<4x16xf32>
    tpu.vector_store %arg8[%c8, %c0_12], %8 {strides = array<i32>} : memref<20x16xf32, #tpu.memory_space<vmem>>, vector<4x16xf32>,
    %15 = tpu.iota {dimensions = array<i32: 0>} : vector<4x1xi32>
    %c2_i32 = arith.constant 2 : i32
    %c0_i32 = arith.constant 0 : i32
    %16 = arith.cmpi eq, %c2_i32, %c0_i32 : i32
    %c1_i32 = arith.constant 1 : i32
    %17 = arith.select %16, %c1_i32, %c2_i32 : i32
    %18 = vector.broadcast %17 : i32 to vector<4x1xi32>
    %19 = arith.remsi %15, %18 : vector<4x1xi32>
    %c0_i32_13 = arith.constant 0 : i32
    %20 = vector.broadcast %c0_i32_13 : i32 to vector<4x1xi32>
    %21 = arith.cmpi ne, %19, %20 : vector<4x1xi32>
    %c0_i32_14 = arith.constant 0 : i32
    %22 = vector.broadcast %c0_i32_14 : i32 to vector<4x1xi32>
    %23 = arith.cmpi slt, %19, %22 : vector<4x1xi32>
    %c0_i32_15 = arith.constant 0 : i32
    %24 = arith.cmpi slt, %17, %c0_i32_15 : i32
    %25 = vector.broadcast %24 : i1 to vector<4x1xi1>
    %26 = vector.broadcast %25 : vector<4x1xi1> to vector<4x1xi1>
    %27 = arith.xori %23, %26 : vector<4x1xi1>
    %28 = arith.andi %27, %21 : vector<4x1xi1>
    %29 = vector.broadcast %17 : i32 to vector<4x1xi32>
    %30 = arith.addi %19, %29 : vector<4x1xi32>
    %31 = arith.select %28, %30, %19 : vector<4x1xi1>, vector<4x1xi32>
    %c0_i32_16 = arith.constant 0 : i32
    %32 = vector.broadcast %c0_i32_16 : i32 to vector<4x1xi32>
    %33 = arith.cmpi ne, %31, %32 : vector<4x1xi32>
    %c1_i32_17 = arith.constant 1 : i32
    %34 = vector.broadcast %c1_i32_17 : i32 to vector<4x1xi32>
    %35 = arith.cmpi ne, %31, %34 : vector<4x1xi32>
    %cst_18 = arith.constant 0.000000e+00 : f32
    %36 = vector.broadcast %cst_18 : f32 to vector<4x16xf32>
    %c5 = arith.constant 5 : index
    %c0_19 = arith.constant 0 : index
    %37 = vector.load %arg8[%c5, %c0_19] : memref<20x16xf32, #tpu.memory_space<vmem>>, vector<4x16xf32>
    %38 = arith.truncf %37 : vector<4x16xf32> to vector<4x16xbf16>
    %c0_20 = arith.constant 0 : index
    %c0_21 = arith.constant 0 : index
    %c0_22 = arith.constant 0 : index
    %39 = vector.load %arg4[%c0_20, %c0_21, %c0_22] : memref<9x16x16xf32, #tpu.memory_space<vmem>>, vector<1x16x16xf32>
    %40 = vector.shape_cast %39 : vector<1x16x16xf32> to vector<16x16xf32>
    %41 = arith.truncf %40 : vector<16x16xf32> to vector<16x16xbf16>
    %cst_23 = arith.constant dense<0.000000e+00> : vector<4x16xf32>
    %42 = tpu.matmul %38, %41, %cst_23 {dimension_numbers = #tpu.dot_dimension_numbers<[1], [0], [0], [1], [0, 0, 1, 1], [], []>} : vector<4x16xbf16>, vector<16x16xbf16>, vector<4x16xf32> -> vector<4x16xf32>
    %cst_24 = arith.constant 0.000000e+00 : f32
    %43 = vector.shape_cast %33 : vector<4x1xi1> to vector<4x1xi1>
    %44 = vector.broadcast %43 : vector<4x1xi1> to vector<4x16xi1>
    %45 = vector.broadcast %cst_24 : f32 to vector<4x16xf32>
    %46 = arith.select %44, %42, %45 : vector<4x16xi1>, vector<4x16xf32>
    %47 = arith.addf %36, %46 : vector<4x16xf32>
    %c6 = arith.constant 6 : index
    %c0_25 = arith.constant 0 : index
    %48 = vector.load %arg8[%c6, %c0_25] : memref<20x16xf32, #tpu.memory_space<vmem>>, vector<4x16xf32>
    %49 = arith.truncf %48 : vector<4x16xf32> to vector<4x16xbf16>
    %c1 = arith.constant 1 : index
    %c0_26 = arith.constant 0 : index
    %c0_27 = arith.constant 0 : index
    %50 = vector.load %arg4[%c1, %c0_26, %c0_27] : memref<9x16x16xf32, #tpu.memory_space<vmem>>, vector<1x16x16xf32>
    %51 = vector.shape_cast %50 : vector<1x16x16xf32> to vector<16x16xf32>
    %52 = arith.truncf %51 : vector<16x16xf32> to vector<16x16xbf16>
    %cst_28 = arith.constant dense<0.000000e+00> : vector<4x16xf32>
    %53 = tpu.matmul %49, %52, %cst_28 {dimension_numbers = #tpu.dot_dimension_numbers<[1], [0], [0], [1], [0, 0, 1, 1], [], []>} : vector<4x16xbf16>, vector<16x16xbf16>, vector<4x16xf32> -> vector<4x16xf32>
    %54 = arith.addf %47, %53 : vector<4x16xf32>
    %c7 = arith.constant 7 : index
    %c0_29 = arith.constant 0 : index
    %55 = vector.load %arg8[%c7, %c0_29] : memref<20x16xf32, #tpu.memory_space<vmem>>, vector<4x16xf32>
    %56 = arith.truncf %55 : vector<4x16xf32> to vector<4x16xbf16>
    %c2 = arith.constant 2 : index
    %c0_30 = arith.constant 0 : index
    %c0_31 = arith.constant 0 : index
    %57 = vector.load %arg4[%c2, %c0_30, %c0_31] : memref<9x16x16xf32, #tpu.memory_space<vmem>>, vector<1x16x16xf32>
    %58 = vector.shape_cast %57 : vector<1x16x16xf32> to vector<16x16xf32>
    %59 = arith.truncf %58 : vector<16x16xf32> to vector<16x16xbf16>
    %cst_32 = arith.constant dense<0.000000e+00> : vector<4x16xf32>
    %60 = tpu.matmul %56, %59, %cst_32 {dimension_numbers = #tpu.dot_dimension_numbers<[1], [0], [0], [1], [0, 0, 1, 1], [], []>} : vector<4x16xbf16>, vector<16x16xbf16>, vector<4x16xf32> -> vector<4x16xf32>
    %cst_33 = arith.constant 0.000000e+00 : f32
    %61 = vector.shape_cast %35 : vector<4x1xi1> to vector<4x1xi1>
    %62 = vector.broadcast %61 : vector<4x1xi1> to vector<4x16xi1>
    %63 = vector.broadcast %cst_33 : f32 to vector<4x16xf32>
    %64 = arith.select %62, %60, %63 : vector<4x16xi1>, vector<4x16xf32>
    %65 = arith.addf %54, %64 : vector<4x16xf32>
    %c7_34 = arith.constant 7 : index
    %c0_35 = arith.constant 0 : index
    %66 = vector.load %arg8[%c7_34, %c0_35] : memref<20x16xf32, #tpu.memory_space<vmem>>, vector<4x16xf32>
    %67 = arith.truncf %66 : vector<4x16xf32> to vector<4x16xbf16>
    %c3 = arith.constant 3 : index
    %c0_36 = arith.constant 0 : index
    %c0_37 = arith.constant 0 : index
    %68 = vector.load %arg4[%c3, %c0_36, %c0_37] : memref<9x16x16xf32, #tpu.memory_space<vmem>>, vector<1x16x16xf32>
    %69 = vector.shape_cast %68 : vector<1x16x16xf32> to vector<16x16xf32>
    %70 = arith.truncf %69 : vector<16x16xf32> to vector<16x16xbf16>
    %cst_38 = arith.constant dense<0.000000e+00> : vector<4x16xf32>
    %71 = tpu.matmul %67, %70, %cst_38 {dimension_numbers = #tpu.dot_dimension_numbers<[1], [0], [0], [1], [0, 0, 1, 1], [], []>} : vector<4x16xbf16>, vector<16x16xbf16>, vector<4x16xf32> -> vector<4x16xf32>
    %cst_39 = arith.constant 0.000000e+00 : f32
    %72 = vector.shape_cast %33 : vector<4x1xi1> to vector<4x1xi1>
    %73 = vector.broadcast %72 : vector<4x1xi1> to vector<4x16xi1>
    %74 = vector.broadcast %cst_39 : f32 to vector<4x16xf32>
    %75 = arith.select %73, %71, %74 : vector<4x16xi1>, vector<4x16xf32>
    %76 = arith.addf %65, %75 : vector<4x16xf32>
    %c8_40 = arith.constant 8 : index
    %c0_41 = arith.constant 0 : index
    %77 = vector.load %arg8[%c8_40, %c0_41] : memref<20x16xf32, #tpu.memory_space<vmem>>, vector<4x16xf32>
    %78 = arith.truncf %77 : vector<4x16xf32> to vector<4x16xbf16>
    %c4 = arith.constant 4 : index
    %c0_42 = arith.constant 0 : index
    %c0_43 = arith.constant 0 : index
    %79 = vector.load %arg4[%c4, %c0_42, %c0_43] : memref<9x16x16xf32, #tpu.memory_space<vmem>>, vector<1x16x16xf32>
    %80 = vector.shape_cast %79 : vector<1x16x16xf32> to vector<16x16xf32>
    %81 = arith.truncf %80 : vector<16x16xf32> to vector<16x16xbf16>
    %cst_44 = arith.constant dense<0.000000e+00> : vector<4x16xf32>
    %82 = tpu.matmul %78, %81, %cst_44 {dimension_numbers = #tpu.dot_dimension_numbers<[1], [0], [0], [1], [0, 0, 1, 1], [], []>} : vector<4x16xbf16>, vector<16x16xbf16>, vector<4x16xf32> -> vector<4x16xf32>
    %83 = arith.addf %76, %82 : vector<4x16xf32>
    %c9 = arith.constant 9 : index
    %c0_45 = arith.constant 0 : index
    %84 = vector.load %arg8[%c9, %c0_45] : memref<20x16xf32, #tpu.memory_space<vmem>>, vector<4x16xf32>
    %85 = arith.truncf %84 : vector<4x16xf32> to vector<4x16xbf16>
    %c5_46 = arith.constant 5 : index
    %c0_47 = arith.constant 0 : index
    %c0_48 = arith.constant 0 : index
    %86 = vector.load %arg4[%c5_46, %c0_47, %c0_48] : memref<9x16x16xf32, #tpu.memory_space<vmem>>, vector<1x16x16xf32>
    %87 = vector.shape_cast %86 : vector<1x16x16xf32> to vector<16x16xf32>
    %88 = arith.truncf %87 : vector<16x16xf32> to vector<16x16xbf16>
    %cst_49 = arith.constant dense<0.000000e+00> : vector<4x16xf32>
    %89 = tpu.matmul %85, %88, %cst_49 {dimension_numbers = #tpu.dot_dimension_numbers<[1], [0], [0], [1], [0, 0, 1, 1], [], []>} : vector<4x16xbf16>, vector<16x16xbf16>, vector<4x16xf32> -> vector<4x16xf32>
    %cst_50 = arith.constant 0.000000e+00 : f32
    %90 = vector.shape_cast %35 : vector<4x1xi1> to vector<4x1xi1>
    %91 = vector.broadcast %90 : vector<4x1xi1> to vector<4x16xi1>
    %92 = vector.broadcast %cst_50 : f32 to vector<4x16xf32>
    %93 = arith.select %91, %89, %92 : vector<4x16xi1>, vector<4x16xf32>
    %94 = arith.addf %83, %93 : vector<4x16xf32>
    %c9_51 = arith.constant 9 : index
    %c0_52 = arith.constant 0 : index
    %95 = vector.load %arg8[%c9_51, %c0_52] : memref<20x16xf32, #tpu.memory_space<vmem>>, vector<4x16xf32>
    %96 = arith.truncf %95 : vector<4x16xf32> to vector<4x16xbf16>
    %c6_53 = arith.constant 6 : index
    %c0_54 = arith.constant 0 : index
    %c0_55 = arith.constant 0 : index
    %97 = vector.load %arg4[%c6_53, %c0_54, %c0_55] : memref<9x16x16xf32, #tpu.memory_space<vmem>>, vector<1x16x16xf32>
    %98 = vector.shape_cast %97 : vector<1x16x16xf32> to vector<16x16xf32>
    %99 = arith.truncf %98 : vector<16x16xf32> to vector<16x16xbf16>
    %cst_56 = arith.constant dense<0.000000e+00> : vector<4x16xf32>
    %100 = tpu.matmul %96, %99, %cst_56 {dimension_numbers = #tpu.dot_dimension_numbers<[1], [0], [0], [1], [0, 0, 1, 1], [], []>} : vector<4x16xbf16>, vector<16x16xbf16>, vector<4x16xf32> -> vector<4x16xf32>
    %cst_57 = arith.constant 0.000000e+00 : f32
    %101 = vector.shape_cast %33 : vector<4x1xi1> to vector<4x1xi1>
    %102 = vector.broadcast %101 : vector<4x1xi1> to vector<4x16xi1>
    %103 = vector.broadcast %cst_57 : f32 to vector<4x16xf32>
    %104 = arith.select %102, %100, %103 : vector<4x16xi1>, vector<4x16xf32>
    %105 = arith.addf %94, %104 : vector<4x16xf32>
    %c10 = arith.constant 10 : index
    %c0_58 = arith.constant 0 : index
    %106 = vector.load %arg8[%c10, %c0_58] : memref<20x16xf32, #tpu.memory_space<vmem>>, vector<4x16xf32>
    %107 = arith.truncf %106 : vector<4x16xf32> to vector<4x16xbf16>
    %c7_59 = arith.constant 7 : index
    %c0_60 = arith.constant 0 : index
    %c0_61 = arith.constant 0 : index
    %108 = vector.load %arg4[%c7_59, %c0_60, %c0_61] : memref<9x16x16xf32, #tpu.memory_space<vmem>>, vector<1x16x16xf32>
    %109 = vector.shape_cast %108 : vector<1x16x16xf32> to vector<16x16xf32>
    %110 = arith.truncf %109 : vector<16x16xf32> to vector<16x16xbf16>
    %cst_62 = arith.constant dense<0.000000e+00> : vector<4x16xf32>
    %111 = tpu.matmul %107, %110, %cst_62 {dimension_numbers = #tpu.dot_dimension_numbers<[1], [0], [0], [1], [0, 0, 1, 1], [], []>} : vector<4x16xbf16>, vector<16x16xbf16>, vector<4x16xf32> -> vector<4x16xf32>
    %112 = arith.addf %105, %111 : vector<4x16xf32>
    %c11 = arith.constant 11 : index
    %c0_63 = arith.constant 0 : index
    %113 = vector.load %arg8[%c11, %c0_63] : memref<20x16xf32, #tpu.memory_space<vmem>>, vector<4x16xf32>
    %114 = arith.truncf %113 : vector<4x16xf32> to vector<4x16xbf16>
    %c8_64 = arith.constant 8 : index
    %c0_65 = arith.constant 0 : index
    %c0_66 = arith.constant 0 : index
    %115 = vector.load %arg4[%c8_64, %c0_65, %c0_66] : memref<9x16x16xf32, #tpu.memory_space<vmem>>, vector<1x16x16xf32>
    %116 = vector.shape_cast %115 : vector<1x16x16xf32> to vector<16x16xf32>
    %117 = arith.truncf %116 : vector<16x16xf32> to vector<16x16xbf16>
    %cst_67 = arith.constant dense<0.000000e+00> : vector<4x16xf32>
    %118 = tpu.matmul %114, %117, %cst_67 {dimension_numbers = #tpu.dot_dimension_numbers<[1], [0], [0], [1], [0, 0, 1, 1], [], []>} : vector<4x16xbf16>, vector<16x16xbf16>, vector<4x16xf32> -> vector<4x16xf32>
    %cst_68 = arith.constant 0.000000e+00 : f32
    %119 = vector.shape_cast %35 : vector<4x1xi1> to vector<4x1xi1>
    %120 = vector.broadcast %119 : vector<4x1xi1> to vector<4x16xi1>
    %121 = vector.broadcast %cst_68 : f32 to vector<4x16xf32>
    %122 = arith.select %120, %118, %121 : vector<4x16xi1>, vector<4x16xf32>
    %123 = arith.addf %112, %122 : vector<4x16xf32>
    %c0_69 = arith.constant 0 : index
    %c0_70 = arith.constant 0 : index
    %124 = vector.load %arg5[%c0_69, %c0_70] : memref<1x16xf32, #tpu.memory_space<vmem>>, vector<1x16xf32>
    %125 = vector.broadcast %124 : vector<1x16xf32> to vector<4x16xf32>
    %126 = arith.addf %123, %125 : vector<4x16xf32>
    %c0_71 = arith.constant 0 : index
    %c0_72 = arith.constant 0 : index
    %c0_73 = arith.constant 0 : index
    %127 = vector.load %arg7[%c0_71, %c0_72, %c0_73] : memref<1x4x16xf32, #tpu.memory_space<vmem>>, vector<1x4x16xf32>
    %128 = vector.shape_cast %127 : vector<1x4x16xf32> to vector<4x16xf32>
    %129 = vector.shape_cast %126 : vector<4x16xf32> to vector<1x4x16xf32>
    tpu.vector_store %arg7[%c0_71, %c0_72, %c0_73], %129 {strides = array<i32>} : memref<1x4x16xf32, #tpu.memory_space<vmem>>, vector<1x4x16xf32>,
    return
  }
  func.func @transform_0(%arg0: i32) -> (i32, i32, i32) {
    %c0_i32 = arith.constant 0 : i32
    %c0_i32_0 = arith.constant 0 : i32
    %c0_i32_1 = arith.constant 0 : i32
    return %arg0, %c0_i32, %c0_i32_0 : i32, i32, i32
  }
  func.func @transform_1(%arg0: i32) -> (i32, i32) {
    %c0_i32 = arith.constant 0 : i32
    %c0_i32_0 = arith.constant 0 : i32
    %c0_i32_1 = arith.constant 0 : i32
    return %c0_i32, %c0_i32_0 : i32, i32
  }
  func.func @transform_2(%arg0: i32) -> (i32, i32) {
    %c0_i32 = arith.constant 0 : i32
    %c0_i32_0 = arith.constant 0 : i32
    %c0_i32_1 = arith.constant 0 : i32
    return %c0_i32, %c0_i32_0 : i32, i32
  }
  func.func @transform_3(%arg0: i32) -> (i32, i32, i32) {
    %c0_i32 = arith.constant 0 : i32
    %c0_i32_0 = arith.constant 0 : i32
    %c0_i32_1 = arith.constant 0 : i32
    %c0_i32_2 = arith.constant 0 : i32
    return %c0_i32, %c0_i32_0, %c0_i32_1 : i32, i32, i32
  }
  func.func @transform_4(%arg0: i32) -> (i32, i32) {
    %c0_i32 = arith.constant 0 : i32
    %c0_i32_0 = arith.constant 0 : i32
    %c0_i32_1 = arith.constant 0 : i32
    return %c0_i32, %c0_i32_0 : i32, i32
  }
  func.func @transform_5(%arg0: i32) -> (i32, i32, i32) {
    %c0_i32 = arith.constant 0 : i32
    %c0_i32_0 = arith.constant 0 : i32
    %c0_i32_1 = arith.constant 0 : i32
    return %arg0, %c0_i32, %c0_i32_0 : i32, i32, i32
  }
  func.func @transform_6(%arg0: i32) -> (i32, i32, i32) {
    %c0_i32 = arith.constant 0 : i32
    %c0_i32_0 = arith.constant 0 : i32
    %c0_i32_1 = arith.constant 0 : i32
    return %arg0, %c0_i32, %c0_i32_0 : i32, i32, i32
  }
}

module attributes {stable_mosaic.version = 11 : i64} {
  func.func @kernel(%arg0: i32, %arg1: memref<1x16x16xf32, #tpu.memory_space<vmem>>, %arg2: memref<1x16x16xf32, #tpu.memory_space<vmem>>, %arg3: memref<16x16xf32, #tpu.memory_space<vmem>>, %arg4: memref<1x16xf32, #tpu.memory_space<vmem>>, %arg5: memref<9x16x16xf32, #tpu.memory_space<vmem>>, %arg6: memref<1x16xf32, #tpu.memory_space<vmem>>, %arg7: memref<1x16x16xf32, #tpu.memory_space<vmem>>, %arg8: memref<1x16x16xf32, #tpu.memory_space<vmem>>, %arg9: memref<32x16xf32, #tpu.memory_space<vmem>>) attributes {dimension_semantics = [#tpu.dimension_semantics<parallel>], iteration_bounds = array<i64: 2>, scalar_prefetch = 0 : i64, scratch_operands = 1 : i64, tpu.core_type = #tpu.core_type<tc>, window_params = [{transform_indices = @transform_0, window_bounds = array<i64: 1, 16, 16>}, {transform_indices = @transform_1, window_bounds = array<i64: 1, 16, 16>}, {pipeline_mode = #tpu.pipeline_mode<synchronous>, transform_indices = @transform_2, window_bounds = array<i64: 16, 16>}, {pipeline_mode = #tpu.pipeline_mode<synchronous>, transform_indices = @transform_3, window_bounds = array<i64: 1, 16>}, {pipeline_mode = #tpu.pipeline_mode<synchronous>, transform_indices = @transform_4, window_bounds = array<i64: 9, 16, 16>}, {pipeline_mode = #tpu.pipeline_mode<synchronous>, transform_indices = @transform_5, window_bounds = array<i64: 1, 16>}, {transform_indices = @transform_6, window_bounds = array<i64: 1, 16, 16>}, {transform_indices = @transform_7, window_bounds = array<i64: 1, 16, 16>}]} {
    %c0 = arith.constant 0 : index
    %c0_0 = arith.constant 0 : index
    %c0_1 = arith.constant 0 : index
    %0 = vector.load %arg1[%c0, %c0_0, %c0_1] : memref<1x16x16xf32, #tpu.memory_space<vmem>>, vector<1x16x16xf32>
    %1 = vector.shape_cast %0 : vector<1x16x16xf32> to vector<16x16xf32>
    %2 = arith.truncf %1 : vector<16x16xf32> to vector<16x16xbf16>
    %c0_2 = arith.constant 0 : index
    %c0_3 = arith.constant 0 : index
    %3 = vector.load %arg3[%c0_2, %c0_3] : memref<16x16xf32, #tpu.memory_space<vmem>>, vector<16x16xf32>
    %4 = arith.truncf %3 : vector<16x16xf32> to vector<16x16xbf16>
    %cst = arith.constant dense<0.000000e+00> : vector<16x16xf32>
    %5 = tpu.matmul %2, %4, %cst {dimension_numbers = #tpu.dot_dimension_numbers<[1], [0], [0], [1], [0, 0, 1, 1], [], []>} : vector<16x16xbf16>, vector<16x16xbf16>, vector<16x16xf32> -> vector<16x16xf32>
    %c0_4 = arith.constant 0 : index
    %c0_5 = arith.constant 0 : index
    %6 = vector.load %arg4[%c0_4, %c0_5] : memref<1x16xf32, #tpu.memory_space<vmem>>, vector<1x16xf32>
    %7 = vector.broadcast %6 : vector<1x16xf32> to vector<16x16xf32>
    %8 = arith.addf %5, %7 : vector<16x16xf32>
    %c0_6 = arith.constant 0 : index
    %c0_7 = arith.constant 0 : index
    %c0_8 = arith.constant 0 : index
    %9 = vector.load %arg2[%c0_6, %c0_7, %c0_8] : memref<1x16x16xf32, #tpu.memory_space<vmem>>, vector<1x16x16xf32>
    %10 = vector.shape_cast %9 : vector<1x16x16xf32> to vector<16x16xf32>
    %11 = arith.addf %8, %10 : vector<16x16xf32>
    %c0_9 = arith.constant 0 : index
    %c0_10 = arith.constant 0 : index
    %c0_11 = arith.constant 0 : index
    %12 = vector.load %arg7[%c0_9, %c0_10, %c0_11] : memref<1x16x16xf32, #tpu.memory_space<vmem>>, vector<1x16x16xf32>
    %13 = vector.shape_cast %12 : vector<1x16x16xf32> to vector<16x16xf32>
    %14 = vector.shape_cast %11 : vector<16x16xf32> to vector<1x16x16xf32>
    tpu.vector_store %arg7[%c0_9, %c0_10, %c0_11], %14 {strides = array<i32>} : memref<1x16x16xf32, #tpu.memory_space<vmem>>, vector<1x16x16xf32>,
    %cst_12 = arith.constant 0.000000e+00 : f32
    %15 = vector.broadcast %cst_12 : f32 to vector<32x16xf32>
    %c0_13 = arith.constant 0 : index
    %c0_14 = arith.constant 0 : index
    %16 = vector.load %arg9[%c0_13, %c0_14] : memref<32x16xf32, #tpu.memory_space<vmem>>, vector<32x16xf32>
    tpu.vector_store %arg9[%c0_13, %c0_14], %15 {strides = array<i32>} : memref<32x16xf32, #tpu.memory_space<vmem>>, vector<32x16xf32>,
    %c8 = arith.constant 8 : index
    %c0_15 = arith.constant 0 : index
    %17 = vector.load %arg9[%c8, %c0_15] : memref<32x16xf32, #tpu.memory_space<vmem>>, vector<16x16xf32>
    tpu.vector_store %arg9[%c8, %c0_15], %11 {strides = array<i32>} : memref<32x16xf32, #tpu.memory_space<vmem>>, vector<16x16xf32>,
    %18 = tpu.iota {dimensions = array<i32: 0>} : vector<16x1xi32>
    %c4_i32 = arith.constant 4 : i32
    %c0_i32 = arith.constant 0 : i32
    %19 = arith.cmpi eq, %c4_i32, %c0_i32 : i32
    %c1_i32 = arith.constant 1 : i32
    %20 = arith.select %19, %c1_i32, %c4_i32 : i32
    %21 = vector.broadcast %20 : i32 to vector<16x1xi32>
    %22 = arith.remsi %18, %21 : vector<16x1xi32>
    %c0_i32_16 = arith.constant 0 : i32
    %23 = vector.broadcast %c0_i32_16 : i32 to vector<16x1xi32>
    %24 = arith.cmpi ne, %22, %23 : vector<16x1xi32>
    %c0_i32_17 = arith.constant 0 : i32
    %25 = vector.broadcast %c0_i32_17 : i32 to vector<16x1xi32>
    %26 = arith.cmpi slt, %22, %25 : vector<16x1xi32>
    %c0_i32_18 = arith.constant 0 : i32
    %27 = arith.cmpi slt, %20, %c0_i32_18 : i32
    %28 = vector.broadcast %27 : i1 to vector<16x1xi1>
    %29 = vector.broadcast %28 : vector<16x1xi1> to vector<16x1xi1>
    %30 = arith.xori %26, %29 : vector<16x1xi1>
    %31 = arith.andi %30, %24 : vector<16x1xi1>
    %32 = vector.broadcast %20 : i32 to vector<16x1xi32>
    %33 = arith.addi %22, %32 : vector<16x1xi32>
    %34 = arith.select %31, %33, %22 : vector<16x1xi1>, vector<16x1xi32>
    %c0_i32_19 = arith.constant 0 : i32
    %35 = vector.broadcast %c0_i32_19 : i32 to vector<16x1xi32>
    %36 = arith.cmpi ne, %34, %35 : vector<16x1xi32>
    %c3_i32 = arith.constant 3 : i32
    %37 = vector.broadcast %c3_i32 : i32 to vector<16x1xi32>
    %38 = arith.cmpi ne, %34, %37 : vector<16x1xi32>
    %cst_20 = arith.constant 0.000000e+00 : f32
    %39 = vector.broadcast %cst_20 : f32 to vector<16x16xf32>
    %c3 = arith.constant 3 : index
    %c0_21 = arith.constant 0 : index
    %40 = vector.load %arg9[%c3, %c0_21] : memref<32x16xf32, #tpu.memory_space<vmem>>, vector<16x16xf32>
    %41 = arith.truncf %40 : vector<16x16xf32> to vector<16x16xbf16>
    %c0_22 = arith.constant 0 : index
    %c0_23 = arith.constant 0 : index
    %c0_24 = arith.constant 0 : index
    %42 = vector.load %arg5[%c0_22, %c0_23, %c0_24] : memref<9x16x16xf32, #tpu.memory_space<vmem>>, vector<1x16x16xf32>
    %43 = vector.shape_cast %42 : vector<1x16x16xf32> to vector<16x16xf32>
    %44 = arith.truncf %43 : vector<16x16xf32> to vector<16x16xbf16>
    %cst_25 = arith.constant dense<0.000000e+00> : vector<16x16xf32>
    %45 = tpu.matmul %41, %44, %cst_25 {dimension_numbers = #tpu.dot_dimension_numbers<[1], [0], [0], [1], [0, 0, 1, 1], [], []>} : vector<16x16xbf16>, vector<16x16xbf16>, vector<16x16xf32> -> vector<16x16xf32>
    %cst_26 = arith.constant 0.000000e+00 : f32
    %46 = vector.shape_cast %36 : vector<16x1xi1> to vector<16x1xi1>
    %47 = vector.broadcast %46 : vector<16x1xi1> to vector<16x16xi1>
    %48 = vector.broadcast %cst_26 : f32 to vector<16x16xf32>
    %49 = arith.select %47, %45, %48 : vector<16x16xi1>, vector<16x16xf32>
    %50 = arith.addf %39, %49 : vector<16x16xf32>
    %c4 = arith.constant 4 : index
    %c0_27 = arith.constant 0 : index
    %51 = vector.load %arg9[%c4, %c0_27] : memref<32x16xf32, #tpu.memory_space<vmem>>, vector<16x16xf32>
    %52 = arith.truncf %51 : vector<16x16xf32> to vector<16x16xbf16>
    %c1 = arith.constant 1 : index
    %c0_28 = arith.constant 0 : index
    %c0_29 = arith.constant 0 : index
    %53 = vector.load %arg5[%c1, %c0_28, %c0_29] : memref<9x16x16xf32, #tpu.memory_space<vmem>>, vector<1x16x16xf32>
    %54 = vector.shape_cast %53 : vector<1x16x16xf32> to vector<16x16xf32>
    %55 = arith.truncf %54 : vector<16x16xf32> to vector<16x16xbf16>
    %cst_30 = arith.constant dense<0.000000e+00> : vector<16x16xf32>
    %56 = tpu.matmul %52, %55, %cst_30 {dimension_numbers = #tpu.dot_dimension_numbers<[1], [0], [0], [1], [0, 0, 1, 1], [], []>} : vector<16x16xbf16>, vector<16x16xbf16>, vector<16x16xf32> -> vector<16x16xf32>
    %57 = arith.addf %50, %56 : vector<16x16xf32>
    %c5 = arith.constant 5 : index
    %c0_31 = arith.constant 0 : index
    %58 = vector.load %arg9[%c5, %c0_31] : memref<32x16xf32, #tpu.memory_space<vmem>>, vector<16x16xf32>
    %59 = arith.truncf %58 : vector<16x16xf32> to vector<16x16xbf16>
    %c2 = arith.constant 2 : index
    %c0_32 = arith.constant 0 : index
    %c0_33 = arith.constant 0 : index
    %60 = vector.load %arg5[%c2, %c0_32, %c0_33] : memref<9x16x16xf32, #tpu.memory_space<vmem>>, vector<1x16x16xf32>
    %61 = vector.shape_cast %60 : vector<1x16x16xf32> to vector<16x16xf32>
    %62 = arith.truncf %61 : vector<16x16xf32> to vector<16x16xbf16>
    %cst_34 = arith.constant dense<0.000000e+00> : vector<16x16xf32>
    %63 = tpu.matmul %59, %62, %cst_34 {dimension_numbers = #tpu.dot_dimension_numbers<[1], [0], [0], [1], [0, 0, 1, 1], [], []>} : vector<16x16xbf16>, vector<16x16xbf16>, vector<16x16xf32> -> vector<16x16xf32>
    %cst_35 = arith.constant 0.000000e+00 : f32
    %64 = vector.shape_cast %38 : vector<16x1xi1> to vector<16x1xi1>
    %65 = vector.broadcast %64 : vector<16x1xi1> to vector<16x16xi1>
    %66 = vector.broadcast %cst_35 : f32 to vector<16x16xf32>
    %67 = arith.select %65, %63, %66 : vector<16x16xi1>, vector<16x16xf32>
    %68 = arith.addf %57, %67 : vector<16x16xf32>
    %c7 = arith.constant 7 : index
    %c0_36 = arith.constant 0 : index
    %69 = vector.load %arg9[%c7, %c0_36] : memref<32x16xf32, #tpu.memory_space<vmem>>, vector<16x16xf32>
    %70 = arith.truncf %69 : vector<16x16xf32> to vector<16x16xbf16>
    %c3_37 = arith.constant 3 : index
    %c0_38 = arith.constant 0 : index
    %c0_39 = arith.constant 0 : index
    %71 = vector.load %arg5[%c3_37, %c0_38, %c0_39] : memref<9x16x16xf32, #tpu.memory_space<vmem>>, vector<1x16x16xf32>
    %72 = vector.shape_cast %71 : vector<1x16x16xf32> to vector<16x16xf32>
    %73 = arith.truncf %72 : vector<16x16xf32> to vector<16x16xbf16>
    %cst_40 = arith.constant dense<0.000000e+00> : vector<16x16xf32>
    %74 = tpu.matmul %70, %73, %cst_40 {dimension_numbers = #tpu.dot_dimension_numbers<[1], [0], [0], [1], [0, 0, 1, 1], [], []>} : vector<16x16xbf16>, vector<16x16xbf16>, vector<16x16xf32> -> vector<16x16xf32>
    %cst_41 = arith.constant 0.000000e+00 : f32
    %75 = vector.shape_cast %36 : vector<16x1xi1> to vector<16x1xi1>
    %76 = vector.broadcast %75 : vector<16x1xi1> to vector<16x16xi1>
    %77 = vector.broadcast %cst_41 : f32 to vector<16x16xf32>
    %78 = arith.select %76, %74, %77 : vector<16x16xi1>, vector<16x16xf32>
    %79 = arith.addf %68, %78 : vector<16x16xf32>
    %c8_42 = arith.constant 8 : index
    %c0_43 = arith.constant 0 : index
    %80 = vector.load %arg9[%c8_42, %c0_43] : memref<32x16xf32, #tpu.memory_space<vmem>>, vector<16x16xf32>
    %81 = arith.truncf %80 : vector<16x16xf32> to vector<16x16xbf16>
    %c4_44 = arith.constant 4 : index
    %c0_45 = arith.constant 0 : index
    %c0_46 = arith.constant 0 : index
    %82 = vector.load %arg5[%c4_44, %c0_45, %c0_46] : memref<9x16x16xf32, #tpu.memory_space<vmem>>, vector<1x16x16xf32>
    %83 = vector.shape_cast %82 : vector<1x16x16xf32> to vector<16x16xf32>
    %84 = arith.truncf %83 : vector<16x16xf32> to vector<16x16xbf16>
    %cst_47 = arith.constant dense<0.000000e+00> : vector<16x16xf32>
    %85 = tpu.matmul %81, %84, %cst_47 {dimension_numbers = #tpu.dot_dimension_numbers<[1], [0], [0], [1], [0, 0, 1, 1], [], []>} : vector<16x16xbf16>, vector<16x16xbf16>, vector<16x16xf32> -> vector<16x16xf32>
    %86 = arith.addf %79, %85 : vector<16x16xf32>
    %c9 = arith.constant 9 : index
    %c0_48 = arith.constant 0 : index
    %87 = vector.load %arg9[%c9, %c0_48] : memref<32x16xf32, #tpu.memory_space<vmem>>, vector<16x16xf32>
    %88 = arith.truncf %87 : vector<16x16xf32> to vector<16x16xbf16>
    %c5_49 = arith.constant 5 : index
    %c0_50 = arith.constant 0 : index
    %c0_51 = arith.constant 0 : index
    %89 = vector.load %arg5[%c5_49, %c0_50, %c0_51] : memref<9x16x16xf32, #tpu.memory_space<vmem>>, vector<1x16x16xf32>
    %90 = vector.shape_cast %89 : vector<1x16x16xf32> to vector<16x16xf32>
    %91 = arith.truncf %90 : vector<16x16xf32> to vector<16x16xbf16>
    %cst_52 = arith.constant dense<0.000000e+00> : vector<16x16xf32>
    %92 = tpu.matmul %88, %91, %cst_52 {dimension_numbers = #tpu.dot_dimension_numbers<[1], [0], [0], [1], [0, 0, 1, 1], [], []>} : vector<16x16xbf16>, vector<16x16xbf16>, vector<16x16xf32> -> vector<16x16xf32>
    %cst_53 = arith.constant 0.000000e+00 : f32
    %93 = vector.shape_cast %38 : vector<16x1xi1> to vector<16x1xi1>
    %94 = vector.broadcast %93 : vector<16x1xi1> to vector<16x16xi1>
    %95 = vector.broadcast %cst_53 : f32 to vector<16x16xf32>
    %96 = arith.select %94, %92, %95 : vector<16x16xi1>, vector<16x16xf32>
    %97 = arith.addf %86, %96 : vector<16x16xf32>
    %c11 = arith.constant 11 : index
    %c0_54 = arith.constant 0 : index
    %98 = vector.load %arg9[%c11, %c0_54] : memref<32x16xf32, #tpu.memory_space<vmem>>, vector<16x16xf32>
    %99 = arith.truncf %98 : vector<16x16xf32> to vector<16x16xbf16>
    %c6 = arith.constant 6 : index
    %c0_55 = arith.constant 0 : index
    %c0_56 = arith.constant 0 : index
    %100 = vector.load %arg5[%c6, %c0_55, %c0_56] : memref<9x16x16xf32, #tpu.memory_space<vmem>>, vector<1x16x16xf32>
    %101 = vector.shape_cast %100 : vector<1x16x16xf32> to vector<16x16xf32>
    %102 = arith.truncf %101 : vector<16x16xf32> to vector<16x16xbf16>
    %cst_57 = arith.constant dense<0.000000e+00> : vector<16x16xf32>
    %103 = tpu.matmul %99, %102, %cst_57 {dimension_numbers = #tpu.dot_dimension_numbers<[1], [0], [0], [1], [0, 0, 1, 1], [], []>} : vector<16x16xbf16>, vector<16x16xbf16>, vector<16x16xf32> -> vector<16x16xf32>
    %cst_58 = arith.constant 0.000000e+00 : f32
    %104 = vector.shape_cast %36 : vector<16x1xi1> to vector<16x1xi1>
    %105 = vector.broadcast %104 : vector<16x1xi1> to vector<16x16xi1>
    %106 = vector.broadcast %cst_58 : f32 to vector<16x16xf32>
    %107 = arith.select %105, %103, %106 : vector<16x16xi1>, vector<16x16xf32>
    %108 = arith.addf %97, %107 : vector<16x16xf32>
    %c12 = arith.constant 12 : index
    %c0_59 = arith.constant 0 : index
    %109 = vector.load %arg9[%c12, %c0_59] : memref<32x16xf32, #tpu.memory_space<vmem>>, vector<16x16xf32>
    %110 = arith.truncf %109 : vector<16x16xf32> to vector<16x16xbf16>
    %c7_60 = arith.constant 7 : index
    %c0_61 = arith.constant 0 : index
    %c0_62 = arith.constant 0 : index
    %111 = vector.load %arg5[%c7_60, %c0_61, %c0_62] : memref<9x16x16xf32, #tpu.memory_space<vmem>>, vector<1x16x16xf32>
    %112 = vector.shape_cast %111 : vector<1x16x16xf32> to vector<16x16xf32>
    %113 = arith.truncf %112 : vector<16x16xf32> to vector<16x16xbf16>
    %cst_63 = arith.constant dense<0.000000e+00> : vector<16x16xf32>
    %114 = tpu.matmul %110, %113, %cst_63 {dimension_numbers = #tpu.dot_dimension_numbers<[1], [0], [0], [1], [0, 0, 1, 1], [], []>} : vector<16x16xbf16>, vector<16x16xbf16>, vector<16x16xf32> -> vector<16x16xf32>
    %115 = arith.addf %108, %114 : vector<16x16xf32>
    %c13 = arith.constant 13 : index
    %c0_64 = arith.constant 0 : index
    %116 = vector.load %arg9[%c13, %c0_64] : memref<32x16xf32, #tpu.memory_space<vmem>>, vector<16x16xf32>
    %117 = arith.truncf %116 : vector<16x16xf32> to vector<16x16xbf16>
    %c8_65 = arith.constant 8 : index
    %c0_66 = arith.constant 0 : index
    %c0_67 = arith.constant 0 : index
    %118 = vector.load %arg5[%c8_65, %c0_66, %c0_67] : memref<9x16x16xf32, #tpu.memory_space<vmem>>, vector<1x16x16xf32>
    %119 = vector.shape_cast %118 : vector<1x16x16xf32> to vector<16x16xf32>
    %120 = arith.truncf %119 : vector<16x16xf32> to vector<16x16xbf16>
    %cst_68 = arith.constant dense<0.000000e+00> : vector<16x16xf32>
    %121 = tpu.matmul %117, %120, %cst_68 {dimension_numbers = #tpu.dot_dimension_numbers<[1], [0], [0], [1], [0, 0, 1, 1], [], []>} : vector<16x16xbf16>, vector<16x16xbf16>, vector<16x16xf32> -> vector<16x16xf32>
    %cst_69 = arith.constant 0.000000e+00 : f32
    %122 = vector.shape_cast %38 : vector<16x1xi1> to vector<16x1xi1>
    %123 = vector.broadcast %122 : vector<16x1xi1> to vector<16x16xi1>
    %124 = vector.broadcast %cst_69 : f32 to vector<16x16xf32>
    %125 = arith.select %123, %121, %124 : vector<16x16xi1>, vector<16x16xf32>
    %126 = arith.addf %115, %125 : vector<16x16xf32>
    %c0_70 = arith.constant 0 : index
    %c0_71 = arith.constant 0 : index
    %127 = vector.load %arg6[%c0_70, %c0_71] : memref<1x16xf32, #tpu.memory_space<vmem>>, vector<1x16xf32>
    %128 = vector.broadcast %127 : vector<1x16xf32> to vector<16x16xf32>
    %129 = arith.addf %126, %128 : vector<16x16xf32>
    %c0_72 = arith.constant 0 : index
    %c0_73 = arith.constant 0 : index
    %c0_74 = arith.constant 0 : index
    %130 = vector.load %arg8[%c0_72, %c0_73, %c0_74] : memref<1x16x16xf32, #tpu.memory_space<vmem>>, vector<1x16x16xf32>
    %131 = vector.shape_cast %130 : vector<1x16x16xf32> to vector<16x16xf32>
    %132 = vector.shape_cast %129 : vector<16x16xf32> to vector<1x16x16xf32>
    tpu.vector_store %arg8[%c0_72, %c0_73, %c0_74], %132 {strides = array<i32>} : memref<1x16x16xf32, #tpu.memory_space<vmem>>, vector<1x16x16xf32>,
    return
  }
  func.func @transform_0(%arg0: i32) -> (i32, i32, i32) {
    %c0_i32 = arith.constant 0 : i32
    %c0_i32_0 = arith.constant 0 : i32
    %c0_i32_1 = arith.constant 0 : i32
    return %arg0, %c0_i32, %c0_i32_0 : i32, i32, i32
  }
  func.func @transform_1(%arg0: i32) -> (i32, i32, i32) {
    %c0_i32 = arith.constant 0 : i32
    %c0_i32_0 = arith.constant 0 : i32
    %c0_i32_1 = arith.constant 0 : i32
    return %arg0, %c0_i32, %c0_i32_0 : i32, i32, i32
  }
  func.func @transform_2(%arg0: i32) -> (i32, i32) {
    %c0_i32 = arith.constant 0 : i32
    %c0_i32_0 = arith.constant 0 : i32
    %c0_i32_1 = arith.constant 0 : i32
    return %c0_i32, %c0_i32_0 : i32, i32
  }
  func.func @transform_3(%arg0: i32) -> (i32, i32) {
    %c0_i32 = arith.constant 0 : i32
    %c0_i32_0 = arith.constant 0 : i32
    %c0_i32_1 = arith.constant 0 : i32
    return %c0_i32, %c0_i32_0 : i32, i32
  }
  func.func @transform_4(%arg0: i32) -> (i32, i32, i32) {
    %c0_i32 = arith.constant 0 : i32
    %c0_i32_0 = arith.constant 0 : i32
    %c0_i32_1 = arith.constant 0 : i32
    %c0_i32_2 = arith.constant 0 : i32
    return %c0_i32, %c0_i32_0, %c0_i32_1 : i32, i32, i32
  }
  func.func @transform_5(%arg0: i32) -> (i32, i32) {
    %c0_i32 = arith.constant 0 : i32
    %c0_i32_0 = arith.constant 0 : i32
    %c0_i32_1 = arith.constant 0 : i32
    return %c0_i32, %c0_i32_0 : i32, i32
  }
  func.func @transform_6(%arg0: i32) -> (i32, i32, i32) {
    %c0_i32 = arith.constant 0 : i32
    %c0_i32_0 = arith.constant 0 : i32
    %c0_i32_1 = arith.constant 0 : i32
    return %arg0, %c0_i32, %c0_i32_0 : i32, i32, i32
  }
  func.func @transform_7(%arg0: i32) -> (i32, i32, i32) {
    %c0_i32 = arith.constant 0 : i32
    %c0_i32_0 = arith.constant 0 : i32
    %c0_i32_1 = arith.constant 0 : i32
    return %arg0, %c0_i32, %c0_i32_0 : i32, i32, i32
  }
}

module attributes {stable_mosaic.version = 11 : i64} {
  func.func @kernel(%arg0: i32, %arg1: memref<1x64x8xf32, #tpu.memory_space<vmem>>, %arg2: memref<1x64x16xf32, #tpu.memory_space<vmem>>, %arg3: memref<1x64x1xf32, #tpu.memory_space<vmem>>, %arg4: memref<8x16xf32, #tpu.memory_space<vmem>>, %arg5: memref<1x16xf32, #tpu.memory_space<vmem>>, %arg6: memref<9x16x16xf32, #tpu.memory_space<vmem>>, %arg7: memref<1x16xf32, #tpu.memory_space<vmem>>, %arg8: memref<1x64x16xf32, #tpu.memory_space<vmem>>, %arg9: memref<1x64x16xf32, #tpu.memory_space<vmem>>, %arg10: memref<96x16xf32, #tpu.memory_space<vmem>>) attributes {dimension_semantics = [#tpu.dimension_semantics<parallel>], iteration_bounds = array<i64: 2>, scalar_prefetch = 0 : i64, scratch_operands = 1 : i64, tpu.core_type = #tpu.core_type<tc>, window_params = [{transform_indices = @transform_0, window_bounds = array<i64: 1, 64, 8>}, {transform_indices = @transform_1, window_bounds = array<i64: 1, 64, 16>}, {transform_indices = @transform_2, window_bounds = array<i64: 1, 64, 1>}, {pipeline_mode = #tpu.pipeline_mode<synchronous>, transform_indices = @transform_3, window_bounds = array<i64: 8, 16>}, {pipeline_mode = #tpu.pipeline_mode<synchronous>, transform_indices = @transform_4, window_bounds = array<i64: 1, 16>}, {pipeline_mode = #tpu.pipeline_mode<synchronous>, transform_indices = @transform_5, window_bounds = array<i64: 9, 16, 16>}, {pipeline_mode = #tpu.pipeline_mode<synchronous>, transform_indices = @transform_6, window_bounds = array<i64: 1, 16>}, {transform_indices = @transform_7, window_bounds = array<i64: 1, 64, 16>}, {transform_indices = @transform_8, window_bounds = array<i64: 1, 64, 16>}]} {
    %c0 = arith.constant 0 : index
    %c0_0 = arith.constant 0 : index
    %c0_1 = arith.constant 0 : index
    %0 = vector.load %arg1[%c0, %c0_0, %c0_1] : memref<1x64x8xf32, #tpu.memory_space<vmem>>, vector<1x64x8xf32>
    %1 = vector.shape_cast %0 : vector<1x64x8xf32> to vector<64x8xf32>
    %2 = arith.truncf %1 : vector<64x8xf32> to vector<64x8xbf16>
    %c0_2 = arith.constant 0 : index
    %c0_3 = arith.constant 0 : index
    %3 = vector.load %arg4[%c0_2, %c0_3] : memref<8x16xf32, #tpu.memory_space<vmem>>, vector<8x16xf32>
    %4 = arith.truncf %3 : vector<8x16xf32> to vector<8x16xbf16>
    %cst = arith.constant dense<0.000000e+00> : vector<64x16xf32>
    %5 = tpu.matmul %2, %4, %cst {dimension_numbers = #tpu.dot_dimension_numbers<[1], [0], [0], [1], [0, 0, 1, 1], [], []>} : vector<64x8xbf16>, vector<8x16xbf16>, vector<64x16xf32> -> vector<64x16xf32>
    %c0_4 = arith.constant 0 : index
    %c0_5 = arith.constant 0 : index
    %6 = vector.load %arg5[%c0_4, %c0_5] : memref<1x16xf32, #tpu.memory_space<vmem>>, vector<1x16xf32>
    %7 = vector.broadcast %6 : vector<1x16xf32> to vector<64x16xf32>
    %8 = arith.addf %5, %7 : vector<64x16xf32>
    %c0_6 = arith.constant 0 : index
    %c0_7 = arith.constant 0 : index
    %c0_8 = arith.constant 0 : index
    %9 = vector.load %arg2[%c0_6, %c0_7, %c0_8] : memref<1x64x16xf32, #tpu.memory_space<vmem>>, vector<1x64x16xf32>
    %10 = vector.shape_cast %9 : vector<1x64x16xf32> to vector<64x16xf32>
    %11 = arith.addf %8, %10 : vector<64x16xf32>
    %c0_9 = arith.constant 0 : index
    %c0_10 = arith.constant 0 : index
    %c0_11 = arith.constant 0 : index
    %12 = vector.load %arg8[%c0_9, %c0_10, %c0_11] : memref<1x64x16xf32, #tpu.memory_space<vmem>>, vector<1x64x16xf32>
    %13 = vector.shape_cast %12 : vector<1x64x16xf32> to vector<64x16xf32>
    %14 = vector.shape_cast %11 : vector<64x16xf32> to vector<1x64x16xf32>
    tpu.vector_store %arg8[%c0_9, %c0_10, %c0_11], %14 {strides = array<i32>} : memref<1x64x16xf32, #tpu.memory_space<vmem>>, vector<1x64x16xf32>,
    %c0_12 = arith.constant 0 : index
    %c0_13 = arith.constant 0 : index
    %c0_14 = arith.constant 0 : index
    %15 = vector.load %arg3[%c0_12, %c0_13, %c0_14] : memref<1x64x1xf32, #tpu.memory_space<vmem>>, vector<1x64x1xf32>
    %16 = vector.shape_cast %15 : vector<1x64x1xf32> to vector<64x1xf32>
    %cst_15 = arith.constant 0.000000e+00 : f32
    %17 = vector.broadcast %cst_15 : f32 to vector<64x1xf32>
    %18 = arith.cmpf oeq, %16, %17 : vector<64x1xf32>
    %cst_16 = arith.constant 5.000000e-01 : f32
    %19 = vector.broadcast %cst_16 : f32 to vector<64x1xf32>
    %20 = arith.select %18, %19, %16 : vector<64x1xi1>, vector<64x1xf32>
    %21 = vector.broadcast %20 : vector<64x1xf32> to vector<64x16xf32>
    %22 = arith.mulf %11, %21 : vector<64x16xf32>
    %cst_17 = arith.constant 0.000000e+00 : f32
    %23 = vector.broadcast %cst_17 : f32 to vector<96x16xf32>
    %c0_18 = arith.constant 0 : index
    %c0_19 = arith.constant 0 : index
    %24 = vector.load %arg10[%c0_18, %c0_19] : memref<96x16xf32, #tpu.memory_space<vmem>>, vector<96x16xf32>
    tpu.vector_store %arg10[%c0_18, %c0_19], %23 {strides = array<i32>} : memref<96x16xf32, #tpu.memory_space<vmem>>, vector<96x16xf32>,
    %c16 = arith.constant 16 : index
    %c0_20 = arith.constant 0 : index
    %25 = vector.load %arg10[%c16, %c0_20] : memref<96x16xf32, #tpu.memory_space<vmem>>, vector<64x16xf32>
    tpu.vector_store %arg10[%c16, %c0_20], %22 {strides = array<i32>} : memref<96x16xf32, #tpu.memory_space<vmem>>, vector<64x16xf32>,
    %26 = tpu.iota {dimensions = array<i32: 0>} : vector<64x1xi32>
    %c8_i32 = arith.constant 8 : i32
    %c0_i32 = arith.constant 0 : i32
    %27 = arith.cmpi eq, %c8_i32, %c0_i32 : i32
    %c1_i32 = arith.constant 1 : i32
    %28 = arith.select %27, %c1_i32, %c8_i32 : i32
    %29 = vector.broadcast %28 : i32 to vector<64x1xi32>
    %30 = arith.remsi %26, %29 : vector<64x1xi32>
    %c0_i32_21 = arith.constant 0 : i32
    %31 = vector.broadcast %c0_i32_21 : i32 to vector<64x1xi32>
    %32 = arith.cmpi ne, %30, %31 : vector<64x1xi32>
    %c0_i32_22 = arith.constant 0 : i32
    %33 = vector.broadcast %c0_i32_22 : i32 to vector<64x1xi32>
    %34 = arith.cmpi slt, %30, %33 : vector<64x1xi32>
    %c0_i32_23 = arith.constant 0 : i32
    %35 = arith.cmpi slt, %28, %c0_i32_23 : i32
    %36 = vector.broadcast %35 : i1 to vector<64x1xi1>
    %37 = vector.broadcast %36 : vector<64x1xi1> to vector<64x1xi1>
    %38 = arith.xori %34, %37 : vector<64x1xi1>
    %39 = arith.andi %38, %32 : vector<64x1xi1>
    %40 = vector.broadcast %28 : i32 to vector<64x1xi32>
    %41 = arith.addi %30, %40 : vector<64x1xi32>
    %42 = arith.select %39, %41, %30 : vector<64x1xi1>, vector<64x1xi32>
    %c0_i32_24 = arith.constant 0 : i32
    %43 = vector.broadcast %c0_i32_24 : i32 to vector<64x1xi32>
    %44 = arith.cmpi ne, %42, %43 : vector<64x1xi32>
    %c7_i32 = arith.constant 7 : i32
    %45 = vector.broadcast %c7_i32 : i32 to vector<64x1xi32>
    %46 = arith.cmpi ne, %42, %45 : vector<64x1xi32>
    %cst_25 = arith.constant 0.000000e+00 : f32
    %47 = vector.broadcast %cst_25 : f32 to vector<64x16xf32>
    %c7 = arith.constant 7 : index
    %c0_26 = arith.constant 0 : index
    %48 = vector.load %arg10[%c7, %c0_26] : memref<96x16xf32, #tpu.memory_space<vmem>>, vector<64x16xf32>
    %49 = arith.truncf %48 : vector<64x16xf32> to vector<64x16xbf16>
    %c0_27 = arith.constant 0 : index
    %c0_28 = arith.constant 0 : index
    %c0_29 = arith.constant 0 : index
    %50 = vector.load %arg6[%c0_27, %c0_28, %c0_29] : memref<9x16x16xf32, #tpu.memory_space<vmem>>, vector<1x16x16xf32>
    %51 = vector.shape_cast %50 : vector<1x16x16xf32> to vector<16x16xf32>
    %52 = arith.truncf %51 : vector<16x16xf32> to vector<16x16xbf16>
    %cst_30 = arith.constant dense<0.000000e+00> : vector<64x16xf32>
    %53 = tpu.matmul %49, %52, %cst_30 {dimension_numbers = #tpu.dot_dimension_numbers<[1], [0], [0], [1], [0, 0, 1, 1], [], []>} : vector<64x16xbf16>, vector<16x16xbf16>, vector<64x16xf32> -> vector<64x16xf32>
    %cst_31 = arith.constant 0.000000e+00 : f32
    %54 = vector.shape_cast %44 : vector<64x1xi1> to vector<64x1xi1>
    %55 = vector.broadcast %54 : vector<64x1xi1> to vector<64x16xi1>
    %56 = vector.broadcast %cst_31 : f32 to vector<64x16xf32>
    %57 = arith.select %55, %53, %56 : vector<64x16xi1>, vector<64x16xf32>
    %58 = arith.addf %47, %57 : vector<64x16xf32>
    %c8 = arith.constant 8 : index
    %c0_32 = arith.constant 0 : index
    %59 = vector.load %arg10[%c8, %c0_32] : memref<96x16xf32, #tpu.memory_space<vmem>>, vector<64x16xf32>
    %60 = arith.truncf %59 : vector<64x16xf32> to vector<64x16xbf16>
    %c1 = arith.constant 1 : index
    %c0_33 = arith.constant 0 : index
    %c0_34 = arith.constant 0 : index
    %61 = vector.load %arg6[%c1, %c0_33, %c0_34] : memref<9x16x16xf32, #tpu.memory_space<vmem>>, vector<1x16x16xf32>
    %62 = vector.shape_cast %61 : vector<1x16x16xf32> to vector<16x16xf32>
    %63 = arith.truncf %62 : vector<16x16xf32> to vector<16x16xbf16>
    %cst_35 = arith.constant dense<0.000000e+00> : vector<64x16xf32>
    %64 = tpu.matmul %60, %63, %cst_35 {dimension_numbers = #tpu.dot_dimension_numbers<[1], [0], [0], [1], [0, 0, 1, 1], [], []>} : vector<64x16xbf16>, vector<16x16xbf16>, vector<64x16xf32> -> vector<64x16xf32>
    %65 = arith.addf %58, %64 : vector<64x16xf32>
    %c9 = arith.constant 9 : index
    %c0_36 = arith.constant 0 : index
    %66 = vector.load %arg10[%c9, %c0_36] : memref<96x16xf32, #tpu.memory_space<vmem>>, vector<64x16xf32>
    %67 = arith.truncf %66 : vector<64x16xf32> to vector<64x16xbf16>
    %c2 = arith.constant 2 : index
    %c0_37 = arith.constant 0 : index
    %c0_38 = arith.constant 0 : index
    %68 = vector.load %arg6[%c2, %c0_37, %c0_38] : memref<9x16x16xf32, #tpu.memory_space<vmem>>, vector<1x16x16xf32>
    %69 = vector.shape_cast %68 : vector<1x16x16xf32> to vector<16x16xf32>
    %70 = arith.truncf %69 : vector<16x16xf32> to vector<16x16xbf16>
    %cst_39 = arith.constant dense<0.000000e+00> : vector<64x16xf32>
    %71 = tpu.matmul %67, %70, %cst_39 {dimension_numbers = #tpu.dot_dimension_numbers<[1], [0], [0], [1], [0, 0, 1, 1], [], []>} : vector<64x16xbf16>, vector<16x16xbf16>, vector<64x16xf32> -> vector<64x16xf32>
    %cst_40 = arith.constant 0.000000e+00 : f32
    %72 = vector.shape_cast %46 : vector<64x1xi1> to vector<64x1xi1>
    %73 = vector.broadcast %72 : vector<64x1xi1> to vector<64x16xi1>
    %74 = vector.broadcast %cst_40 : f32 to vector<64x16xf32>
    %75 = arith.select %73, %71, %74 : vector<64x16xi1>, vector<64x16xf32>
    %76 = arith.addf %65, %75 : vector<64x16xf32>
    %c15 = arith.constant 15 : index
    %c0_41 = arith.constant 0 : index
    %77 = vector.load %arg10[%c15, %c0_41] : memref<96x16xf32, #tpu.memory_space<vmem>>, vector<64x16xf32>
    %78 = arith.truncf %77 : vector<64x16xf32> to vector<64x16xbf16>
    %c3 = arith.constant 3 : index
    %c0_42 = arith.constant 0 : index
    %c0_43 = arith.constant 0 : index
    %79 = vector.load %arg6[%c3, %c0_42, %c0_43] : memref<9x16x16xf32, #tpu.memory_space<vmem>>, vector<1x16x16xf32>
    %80 = vector.shape_cast %79 : vector<1x16x16xf32> to vector<16x16xf32>
    %81 = arith.truncf %80 : vector<16x16xf32> to vector<16x16xbf16>
    %cst_44 = arith.constant dense<0.000000e+00> : vector<64x16xf32>
    %82 = tpu.matmul %78, %81, %cst_44 {dimension_numbers = #tpu.dot_dimension_numbers<[1], [0], [0], [1], [0, 0, 1, 1], [], []>} : vector<64x16xbf16>, vector<16x16xbf16>, vector<64x16xf32> -> vector<64x16xf32>
    %cst_45 = arith.constant 0.000000e+00 : f32
    %83 = vector.shape_cast %44 : vector<64x1xi1> to vector<64x1xi1>
    %84 = vector.broadcast %83 : vector<64x1xi1> to vector<64x16xi1>
    %85 = vector.broadcast %cst_45 : f32 to vector<64x16xf32>
    %86 = arith.select %84, %82, %85 : vector<64x16xi1>, vector<64x16xf32>
    %87 = arith.addf %76, %86 : vector<64x16xf32>
    %c16_46 = arith.constant 16 : index
    %c0_47 = arith.constant 0 : index
    %88 = vector.load %arg10[%c16_46, %c0_47] : memref<96x16xf32, #tpu.memory_space<vmem>>, vector<64x16xf32>
    %89 = arith.truncf %88 : vector<64x16xf32> to vector<64x16xbf16>
    %c4 = arith.constant 4 : index
    %c0_48 = arith.constant 0 : index
    %c0_49 = arith.constant 0 : index
    %90 = vector.load %arg6[%c4, %c0_48, %c0_49] : memref<9x16x16xf32, #tpu.memory_space<vmem>>, vector<1x16x16xf32>
    %91 = vector.shape_cast %90 : vector<1x16x16xf32> to vector<16x16xf32>
    %92 = arith.truncf %91 : vector<16x16xf32> to vector<16x16xbf16>
    %cst_50 = arith.constant dense<0.000000e+00> : vector<64x16xf32>
    %93 = tpu.matmul %89, %92, %cst_50 {dimension_numbers = #tpu.dot_dimension_numbers<[1], [0], [0], [1], [0, 0, 1, 1], [], []>} : vector<64x16xbf16>, vector<16x16xbf16>, vector<64x16xf32> -> vector<64x16xf32>
    %94 = arith.addf %87, %93 : vector<64x16xf32>
    %c17 = arith.constant 17 : index
    %c0_51 = arith.constant 0 : index
    %95 = vector.load %arg10[%c17, %c0_51] : memref<96x16xf32, #tpu.memory_space<vmem>>, vector<64x16xf32>
    %96 = arith.truncf %95 : vector<64x16xf32> to vector<64x16xbf16>
    %c5 = arith.constant 5 : index
    %c0_52 = arith.constant 0 : index
    %c0_53 = arith.constant 0 : index
    %97 = vector.load %arg6[%c5, %c0_52, %c0_53] : memref<9x16x16xf32, #tpu.memory_space<vmem>>, vector<1x16x16xf32>
    %98 = vector.shape_cast %97 : vector<1x16x16xf32> to vector<16x16xf32>
    %99 = arith.truncf %98 : vector<16x16xf32> to vector<16x16xbf16>
    %cst_54 = arith.constant dense<0.000000e+00> : vector<64x16xf32>
    %100 = tpu.matmul %96, %99, %cst_54 {dimension_numbers = #tpu.dot_dimension_numbers<[1], [0], [0], [1], [0, 0, 1, 1], [], []>} : vector<64x16xbf16>, vector<16x16xbf16>, vector<64x16xf32> -> vector<64x16xf32>
    %cst_55 = arith.constant 0.000000e+00 : f32
    %101 = vector.shape_cast %46 : vector<64x1xi1> to vector<64x1xi1>
    %102 = vector.broadcast %101 : vector<64x1xi1> to vector<64x16xi1>
    %103 = vector.broadcast %cst_55 : f32 to vector<64x16xf32>
    %104 = arith.select %102, %100, %103 : vector<64x16xi1>, vector<64x16xf32>
    %105 = arith.addf %94, %104 : vector<64x16xf32>
    %c23 = arith.constant 23 : index
    %c0_56 = arith.constant 0 : index
    %106 = vector.load %arg10[%c23, %c0_56] : memref<96x16xf32, #tpu.memory_space<vmem>>, vector<64x16xf32>
    %107 = arith.truncf %106 : vector<64x16xf32> to vector<64x16xbf16>
    %c6 = arith.constant 6 : index
    %c0_57 = arith.constant 0 : index
    %c0_58 = arith.constant 0 : index
    %108 = vector.load %arg6[%c6, %c0_57, %c0_58] : memref<9x16x16xf32, #tpu.memory_space<vmem>>, vector<1x16x16xf32>
    %109 = vector.shape_cast %108 : vector<1x16x16xf32> to vector<16x16xf32>
    %110 = arith.truncf %109 : vector<16x16xf32> to vector<16x16xbf16>
    %cst_59 = arith.constant dense<0.000000e+00> : vector<64x16xf32>
    %111 = tpu.matmul %107, %110, %cst_59 {dimension_numbers = #tpu.dot_dimension_numbers<[1], [0], [0], [1], [0, 0, 1, 1], [], []>} : vector<64x16xbf16>, vector<16x16xbf16>, vector<64x16xf32> -> vector<64x16xf32>
    %cst_60 = arith.constant 0.000000e+00 : f32
    %112 = vector.shape_cast %44 : vector<64x1xi1> to vector<64x1xi1>
    %113 = vector.broadcast %112 : vector<64x1xi1> to vector<64x16xi1>
    %114 = vector.broadcast %cst_60 : f32 to vector<64x16xf32>
    %115 = arith.select %113, %111, %114 : vector<64x16xi1>, vector<64x16xf32>
    %116 = arith.addf %105, %115 : vector<64x16xf32>
    %c24 = arith.constant 24 : index
    %c0_61 = arith.constant 0 : index
    %117 = vector.load %arg10[%c24, %c0_61] : memref<96x16xf32, #tpu.memory_space<vmem>>, vector<64x16xf32>
    %118 = arith.truncf %117 : vector<64x16xf32> to vector<64x16xbf16>
    %c7_62 = arith.constant 7 : index
    %c0_63 = arith.constant 0 : index
    %c0_64 = arith.constant 0 : index
    %119 = vector.load %arg6[%c7_62, %c0_63, %c0_64] : memref<9x16x16xf32, #tpu.memory_space<vmem>>, vector<1x16x16xf32>
    %120 = vector.shape_cast %119 : vector<1x16x16xf32> to vector<16x16xf32>
    %121 = arith.truncf %120 : vector<16x16xf32> to vector<16x16xbf16>
    %cst_65 = arith.constant dense<0.000000e+00> : vector<64x16xf32>
    %122 = tpu.matmul %118, %121, %cst_65 {dimension_numbers = #tpu.dot_dimension_numbers<[1], [0], [0], [1], [0, 0, 1, 1], [], []>} : vector<64x16xbf16>, vector<16x16xbf16>, vector<64x16xf32> -> vector<64x16xf32>
    %123 = arith.addf %116, %122 : vector<64x16xf32>
    %c25 = arith.constant 25 : index
    %c0_66 = arith.constant 0 : index
    %124 = vector.load %arg10[%c25, %c0_66] : memref<96x16xf32, #tpu.memory_space<vmem>>, vector<64x16xf32>
    %125 = arith.truncf %124 : vector<64x16xf32> to vector<64x16xbf16>
    %c8_67 = arith.constant 8 : index
    %c0_68 = arith.constant 0 : index
    %c0_69 = arith.constant 0 : index
    %126 = vector.load %arg6[%c8_67, %c0_68, %c0_69] : memref<9x16x16xf32, #tpu.memory_space<vmem>>, vector<1x16x16xf32>
    %127 = vector.shape_cast %126 : vector<1x16x16xf32> to vector<16x16xf32>
    %128 = arith.truncf %127 : vector<16x16xf32> to vector<16x16xbf16>
    %cst_70 = arith.constant dense<0.000000e+00> : vector<64x16xf32>
    %129 = tpu.matmul %125, %128, %cst_70 {dimension_numbers = #tpu.dot_dimension_numbers<[1], [0], [0], [1], [0, 0, 1, 1], [], []>} : vector<64x16xbf16>, vector<16x16xbf16>, vector<64x16xf32> -> vector<64x16xf32>
    %cst_71 = arith.constant 0.000000e+00 : f32
    %130 = vector.shape_cast %46 : vector<64x1xi1> to vector<64x1xi1>
    %131 = vector.broadcast %130 : vector<64x1xi1> to vector<64x16xi1>
    %132 = vector.broadcast %cst_71 : f32 to vector<64x16xf32>
    %133 = arith.select %131, %129, %132 : vector<64x16xi1>, vector<64x16xf32>
    %134 = arith.addf %123, %133 : vector<64x16xf32>
    %c0_72 = arith.constant 0 : index
    %c0_73 = arith.constant 0 : index
    %135 = vector.load %arg7[%c0_72, %c0_73] : memref<1x16xf32, #tpu.memory_space<vmem>>, vector<1x16xf32>
    %136 = vector.broadcast %135 : vector<1x16xf32> to vector<64x16xf32>
    %137 = arith.addf %134, %136 : vector<64x16xf32>
    %c0_74 = arith.constant 0 : index
    %c0_75 = arith.constant 0 : index
    %c0_76 = arith.constant 0 : index
    %138 = vector.load %arg9[%c0_74, %c0_75, %c0_76] : memref<1x64x16xf32, #tpu.memory_space<vmem>>, vector<1x64x16xf32>
    %139 = vector.shape_cast %138 : vector<1x64x16xf32> to vector<64x16xf32>
    %140 = vector.shape_cast %137 : vector<64x16xf32> to vector<1x64x16xf32>
    tpu.vector_store %arg9[%c0_74, %c0_75, %c0_76], %140 {strides = array<i32>} : memref<1x64x16xf32, #tpu.memory_space<vmem>>, vector<1x64x16xf32>,
    return
  }
  func.func @transform_0(%arg0: i32) -> (i32, i32, i32) {
    %c0_i32 = arith.constant 0 : i32
    %c0_i32_0 = arith.constant 0 : i32
    %c0_i32_1 = arith.constant 0 : i32
    return %arg0, %c0_i32, %c0_i32_0 : i32, i32, i32
  }
  func.func @transform_1(%arg0: i32) -> (i32, i32, i32) {
    %c0_i32 = arith.constant 0 : i32
    %c0_i32_0 = arith.constant 0 : i32
    %c0_i32_1 = arith.constant 0 : i32
    return %arg0, %c0_i32, %c0_i32_0 : i32, i32, i32
  }
  func.func @transform_2(%arg0: i32) -> (i32, i32, i32) {
    %c0_i32 = arith.constant 0 : i32
    %c0_i32_0 = arith.constant 0 : i32
    %c0_i32_1 = arith.constant 0 : i32
    return %arg0, %c0_i32, %c0_i32_0 : i32, i32, i32
  }
  func.func @transform_3(%arg0: i32) -> (i32, i32) {
    %c0_i32 = arith.constant 0 : i32
    %c0_i32_0 = arith.constant 0 : i32
    %c0_i32_1 = arith.constant 0 : i32
    return %c0_i32, %c0_i32_0 : i32, i32
  }
  func.func @transform_4(%arg0: i32) -> (i32, i32) {
    %c0_i32 = arith.constant 0 : i32
    %c0_i32_0 = arith.constant 0 : i32
    %c0_i32_1 = arith.constant 0 : i32
    return %c0_i32, %c0_i32_0 : i32, i32
  }
  func.func @transform_5(%arg0: i32) -> (i32, i32, i32) {
    %c0_i32 = arith.constant 0 : i32
    %c0_i32_0 = arith.constant 0 : i32
    %c0_i32_1 = arith.constant 0 : i32
    %c0_i32_2 = arith.constant 0 : i32
    return %c0_i32, %c0_i32_0, %c0_i32_1 : i32, i32, i32
  }
  func.func @transform_6(%arg0: i32) -> (i32, i32) {
    %c0_i32 = arith.constant 0 : i32
    %c0_i32_0 = arith.constant 0 : i32
    %c0_i32_1 = arith.constant 0 : i32
    return %c0_i32, %c0_i32_0 : i32, i32
  }
  func.func @transform_7(%arg0: i32) -> (i32, i32, i32) {
    %c0_i32 = arith.constant 0 : i32
    %c0_i32_0 = arith.constant 0 : i32
    %c0_i32_1 = arith.constant 0 : i32
    return %arg0, %c0_i32, %c0_i32_0 : i32, i32, i32
  }
  func.func @transform_8(%arg0: i32) -> (i32, i32, i32) {
    %c0_i32 = arith.constant 0 : i32
    %c0_i32_0 = arith.constant 0 : i32
    %c0_i32_1 = arith.constant 0 : i32
    return %arg0, %c0_i32, %c0_i32_0 : i32, i32, i32
  }
}

module attributes {stable_mosaic.version = 11 : i64} {
  func.func @kernel(%arg0: i32, %arg1: memref<1x256x4xf32, #tpu.memory_space<vmem>>, %arg2: memref<1x256x16xf32, #tpu.memory_space<vmem>>, %arg3: memref<1x256x1xf32, #tpu.memory_space<vmem>>, %arg4: memref<4x16xf32, #tpu.memory_space<vmem>>, %arg5: memref<1x16xf32, #tpu.memory_space<vmem>>, %arg6: memref<9x16x16xf32, #tpu.memory_space<vmem>>, %arg7: memref<1x16xf32, #tpu.memory_space<vmem>>, %arg8: memref<1x256x16xf32, #tpu.memory_space<vmem>>, %arg9: memref<1x256x16xf32, #tpu.memory_space<vmem>>, %arg10: memref<304x16xf32, #tpu.memory_space<vmem>>) attributes {dimension_semantics = [#tpu.dimension_semantics<parallel>], iteration_bounds = array<i64: 2>, scalar_prefetch = 0 : i64, scratch_operands = 1 : i64, tpu.core_type = #tpu.core_type<tc>, window_params = [{transform_indices = @transform_0, window_bounds = array<i64: 1, 256, 4>}, {transform_indices = @transform_1, window_bounds = array<i64: 1, 256, 16>}, {transform_indices = @transform_2, window_bounds = array<i64: 1, 256, 1>}, {pipeline_mode = #tpu.pipeline_mode<synchronous>, transform_indices = @transform_3, window_bounds = array<i64: 4, 16>}, {pipeline_mode = #tpu.pipeline_mode<synchronous>, transform_indices = @transform_4, window_bounds = array<i64: 1, 16>}, {pipeline_mode = #tpu.pipeline_mode<synchronous>, transform_indices = @transform_5, window_bounds = array<i64: 9, 16, 16>}, {pipeline_mode = #tpu.pipeline_mode<synchronous>, transform_indices = @transform_6, window_bounds = array<i64: 1, 16>}, {transform_indices = @transform_7, window_bounds = array<i64: 1, 256, 16>}, {transform_indices = @transform_8, window_bounds = array<i64: 1, 256, 16>}]} {
    %c0 = arith.constant 0 : index
    %c0_0 = arith.constant 0 : index
    %c0_1 = arith.constant 0 : index
    %0 = vector.load %arg1[%c0, %c0_0, %c0_1] : memref<1x256x4xf32, #tpu.memory_space<vmem>>, vector<1x256x4xf32>
    %1 = vector.shape_cast %0 : vector<1x256x4xf32> to vector<256x4xf32>
    %2 = arith.truncf %1 : vector<256x4xf32> to vector<256x4xbf16>
    %c0_2 = arith.constant 0 : index
    %c0_3 = arith.constant 0 : index
    %3 = vector.load %arg4[%c0_2, %c0_3] : memref<4x16xf32, #tpu.memory_space<vmem>>, vector<4x16xf32>
    %4 = arith.truncf %3 : vector<4x16xf32> to vector<4x16xbf16>
    %cst = arith.constant dense<0.000000e+00> : vector<256x16xf32>
    %5 = tpu.matmul %2, %4, %cst {dimension_numbers = #tpu.dot_dimension_numbers<[1], [0], [0], [1], [0, 0, 1, 1], [], []>} : vector<256x4xbf16>, vector<4x16xbf16>, vector<256x16xf32> -> vector<256x16xf32>
    %c0_4 = arith.constant 0 : index
    %c0_5 = arith.constant 0 : index
    %6 = vector.load %arg5[%c0_4, %c0_5] : memref<1x16xf32, #tpu.memory_space<vmem>>, vector<1x16xf32>
    %7 = vector.broadcast %6 : vector<1x16xf32> to vector<256x16xf32>
    %8 = arith.addf %5, %7 : vector<256x16xf32>
    %c0_6 = arith.constant 0 : index
    %c0_7 = arith.constant 0 : index
    %c0_8 = arith.constant 0 : index
    %9 = vector.load %arg2[%c0_6, %c0_7, %c0_8] : memref<1x256x16xf32, #tpu.memory_space<vmem>>, vector<1x256x16xf32>
    %10 = vector.shape_cast %9 : vector<1x256x16xf32> to vector<256x16xf32>
    %11 = arith.addf %8, %10 : vector<256x16xf32>
    %c0_9 = arith.constant 0 : index
    %c0_10 = arith.constant 0 : index
    %c0_11 = arith.constant 0 : index
    %12 = vector.load %arg8[%c0_9, %c0_10, %c0_11] : memref<1x256x16xf32, #tpu.memory_space<vmem>>, vector<1x256x16xf32>
    %13 = vector.shape_cast %12 : vector<1x256x16xf32> to vector<256x16xf32>
    %14 = vector.shape_cast %11 : vector<256x16xf32> to vector<1x256x16xf32>
    tpu.vector_store %arg8[%c0_9, %c0_10, %c0_11], %14 {strides = array<i32>} : memref<1x256x16xf32, #tpu.memory_space<vmem>>, vector<1x256x16xf32>,
    %c0_12 = arith.constant 0 : index
    %c0_13 = arith.constant 0 : index
    %c0_14 = arith.constant 0 : index
    %15 = vector.load %arg3[%c0_12, %c0_13, %c0_14] : memref<1x256x1xf32, #tpu.memory_space<vmem>>, vector<1x256x1xf32>
    %16 = vector.shape_cast %15 : vector<1x256x1xf32> to vector<256x1xf32>
    %cst_15 = arith.constant 0.000000e+00 : f32
    %17 = vector.broadcast %cst_15 : f32 to vector<256x1xf32>
    %18 = arith.cmpf oeq, %16, %17 : vector<256x1xf32>
    %cst_16 = arith.constant 5.000000e-01 : f32
    %19 = vector.broadcast %cst_16 : f32 to vector<256x1xf32>
    %20 = arith.select %18, %19, %16 : vector<256x1xi1>, vector<256x1xf32>
    %21 = vector.broadcast %20 : vector<256x1xf32> to vector<256x16xf32>
    %22 = arith.mulf %11, %21 : vector<256x16xf32>
    %cst_17 = arith.constant 0.000000e+00 : f32
    %23 = vector.broadcast %cst_17 : f32 to vector<304x16xf32>
    %c0_18 = arith.constant 0 : index
    %c0_19 = arith.constant 0 : index
    %24 = vector.load %arg10[%c0_18, %c0_19] : memref<304x16xf32, #tpu.memory_space<vmem>>, vector<304x16xf32>
    tpu.vector_store %arg10[%c0_18, %c0_19], %23 {strides = array<i32>} : memref<304x16xf32, #tpu.memory_space<vmem>>, vector<304x16xf32>,
    %c24 = arith.constant 24 : index
    %c0_20 = arith.constant 0 : index
    %25 = vector.load %arg10[%c24, %c0_20] : memref<304x16xf32, #tpu.memory_space<vmem>>, vector<256x16xf32>
    tpu.vector_store %arg10[%c24, %c0_20], %22 {strides = array<i32>} : memref<304x16xf32, #tpu.memory_space<vmem>>, vector<256x16xf32>,
    %26 = tpu.iota {dimensions = array<i32: 0>} : vector<256x1xi32>
    %c16_i32 = arith.constant 16 : i32
    %c0_i32 = arith.constant 0 : i32
    %27 = arith.cmpi eq, %c16_i32, %c0_i32 : i32
    %c1_i32 = arith.constant 1 : i32
    %28 = arith.select %27, %c1_i32, %c16_i32 : i32
    %29 = vector.broadcast %28 : i32 to vector<256x1xi32>
    %30 = arith.remsi %26, %29 : vector<256x1xi32>
    %c0_i32_21 = arith.constant 0 : i32
    %31 = vector.broadcast %c0_i32_21 : i32 to vector<256x1xi32>
    %32 = arith.cmpi ne, %30, %31 : vector<256x1xi32>
    %c0_i32_22 = arith.constant 0 : i32
    %33 = vector.broadcast %c0_i32_22 : i32 to vector<256x1xi32>
    %34 = arith.cmpi slt, %30, %33 : vector<256x1xi32>
    %c0_i32_23 = arith.constant 0 : i32
    %35 = arith.cmpi slt, %28, %c0_i32_23 : i32
    %36 = vector.broadcast %35 : i1 to vector<256x1xi1>
    %37 = vector.broadcast %36 : vector<256x1xi1> to vector<256x1xi1>
    %38 = arith.xori %34, %37 : vector<256x1xi1>
    %39 = arith.andi %38, %32 : vector<256x1xi1>
    %40 = vector.broadcast %28 : i32 to vector<256x1xi32>
    %41 = arith.addi %30, %40 : vector<256x1xi32>
    %42 = arith.select %39, %41, %30 : vector<256x1xi1>, vector<256x1xi32>
    %c0_i32_24 = arith.constant 0 : i32
    %43 = vector.broadcast %c0_i32_24 : i32 to vector<256x1xi32>
    %44 = arith.cmpi ne, %42, %43 : vector<256x1xi32>
    %c15_i32 = arith.constant 15 : i32
    %45 = vector.broadcast %c15_i32 : i32 to vector<256x1xi32>
    %46 = arith.cmpi ne, %42, %45 : vector<256x1xi32>
    %cst_25 = arith.constant 0.000000e+00 : f32
    %47 = vector.broadcast %cst_25 : f32 to vector<256x16xf32>
    %c7 = arith.constant 7 : index
    %c0_26 = arith.constant 0 : index
    %48 = vector.load %arg10[%c7, %c0_26] : memref<304x16xf32, #tpu.memory_space<vmem>>, vector<256x16xf32>
    %49 = arith.truncf %48 : vector<256x16xf32> to vector<256x16xbf16>
    %c0_27 = arith.constant 0 : index
    %c0_28 = arith.constant 0 : index
    %c0_29 = arith.constant 0 : index
    %50 = vector.load %arg6[%c0_27, %c0_28, %c0_29] : memref<9x16x16xf32, #tpu.memory_space<vmem>>, vector<1x16x16xf32>
    %51 = vector.shape_cast %50 : vector<1x16x16xf32> to vector<16x16xf32>
    %52 = arith.truncf %51 : vector<16x16xf32> to vector<16x16xbf16>
    %cst_30 = arith.constant dense<0.000000e+00> : vector<256x16xf32>
    %53 = tpu.matmul %49, %52, %cst_30 {dimension_numbers = #tpu.dot_dimension_numbers<[1], [0], [0], [1], [0, 0, 1, 1], [], []>} : vector<256x16xbf16>, vector<16x16xbf16>, vector<256x16xf32> -> vector<256x16xf32>
    %cst_31 = arith.constant 0.000000e+00 : f32
    %54 = vector.shape_cast %44 : vector<256x1xi1> to vector<256x1xi1>
    %55 = vector.broadcast %54 : vector<256x1xi1> to vector<256x16xi1>
    %56 = vector.broadcast %cst_31 : f32 to vector<256x16xf32>
    %57 = arith.select %55, %53, %56 : vector<256x16xi1>, vector<256x16xf32>
    %58 = arith.addf %47, %57 : vector<256x16xf32>
    %c8 = arith.constant 8 : index
    %c0_32 = arith.constant 0 : index
    %59 = vector.load %arg10[%c8, %c0_32] : memref<304x16xf32, #tpu.memory_space<vmem>>, vector<256x16xf32>
    %60 = arith.truncf %59 : vector<256x16xf32> to vector<256x16xbf16>
    %c1 = arith.constant 1 : index
    %c0_33 = arith.constant 0 : index
    %c0_34 = arith.constant 0 : index
    %61 = vector.load %arg6[%c1, %c0_33, %c0_34] : memref<9x16x16xf32, #tpu.memory_space<vmem>>, vector<1x16x16xf32>
    %62 = vector.shape_cast %61 : vector<1x16x16xf32> to vector<16x16xf32>
    %63 = arith.truncf %62 : vector<16x16xf32> to vector<16x16xbf16>
    %cst_35 = arith.constant dense<0.000000e+00> : vector<256x16xf32>
    %64 = tpu.matmul %60, %63, %cst_35 {dimension_numbers = #tpu.dot_dimension_numbers<[1], [0], [0], [1], [0, 0, 1, 1], [], []>} : vector<256x16xbf16>, vector<16x16xbf16>, vector<256x16xf32> -> vector<256x16xf32>
    %65 = arith.addf %58, %64 : vector<256x16xf32>
    %c9 = arith.constant 9 : index
    %c0_36 = arith.constant 0 : index
    %66 = vector.load %arg10[%c9, %c0_36] : memref<304x16xf32, #tpu.memory_space<vmem>>, vector<256x16xf32>
    %67 = arith.truncf %66 : vector<256x16xf32> to vector<256x16xbf16>
    %c2 = arith.constant 2 : index
    %c0_37 = arith.constant 0 : index
    %c0_38 = arith.constant 0 : index
    %68 = vector.load %arg6[%c2, %c0_37, %c0_38] : memref<9x16x16xf32, #tpu.memory_space<vmem>>, vector<1x16x16xf32>
    %69 = vector.shape_cast %68 : vector<1x16x16xf32> to vector<16x16xf32>
    %70 = arith.truncf %69 : vector<16x16xf32> to vector<16x16xbf16>
    %cst_39 = arith.constant dense<0.000000e+00> : vector<256x16xf32>
    %71 = tpu.matmul %67, %70, %cst_39 {dimension_numbers = #tpu.dot_dimension_numbers<[1], [0], [0], [1], [0, 0, 1, 1], [], []>} : vector<256x16xbf16>, vector<16x16xbf16>, vector<256x16xf32> -> vector<256x16xf32>
    %cst_40 = arith.constant 0.000000e+00 : f32
    %72 = vector.shape_cast %46 : vector<256x1xi1> to vector<256x1xi1>
    %73 = vector.broadcast %72 : vector<256x1xi1> to vector<256x16xi1>
    %74 = vector.broadcast %cst_40 : f32 to vector<256x16xf32>
    %75 = arith.select %73, %71, %74 : vector<256x16xi1>, vector<256x16xf32>
    %76 = arith.addf %65, %75 : vector<256x16xf32>
    %c23 = arith.constant 23 : index
    %c0_41 = arith.constant 0 : index
    %77 = vector.load %arg10[%c23, %c0_41] : memref<304x16xf32, #tpu.memory_space<vmem>>, vector<256x16xf32>
    %78 = arith.truncf %77 : vector<256x16xf32> to vector<256x16xbf16>
    %c3 = arith.constant 3 : index
    %c0_42 = arith.constant 0 : index
    %c0_43 = arith.constant 0 : index
    %79 = vector.load %arg6[%c3, %c0_42, %c0_43] : memref<9x16x16xf32, #tpu.memory_space<vmem>>, vector<1x16x16xf32>
    %80 = vector.shape_cast %79 : vector<1x16x16xf32> to vector<16x16xf32>
    %81 = arith.truncf %80 : vector<16x16xf32> to vector<16x16xbf16>
    %cst_44 = arith.constant dense<0.000000e+00> : vector<256x16xf32>
    %82 = tpu.matmul %78, %81, %cst_44 {dimension_numbers = #tpu.dot_dimension_numbers<[1], [0], [0], [1], [0, 0, 1, 1], [], []>} : vector<256x16xbf16>, vector<16x16xbf16>, vector<256x16xf32> -> vector<256x16xf32>
    %cst_45 = arith.constant 0.000000e+00 : f32
    %83 = vector.shape_cast %44 : vector<256x1xi1> to vector<256x1xi1>
    %84 = vector.broadcast %83 : vector<256x1xi1> to vector<256x16xi1>
    %85 = vector.broadcast %cst_45 : f32 to vector<256x16xf32>
    %86 = arith.select %84, %82, %85 : vector<256x16xi1>, vector<256x16xf32>
    %87 = arith.addf %76, %86 : vector<256x16xf32>
    %c24_46 = arith.constant 24 : index
    %c0_47 = arith.constant 0 : index
    %88 = vector.load %arg10[%c24_46, %c0_47] : memref<304x16xf32, #tpu.memory_space<vmem>>, vector<256x16xf32>
    %89 = arith.truncf %88 : vector<256x16xf32> to vector<256x16xbf16>
    %c4 = arith.constant 4 : index
    %c0_48 = arith.constant 0 : index
    %c0_49 = arith.constant 0 : index
    %90 = vector.load %arg6[%c4, %c0_48, %c0_49] : memref<9x16x16xf32, #tpu.memory_space<vmem>>, vector<1x16x16xf32>
    %91 = vector.shape_cast %90 : vector<1x16x16xf32> to vector<16x16xf32>
    %92 = arith.truncf %91 : vector<16x16xf32> to vector<16x16xbf16>
    %cst_50 = arith.constant dense<0.000000e+00> : vector<256x16xf32>
    %93 = tpu.matmul %89, %92, %cst_50 {dimension_numbers = #tpu.dot_dimension_numbers<[1], [0], [0], [1], [0, 0, 1, 1], [], []>} : vector<256x16xbf16>, vector<16x16xbf16>, vector<256x16xf32> -> vector<256x16xf32>
    %94 = arith.addf %87, %93 : vector<256x16xf32>
    %c25 = arith.constant 25 : index
    %c0_51 = arith.constant 0 : index
    %95 = vector.load %arg10[%c25, %c0_51] : memref<304x16xf32, #tpu.memory_space<vmem>>, vector<256x16xf32>
    %96 = arith.truncf %95 : vector<256x16xf32> to vector<256x16xbf16>
    %c5 = arith.constant 5 : index
    %c0_52 = arith.constant 0 : index
    %c0_53 = arith.constant 0 : index
    %97 = vector.load %arg6[%c5, %c0_52, %c0_53] : memref<9x16x16xf32, #tpu.memory_space<vmem>>, vector<1x16x16xf32>
    %98 = vector.shape_cast %97 : vector<1x16x16xf32> to vector<16x16xf32>
    %99 = arith.truncf %98 : vector<16x16xf32> to vector<16x16xbf16>
    %cst_54 = arith.constant dense<0.000000e+00> : vector<256x16xf32>
    %100 = tpu.matmul %96, %99, %cst_54 {dimension_numbers = #tpu.dot_dimension_numbers<[1], [0], [0], [1], [0, 0, 1, 1], [], []>} : vector<256x16xbf16>, vector<16x16xbf16>, vector<256x16xf32> -> vector<256x16xf32>
    %cst_55 = arith.constant 0.000000e+00 : f32
    %101 = vector.shape_cast %46 : vector<256x1xi1> to vector<256x1xi1>
    %102 = vector.broadcast %101 : vector<256x1xi1> to vector<256x16xi1>
    %103 = vector.broadcast %cst_55 : f32 to vector<256x16xf32>
    %104 = arith.select %102, %100, %103 : vector<256x16xi1>, vector<256x16xf32>
    %105 = arith.addf %94, %104 : vector<256x16xf32>
    %c39 = arith.constant 39 : index
    %c0_56 = arith.constant 0 : index
    %106 = vector.load %arg10[%c39, %c0_56] : memref<304x16xf32, #tpu.memory_space<vmem>>, vector<256x16xf32>
    %107 = arith.truncf %106 : vector<256x16xf32> to vector<256x16xbf16>
    %c6 = arith.constant 6 : index
    %c0_57 = arith.constant 0 : index
    %c0_58 = arith.constant 0 : index
    %108 = vector.load %arg6[%c6, %c0_57, %c0_58] : memref<9x16x16xf32, #tpu.memory_space<vmem>>, vector<1x16x16xf32>
    %109 = vector.shape_cast %108 : vector<1x16x16xf32> to vector<16x16xf32>
    %110 = arith.truncf %109 : vector<16x16xf32> to vector<16x16xbf16>
    %cst_59 = arith.constant dense<0.000000e+00> : vector<256x16xf32>
    %111 = tpu.matmul %107, %110, %cst_59 {dimension_numbers = #tpu.dot_dimension_numbers<[1], [0], [0], [1], [0, 0, 1, 1], [], []>} : vector<256x16xbf16>, vector<16x16xbf16>, vector<256x16xf32> -> vector<256x16xf32>
    %cst_60 = arith.constant 0.000000e+00 : f32
    %112 = vector.shape_cast %44 : vector<256x1xi1> to vector<256x1xi1>
    %113 = vector.broadcast %112 : vector<256x1xi1> to vector<256x16xi1>
    %114 = vector.broadcast %cst_60 : f32 to vector<256x16xf32>
    %115 = arith.select %113, %111, %114 : vector<256x16xi1>, vector<256x16xf32>
    %116 = arith.addf %105, %115 : vector<256x16xf32>
    %c40 = arith.constant 40 : index
    %c0_61 = arith.constant 0 : index
    %117 = vector.load %arg10[%c40, %c0_61] : memref<304x16xf32, #tpu.memory_space<vmem>>, vector<256x16xf32>
    %118 = arith.truncf %117 : vector<256x16xf32> to vector<256x16xbf16>
    %c7_62 = arith.constant 7 : index
    %c0_63 = arith.constant 0 : index
    %c0_64 = arith.constant 0 : index
    %119 = vector.load %arg6[%c7_62, %c0_63, %c0_64] : memref<9x16x16xf32, #tpu.memory_space<vmem>>, vector<1x16x16xf32>
    %120 = vector.shape_cast %119 : vector<1x16x16xf32> to vector<16x16xf32>
    %121 = arith.truncf %120 : vector<16x16xf32> to vector<16x16xbf16>
    %cst_65 = arith.constant dense<0.000000e+00> : vector<256x16xf32>
    %122 = tpu.matmul %118, %121, %cst_65 {dimension_numbers = #tpu.dot_dimension_numbers<[1], [0], [0], [1], [0, 0, 1, 1], [], []>} : vector<256x16xbf16>, vector<16x16xbf16>, vector<256x16xf32> -> vector<256x16xf32>
    %123 = arith.addf %116, %122 : vector<256x16xf32>
    %c41 = arith.constant 41 : index
    %c0_66 = arith.constant 0 : index
    %124 = vector.load %arg10[%c41, %c0_66] : memref<304x16xf32, #tpu.memory_space<vmem>>, vector<256x16xf32>
    %125 = arith.truncf %124 : vector<256x16xf32> to vector<256x16xbf16>
    %c8_67 = arith.constant 8 : index
    %c0_68 = arith.constant 0 : index
    %c0_69 = arith.constant 0 : index
    %126 = vector.load %arg6[%c8_67, %c0_68, %c0_69] : memref<9x16x16xf32, #tpu.memory_space<vmem>>, vector<1x16x16xf32>
    %127 = vector.shape_cast %126 : vector<1x16x16xf32> to vector<16x16xf32>
    %128 = arith.truncf %127 : vector<16x16xf32> to vector<16x16xbf16>
    %cst_70 = arith.constant dense<0.000000e+00> : vector<256x16xf32>
    %129 = tpu.matmul %125, %128, %cst_70 {dimension_numbers = #tpu.dot_dimension_numbers<[1], [0], [0], [1], [0, 0, 1, 1], [], []>} : vector<256x16xbf16>, vector<16x16xbf16>, vector<256x16xf32> -> vector<256x16xf32>
    %cst_71 = arith.constant 0.000000e+00 : f32
    %130 = vector.shape_cast %46 : vector<256x1xi1> to vector<256x1xi1>
    %131 = vector.broadcast %130 : vector<256x1xi1> to vector<256x16xi1>
    %132 = vector.broadcast %cst_71 : f32 to vector<256x16xf32>
    %133 = arith.select %131, %129, %132 : vector<256x16xi1>, vector<256x16xf32>
    %134 = arith.addf %123, %133 : vector<256x16xf32>
    %c0_72 = arith.constant 0 : index
    %c0_73 = arith.constant 0 : index
    %135 = vector.load %arg7[%c0_72, %c0_73] : memref<1x16xf32, #tpu.memory_space<vmem>>, vector<1x16xf32>
    %136 = vector.broadcast %135 : vector<1x16xf32> to vector<256x16xf32>
    %137 = arith.addf %134, %136 : vector<256x16xf32>
    %c0_74 = arith.constant 0 : index
    %c0_75 = arith.constant 0 : index
    %c0_76 = arith.constant 0 : index
    %138 = vector.load %arg9[%c0_74, %c0_75, %c0_76] : memref<1x256x16xf32, #tpu.memory_space<vmem>>, vector<1x256x16xf32>
    %139 = vector.shape_cast %138 : vector<1x256x16xf32> to vector<256x16xf32>
    %140 = vector.shape_cast %137 : vector<256x16xf32> to vector<1x256x16xf32>
    tpu.vector_store %arg9[%c0_74, %c0_75, %c0_76], %140 {strides = array<i32>} : memref<1x256x16xf32, #tpu.memory_space<vmem>>, vector<1x256x16xf32>,
    return
  }
  func.func @transform_0(%arg0: i32) -> (i32, i32, i32) {
    %c0_i32 = arith.constant 0 : i32
    %c0_i32_0 = arith.constant 0 : i32
    %c0_i32_1 = arith.constant 0 : i32
    return %arg0, %c0_i32, %c0_i32_0 : i32, i32, i32
  }
  func.func @transform_1(%arg0: i32) -> (i32, i32, i32) {
    %c0_i32 = arith.constant 0 : i32
    %c0_i32_0 = arith.constant 0 : i32
    %c0_i32_1 = arith.constant 0 : i32
    return %arg0, %c0_i32, %c0_i32_0 : i32, i32, i32
  }
  func.func @transform_2(%arg0: i32) -> (i32, i32, i32) {
    %c0_i32 = arith.constant 0 : i32
    %c0_i32_0 = arith.constant 0 : i32
    %c0_i32_1 = arith.constant 0 : i32
    return %arg0, %c0_i32, %c0_i32_0 : i32, i32, i32
  }
  func.func @transform_3(%arg0: i32) -> (i32, i32) {
    %c0_i32 = arith.constant 0 : i32
    %c0_i32_0 = arith.constant 0 : i32
    %c0_i32_1 = arith.constant 0 : i32
    return %c0_i32, %c0_i32_0 : i32, i32
  }
  func.func @transform_4(%arg0: i32) -> (i32, i32) {
    %c0_i32 = arith.constant 0 : i32
    %c0_i32_0 = arith.constant 0 : i32
    %c0_i32_1 = arith.constant 0 : i32
    return %c0_i32, %c0_i32_0 : i32, i32
  }
  func.func @transform_5(%arg0: i32) -> (i32, i32, i32) {
    %c0_i32 = arith.constant 0 : i32
    %c0_i32_0 = arith.constant 0 : i32
    %c0_i32_1 = arith.constant 0 : i32
    %c0_i32_2 = arith.constant 0 : i32
    return %c0_i32, %c0_i32_0, %c0_i32_1 : i32, i32, i32
  }
  func.func @transform_6(%arg0: i32) -> (i32, i32) {
    %c0_i32 = arith.constant 0 : i32
    %c0_i32_0 = arith.constant 0 : i32
    %c0_i32_1 = arith.constant 0 : i32
    return %c0_i32, %c0_i32_0 : i32, i32
  }
  func.func @transform_7(%arg0: i32) -> (i32, i32, i32) {
    %c0_i32 = arith.constant 0 : i32
    %c0_i32_0 = arith.constant 0 : i32
    %c0_i32_1 = arith.constant 0 : i32
    return %arg0, %c0_i32, %c0_i32_0 : i32, i32, i32
  }
  func.func @transform_8(%arg0: i32) -> (i32, i32, i32) {
    %c0_i32 = arith.constant 0 : i32
    %c0_i32_0 = arith.constant 0 : i32
    %c0_i32_1 = arith.constant 0 : i32
    return %arg0, %c0_i32, %c0_i32_0 : i32, i32, i32
  }
}

</mosaic_0001>

<llo_original>
// kernel: fpn_forward_pallas.5
$region0: #{fpn_forward_pallas.5}
  #allocation0 [shape = 'u32[]', space=smem, size = 0x4, offset = 0x4, fixed_abs, tag = 'smem constant byte address 0x4 - core index']
  #allocation1 [shape = 'u32[144,128]{1,0:T(1,128)}', space=vmem, size = 0x12000, scoped, tag = 'internal scratch']
  #allocation2 [shape = 'f32[32,16]{1,0:T(8,128)}', space=vmem, size = 0x4000, scoped, tag = 'scratch operand']
  %s0 = inlined_call_operand.vmem [shape: f32[2,16,16], index: 0, kind: input, shape index: {}]
  %s1 = inlined_call_operand.vmem [shape: f32[2,16,16], index: 1, kind: input, shape index: {}]
  %s2 = inlined_call_operand.vmem [shape: f32[16,16], index: 2, kind: input, shape index: {}]
  %s3 = inlined_call_operand.vmem [shape: f32[1,16], index: 3, kind: input, shape index: {}]
  %s4 = inlined_call_operand.vmem [shape: f32[9,16,16], index: 4, kind: input, shape index: {}]
  %s5 = inlined_call_operand.vmem [shape: f32[1,16], index: 5, kind: input, shape index: {}]
  %s6 = inlined_call_operand.vmem [shape: f32[2,16,16], index: 6, kind: output, shape index: {0}]
  %s7 = inlined_call_operand.hbm [shape: f32[2,16,16], index: 7, kind: output, shape index: {1}]
  %8 = xla_tuple %s6, %s7
  %s9 = sld [smem:[#allocation0]]
  $region65: #{fpn_forward_pallas.5} parent=0
    _
  %s11 = ssub.s32 1, %s9
  %s12 = scalar_select 0, %s11, %s9
  $region1: #{fpn_forward_pallas.5} parent=0
    #allocation3 [shape = 'u8[16384]{0}', space=vmem, size = 0x4000, scoped, tag = 'output window, operand 1']
    #allocation4 [shape = 's32[2]{0}', space=sflag, size = 0x8, scoped, tag = 'scoped memory for fpn_forward_pallas.5']
    %13 = vsyncpa [#allocation4], 0
    %s14 = scalar_lea.sflag [#allocation4], 1
    %15 = vsyncpa %s14, 0
    loop: start=0, step=1, limit=4
    $region2: #{fpn_forward_pallas.5} parent=1 // loop_pre_header
      _
    $region3: #{fpn_forward_pallas.5} parent=1 // loop_header
      %s17 = sphi 0, %s21
      %p18 = scmp.ge.s32.totalorder %s17, 4
      %s27 = sphi 0, %s29
      %s30 = sphi 0, %s27
      %s31 = sphi 0, %s30
      %s47 = sphi 0, %s31
      %s53 = sphi 0, %s55
      %s56 = sphi 0, %s53
      %s57 = sphi 0, %s56
      %s73 = sphi 0, %s57
      %s77 = sphi 0, %s77
      %s79 = sphi 0, %s77
      %s80 = sphi 0, %s79
      %s94 = sphi 0, %s80
      %s98 = sphi 0, %s98
      %s100 = sphi 0, %s98
      %s101 = sphi 0, %s100
      %s115 = sphi 0, %s101
      %s119 = sphi 0, %s119
      %s121 = sphi 0, %s119
      %s122 = sphi 0, %s121
      %s136 = sphi 0, %s122
      %s140 = sphi 0, %s140
      %s142 = sphi 0, %s140
      %s143 = sphi 0, %s142
      %s157 = sphi 0, %s143
      %s163 = sphi 0, %s165
      %s166 = sphi 0, %s163
      %s167 = sphi 0, %s166
      %s183 = sphi 0, %s167
      %s189 = sphi 0, %s191
      %s192 = sphi 0, %s189
      %s193 = sphi 0, %s192
      %s209 = sphi 0, %s193
    $region4: #{fpn_forward_pallas.5} parent=1 // loop_header_branch
      %20 = sbr.rel (%p18) target = $region8
    $region5: #{fpn_forward_pallas.5} parent=1 // loop_body
      %s22 = ssub.s32 %s17, 1
      %s23 = ssub.s32 %s17, 2
      %s24 = sadd.s32 %s17, 1
      %s25 = ssub.s32 %s17, %s24
      %p26 = scmp.eq.s32.totalorder %s25, 0
      %s28 = sadd.s32 %s27, 1
      %s29 = scalar_select %p26, %s27, %s28
      %p32 = pneg %p26
      %p33 = scmp.eq.s32.totalorder %s17, 1
      %p34 = por %p32, %p33
      %p35 = scmp.ne.s32.totalorder %s27, %s30
      %p36 = scmp.eq.s32.totalorder %s17, 0
      %p37 = por %p35, %p36
      %p38 = scmp.ne.s32.totalorder %s27, %s30
      %p39 = scmp.eq.s32.totalorder %s22, 1
      %p40 = por %p38, %p39
      %p41 = scmp.ne.s32.totalorder %s30, %s31
      %p42 = scmp.eq.s32.totalorder %s22, 0
      %p43 = por %p41, %p42
      %p44 = scmp.ne.s32.totalorder %s30, %s31
      %p45 = scmp.eq.s32.totalorder %s23, 1
      %p46 = por %p44, %p45
      %p48 = scmp.ne.s32.totalorder %s31, %s47
      %p49 = scmp.eq.s32.totalorder %s23, 0
      %p50 = por %p48, %p49
      %s51 = ssub.s32 %s17, %s24
      %p52 = scmp.eq.s32.totalorder %s51, 0
      %s54 = sadd.s32 %s53, 1
      %s55 = scalar_select %p52, %s53, %s54
      %p58 = pneg %p52
      %p59 = scmp.eq.s32.totalorder %s17, 1
      %p60 = por %p58, %p59
      %p61 = scmp.ne.s32.totalorder %s53, %s56
      %p62 = scmp.eq.s32.totalorder %s17, 0
      %p63 = por %p61, %p62
      %p64 = scmp.ne.s32.totalorder %s53, %s56
      %p65 = scmp.eq.s32.totalorder %s22, 1
      %p66 = por %p64, %p65
      %p67 = scmp.ne.s32.totalorder %s56, %s57
      %p68 = scmp.eq.s32.totalorder %s22, 0
      %p69 = por %p67, %p68
      %p70 = scmp.ne.s32.totalorder %s56, %s57
      %p71 = scmp.eq.s32.totalorder %s23, 1
      %p72 = por %p70, %p71
      %p74 = scmp.ne.s32.totalorder %s57, %s73
      %p75 = scmp.eq.s32.totalorder %s23, 0
      %p76 = por %p74, %p75
      %s78 = sadd.s32 %s77, 1
      %p81 = scmp.eq.s32.totalorder %s17, 1
      %p82 = scmp.ne.s32.totalorder %s77, %s79
      %p83 = scmp.eq.s32.totalorder %s17, 0
      %p84 = por %p82, %p83
      %p85 = scmp.ne.s32.totalorder %s77, %s79
      %p86 = scmp.eq.s32.totalorder %s22, 1
      %p87 = por %p85, %p86
      %p88 = scmp.ne.s32.totalorder %s79, %s80
      %p89 = scmp.eq.s32.totalorder %s22, 0
      %p90 = por %p88, %p89
      %p91 = scmp.ne.s32.totalorder %s79, %s80
      %p92 = scmp.eq.s32.totalorder %s23, 1
      %p93 = por %p91, %p92
      %p95 = scmp.ne.s32.totalorder %s80, %s94
      %p96 = scmp.eq.s32.totalorder %s23, 0
      %p97 = por %p95, %p96
      %s99 = sadd.s32 %s98, 1
      %p102 = scmp.eq.s32.totalorder %s17, 1
      %p103 = scmp.ne.s32.totalorder %s98, %s100
      %p104 = scmp.eq.s32.totalorder %s17, 0
      %p105 = por %p103, %p104
      %p106 = scmp.ne.s32.totalorder %s98, %s100
      %p107 = scmp.eq.s32.totalorder %s22, 1
      %p108 = por %p106, %p107
      %p109 = scmp.ne.s32.totalorder %s100, %s101
      %p110 = scmp.eq.s32.totalorder %s22, 0
      %p111 = por %p109, %p110
      %p112 = scmp.ne.s32.totalorder %s100, %s101
      %p113 = scmp.eq.s32.totalorder %s23, 1
      %p114 = por %p112, %p113
      %p116 = scmp.ne.s32.totalorder %s101, %s115
      %p117 = scmp.eq.s32.totalorder %s23, 0
      %p118 = por %p116, %p117
      %s120 = sadd.s32 %s119, 1
      %p123 = scmp.eq.s32.totalorder %s17, 1
      %p124 = scmp.ne.s32.totalorder %s119, %s121
      %p125 = scmp.eq.s32.totalorder %s17, 0
      %p126 = por %p124, %p125
      %p127 = scmp.ne.s32.totalorder %s119, %s121
      %p128 = scmp.eq.s32.totalorder %s22, 1
      %p129 = por %p127, %p128
      %p130 = scmp.ne.s32.totalorder %s121, %s122
      %p131 = scmp.eq.s32.totalorder %s22, 0
      %p132 = por %p130, %p131
      %p133 = scmp.ne.s32.totalorder %s121, %s122
      %p134 = scmp.eq.s32.totalorder %s23, 1
      %p135 = por %p133, %p134
      %p137 = scmp.ne.s32.totalorder %s122, %s136
      %p138 = scmp.eq.s32.totalorder %s23, 0
      %p139 = por %p137, %p138
      %s141 = sadd.s32 %s140, 1
      %p144 = scmp.eq.s32.totalorder %s17, 1
      %p145 = scmp.ne.s32.totalorder %s140, %s142
      %p146 = scmp.eq.s32.totalorder %s17, 0
      %p147 = por %p145, %p146
      %p148 = scmp.ne.s32.totalorder %s140, %s142
      %p149 = scmp.eq.s32.totalorder %s22, 1
      %p150 = por %p148, %p149
      %p151 = scmp.ne.s32.totalorder %s142, %s143
      %p152 = scmp.eq.s32.totalorder %s22, 0
      %p153 = por %p151, %p152
      %p154 = scmp.ne.s32.totalorder %s142, %s143
      %p155 = scmp.eq.s32.totalorder %s23, 1
      %p156 = por %p154, %p155
      %p158 = scmp.ne.s32.totalorder %s143, %s157
      %p159 = scmp.eq.s32.totalorder %s23, 0
      %p160 = por %p158, %p159
      %s161 = ssub.s32 %s17, %s24
      %p162 = scmp.eq.s32.totalorder %s161, 0
      %s164 = sadd.s32 %s163, 1
      %s165 = scalar_select %p162, %s163, %s164
      %p168 = pneg %p162
      %p169 = scmp.eq.s32.totalorder %s17, 1
      %p170 = por %p168, %p169
      %p171 = scmp.ne.s32.totalorder %s163, %s166
      %p172 = scmp.eq.s32.totalorder %s17, 0
      %p173 = por %p171, %p172
      %p174 = scmp.ne.s32.totalorder %s163, %s166
      %p175 = scmp.eq.s32.totalorder %s22, 1
      %p176 = por %p174, %p175
      %p177 = scmp.ne.s32.totalorder %s166, %s167
      %p178 = scmp.eq.s32.totalorder %s22, 0
      %p179 = por %p177, %p178
      %p180 = scmp.ne.s32.totalorder %s166, %s167
      %p181 = scmp.eq.s32.totalorder %s23, 1
      %p182 = por %p180, %p181
      %p184 = scmp.ne.s32.totalorder %s167, %s183
      %p185 = scmp.eq.s32.totalorder %s23, 0
      %p186 = por %p184, %p185
      %s187 = ssub.s32 %s17, %s24
      %p188 = scmp.eq.s32.totalorder %s187, 0
      %s190 = sadd.s32 %s189, 1
      %s191 = scalar_select %p188, %s189, %s190
      %p194 = pneg %p188
      %p195 = scmp.eq.s32.totalorder %s17, 1
      %p196 = por %p194, %p195
      %p197 = scmp.ne.s32.totalorder %s189, %s192
      %p198 = scmp.eq.s32.totalorder %s17, 0
      %p199 = por %p197, %p198
      %p200 = scmp.ne.s32.totalorder %s189, %s192
      %p201 = scmp.eq.s32.totalorder %s22, 1
      %p202 = por %p200, %p201
      %p203 = scmp.ne.s32.totalorder %s192, %s193
      %p204 = scmp.eq.s32.totalorder %s22, 0
      %p205 = por %p203, %p204
      %p206 = scmp.ne.s32.totalorder %s192, %s193
      %p207 = scmp.eq.s32.totalorder %s23, 1
      %p208 = por %p206, %p207
      %p210 = scmp.ne.s32.totalorder %s193, %s209
      %p211 = scmp.eq.s32.totalorder %s23, 0
      %p212 = por %p210, %p211
      %p213 = scmp.le.s32.totalorder 1, %s17
      %p214 = scmp.lt.s32.totalorder %s17, 3
      %p215 = pnand %p213, %p214
      %p216 = pneg %p215
      // Predicated region
      $region9: #{fpn_forward_pallas.5} parent=5 // pred_check
        _
      $region10: #{fpn_forward_pallas.5} parent=5 // pred_check_branch
        %218 = sbr.rel (%p215) target = $region12
      $region11: #{fpn_forward_pallas.5} parent=5 // pred_region
        %s219 = ssub.s32 %s17, 1
        // Predicated region
        $region13: #{fpn_forward_pallas.5} parent=11 // pred_check
          %p220 = pneg %p90
        $region14: #{fpn_forward_pallas.5} parent=11 // pred_check_branch
          %222 = sbr.rel (%p220) target = $region16
        $region15: #{fpn_forward_pallas.5} parent=11 // pred_region
          _
        $region16: #{fpn_forward_pallas.5} parent=11 // pred_fallthru
          _
        // Predicated region
        $region17: #{fpn_forward_pallas.5} parent=11 // pred_check
          %p223 = pneg %p111
        $region18: #{fpn_forward_pallas.5} parent=11 // pred_check_branch
          %225 = sbr.rel (%p223) target = $region20
        $region19: #{fpn_forward_pallas.5} parent=11 // pred_region
          _
        $region20: #{fpn_forward_pallas.5} parent=11 // pred_fallthru
          _
        // Predicated region
        $region21: #{fpn_forward_pallas.5} parent=11 // pred_check
          %p226 = pneg %p132
        $region22: #{fpn_forward_pallas.5} parent=11 // pred_check_branch
          %228 = sbr.rel (%p226) target = $region24
        $region23: #{fpn_forward_pallas.5} parent=11 // pred_region
          _
        $region24: #{fpn_forward_pallas.5} parent=11 // pred_fallthru
          _
        // Predicated region
        $region25: #{fpn_forward_pallas.5} parent=11 // pred_check
          %p229 = pneg %p153
        $region26: #{fpn_forward_pallas.5} parent=11 // pred_check_branch
          %231 = sbr.rel (%p229) target = $region28
        $region27: #{fpn_forward_pallas.5} parent=11 // pred_region
          _
        $region28: #{fpn_forward_pallas.5} parent=11 // pred_fallthru
          _
      $region12: #{fpn_forward_pallas.5} parent=5 // pred_fallthru
        _
      %p232 = scmp.lt.s32.totalorder %s17, 2
      // Predicated region
      $region29: #{fpn_forward_pallas.5} parent=5 // pred_check
        %p233 = pneg %p232
      $region30: #{fpn_forward_pallas.5} parent=5 // pred_check_branch
        %235 = sbr.rel (%p233) target = $region32
      $region31: #{fpn_forward_pallas.5} parent=5 // pred_region
        // Predicated region
        $region33: #{fpn_forward_pallas.5} parent=31 // pred_check
          %p236 = pneg %p37
        $region34: #{fpn_forward_pallas.5} parent=31 // pred_check_branch
          %238 = sbr.rel (%p236) target = $region36
        $region35: #{fpn_forward_pallas.5} parent=31 // pred_region
          %p239 = scmp.lt.s32.totalorder %s17, 1
          %s240 = scalar_select %p239, %s17, 1
          %s241 = smul.addr %s240, 2
          %s242 = smul.addr %s241, 8
          %s243 = scalar_lea.vmem %s0, %s242
        $region36: #{fpn_forward_pallas.5} parent=31 // pred_fallthru
          _
        // Predicated region
        $region37: #{fpn_forward_pallas.5} parent=31 // pred_check
          %p244 = pneg %p63
        $region38: #{fpn_forward_pallas.5} parent=31 // pred_check_branch
          %246 = sbr.rel (%p244) target = $region40
        $region39: #{fpn_forward_pallas.5} parent=31 // pred_region
          %p247 = scmp.lt.s32.totalorder %s17, 1
          %s248 = scalar_select %p247, %s17, 1
          %s249 = smul.addr %s248, 2
          %s250 = smul.addr %s249, 8
          %s251 = scalar_lea.vmem %s1, %s250
        $region40: #{fpn_forward_pallas.5} parent=31 // pred_fallthru
          _
      $region32: #{fpn_forward_pallas.5} parent=5 // pred_fallthru
        _
      %p252 = scmp.le.s32.totalorder 1, %s17
      %p253 = scmp.lt.s32.totalorder %s17, 3
      %p254 = pnand %p252, %p253
      %p255 = pneg %p254
      // Predicated region
      $region41: #{fpn_forward_pallas.5} parent=5 // pred_check
        _
      $region42: #{fpn_forward_pallas.5} parent=5 // pred_check_branch
        %257 = sbr.rel (%p254) target = $region44
      $region43: #{fpn_forward_pallas.5} parent=5 // pred_region
        %s258 = ssub.s32 %s17, 1
        %p259 = scmp.lt.s32.totalorder %s22, 1
        %s260 = scalar_select %p259, %s22, 1
        %s261 = smul.addr %s260, 2
        %s262 = smul.addr %s261, 8
        %s263 = scalar_lea.vmem %s0, %s262
        %p264 = pneg %p43
        %p265 = pneg %p40
        %p266 = scmp.lt.s32.totalorder %s22, 1
        %s267 = scalar_select %p266, %s22, 1
        %s268 = smul.addr %s267, 2
        %s269 = smul.addr %s268, 8
        %s270 = scalar_lea.vmem %s1, %s269
        %p271 = pneg %p69
        %p272 = pneg %p66
        %p273 = pneg %p90
        %p274 = pneg %p87
        %p275 = pneg %p111
        %p276 = pneg %p108
        %p277 = pneg %p132
        %p278 = pneg %p129
        %p279 = pneg %p153
        %p280 = pneg %p150
        %p281 = pneg %p179
        %p282 = pneg %p176
        %p283 = scmp.lt.s32.totalorder %s22, 1
        %s284 = scalar_select %p283, %s22, 1
        %s285 = smul.addr %s284, 2
        %s286 = smul.addr %s285, 8
        %s287 = scalar_lea.vmem %s6, %s286
        %p288 = pneg %p205
        %p289 = pneg %p202
        %s290 = sand.u32 %s192, 1
        %s291 = scalar_lea.sflag [#allocation4], %s290
        %s292 = sand.u32 %s192, 1
        %s293 = smul.addr %s292, 16
        %s294 = scalar_lea.vmem [#allocation3], %s293
        %p295 = scmp.lt.s32.totalorder %s22, 1
        %s296 = scalar_select %p295, %s22, 1
        %s297 = smul.addr %s296, 2
        %s298 = smul.addr %s297, 8
        %s299 = scalar_lea.vmem %s0, %s298
        %p300 = scmp.lt.s32.totalorder %s22, 1
        %s301 = scalar_select %p300, %s22, 1
        %s302 = smul.addr %s301, 2
        %s303 = smul.addr %s302, 8
        %s304 = scalar_lea.vmem %s1, %s303
        %p305 = scmp.lt.s32.totalorder %s22, 1
        %s306 = scalar_select %p305, %s22, 1
        %s307 = smul.addr %s306, 2
        %s308 = smul.addr %s307, 8
        %s309 = scalar_lea.vmem %s6, %s308
        %v311 = vld [vmem:[%s299] sm:$0xff]
        %v312 = vld [vmem:[%s299 + $0x8] sm:$0xff]
        %v313 = vpack.c.bf16 %v312, %v311
        %v314 = vld [vmem:[%s2] sm:$0xff]
        %v315 = vld [vmem:[%s2 + $0x8] sm:$0xff]
        %v316 = vpack.c.bf16 %v315, %v314
        %v317 = vld [vmem:[%s3] sm:$0x1]
        %v319 = vlaneseq
        %v320 = vshrl.u32 %v319, 7
        %v321 = vsub.s32 0, %v320
        %v322 = vrot.slane %v317, %v321
        %vm324 = vcmask 130048
        %v326 = vsel %vm324, %v313, 0
        %328 = vmatprep.subr.bf16.mxu0 0
        %329 = vmatpush1.bf16.msra.mxu0 0
        %330 = vmatprep.subr.bf16.mxu0 0
        %331 = vmatpush1.bf16.msra.mxu0 0
        %332 = vmatprep.subr.bf16.mxu0 0
        %333 = vmatpush1.bf16.msra.mxu0 0
        %334 = vmatprep.subr.bf16.mxu0 0
        %335 = vmatpush1.bf16.msra.mxu0 0
        %336 = vmatprep.subr.bf16.mxu0 0
        %337 = vmatpush1.bf16.msra.mxu0 0
        %338 = vmatprep.subr.bf16.mxu0 0
        %339 = vmatpush1.bf16.msra.mxu0 0
        %340 = vmatprep.subr.bf16.mxu0 0
        %341 = vmatpush1.bf16.msra.mxu0 0
        %342 = vmatprep.subr.bf16.mxu0 0
        %343 = vmatpush1.bf16.msra.mxu0 %v316
        %344 = vmatprep.subr.bf16.mxu0 0
        %345 = vmatpush2.bf16.msra.mxu0 0
        %346 = vmatprep.subr.bf16.mxu0 0
        %347 = vmatpush2.bf16.msra.mxu0 0
        %348 = vmatprep.subr.bf16.mxu0 0
        %349 = vmatpush2.bf16.msra.mxu0 0
        %350 = vmatprep.subr.bf16.mxu0 0
        %351 = vmatpush2.bf16.msra.mxu0 0
        %352 = vmatprep.subr.bf16.mxu0 0
        %353 = vmatpush2.bf16.msra.mxu0 0
        %354 = vmatprep.subr.bf16.mxu0 0
        %355 = vmatpush2.bf16.msra.mxu0 0
        %356 = vmatprep.subr.bf16.mxu0 0
        %357 = vmatpush2.bf16.msra.mxu0 0
        %358 = vmatprep.subr.bf16.mxu0 0
        %359 = vmatpush2.bf16.msra.mxu0 0
        %360 = vmatprep.mubr.bf16.mxu0 0
        %361 = vmatmul.mubr.bf16.gmra.mxu0 %v326
        %v362 = vpop.f32.mrf.mxu0
        %v363 = vadd.f32 %v322, %v362
        %v364 = vpop.f32.mrf.mxu0
        %v365 = vpop.f32.mrf.mxu0
        %v366 = vadd.f32 %v322, %v365
        %v367 = vpop.f32.mrf.mxu0
        %368 = vdwg.mxu0
        %v369 = vld [vmem:[%s304] sm:$0xff]
        %v370 = vld [vmem:[%s304 + $0x8] sm:$0xff]
        %v371 = vadd.f32 %v363, %v369
        %v372 = vadd.f32 %v366, %v370
        %373 = vst.msk [vmem:[%s309] sm:$0xff] %vm324, %v371
        %374 = vst.msk [vmem:[%s309 + $0x8] sm:$0xff] %vm324, %v372
        %375 = vst.msk [vmem:[#allocation2] sm:$0xff] %vm324, 0.0
        %376 = vst.msk [vmem:[#allocation2 + $0x8] sm:$0xff] %vm324, 0.0
        %377 = vst.msk [vmem:[#allocation2 + $0x10] sm:$0xff] %vm324, 0.0
        %378 = vst.msk [vmem:[#allocation2 + $0x18] sm:$0xff] %vm324, 0.0
        %379 = vst.msk [vmem:[#allocation2 + $0x8] sm:$0xff] %vm324, %v371
        %380 = vst.msk [vmem:[#allocation2 + $0x10] sm:$0xff] %vm324, %v372
        %v381 = vlaneseq
        %v382 = vshrl.u32 %v381, 7
        %v383 = vadd.s32 %v382, 8
        %vm384 = vcmp.lt.s32.totalorder %v382, 0
        %v385 = vsub.s32 0, %v382
        %v386 = vsel %vm384, %v385, %v382
        %v387 = vshrl.u32 %v386, 2
        %v388 = vand.u32 %v386, 3
        %v389 = vsub.s32 0, %v388
        %v390 = vsel %vm384, %v389, %v388
        %vm391 = vcmp.lt.s32.totalorder %v383, 0
        %v392 = vsub.s32 0, %v383
        %v393 = vsel %vm391, %v392, %v383
        %v394 = vshrl.u32 %v393, 2
        %v395 = vand.u32 %v393, 3
        %v396 = vsub.s32 0, %v395
        %v397 = vsel %vm391, %v396, %v395
        %vm398 = vcmp.ne.s32.totalorder %v390, 0
        %vm399 = vcmp.ne.s32.totalorder %v397, 0
        %vm400 = vcmp.lt.s32.totalorder %v390, 0
        %vm401 = vcmp.lt.s32.totalorder %v397, 0
        %vm402 = vmand %vm400, %vm398
        %vm403 = vmand %vm401, %vm399
        %v404 = vadd.s32 %v390, 4
        %v405 = vadd.s32 %v397, 4
        %v406 = vsel %vm402, %v404, %v390
        %v407 = vsel %vm403, %v405, %v397
        %vm408 = vcmp.ne.s32.totalorder %v406, 0
        %vm409 = vcmp.ne.s32.totalorder %v407, 0
        %vm410 = vcmp.ne.s32.totalorder %v406, 3
        %vm411 = vcmp.ne.s32.totalorder %v407, 3
        %v412 = vld [vmem:[#allocation2 + $0x3] sm:$0xff]
        %v413 = vld [vmem:[#allocation2 + $0xb] sm:$0xff]
        %v414 = vpack.c.bf16 %v413, %v412
        %v415 = vld [vmem:[%s4] sm:$0xff]
        %v416 = vld [vmem:[%s4 + $0x8] sm:$0xff]
        %v417 = vpack.c.bf16 %v416, %v415
        %v419 = vsel %vm324, %v414, 0
        %421 = vmatprep.subr.bf16.mxu0 0
        %422 = vmatpush1.bf16.msra.mxu0 0
        %423 = vmatprep.subr.bf16.mxu0 0
        %424 = vmatpush1.bf16.msra.mxu0 0
        %425 = vmatprep.subr.bf16.mxu0 0
        %426 = vmatpush1.bf16.msra.mxu0 0
        %427 = vmatprep.subr.bf16.mxu0 0
        %428 = vmatpush1.bf16.msra.mxu0 0
        %429 = vmatprep.subr.bf16.mxu0 0
        %430 = vmatpush1.bf16.msra.mxu0 0
        %431 = vmatprep.subr.bf16.mxu0 0
        %432 = vmatpush1.bf16.msra.mxu0 0
        %433 = vmatprep.subr.bf16.mxu0 0
        %434 = vmatpush1.bf16.msra.mxu0 0
        %435 = vmatprep.subr.bf16.mxu0 0
        %436 = vmatpush1.bf16.msra.mxu0 %v417
        %437 = vmatprep.subr.bf16.mxu0 0
        %438 = vmatpush2.bf16.msra.mxu0 0
        %439 = vmatprep.subr.bf16.mxu0 0
        %440 = vmatpush2.bf16.msra.mxu0 0
        %441 = vmatprep.subr.bf16.mxu0 0
        %442 = vmatpush2.bf16.msra.mxu0 0
        %443 = vmatprep.subr.bf16.mxu0 0
        %444 = vmatpush2.bf16.msra.mxu0 0
        %445 = vmatprep.subr.bf16.mxu0 0
        %446 = vmatpush2.bf16.msra.mxu0 0
        %447 = vmatprep.subr.bf16.mxu0 0
        %448 = vmatpush2.bf16.msra.mxu0 0
        %449 = vmatprep.subr.bf16.mxu0 0
        %450 = vmatpush2.bf16.msra.mxu0 0
        %451 = vmatprep.subr.bf16.mxu0 0
        %452 = vmatpush2.bf16.msra.mxu0 0
        %453 = vmatprep.mubr.bf16.mxu0 0
        %454 = vmatmul.mubr.bf16.gmra.mxu0 %v419
        %v455 = vpop.f32.mrf.mxu0
        %v456 = vadd.f32 0.0, %v455
        %v457 = vpop.f32.mrf.mxu0
        %v458 = vpop.f32.mrf.mxu0
        %v459 = vadd.f32 0.0, %v458
        %v460 = vpop.f32.mrf.mxu0
        %461 = vdwg.mxu0
        %v462 = vsel %vm408, 1, 0
        %v463 = vsel %vm409, 1, 0
        %vm464 = vcmp.eq.s32.totalorder %v462, 1
        %vm465 = vcmp.eq.s32.totalorder %v463, 1
        %v466 = vsel %vm464, %v456, 0.0
        %v467 = vsel %vm465, %v459, 0.0
        %v468 = vadd.f32 %v466, 0.0
        %v469 = vadd.f32 %v467, 0.0
        %v470 = vld [vmem:[#allocation2 + $0x4] sm:$0xff]
        %v471 = vld [vmem:[#allocation2 + $0xc] sm:$0xff]
        %v472 = vpack.c.bf16 %v471, %v470
        %s473 = scalar_lea.vmem %s4, 16
        %v474 = vld [vmem:[%s473] sm:$0xff]
        %v475 = vld [vmem:[%s473 + $0x8] sm:$0xff]
        %v476 = vpack.c.bf16 %v475, %v474
        %v478 = vsel %vm324, %v472, 0
        %480 = vmatprep.subr.bf16.mxu0 0
        %481 = vmatpush1.bf16.msra.mxu0 0
        %482 = vmatprep.subr.bf16.mxu0 0
        %483 = vmatpush1.bf16.msra.mxu0 0
        %484 = vmatprep.subr.bf16.mxu0 0
        %485 = vmatpush1.bf16.msra.mxu0 0
        %486 = vmatprep.subr.bf16.mxu0 0
        %487 = vmatpush1.bf16.msra.mxu0 0
        %488 = vmatprep.subr.bf16.mxu0 0
        %489 = vmatpush1.bf16.msra.mxu0 0
        %490 = vmatprep.subr.bf16.mxu0 0
        %491 = vmatpush1.bf16.msra.mxu0 0
        %492 = vmatprep.subr.bf16.mxu0 0
        %493 = vmatpush1.bf16.msra.mxu0 0
        %494 = vmatprep.subr.bf16.mxu0 0
        %495 = vmatpush1.bf16.msra.mxu0 %v476
        %496 = vmatprep.subr.bf16.mxu0 0
        %497 = vmatpush2.bf16.msra.mxu0 0
        %498 = vmatprep.subr.bf16.mxu0 0
        %499 = vmatpush2.bf16.msra.mxu0 0
        %500 = vmatprep.subr.bf16.mxu0 0
        %501 = vmatpush2.bf16.msra.mxu0 0
        %502 = vmatprep.subr.bf16.mxu0 0
        %503 = vmatpush2.bf16.msra.mxu0 0
        %504 = vmatprep.subr.bf16.mxu0 0
        %505 = vmatpush2.bf16.msra.mxu0 0
        %506 = vmatprep.subr.bf16.mxu0 0
        %507 = vmatpush2.bf16.msra.mxu0 0
        %508 = vmatprep.subr.bf16.mxu0 0
        %509 = vmatpush2.bf16.msra.mxu0 0
        %510 = vmatprep.subr.bf16.mxu0 0
        %511 = vmatpush2.bf16.msra.mxu0 0
        %512 = vmatprep.mubr.bf16.mxu0 0
        %513 = vmatmul.mubr.bf16.gmra.mxu0 %v478
        %v514 = vpop.f32.mrf.mxu0
        %v515 = vadd.f32 0.0, %v514
        %v516 = vpop.f32.mrf.mxu0
        %v517 = vpop.f32.mrf.mxu0
        %v518 = vadd.f32 0.0, %v517
        %v519 = vpop.f32.mrf.mxu0
        %520 = vdwg.mxu0
        %v521 = vadd.f32 %v468, %v515
        %v522 = vadd.f32 %v469, %v518
        %v523 = vld [vmem:[#allocation2 + $0x5] sm:$0xff]
        %v524 = vld [vmem:[#allocation2 + $0xd] sm:$0xff]
        %v525 = vpack.c.bf16 %v524, %v523
        %s526 = scalar_lea.vmem %s4, 32
        %v527 = vld [vmem:[%s526] sm:$0xff]
        %v528 = vld [vmem:[%s526 + $0x8] sm:$0xff]
        %v529 = vpack.c.bf16 %v528, %v527
        %v531 = vsel %vm324, %v525, 0
        %533 = vmatprep.subr.bf16.mxu0 0
        %534 = vmatpush1.bf16.msra.mxu0 0
        %535 = vmatprep.subr.bf16.mxu0 0
        %536 = vmatpush1.bf16.msra.mxu0 0
        %537 = vmatprep.subr.bf16.mxu0 0
        %538 = vmatpush1.bf16.msra.mxu0 0
        %539 = vmatprep.subr.bf16.mxu0 0
        %540 = vmatpush1.bf16.msra.mxu0 0
        %541 = vmatprep.subr.bf16.mxu0 0
        %542 = vmatpush1.bf16.msra.mxu0 0
        %543 = vmatprep.subr.bf16.mxu0 0
        %544 = vmatpush1.bf16.msra.mxu0 0
        %545 = vmatprep.subr.bf16.mxu0 0
        %546 = vmatpush1.bf16.msra.mxu0 0
        %547 = vmatprep.subr.bf16.mxu0 0
        %548 = vmatpush1.bf16.msra.mxu0 %v529
        %549 = vmatprep.subr.bf16.mxu0 0
        %550 = vmatpush2.bf16.msra.mxu0 0
        %551 = vmatprep.subr.bf16.mxu0 0
        %552 = vmatpush2.bf16.msra.mxu0 0
        %553 = vmatprep.subr.bf16.mxu0 0
        %554 = vmatpush2.bf16.msra.mxu0 0
        %555 = vmatprep.subr.bf16.mxu0 0
        %556 = vmatpush2.bf16.msra.mxu0 0
        %557 = vmatprep.subr.bf16.mxu0 0
        %558 = vmatpush2.bf16.msra.mxu0 0
        %559 = vmatprep.subr.bf16.mxu0 0
        %560 = vmatpush2.bf16.msra.mxu0 0
        %561 = vmatprep.subr.bf16.mxu0 0
        %562 = vmatpush2.bf16.msra.mxu0 0
        %563 = vmatprep.subr.bf16.mxu0 0
        %564 = vmatpush2.bf16.msra.mxu0 0
        %565 = vmatprep.mubr.bf16.mxu0 0
        %566 = vmatmul.mubr.bf16.gmra.mxu0 %v531
        %v567 = vpop.f32.mrf.mxu0
        %v568 = vadd.f32 0.0, %v567
        %v569 = vpop.f32.mrf.mxu0
        %v570 = vpop.f32.mrf.mxu0
        %v571 = vadd.f32 0.0, %v570
        %v572 = vpop.f32.mrf.mxu0
        %573 = vdwg.mxu0
        %v574 = vsel %vm410, 1, 0
        %v575 = vsel %vm411, 1, 0
        %vm576 = vcmp.eq.s32.totalorder %v574, 1
        %vm577 = vcmp.eq.s32.totalorder %v575, 1
        %v578 = vsel %vm576, %v568, 0.0
        %v579 = vsel %vm577, %v571, 0.0
        %v580 = vadd.f32 %v521, %v578
        %v581 = vadd.f32 %v522, %v579
        %v582 = vld [vmem:[#allocation2 + $0x7] sm:$0xff]
        %v583 = vld [vmem:[#allocation2 + $0xf] sm:$0xff]
        %v584 = vpack.c.bf16 %v583, %v582
        %s585 = scalar_lea.vmem %s4, 48
        %v586 = vld [vmem:[%s585] sm:$0xff]
        %v587 = vld [vmem:[%s585 + $0x8] sm:$0xff]
        %v588 = vpack.c.bf16 %v587, %v586
        %v590 = vsel %vm324, %v584, 0
        %592 = vmatprep.subr.bf16.mxu0 0
        %593 = vmatpush1.bf16.msra.mxu0 0
        %594 = vmatprep.subr.bf16.mxu0 0
        %595 = vmatpush1.bf16.msra.mxu0 0
        %596 = vmatprep.subr.bf16.mxu0 0
        %597 = vmatpush1.bf16.msra.mxu0 0
        %598 = vmatprep.subr.bf16.mxu0 0
        %599 = vmatpush1.bf16.msra.mxu0 0
        %600 = vmatprep.subr.bf16.mxu0 0
        %601 = vmatpush1.bf16.msra.mxu0 0
        %602 = vmatprep.subr.bf16.mxu0 0
        %603 = vmatpush1.bf16.msra.mxu0 0
        %604 = vmatprep.subr.bf16.mxu0 0
        %605 = vmatpush1.bf16.msra.mxu0 0
        %606 = vmatprep.subr.bf16.mxu0 0
        %607 = vmatpush1.bf16.msra.mxu0 %v588
        %608 = vmatprep.subr.bf16.mxu0 0
        %609 = vmatpush2.bf16.msra.mxu0 0
        %610 = vmatprep.subr.bf16.mxu0 0
        %611 = vmatpush2.bf16.msra.mxu0 0
        %612 = vmatprep.subr.bf16.mxu0 0
        %613 = vmatpush2.bf16.msra.mxu0 0
        %614 = vmatprep.subr.bf16.mxu0 0
        %615 = vmatpush2.bf16.msra.mxu0 0
        %616 = vmatprep.subr.bf16.mxu0 0
        %617 = vmatpush2.bf16.msra.mxu0 0
        %618 = vmatprep.subr.bf16.mxu0 0
        %619 = vmatpush2.bf16.msra.mxu0 0
        %620 = vmatprep.subr.bf16.mxu0 0
        %621 = vmatpush2.bf16.msra.mxu0 0
        %622 = vmatprep.subr.bf16.mxu0 0
        %623 = vmatpush2.bf16.msra.mxu0 0
        %624 = vmatprep.mubr.bf16.mxu0 0
        %625 = vmatmul.mubr.bf16.gmra.mxu0 %v590
        %v626 = vpop.f32.mrf.mxu0
        %v627 = vadd.f32 0.0, %v626
        %v628 = vpop.f32.mrf.mxu0
        %v629 = vpop.f32.mrf.mxu0
        %v630 = vadd.f32 0.0, %v629
        %v631 = vpop.f32.mrf.mxu0
        %632 = vdwg.mxu0
        %v633 = vsel %vm464, %v627, 0.0
        %v634 = vsel %vm465, %v630, 0.0
        %v635 = vadd.f32 %v580, %v633
        %v636 = vadd.f32 %v581, %v634
        %v637 = vld [vmem:[#allocation2 + $0x8] sm:$0xff]
        %v638 = vld [vmem:[#allocation2 + $0x10] sm:$0xff]
        %v639 = vpack.c.bf16 %v638, %v637
        %s640 = scalar_lea.vmem %s4, 64
        %v641 = vld [vmem:[%s640] sm:$0xff]
        %v642 = vld [vmem:[%s640 + $0x8] sm:$0xff]
        %v643 = vpack.c.bf16 %v642, %v641
        %v645 = vsel %vm324, %v639, 0
        %647 = vmatprep.subr.bf16.mxu0 0
        %648 = vmatpush1.bf16.msra.mxu0 0
        %649 = vmatprep.subr.bf16.mxu0 0
        %650 = vmatpush1.bf16.msra.mxu0 0
        %651 = vmatprep.subr.bf16.mxu0 0
        %652 = vmatpush1.bf16.msra.mxu0 0
        %653 = vmatprep.subr.bf16.mxu0 0
        %654 = vmatpush1.bf16.msra.mxu0 0
        %655 = vmatprep.subr.bf16.mxu0 0
        %656 = vmatpush1.bf16.msra.mxu0 0
        %657 = vmatprep.subr.bf16.mxu0 0
        %658 = vmatpush1.bf16.msra.mxu0 0
        %659 = vmatprep.subr.bf16.mxu0 0
        %660 = vmatpush1.bf16.msra.mxu0 0
        %661 = vmatprep.subr.bf16.mxu0 0
        %662 = vmatpush1.bf16.msra.mxu0 %v643
        %663 = vmatprep.subr.bf16.mxu0 0
        %664 = vmatpush2.bf16.msra.mxu0 0
        %665 = vmatprep.subr.bf16.mxu0 0
        %666 = vmatpush2.bf16.msra.mxu0 0
        %667 = vmatprep.subr.bf16.mxu0 0
        %668 = vmatpush2.bf16.msra.mxu0 0
        %669 = vmatprep.subr.bf16.mxu0 0
        %670 = vmatpush2.bf16.msra.mxu0 0
        %671 = vmatprep.subr.bf16.mxu0 0
        %672 = vmatpush2.bf16.msra.mxu0 0
        %673 = vmatprep.subr.bf16.mxu0 0
        %674 = vmatpush2.bf16.msra.mxu0 0
        %675 = vmatprep.subr.bf16.mxu0 0
        %676 = vmatpush2.bf16.msra.mxu0 0
        %677 = vmatprep.subr.bf16.mxu0 0
        %678 = vmatpush2.bf16.msra.mxu0 0
        %679 = vmatprep.mubr.bf16.mxu0 0
        %680 = vmatmul.mubr.bf16.gmra.mxu0 %v645
        %v681 = vpop.f32.mrf.mxu0
        %v682 = vadd.f32 0.0, %v681
        %v683 = vpop.f32.mrf.mxu0
        %v684 = vpop.f32.mrf.mxu0
        %v685 = vadd.f32 0.0, %v684
        %v686 = vpop.f32.mrf.mxu0
        %687 = vdwg.mxu0
        %v688 = vadd.f32 %v635, %v682
        %v689 = vadd.f32 %v636, %v685
        %v690 = vld [vmem:[#allocation2 + $0x9] sm:$0xff]
        %v691 = vld [vmem:[#allocation2 + $0x11] sm:$0xff]
        %v692 = vpack.c.bf16 %v691, %v690
        %s693 = scalar_lea.vmem %s4, 80
        %v694 = vld [vmem:[%s693] sm:$0xff]
        %v695 = vld [vmem:[%s693 + $0x8] sm:$0xff]
        %v696 = vpack.c.bf16 %v695, %v694
        %v698 = vsel %vm324, %v692, 0
        %700 = vmatprep.subr.bf16.mxu0 0
        %701 = vmatpush1.bf16.msra.mxu0 0
        %702 = vmatprep.subr.bf16.mxu0 0
        %703 = vmatpush1.bf16.msra.mxu0 0
        %704 = vmatprep.subr.bf16.mxu0 0
        %705 = vmatpush1.bf16.msra.mxu0 0
        %706 = vmatprep.subr.bf16.mxu0 0
        %707 = vmatpush1.bf16.msra.mxu0 0
        %708 = vmatprep.subr.bf16.mxu0 0
        %709 = vmatpush1.bf16.msra.mxu0 0
        %710 = vmatprep.subr.bf16.mxu0 0
        %711 = vmatpush1.bf16.msra.mxu0 0
        %712 = vmatprep.subr.bf16.mxu0 0
        %713 = vmatpush1.bf16.msra.mxu0 0
        %714 = vmatprep.subr.bf16.mxu0 0
        %715 = vmatpush1.bf16.msra.mxu0 %v696
        %716 = vmatprep.subr.bf16.mxu0 0
        %717 = vmatpush2.bf16.msra.mxu0 0
        %718 = vmatprep.subr.bf16.mxu0 0
        %719 = vmatpush2.bf16.msra.mxu0 0
        %720 = vmatprep.subr.bf16.mxu0 0
        %721 = vmatpush2.bf16.msra.mxu0 0
        %722 = vmatprep.subr.bf16.mxu0 0
        %723 = vmatpush2.bf16.msra.mxu0 0
        %724 = vmatprep.subr.bf16.mxu0 0
        %725 = vmatpush2.bf16.msra.mxu0 0
        %726 = vmatprep.subr.bf16.mxu0 0
        %727 = vmatpush2.bf16.msra.mxu0 0
        %728 = vmatprep.subr.bf16.mxu0 0
        %729 = vmatpush2.bf16.msra.mxu0 0
        %730 = vmatprep.subr.bf16.mxu0 0
        %731 = vmatpush2.bf16.msra.mxu0 0
        %732 = vmatprep.mubr.bf16.mxu0 0
        %733 = vmatmul.mubr.bf16.gmra.mxu0 %v698
        %v734 = vpop.f32.mrf.mxu0
        %v735 = vadd.f32 0.0, %v734
        %v736 = vpop.f32.mrf.mxu0
        %v737 = vpop.f32.mrf.mxu0
        %v738 = vadd.f32 0.0, %v737
        %v739 = vpop.f32.mrf.mxu0
        %740 = vdwg.mxu0
        %v741 = vsel %vm576, %v735, 0.0
        %v742 = vsel %vm577, %v738, 0.0
        %v743 = vadd.f32 %v688, %v741
        %v744 = vadd.f32 %v689, %v742
        %v745 = vld [vmem:[#allocation2 + $0xb] sm:$0xff]
        %v746 = vld [vmem:[#allocation2 + $0x13] sm:$0xff]
        %v747 = vpack.c.bf16 %v746, %v745
        %s748 = scalar_lea.vmem %s4, 96
        %v749 = vld [vmem:[%s748] sm:$0xff]
        %v750 = vld [vmem:[%s748 + $0x8] sm:$0xff]
        %v751 = vpack.c.bf16 %v750, %v749
        %v753 = vsel %vm324, %v747, 0
        %755 = vmatprep.subr.bf16.mxu0 0
        %756 = vmatpush1.bf16.msra.mxu0 0
        %757 = vmatprep.subr.bf16.mxu0 0
        %758 = vmatpush1.bf16.msra.mxu0 0
        %759 = vmatprep.subr.bf16.mxu0 0
        %760 = vmatpush1.bf16.msra.mxu0 0
        %761 = vmatprep.subr.bf16.mxu0 0
        %762 = vmatpush1.bf16.msra.mxu0 0
        %763 = vmatprep.subr.bf16.mxu0 0
        %764 = vmatpush1.bf16.msra.mxu0 0
        %765 = vmatprep.subr.bf16.mxu0 0
        %766 = vmatpush1.bf16.msra.mxu0 0
        %767 = vmatprep.subr.bf16.mxu0 0
        %768 = vmatpush1.bf16.msra.mxu0 0
        %769 = vmatprep.subr.bf16.mxu0 0
        %770 = vmatpush1.bf16.msra.mxu0 %v751
        %771 = vmatprep.subr.bf16.mxu0 0
        %772 = vmatpush2.bf16.msra.mxu0 0
        %773 = vmatprep.subr.bf16.mxu0 0
        %774 = vmatpush2.bf16.msra.mxu0 0
        %775 = vmatprep.subr.bf16.mxu0 0
        %776 = vmatpush2.bf16.msra.mxu0 0
        %777 = vmatprep.subr.bf16.mxu0 0
        %778 = vmatpush2.bf16.msra.mxu0 0
        %779 = vmatprep.subr.bf16.mxu0 0
        %780 = vmatpush2.bf16.msra.mxu0 0
        %781 = vmatprep.subr.bf16.mxu0 0
        %782 = vmatpush2.bf16.msra.mxu0 0
        %783 = vmatprep.subr.bf16.mxu0 0
        %784 = vmatpush2.bf16.msra.mxu0 0
        %785 = vmatprep.subr.bf16.mxu0 0
        %786 = vmatpush2.bf16.msra.mxu0 0
        %787 = vmatprep.mubr.bf16.mxu0 0
        %788 = vmatmul.mubr.bf16.gmra.mxu0 %v753
        %v789 = vpop.f32.mrf.mxu0
        %v790 = vadd.f32 0.0, %v789
        %v791 = vpop.f32.mrf.mxu0
        %v792 = vpop.f32.mrf.mxu0
        %v793 = vadd.f32 0.0, %v792
        %v794 = vpop.f32.mrf.mxu0
        %795 = vdwg.mxu0
        %v796 = vsel %vm464, %v790, 0.0
        %v797 = vsel %vm465, %v793, 0.0
        %v798 = vadd.f32 %v743, %v796
        %v799 = vadd.f32 %v744, %v797
        %v800 = vld [vmem:[#allocation2 + $0xc] sm:$0xff]
        %v801 = vld [vmem:[#allocation2 + $0x14] sm:$0xff]
        %v802 = vpack.c.bf16 %v801, %v800
        %s803 = scalar_lea.vmem %s4, 112
        %v804 = vld [vmem:[%s803] sm:$0xff]
        %v805 = vld [vmem:[%s803 + $0x8] sm:$0xff]
        %v806 = vpack.c.bf16 %v805, %v804
        %v808 = vsel %vm324, %v802, 0
        %810 = vmatprep.subr.bf16.mxu0 0
        %811 = vmatpush1.bf16.msra.mxu0 0
        %812 = vmatprep.subr.bf16.mxu0 0
        %813 = vmatpush1.bf16.msra.mxu0 0
        %814 = vmatprep.subr.bf16.mxu0 0
        %815 = vmatpush1.bf16.msra.mxu0 0
        %816 = vmatprep.subr.bf16.mxu0 0
        %817 = vmatpush1.bf16.msra.mxu0 0
        %818 = vmatprep.subr.bf16.mxu0 0
        %819 = vmatpush1.bf16.msra.mxu0 0
        %820 = vmatprep.subr.bf16.mxu0 0
        %821 = vmatpush1.bf16.msra.mxu0 0
        %822 = vmatprep.subr.bf16.mxu0 0
        %823 = vmatpush1.bf16.msra.mxu0 0
        %824 = vmatprep.subr.bf16.mxu0 0
        %825 = vmatpush1.bf16.msra.mxu0 %v806
        %826 = vmatprep.subr.bf16.mxu0 0
        %827 = vmatpush2.bf16.msra.mxu0 0
        %828 = vmatprep.subr.bf16.mxu0 0
        %829 = vmatpush2.bf16.msra.mxu0 0
        %830 = vmatprep.subr.bf16.mxu0 0
        %831 = vmatpush2.bf16.msra.mxu0 0
        %832 = vmatprep.subr.bf16.mxu0 0
        %833 = vmatpush2.bf16.msra.mxu0 0
        %834 = vmatprep.subr.bf16.mxu0 0
        %835 = vmatpush2.bf16.msra.mxu0 0
        %836 = vmatprep.subr.bf16.mxu0 0
        %837 = vmatpush2.bf16.msra.mxu0 0
        %838 = vmatprep.subr.bf16.mxu0 0
        %839 = vmatpush2.bf16.msra.mxu0 0
        %840 = vmatprep.subr.bf16.mxu0 0
        %841 = vmatpush2.bf16.msra.mxu0 0
        %842 = vmatprep.mubr.bf16.mxu0 0
        %843 = vmatmul.mubr.bf16.gmra.mxu0 %v808
        %v844 = vpop.f32.mrf.mxu0
        %v845 = vadd.f32 0.0, %v844
        %v846 = vpop.f32.mrf.mxu0
        %v847 = vpop.f32.mrf.mxu0
        %v848 = vadd.f32 0.0, %v847
        %v849 = vpop.f32.mrf.mxu0
        %850 = vdwg.mxu0
        %v851 = vadd.f32 %v798, %v845
        %v852 = vadd.f32 %v799, %v848
        %v853 = vld [vmem:[#allocation2 + $0xd] sm:$0xff]
        %v854 = vld [vmem:[#allocation2 + $0x15] sm:$0xff]
        %v855 = vpack.c.bf16 %v854, %v853
        %s856 = scalar_lea.vmem %s4, 128
        %v857 = vld [vmem:[%s856] sm:$0xff]
        %v858 = vld [vmem:[%s856 + $0x8] sm:$0xff]
        %v859 = vpack.c.bf16 %v858, %v857
        %v861 = vsel %vm324, %v855, 0
        %863 = vmatprep.subr.bf16.mxu0 0
        %864 = vmatpush1.bf16.msra.mxu0 0
        %865 = vmatprep.subr.bf16.mxu0 0
        %866 = vmatpush1.bf16.msra.mxu0 0
        %867 = vmatprep.subr.bf16.mxu0 0
        %868 = vmatpush1.bf16.msra.mxu0 0
        %869 = vmatprep.subr.bf16.mxu0 0
        %870 = vmatpush1.bf16.msra.mxu0 0
        %871 = vmatprep.subr.bf16.mxu0 0
        %872 = vmatpush1.bf16.msra.mxu0 0
        %873 = vmatprep.subr.bf16.mxu0 0
        %874 = vmatpush1.bf16.msra.mxu0 0
        %875 = vmatprep.subr.bf16.mxu0 0
        %876 = vmatpush1.bf16.msra.mxu0 0
        %877 = vmatprep.subr.bf16.mxu0 0
        %878 = vmatpush1.bf16.msra.mxu0 %v859
        %879 = vmatprep.subr.bf16.mxu0 0
        %880 = vmatpush2.bf16.msra.mxu0 0
        %881 = vmatprep.subr.bf16.mxu0 0
        %882 = vmatpush2.bf16.msra.mxu0 0
        %883 = vmatprep.subr.bf16.mxu0 0
        %884 = vmatpush2.bf16.msra.mxu0 0
        %885 = vmatprep.subr.bf16.mxu0 0
        %886 = vmatpush2.bf16.msra.mxu0 0
        %887 = vmatprep.subr.bf16.mxu0 0
        %888 = vmatpush2.bf16.msra.mxu0 0
        %889 = vmatprep.subr.bf16.mxu0 0
        %890 = vmatpush2.bf16.msra.mxu0 0
        %891 = vmatprep.subr.bf16.mxu0 0
        %892 = vmatpush2.bf16.msra.mxu0 0
        %893 = vmatprep.subr.bf16.mxu0 0
        %894 = vmatpush2.bf16.msra.mxu0 0
        %895 = vmatprep.mubr.bf16.mxu0 0
        %896 = vmatmul.mubr.bf16.gmra.mxu0 %v861
        %v897 = vpop.f32.mrf.mxu0
        %v898 = vadd.f32 0.0, %v897
        %v899 = vpop.f32.mrf.mxu0
        %v900 = vpop.f32.mrf.mxu0
        %v901 = vadd.f32 0.0, %v900
        %v902 = vpop.f32.mrf.mxu0
        %903 = vdwg.mxu0
        %v904 = vsel %vm576, %v898, 0.0
        %v905 = vsel %vm577, %v901, 0.0
        %v906 = vadd.f32 %v851, %v904
        %v907 = vadd.f32 %v852, %v905
        %v908 = vld [vmem:[%s5] sm:$0x1]
        %v910 = vlaneseq
        %v911 = vshrl.u32 %v910, 7
        %v912 = vsub.s32 0, %v911
        %v913 = vrot.slane %v908, %v912
        %v915 = vadd.f32 %v906, %v913
        %v916 = vadd.f32 %v907, %v913
        %917 = vst.msk [vmem:[%s294] sm:$0xff] %vm324, %v915
        %918 = vst.msk [vmem:[%s294 + $0x8] sm:$0xff] %vm324, %v916
        %p919 = scmp.lt.s32.totalorder %s22, 1
        %s920 = scalar_select %p919, %s22, 1
        %s921 = smul.addr %s920, 2
        %s922 = smul.addr %s921, 8
        %s923 = scalar_lea.vmem %s6, %s922
        %s924 = sand.u32 %s192, 1
        %s925 = scalar_lea.sflag [#allocation4], %s924
        %s926 = sand.u32 %s192, 1
        %s927 = smul.addr %s926, 16
        %s928 = scalar_lea.vmem [#allocation3], %s927
        // Predicated region
        $region45: #{fpn_forward_pallas.5} parent=43 // pred_check
          %p929 = pneg %p176
        $region46: #{fpn_forward_pallas.5} parent=43 // pred_check_branch
          %931 = sbr.rel (%p929) target = $region48
        $region47: #{fpn_forward_pallas.5} parent=43 // pred_region
          _
        $region48: #{fpn_forward_pallas.5} parent=43 // pred_fallthru
          _
        // Predicated region
        $region49: #{fpn_forward_pallas.5} parent=43 // pred_check
          %p932 = pneg %p202
        $region50: #{fpn_forward_pallas.5} parent=43 // pred_check_branch
          %934 = sbr.rel (%p932) target = $region52
        $region51: #{fpn_forward_pallas.5} parent=43 // pred_region
          %s936 = ssub.s32 256, 256
          %937 = vsyncadd %s925, %s936
          %s938 = smul.addr %s22, 2
          %s939 = smul.addr %s938, 128
          %s940 = scalar_lea.hbm %s7, %s939
          %s941 = sshll.u32 %s928, 4
          %s942 = int_to_ptr.vmem [resolvable:$true] %s941
          %947 = dma.vmem_to_hbm [thread:$0]  %s942, 256, %s940, %s925, 128, 128, 8
        $region52: #{fpn_forward_pallas.5} parent=43 // pred_fallthru
          _
      $region44: #{fpn_forward_pallas.5} parent=5 // pred_fallthru
        _
      %p948 = scmp.le.s32.totalorder 2, %s17
      // Predicated region
      $region53: #{fpn_forward_pallas.5} parent=5 // pred_check
        %p949 = pneg %p948
      $region54: #{fpn_forward_pallas.5} parent=5 // pred_check_branch
        %951 = sbr.rel (%p949) target = $region56
      $region55: #{fpn_forward_pallas.5} parent=5 // pred_region
        %s952 = ssub.s32 %s17, 2
        // Predicated region
        $region57: #{fpn_forward_pallas.5} parent=55 // pred_check
          %p953 = pneg %p182
        $region58: #{fpn_forward_pallas.5} parent=55 // pred_check_branch
          %955 = sbr.rel (%p953) target = $region60
        $region59: #{fpn_forward_pallas.5} parent=55 // pred_region
          %p956 = scmp.lt.s32.totalorder %s23, 1
          %s957 = scalar_select %p956, %s23, 1
          %s958 = smul.addr %s957, 2
          %s959 = smul.addr %s958, 8
          %s960 = scalar_lea.vmem %s6, %s959
        $region60: #{fpn_forward_pallas.5} parent=55 // pred_fallthru
          _
        // Predicated region
        $region61: #{fpn_forward_pallas.5} parent=55 // pred_check
          %p961 = pneg %p208
        $region62: #{fpn_forward_pallas.5} parent=55 // pred_check_branch
          %963 = sbr.rel (%p961) target = $region64
        $region63: #{fpn_forward_pallas.5} parent=55 // pred_region
          %s964 = sand.u32 %s193, 1
          %s965 = scalar_lea.sflag [#allocation4], %s964
          %s966 = sand.u32 %s193, 1
          %s967 = smul.addr %s966, 16
          %s968 = scalar_lea.vmem [#allocation3], %s967
          %969 = dma.done %s965, 256
        $region64: #{fpn_forward_pallas.5} parent=55 // pred_fallthru
          _
      $region56: #{fpn_forward_pallas.5} parent=5 // pred_fallthru
        _
    $region6: #{fpn_forward_pallas.5} parent=1 // loop_footer
      %s21 = sadd.s32 1, %s17
    $region7: #{fpn_forward_pallas.5} parent=1 // loop_footer_branch
      %16 = sbr.rel target = $region3
    $region8: #{fpn_forward_pallas.5} parent=1 // loop_exit
      _
    %970 = vsyncpa [#allocation4], 1
    %s971 = scalar_lea.sflag [#allocation4], 1
    %972 = vsyncpa %s971, 1

// kernel: fpn_forward_pallas.4
$region0: #{fpn_forward_pallas.4}
  #allocation0 [shape = 'u32[]', space=smem, size = 0x4, offset = 0x4, fixed_abs, tag = 'smem constant byte address 0x4 - core index']
  #allocation1 [shape = 'u32[144,128]{1,0:T(1,128)}', space=vmem, size = 0x12000, scoped, tag = 'internal scratch']
  #allocation2 [shape = 'f32[20,16]{1,0:T(8,128)}', space=vmem, size = 0x3000, scoped, tag = 'scratch operand']
  %s0 = inlined_call_operand.vmem [shape: f32[2,4,32], index: 0, kind: input, shape index: {}]
  %s1 = inlined_call_operand.vmem [shape: f32[32,16], index: 1, kind: input, shape index: {}]
  %s2 = inlined_call_operand.vmem [shape: f32[1,16], index: 2, kind: input, shape index: {}]
  %s3 = inlined_call_operand.hbm [shape: f32[9,16,16], index: 3, kind: input, shape index: {}]
  %s4 = inlined_call_operand.vmem [shape: f32[1,16], index: 4, kind: input, shape index: {}]
  %s5 = inlined_call_operand.vmem [shape: f32[2,4,16], index: 5, kind: output, shape index: {0}]
  %s6 = inlined_call_operand.hbm [shape: f32[2,4,16], index: 6, kind: output, shape index: {1}]
  %7 = xla_tuple %s5, %s6
  %s8 = sld [smem:[#allocation0]]
  $region65: #{fpn_forward_pallas.4} parent=0
    _
  %s10 = ssub.s32 1, %s8
  %s11 = scalar_select 0, %s10, %s8
  $region1: #{fpn_forward_pallas.4} parent=0
    #allocation3 [shape = 'u8[73728]{0}', space=vmem, size = 0x12000, scoped, tag = 'input window, operand 3, single buffered']
    #allocation4 [shape = 's32[2]{0}', space=sflag, size = 0x8, scoped, tag = 'scoped memory for fpn_forward_pallas.4']
    #allocation5 [shape = 's32[2]{0}', space=sflag, size = 0x8, scoped, tag = 'scoped memory for fpn_forward_pallas.4']
    #allocation6 [shape = 'u8[4096]{0}', space=vmem, size = 0x1000, scoped, tag = 'output window, operand 1']
    %12 = vsyncpa [#allocation4], 0
    %13 = vsyncpa [#allocation5], 0
    %s14 = scalar_lea.sflag [#allocation5], 1
    %15 = vsyncpa %s14, 0
    loop: start=0, step=1, limit=4
    $region2: #{fpn_forward_pallas.4} parent=1 // loop_pre_header
      _
    $region3: #{fpn_forward_pallas.4} parent=1 // loop_header
      %s17 = sphi 0, %s21
      %p18 = scmp.ge.s32.totalorder %s17, 4
      %s27 = sphi 0, %s29
      %s30 = sphi 0, %s27
      %s31 = sphi 0, %s30
      %s47 = sphi 0, %s31
      %s51 = sphi 0, %s51
      %s53 = sphi 0, %s51
      %s54 = sphi 0, %s53
      %s68 = sphi 0, %s54
      %s72 = sphi 0, %s72
      %s74 = sphi 0, %s72
      %s75 = sphi 0, %s74
      %s89 = sphi 0, %s75
      %s93 = sphi 0, %s93
      %s95 = sphi 0, %s93
      %s96 = sphi 0, %s95
      %s110 = sphi 0, %s96
      %s114 = sphi 0, %s114
      %s116 = sphi 0, %s114
      %s117 = sphi 0, %s116
      %s131 = sphi 0, %s117
      %s137 = sphi 0, %s139
      %s140 = sphi 0, %s137
      %s141 = sphi 0, %s140
      %s157 = sphi 0, %s141
      %s163 = sphi 0, %s165
      %s166 = sphi 0, %s163
      %s167 = sphi 0, %s166
      %s183 = sphi 0, %s167
    $region4: #{fpn_forward_pallas.4} parent=1 // loop_header_branch
      %20 = sbr.rel (%p18) target = $region8
    $region5: #{fpn_forward_pallas.4} parent=1 // loop_body
      %s22 = ssub.s32 %s17, 1
      %s23 = ssub.s32 %s17, 2
      %s24 = sadd.s32 %s17, 1
      %s25 = ssub.s32 %s17, %s24
      %p26 = scmp.eq.s32.totalorder %s25, 0
      %s28 = sadd.s32 %s27, 1
      %s29 = scalar_select %p26, %s27, %s28
      %p32 = pneg %p26
      %p33 = scmp.eq.s32.totalorder %s17, 1
      %p34 = por %p32, %p33
      %p35 = scmp.ne.s32.totalorder %s27, %s30
      %p36 = scmp.eq.s32.totalorder %s17, 0
      %p37 = por %p35, %p36
      %p38 = scmp.ne.s32.totalorder %s27, %s30
      %p39 = scmp.eq.s32.totalorder %s22, 1
      %p40 = por %p38, %p39
      %p41 = scmp.ne.s32.totalorder %s30, %s31
      %p42 = scmp.eq.s32.totalorder %s22, 0
      %p43 = por %p41, %p42
      %p44 = scmp.ne.s32.totalorder %s30, %s31
      %p45 = scmp.eq.s32.totalorder %s23, 1
      %p46 = por %p44, %p45
      %p48 = scmp.ne.s32.totalorder %s31, %s47
      %p49 = scmp.eq.s32.totalorder %s23, 0
      %p50 = por %p48, %p49
      %s52 = sadd.s32 %s51, 1
      %p55 = scmp.eq.s32.totalorder %s17, 1
      %p56 = scmp.ne.s32.totalorder %s51, %s53
      %p57 = scmp.eq.s32.totalorder %s17, 0
      %p58 = por %p56, %p57
      %p59 = scmp.ne.s32.totalorder %s51, %s53
      %p60 = scmp.eq.s32.totalorder %s22, 1
      %p61 = por %p59, %p60
      %p62 = scmp.ne.s32.totalorder %s53, %s54
      %p63 = scmp.eq.s32.totalorder %s22, 0
      %p64 = por %p62, %p63
      %p65 = scmp.ne.s32.totalorder %s53, %s54
      %p66 = scmp.eq.s32.totalorder %s23, 1
      %p67 = por %p65, %p66
      %p69 = scmp.ne.s32.totalorder %s54, %s68
      %p70 = scmp.eq.s32.totalorder %s23, 0
      %p71 = por %p69, %p70
      %s73 = sadd.s32 %s72, 1
      %p76 = scmp.eq.s32.totalorder %s17, 1
      %p77 = scmp.ne.s32.totalorder %s72, %s74
      %p78 = scmp.eq.s32.totalorder %s17, 0
      %p79 = por %p77, %p78
      %p80 = scmp.ne.s32.totalorder %s72, %s74
      %p81 = scmp.eq.s32.totalorder %s22, 1
      %p82 = por %p80, %p81
      %p83 = scmp.ne.s32.totalorder %s74, %s75
      %p84 = scmp.eq.s32.totalorder %s22, 0
      %p85 = por %p83, %p84
      %p86 = scmp.ne.s32.totalorder %s74, %s75
      %p87 = scmp.eq.s32.totalorder %s23, 1
      %p88 = por %p86, %p87
      %p90 = scmp.ne.s32.totalorder %s75, %s89
      %p91 = scmp.eq.s32.totalorder %s23, 0
      %p92 = por %p90, %p91
      %s94 = sadd.s32 %s93, 1
      %p97 = scmp.eq.s32.totalorder %s17, 1
      %p98 = scmp.ne.s32.totalorder %s93, %s95
      %p99 = scmp.eq.s32.totalorder %s17, 0
      %p100 = por %p98, %p99
      %p101 = scmp.ne.s32.totalorder %s93, %s95
      %p102 = scmp.eq.s32.totalorder %s22, 1
      %p103 = por %p101, %p102
      %p104 = scmp.ne.s32.totalorder %s95, %s96
      %p105 = scmp.eq.s32.totalorder %s22, 0
      %p106 = por %p104, %p105
      %p107 = scmp.ne.s32.totalorder %s95, %s96
      %p108 = scmp.eq.s32.totalorder %s23, 1
      %p109 = por %p107, %p108
      %p111 = scmp.ne.s32.totalorder %s96, %s110
      %p112 = scmp.eq.s32.totalorder %s23, 0
      %p113 = por %p111, %p112
      %s115 = sadd.s32 %s114, 1
      %p118 = scmp.eq.s32.totalorder %s17, 1
      %p119 = scmp.ne.s32.totalorder %s114, %s116
      %p120 = scmp.eq.s32.totalorder %s17, 0
      %p121 = por %p119, %p120
      %p122 = scmp.ne.s32.totalorder %s114, %s116
      %p123 = scmp.eq.s32.totalorder %s22, 1
      %p124 = por %p122, %p123
      %p125 = scmp.ne.s32.totalorder %s116, %s117
      %p126 = scmp.eq.s32.totalorder %s22, 0
      %p127 = por %p125, %p126
      %p128 = scmp.ne.s32.totalorder %s116, %s117
      %p129 = scmp.eq.s32.totalorder %s23, 1
      %p130 = por %p128, %p129
      %p132 = scmp.ne.s32.totalorder %s117, %s131
      %p133 = scmp.eq.s32.totalorder %s23, 0
      %p134 = por %p132, %p133
      %s135 = ssub.s32 %s17, %s24
      %p136 = scmp.eq.s32.totalorder %s135, 0
      %s138 = sadd.s32 %s137, 1
      %s139 = scalar_select %p136, %s137, %s138
      %p142 = pneg %p136
      %p143 = scmp.eq.s32.totalorder %s17, 1
      %p144 = por %p142, %p143
      %p145 = scmp.ne.s32.totalorder %s137, %s140
      %p146 = scmp.eq.s32.totalorder %s17, 0
      %p147 = por %p145, %p146
      %p148 = scmp.ne.s32.totalorder %s137, %s140
      %p149 = scmp.eq.s32.totalorder %s22, 1
      %p150 = por %p148, %p149
      %p151 = scmp.ne.s32.totalorder %s140, %s141
      %p152 = scmp.eq.s32.totalorder %s22, 0
      %p153 = por %p151, %p152
      %p154 = scmp.ne.s32.totalorder %s140, %s141
      %p155 = scmp.eq.s32.totalorder %s23, 1
      %p156 = por %p154, %p155
      %p158 = scmp.ne.s32.totalorder %s141, %s157
      %p159 = scmp.eq.s32.totalorder %s23, 0
      %p160 = por %p158, %p159
      %s161 = ssub.s32 %s17, %s24
      %p162 = scmp.eq.s32.totalorder %s161, 0
      %s164 = sadd.s32 %s163, 1
      %s165 = scalar_select %p162, %s163, %s164
      %p168 = pneg %p162
      %p169 = scmp.eq.s32.totalorder %s17, 1
      %p170 = por %p168, %p169
      %p171 = scmp.ne.s32.totalorder %s163, %s166
      %p172 = scmp.eq.s32.totalorder %s17, 0
      %p173 = por %p171, %p172
      %p174 = scmp.ne.s32.totalorder %s163, %s166
      %p175 = scmp.eq.s32.totalorder %s22, 1
      %p176 = por %p174, %p175
      %p177 = scmp.ne.s32.totalorder %s166, %s167
      %p178 = scmp.eq.s32.totalorder %s22, 0
      %p179 = por %p177, %p178
      %p180 = scmp.ne.s32.totalorder %s166, %s167
      %p181 = scmp.eq.s32.totalorder %s23, 1
      %p182 = por %p180, %p181
      %p184 = scmp.ne.s32.totalorder %s167, %s183
      %p185 = scmp.eq.s32.totalorder %s23, 0
      %p186 = por %p184, %p185
      %p187 = scmp.le.s32.totalorder 1, %s17
      %p188 = scmp.lt.s32.totalorder %s17, 3
      %p189 = pnand %p187, %p188
      %p190 = pneg %p189
      // Predicated region
      $region9: #{fpn_forward_pallas.4} parent=5 // pred_check
        _
      $region10: #{fpn_forward_pallas.4} parent=5 // pred_check_branch
        %192 = sbr.rel (%p189) target = $region12
      $region11: #{fpn_forward_pallas.4} parent=5 // pred_region
        %s193 = ssub.s32 %s17, 1
        // Predicated region
        $region13: #{fpn_forward_pallas.4} parent=11 // pred_check
          %p194 = pneg %p64
        $region14: #{fpn_forward_pallas.4} parent=11 // pred_check_branch
          %196 = sbr.rel (%p194) target = $region16
        $region15: #{fpn_forward_pallas.4} parent=11 // pred_region
          _
        $region16: #{fpn_forward_pallas.4} parent=11 // pred_fallthru
          _
        // Predicated region
        $region17: #{fpn_forward_pallas.4} parent=11 // pred_check
          %p197 = pneg %p85
        $region18: #{fpn_forward_pallas.4} parent=11 // pred_check_branch
          %199 = sbr.rel (%p197) target = $region20
        $region19: #{fpn_forward_pallas.4} parent=11 // pred_region
          _
        $region20: #{fpn_forward_pallas.4} parent=11 // pred_fallthru
          _
        // Predicated region
        $region21: #{fpn_forward_pallas.4} parent=11 // pred_check
          %p200 = pneg %p106
        $region22: #{fpn_forward_pallas.4} parent=11 // pred_check_branch
          %202 = sbr.rel (%p200) target = $region24
        $region23: #{fpn_forward_pallas.4} parent=11 // pred_region
          %s204 = ssub.s32 2304, 2304
          %205 = vsyncadd [#allocation4], %s204
          %s206 = sshll.u32 [#allocation3], 4
          %s207 = int_to_ptr.vmem [resolvable:$true] %s206
          %212 = dma.hbm_to_vmem [thread:$0]  %s3, 2304, %s207, [#allocation4], 128, 128, 8
        $region24: #{fpn_forward_pallas.4} parent=11 // pred_fallthru
          _
        // Predicated region
        $region25: #{fpn_forward_pallas.4} parent=11 // pred_check
          %p213 = pneg %p127
        $region26: #{fpn_forward_pallas.4} parent=11 // pred_check_branch
          %215 = sbr.rel (%p213) target = $region28
        $region27: #{fpn_forward_pallas.4} parent=11 // pred_region
          _
        $region28: #{fpn_forward_pallas.4} parent=11 // pred_fallthru
          _
      $region12: #{fpn_forward_pallas.4} parent=5 // pred_fallthru
        _
      %p216 = scmp.lt.s32.totalorder %s17, 2
      // Predicated region
      $region29: #{fpn_forward_pallas.4} parent=5 // pred_check
        %p217 = pneg %p216
      $region30: #{fpn_forward_pallas.4} parent=5 // pred_check_branch
        %219 = sbr.rel (%p217) target = $region32
      $region31: #{fpn_forward_pallas.4} parent=5 // pred_region
        // Predicated region
        $region33: #{fpn_forward_pallas.4} parent=31 // pred_check
          %p220 = pneg %p37
        $region34: #{fpn_forward_pallas.4} parent=31 // pred_check_branch
          %222 = sbr.rel (%p220) target = $region36
        $region35: #{fpn_forward_pallas.4} parent=31 // pred_region
          %p223 = scmp.lt.s32.totalorder %s17, 1
          %s224 = scalar_select %p223, %s17, 1
          %s225 = smul.addr %s224, 4
          %s226 = scalar_lea.vmem %s0, %s225
        $region36: #{fpn_forward_pallas.4} parent=31 // pred_fallthru
          _
      $region32: #{fpn_forward_pallas.4} parent=5 // pred_fallthru
        _
      %p227 = scmp.le.s32.totalorder 1, %s17
      %p228 = scmp.lt.s32.totalorder %s17, 3
      %p229 = pnand %p227, %p228
      %p230 = pneg %p229
      // Predicated region
      $region37: #{fpn_forward_pallas.4} parent=5 // pred_check
        _
      $region38: #{fpn_forward_pallas.4} parent=5 // pred_check_branch
        %232 = sbr.rel (%p229) target = $region40
      $region39: #{fpn_forward_pallas.4} parent=5 // pred_region
        %s233 = ssub.s32 %s17, 1
        // Predicated region
        $region41: #{fpn_forward_pallas.4} parent=39 // pred_check
          %p234 = pneg %p106
        $region42: #{fpn_forward_pallas.4} parent=39 // pred_check_branch
          %236 = sbr.rel (%p234) target = $region44
        $region43: #{fpn_forward_pallas.4} parent=39 // pred_region
          %237 = dma.done [#allocation4], 2304
        $region44: #{fpn_forward_pallas.4} parent=39 // pred_fallthru
          _
        %p238 = scmp.lt.s32.totalorder %s22, 1
        %s239 = scalar_select %p238, %s22, 1
        %s240 = smul.addr %s239, 4
        %s241 = scalar_lea.vmem %s0, %s240
        %p242 = pneg %p43
        %p243 = pneg %p40
        %p244 = pneg %p64
        %p245 = pneg %p61
        %p246 = pneg %p85
        %p247 = pneg %p82
        %p248 = pneg %p106
        %p249 = pneg %p103
        %p250 = pneg %p127
        %p251 = pneg %p124
        %p252 = pneg %p153
        %p253 = pneg %p150
        %p254 = scmp.lt.s32.totalorder %s22, 1
        %s255 = scalar_select %p254, %s22, 1
        %s256 = smul.addr %s255, 4
        %s257 = scalar_lea.vmem %s5, %s256
        %p258 = pneg %p179
        %p259 = pneg %p176
        %s260 = sand.u32 %s166, 1
        %s261 = scalar_lea.sflag [#allocation5], %s260
        %s262 = sand.u32 %s166, 1
        %s263 = smul.addr %s262, 4
        %s264 = scalar_lea.vmem [#allocation6], %s263
        %p265 = scmp.lt.s32.totalorder %s22, 1
        %s266 = scalar_select %p265, %s22, 1
        %s267 = smul.addr %s266, 4
        %s268 = scalar_lea.vmem %s0, %s267
        %p269 = scmp.lt.s32.totalorder %s22, 1
        %s270 = scalar_select %p269, %s22, 1
        %s271 = smul.addr %s270, 4
        %s272 = scalar_lea.vmem %s5, %s271
        %v274 = vld [vmem:[%s268] sm:$0xf]
        %v275 = vpack.c.bf16 %v274, %v274
        %v276 = vld [vmem:[%s1] sm:$0xff]
        %v277 = vld [vmem:[%s1 + $0x8] sm:$0xff]
        %v278 = vld [vmem:[%s1 + $0x10] sm:$0xff]
        %v279 = vld [vmem:[%s1 + $0x18] sm:$0xff]
        %v280 = vpack.c.bf16 %v277, %v276
        %v281 = vpack.c.bf16 %v279, %v278
        %v282 = vld [vmem:[%s2] sm:$0x1]
        %v284 = vlaneseq
        %v285 = vshrl.u32 %v284, 7
        %v286 = vsub.s32 0, %v285
        %v287 = vrot.slane %v282, %v286
        %vm289 = vcmask 261120
        %v291 = vsel %vm289, %v275, 0
        %293 = vmatprep.subr.bf16.mxu0 0
        %294 = vmatpush1.bf16.msra.mxu0 0
        %295 = vmatprep.subr.bf16.mxu0 0
        %296 = vmatpush1.bf16.msra.mxu0 0
        %297 = vmatprep.subr.bf16.mxu0 0
        %298 = vmatpush1.bf16.msra.mxu0 0
        %299 = vmatprep.subr.bf16.mxu0 0
        %300 = vmatpush1.bf16.msra.mxu0 0
        %301 = vmatprep.subr.bf16.mxu0 0
        %302 = vmatpush1.bf16.msra.mxu0 0
        %303 = vmatprep.subr.bf16.mxu0 0
        %304 = vmatpush1.bf16.msra.mxu0 0
        %305 = vmatprep.subr.bf16.mxu0 0
        %306 = vmatpush1.bf16.msra.mxu0 %v281
        %307 = vmatprep.subr.bf16.mxu0 0
        %308 = vmatpush1.bf16.msra.mxu0 %v280
        %309 = vmatprep.subr.bf16.mxu0 0
        %310 = vmatpush2.bf16.msra.mxu0 0
        %311 = vmatprep.subr.bf16.mxu0 0
        %312 = vmatpush2.bf16.msra.mxu0 0
        %313 = vmatprep.subr.bf16.mxu0 0
        %314 = vmatpush2.bf16.msra.mxu0 0
        %315 = vmatprep.subr.bf16.mxu0 0
        %316 = vmatpush2.bf16.msra.mxu0 0
        %317 = vmatprep.subr.bf16.mxu0 0
        %318 = vmatpush2.bf16.msra.mxu0 0
        %319 = vmatprep.subr.bf16.mxu0 0
        %320 = vmatpush2.bf16.msra.mxu0 0
        %321 = vmatprep.subr.bf16.mxu0 0
        %322 = vmatpush2.bf16.msra.mxu0 0
        %323 = vmatprep.subr.bf16.mxu0 0
        %324 = vmatpush2.bf16.msra.mxu0 0
        %325 = vmatprep.mubr.bf16.mxu0 0
        %326 = vmatmul.mubr.bf16.gmra.mxu0 %v291
        %v327 = vpop.f32.mrf.mxu0
        %v328 = vadd.f32 %v287, %v327
        %v329 = vpop.f32.mrf.mxu0
        %v330 = vpop.f32.mrf.mxu0
        %v331 = vpop.f32.mrf.mxu0
        %332 = vdwg.mxu0
        %vm333 = vcmask 125952
        %334 = vst.msk [vmem:[%s272] sm:$0xf] %vm333, %v328
        %vm335 = vcmask 130048
        %336 = vst.msk [vmem:[#allocation2] sm:$0xff] %vm335, 0.0
        %337 = vst.msk [vmem:[#allocation2 + $0x8] sm:$0xff] %vm335, 0.0
        %338 = vst.msk [vmem:[#allocation2 + $0x10] sm:$0xf] %vm333, 0.0
        %339 = vst.msk [vmem:[#allocation2 + $0x8] sm:$0xf] %vm333, %v328
        %v340 = vlaneseq
        %v341 = vshrl.u32 %v340, 7
        %vm342 = vcmp.lt.s32.totalorder %v341, 0
        %v343 = vsub.s32 0, %v341
        %v344 = vsel %vm342, %v343, %v341
        %v345 = vshrl.u32 %v344, 1
        %v346 = vand.u32 %v344, 1
        %v347 = vsub.s32 0, %v346
        %v348 = vsel %vm342, %v347, %v346
        %vm349 = vcmp.ne.s32.totalorder %v348, 0
        %vm350 = vcmp.lt.s32.totalorder %v348, 0
        %vm351 = vmand %vm350, %vm349
        %v352 = vadd.s32 %v348, 2
        %v353 = vsel %vm351, %v352, %v348
        %vm354 = vcmp.ne.s32.totalorder %v353, 0
        %vm355 = vcmp.ne.s32.totalorder %v353, 1
        %v356 = vld [vmem:[#allocation2 + $0x5] sm:$0xf]
        %v357 = vpack.c.bf16 %v356, %v356
        %v358 = vld [vmem:[#allocation3] sm:$0xff]
        %v359 = vld [vmem:[#allocation3 + $0x8] sm:$0xff]
        %v360 = vpack.c.bf16 %v359, %v358
        %v362 = vsel %vm335, %v357, 0
        %364 = vmatprep.subr.bf16.mxu0 0
        %365 = vmatpush1.bf16.msra.mxu0 0
        %366 = vmatprep.subr.bf16.mxu0 0
        %367 = vmatpush1.bf16.msra.mxu0 0
        %368 = vmatprep.subr.bf16.mxu0 0
        %369 = vmatpush1.bf16.msra.mxu0 0
        %370 = vmatprep.subr.bf16.mxu0 0
        %371 = vmatpush1.bf16.msra.mxu0 0
        %372 = vmatprep.subr.bf16.mxu0 0
        %373 = vmatpush1.bf16.msra.mxu0 0
        %374 = vmatprep.subr.bf16.mxu0 0
        %375 = vmatpush1.bf16.msra.mxu0 0
        %376 = vmatprep.subr.bf16.mxu0 0
        %377 = vmatpush1.bf16.msra.mxu0 0
        %378 = vmatprep.subr.bf16.mxu0 0
        %379 = vmatpush1.bf16.msra.mxu0 %v360
        %380 = vmatprep.subr.bf16.mxu0 0
        %381 = vmatpush2.bf16.msra.mxu0 0
        %382 = vmatprep.subr.bf16.mxu0 0
        %383 = vmatpush2.bf16.msra.mxu0 0
        %384 = vmatprep.subr.bf16.mxu0 0
        %385 = vmatpush2.bf16.msra.mxu0 0
        %386 = vmatprep.subr.bf16.mxu0 0
        %387 = vmatpush2.bf16.msra.mxu0 0
        %388 = vmatprep.subr.bf16.mxu0 0
        %389 = vmatpush2.bf16.msra.mxu0 0
        %390 = vmatprep.subr.bf16.mxu0 0
        %391 = vmatpush2.bf16.msra.mxu0 0
        %392 = vmatprep.subr.bf16.mxu0 0
        %393 = vmatpush2.bf16.msra.mxu0 0
        %394 = vmatprep.subr.bf16.mxu0 0
        %395 = vmatpush2.bf16.msra.mxu0 0
        %396 = vmatprep.mubr.bf16.mxu0 0
        %397 = vmatmul.mubr.bf16.gmra.mxu0 %v362
        %v398 = vpop.f32.mrf.mxu0
        %v399 = vadd.f32 0.0, %v398
        %v400 = vpop.f32.mrf.mxu0
        %v401 = vpop.f32.mrf.mxu0
        %v402 = vpop.f32.mrf.mxu0
        %403 = vdwg.mxu0
        %v404 = vsel %vm354, 1, 0
        %vm405 = vcmp.eq.s32.totalorder %v404, 1
        %v406 = vsel %vm405, %v399, 0.0
        %v407 = vadd.f32 %v406, 0.0
        %v408 = vld [vmem:[#allocation2 + $0x6] sm:$0xf]
        %v409 = vpack.c.bf16 %v408, %v408
        %s410 = scalar_lea.vmem [#allocation3], 16
        %v411 = vld [vmem:[%s410] sm:$0xff]
        %v412 = vld [vmem:[%s410 + $0x8] sm:$0xff]
        %v413 = vpack.c.bf16 %v412, %v411
        %v415 = vsel %vm335, %v409, 0
        %417 = vmatprep.subr.bf16.mxu0 0
        %418 = vmatpush1.bf16.msra.mxu0 0
        %419 = vmatprep.subr.bf16.mxu0 0
        %420 = vmatpush1.bf16.msra.mxu0 0
        %421 = vmatprep.subr.bf16.mxu0 0
        %422 = vmatpush1.bf16.msra.mxu0 0
        %423 = vmatprep.subr.bf16.mxu0 0
        %424 = vmatpush1.bf16.msra.mxu0 0
        %425 = vmatprep.subr.bf16.mxu0 0
        %426 = vmatpush1.bf16.msra.mxu0 0
        %427 = vmatprep.subr.bf16.mxu0 0
        %428 = vmatpush1.bf16.msra.mxu0 0
        %429 = vmatprep.subr.bf16.mxu0 0
        %430 = vmatpush1.bf16.msra.mxu0 0
        %431 = vmatprep.subr.bf16.mxu0 0
        %432 = vmatpush1.bf16.msra.mxu0 %v413
        %433 = vmatprep.subr.bf16.mxu0 0
        %434 = vmatpush2.bf16.msra.mxu0 0
        %435 = vmatprep.subr.bf16.mxu0 0
        %436 = vmatpush2.bf16.msra.mxu0 0
        %437 = vmatprep.subr.bf16.mxu0 0
        %438 = vmatpush2.bf16.msra.mxu0 0
        %439 = vmatprep.subr.bf16.mxu0 0
        %440 = vmatpush2.bf16.msra.mxu0 0
        %441 = vmatprep.subr.bf16.mxu0 0
        %442 = vmatpush2.bf16.msra.mxu0 0
        %443 = vmatprep.subr.bf16.mxu0 0
        %444 = vmatpush2.bf16.msra.mxu0 0
        %445 = vmatprep.subr.bf16.mxu0 0
        %446 = vmatpush2.bf16.msra.mxu0 0
        %447 = vmatprep.subr.bf16.mxu0 0
        %448 = vmatpush2.bf16.msra.mxu0 0
        %449 = vmatprep.mubr.bf16.mxu0 0
        %450 = vmatmul.mubr.bf16.gmra.mxu0 %v415
        %v451 = vpop.f32.mrf.mxu0
        %v452 = vadd.f32 0.0, %v451
        %v453 = vpop.f32.mrf.mxu0
        %v454 = vpop.f32.mrf.mxu0
        %v455 = vpop.f32.mrf.mxu0
        %456 = vdwg.mxu0
        %v457 = vadd.f32 %v407, %v452
        %v458 = vld [vmem:[#allocation2 + $0x7] sm:$0xf]
        %v459 = vpack.c.bf16 %v458, %v458
        %s460 = scalar_lea.vmem [#allocation3], 32
        %v461 = vld [vmem:[%s460] sm:$0xff]
        %v462 = vld [vmem:[%s460 + $0x8] sm:$0xff]
        %v463 = vpack.c.bf16 %v462, %v461
        %v465 = vsel %vm335, %v459, 0
        %467 = vmatprep.subr.bf16.mxu0 0
        %468 = vmatpush1.bf16.msra.mxu0 0
        %469 = vmatprep.subr.bf16.mxu0 0
        %470 = vmatpush1.bf16.msra.mxu0 0
        %471 = vmatprep.subr.bf16.mxu0 0
        %472 = vmatpush1.bf16.msra.mxu0 0
        %473 = vmatprep.subr.bf16.mxu0 0
        %474 = vmatpush1.bf16.msra.mxu0 0
        %475 = vmatprep.subr.bf16.mxu0 0
        %476 = vmatpush1.bf16.msra.mxu0 0
        %477 = vmatprep.subr.bf16.mxu0 0
        %478 = vmatpush1.bf16.msra.mxu0 0
        %479 = vmatprep.subr.bf16.mxu0 0
        %480 = vmatpush1.bf16.msra.mxu0 0
        %481 = vmatprep.subr.bf16.mxu0 0
        %482 = vmatpush1.bf16.msra.mxu0 %v463
        %483 = vmatprep.subr.bf16.mxu0 0
        %484 = vmatpush2.bf16.msra.mxu0 0
        %485 = vmatprep.subr.bf16.mxu0 0
        %486 = vmatpush2.bf16.msra.mxu0 0
        %487 = vmatprep.subr.bf16.mxu0 0
        %488 = vmatpush2.bf16.msra.mxu0 0
        %489 = vmatprep.subr.bf16.mxu0 0
        %490 = vmatpush2.bf16.msra.mxu0 0
        %491 = vmatprep.subr.bf16.mxu0 0
        %492 = vmatpush2.bf16.msra.mxu0 0
        %493 = vmatprep.subr.bf16.mxu0 0
        %494 = vmatpush2.bf16.msra.mxu0 0
        %495 = vmatprep.subr.bf16.mxu0 0
        %496 = vmatpush2.bf16.msra.mxu0 0
        %497 = vmatprep.subr.bf16.mxu0 0
        %498 = vmatpush2.bf16.msra.mxu0 0
        %499 = vmatprep.mubr.bf16.mxu0 0
        %500 = vmatmul.mubr.bf16.gmra.mxu0 %v465
        %v501 = vpop.f32.mrf.mxu0
        %v502 = vadd.f32 0.0, %v501
        %v503 = vpop.f32.mrf.mxu0
        %v504 = vpop.f32.mrf.mxu0
        %v505 = vpop.f32.mrf.mxu0
        %506 = vdwg.mxu0
        %v507 = vsel %vm355, 1, 0
        %vm508 = vcmp.eq.s32.totalorder %v507, 1
        %v509 = vsel %vm508, %v502, 0.0
        %v510 = vadd.f32 %v457, %v509
        %s511 = scalar_lea.vmem [#allocation3], 48
        %v512 = vld [vmem:[%s511] sm:$0xff]
        %v513 = vld [vmem:[%s511 + $0x8] sm:$0xff]
        %v514 = vpack.c.bf16 %v513, %v512
        %515 = vmatprep.subr.bf16.mxu0 0
        %516 = vmatpush1.bf16.msra.mxu0 0
        %517 = vmatprep.subr.bf16.mxu0 0
        %518 = vmatpush1.bf16.msra.mxu0 0
        %519 = vmatprep.subr.bf16.mxu0 0
        %520 = vmatpush1.bf16.msra.mxu0 0
        %521 = vmatprep.subr.bf16.mxu0 0
        %522 = vmatpush1.bf16.msra.mxu0 0
        %523 = vmatprep.subr.bf16.mxu0 0
        %524 = vmatpush1.bf16.msra.mxu0 0
        %525 = vmatprep.subr.bf16.mxu0 0
        %526 = vmatpush1.bf16.msra.mxu0 0
        %527 = vmatprep.subr.bf16.mxu0 0
        %528 = vmatpush1.bf16.msra.mxu0 0
        %529 = vmatprep.subr.bf16.mxu0 0
        %530 = vmatpush1.bf16.msra.mxu0 %v514
        %531 = vmatprep.subr.bf16.mxu0 0
        %532 = vmatpush2.bf16.msra.mxu0 0
        %533 = vmatprep.subr.bf16.mxu0 0
        %534 = vmatpush2.bf16.msra.mxu0 0
        %535 = vmatprep.subr.bf16.mxu0 0
        %536 = vmatpush2.bf16.msra.mxu0 0
        %537 = vmatprep.subr.bf16.mxu0 0
        %538 = vmatpush2.bf16.msra.mxu0 0
        %539 = vmatprep.subr.bf16.mxu0 0
        %540 = vmatpush2.bf16.msra.mxu0 0
        %541 = vmatprep.subr.bf16.mxu0 0
        %542 = vmatpush2.bf16.msra.mxu0 0
        %543 = vmatprep.subr.bf16.mxu0 0
        %544 = vmatpush2.bf16.msra.mxu0 0
        %545 = vmatprep.subr.bf16.mxu0 0
        %546 = vmatpush2.bf16.msra.mxu0 0
        %547 = vmatprep.mubr.bf16.mxu0 0
        %548 = vmatmul.mubr.bf16.gmra.mxu0 %v465
        %v549 = vpop.f32.mrf.mxu0
        %v550 = vadd.f32 0.0, %v549
        %v551 = vpop.f32.mrf.mxu0
        %v552 = vpop.f32.mrf.mxu0
        %v553 = vpop.f32.mrf.mxu0
        %554 = vdwg.mxu0
        %v555 = vsel %vm405, %v550, 0.0
        %v556 = vadd.f32 %v510, %v555
        %v557 = vld [vmem:[#allocation2 + $0x8] sm:$0xf]
        %v558 = vpack.c.bf16 %v557, %v557
        %s559 = scalar_lea.vmem [#allocation3], 64
        %v560 = vld [vmem:[%s559] sm:$0xff]
        %v561 = vld [vmem:[%s559 + $0x8] sm:$0xff]
        %v562 = vpack.c.bf16 %v561, %v560
        %v564 = vsel %vm335, %v558, 0
        %566 = vmatprep.subr.bf16.mxu0 0
        %567 = vmatpush1.bf16.msra.mxu0 0
        %568 = vmatprep.subr.bf16.mxu0 0
        %569 = vmatpush1.bf16.msra.mxu0 0
        %570 = vmatprep.subr.bf16.mxu0 0
        %571 = vmatpush1.bf16.msra.mxu0 0
        %572 = vmatprep.subr.bf16.mxu0 0
        %573 = vmatpush1.bf16.msra.mxu0 0
        %574 = vmatprep.subr.bf16.mxu0 0
        %575 = vmatpush1.bf16.msra.mxu0 0
        %576 = vmatprep.subr.bf16.mxu0 0
        %577 = vmatpush1.bf16.msra.mxu0 0
        %578 = vmatprep.subr.bf16.mxu0 0
        %579 = vmatpush1.bf16.msra.mxu0 0
        %580 = vmatprep.subr.bf16.mxu0 0
        %581 = vmatpush1.bf16.msra.mxu0 %v562
        %582 = vmatprep.subr.bf16.mxu0 0
        %583 = vmatpush2.bf16.msra.mxu0 0
        %584 = vmatprep.subr.bf16.mxu0 0
        %585 = vmatpush2.bf16.msra.mxu0 0
        %586 = vmatprep.subr.bf16.mxu0 0
        %587 = vmatpush2.bf16.msra.mxu0 0
        %588 = vmatprep.subr.bf16.mxu0 0
        %589 = vmatpush2.bf16.msra.mxu0 0
        %590 = vmatprep.subr.bf16.mxu0 0
        %591 = vmatpush2.bf16.msra.mxu0 0
        %592 = vmatprep.subr.bf16.mxu0 0
        %593 = vmatpush2.bf16.msra.mxu0 0
        %594 = vmatprep.subr.bf16.mxu0 0
        %595 = vmatpush2.bf16.msra.mxu0 0
        %596 = vmatprep.subr.bf16.mxu0 0
        %597 = vmatpush2.bf16.msra.mxu0 0
        %598 = vmatprep.mubr.bf16.mxu0 0
        %599 = vmatmul.mubr.bf16.gmra.mxu0 %v564
        %v600 = vpop.f32.mrf.mxu0
        %v601 = vadd.f32 0.0, %v600
        %v602 = vpop.f32.mrf.mxu0
        %v603 = vpop.f32.mrf.mxu0
        %v604 = vpop.f32.mrf.mxu0
        %605 = vdwg.mxu0
        %v606 = vadd.f32 %v556, %v601
        %v607 = vld [vmem:[#allocation2 + $0x9] sm:$0xf]
        %v608 = vpack.c.bf16 %v607, %v607
        %s609 = scalar_lea.vmem [#allocation3], 80
        %v610 = vld [vmem:[%s609] sm:$0xff]
        %v611 = vld [vmem:[%s609 + $0x8] sm:$0xff]
        %v612 = vpack.c.bf16 %v611, %v610
        %v614 = vsel %vm335, %v608, 0
        %616 = vmatprep.subr.bf16.mxu0 0
        %617 = vmatpush1.bf16.msra.mxu0 0
        %618 = vmatprep.subr.bf16.mxu0 0
        %619 = vmatpush1.bf16.msra.mxu0 0
        %620 = vmatprep.subr.bf16.mxu0 0
        %621 = vmatpush1.bf16.msra.mxu0 0
        %622 = vmatprep.subr.bf16.mxu0 0
        %623 = vmatpush1.bf16.msra.mxu0 0
        %624 = vmatprep.subr.bf16.mxu0 0
        %625 = vmatpush1.bf16.msra.mxu0 0
        %626 = vmatprep.subr.bf16.mxu0 0
        %627 = vmatpush1.bf16.msra.mxu0 0
        %628 = vmatprep.subr.bf16.mxu0 0
        %629 = vmatpush1.bf16.msra.mxu0 0
        %630 = vmatprep.subr.bf16.mxu0 0
        %631 = vmatpush1.bf16.msra.mxu0 %v612
        %632 = vmatprep.subr.bf16.mxu0 0
        %633 = vmatpush2.bf16.msra.mxu0 0
        %634 = vmatprep.subr.bf16.mxu0 0
        %635 = vmatpush2.bf16.msra.mxu0 0
        %636 = vmatprep.subr.bf16.mxu0 0
        %637 = vmatpush2.bf16.msra.mxu0 0
        %638 = vmatprep.subr.bf16.mxu0 0
        %639 = vmatpush2.bf16.msra.mxu0 0
        %640 = vmatprep.subr.bf16.mxu0 0
        %641 = vmatpush2.bf16.msra.mxu0 0
        %642 = vmatprep.subr.bf16.mxu0 0
        %643 = vmatpush2.bf16.msra.mxu0 0
        %644 = vmatprep.subr.bf16.mxu0 0
        %645 = vmatpush2.bf16.msra.mxu0 0
        %646 = vmatprep.subr.bf16.mxu0 0
        %647 = vmatpush2.bf16.msra.mxu0 0
        %648 = vmatprep.mubr.bf16.mxu0 0
        %649 = vmatmul.mubr.bf16.gmra.mxu0 %v614
        %v650 = vpop.f32.mrf.mxu0
        %v651 = vadd.f32 0.0, %v650
        %v652 = vpop.f32.mrf.mxu0
        %v653 = vpop.f32.mrf.mxu0
        %v654 = vpop.f32.mrf.mxu0
        %655 = vdwg.mxu0
        %v656 = vsel %vm508, %v651, 0.0
        %v657 = vadd.f32 %v606, %v656
        %s658 = scalar_lea.vmem [#allocation3], 96
        %v659 = vld [vmem:[%s658] sm:$0xff]
        %v660 = vld [vmem:[%s658 + $0x8] sm:$0xff]
        %v661 = vpack.c.bf16 %v660, %v659
        %662 = vmatprep.subr.bf16.mxu0 0
        %663 = vmatpush1.bf16.msra.mxu0 0
        %664 = vmatprep.subr.bf16.mxu0 0
        %665 = vmatpush1.bf16.msra.mxu0 0
        %666 = vmatprep.subr.bf16.mxu0 0
        %667 = vmatpush1.bf16.msra.mxu0 0
        %668 = vmatprep.subr.bf16.mxu0 0
        %669 = vmatpush1.bf16.msra.mxu0 0
        %670 = vmatprep.subr.bf16.mxu0 0
        %671 = vmatpush1.bf16.msra.mxu0 0
        %672 = vmatprep.subr.bf16.mxu0 0
        %673 = vmatpush1.bf16.msra.mxu0 0
        %674 = vmatprep.subr.bf16.mxu0 0
        %675 = vmatpush1.bf16.msra.mxu0 0
        %676 = vmatprep.subr.bf16.mxu0 0
        %677 = vmatpush1.bf16.msra.mxu0 %v661
        %678 = vmatprep.subr.bf16.mxu0 0
        %679 = vmatpush2.bf16.msra.mxu0 0
        %680 = vmatprep.subr.bf16.mxu0 0
        %681 = vmatpush2.bf16.msra.mxu0 0
        %682 = vmatprep.subr.bf16.mxu0 0
        %683 = vmatpush2.bf16.msra.mxu0 0
        %684 = vmatprep.subr.bf16.mxu0 0
        %685 = vmatpush2.bf16.msra.mxu0 0
        %686 = vmatprep.subr.bf16.mxu0 0
        %687 = vmatpush2.bf16.msra.mxu0 0
        %688 = vmatprep.subr.bf16.mxu0 0
        %689 = vmatpush2.bf16.msra.mxu0 0
        %690 = vmatprep.subr.bf16.mxu0 0
        %691 = vmatpush2.bf16.msra.mxu0 0
        %692 = vmatprep.subr.bf16.mxu0 0
        %693 = vmatpush2.bf16.msra.mxu0 0
        %694 = vmatprep.mubr.bf16.mxu0 0
        %695 = vmatmul.mubr.bf16.gmra.mxu0 %v614
        %v696 = vpop.f32.mrf.mxu0
        %v697 = vadd.f32 0.0, %v696
        %v698 = vpop.f32.mrf.mxu0
        %v699 = vpop.f32.mrf.mxu0
        %v700 = vpop.f32.mrf.mxu0
        %701 = vdwg.mxu0
        %v702 = vsel %vm405, %v697, 0.0
        %v703 = vadd.f32 %v657, %v702
        %v704 = vld [vmem:[#allocation2 + $0xa] sm:$0xf]
        %v705 = vpack.c.bf16 %v704, %v704
        %s706 = scalar_lea.vmem [#allocation3], 112
        %v707 = vld [vmem:[%s706] sm:$0xff]
        %v708 = vld [vmem:[%s706 + $0x8] sm:$0xff]
        %v709 = vpack.c.bf16 %v708, %v707
        %v711 = vsel %vm335, %v705, 0
        %713 = vmatprep.subr.bf16.mxu0 0
        %714 = vmatpush1.bf16.msra.mxu0 0
        %715 = vmatprep.subr.bf16.mxu0 0
        %716 = vmatpush1.bf16.msra.mxu0 0
        %717 = vmatprep.subr.bf16.mxu0 0
        %718 = vmatpush1.bf16.msra.mxu0 0
        %719 = vmatprep.subr.bf16.mxu0 0
        %720 = vmatpush1.bf16.msra.mxu0 0
        %721 = vmatprep.subr.bf16.mxu0 0
        %722 = vmatpush1.bf16.msra.mxu0 0
        %723 = vmatprep.subr.bf16.mxu0 0
        %724 = vmatpush1.bf16.msra.mxu0 0
        %725 = vmatprep.subr.bf16.mxu0 0
        %726 = vmatpush1.bf16.msra.mxu0 0
        %727 = vmatprep.subr.bf16.mxu0 0
        %728 = vmatpush1.bf16.msra.mxu0 %v709
        %729 = vmatprep.subr.bf16.mxu0 0
        %730 = vmatpush2.bf16.msra.mxu0 0
        %731 = vmatprep.subr.bf16.mxu0 0
        %732 = vmatpush2.bf16.msra.mxu0 0
        %733 = vmatprep.subr.bf16.mxu0 0
        %734 = vmatpush2.bf16.msra.mxu0 0
        %735 = vmatprep.subr.bf16.mxu0 0
        %736 = vmatpush2.bf16.msra.mxu0 0
        %737 = vmatprep.subr.bf16.mxu0 0
        %738 = vmatpush2.bf16.msra.mxu0 0
        %739 = vmatprep.subr.bf16.mxu0 0
        %740 = vmatpush2.bf16.msra.mxu0 0
        %741 = vmatprep.subr.bf16.mxu0 0
        %742 = vmatpush2.bf16.msra.mxu0 0
        %743 = vmatprep.subr.bf16.mxu0 0
        %744 = vmatpush2.bf16.msra.mxu0 0
        %745 = vmatprep.mubr.bf16.mxu0 0
        %746 = vmatmul.mubr.bf16.gmra.mxu0 %v711
        %v747 = vpop.f32.mrf.mxu0
        %v748 = vadd.f32 0.0, %v747
        %v749 = vpop.f32.mrf.mxu0
        %v750 = vpop.f32.mrf.mxu0
        %v751 = vpop.f32.mrf.mxu0
        %752 = vdwg.mxu0
        %v753 = vadd.f32 %v703, %v748
        %v754 = vld [vmem:[#allocation2 + $0xb] sm:$0xf]
        %v755 = vpack.c.bf16 %v754, %v754
        %s756 = scalar_lea.vmem [#allocation3], 128
        %v757 = vld [vmem:[%s756] sm:$0xff]
        %v758 = vld [vmem:[%s756 + $0x8] sm:$0xff]
        %v759 = vpack.c.bf16 %v758, %v757
        %v761 = vsel %vm335, %v755, 0
        %763 = vmatprep.subr.bf16.mxu0 0
        %764 = vmatpush1.bf16.msra.mxu0 0
        %765 = vmatprep.subr.bf16.mxu0 0
        %766 = vmatpush1.bf16.msra.mxu0 0
        %767 = vmatprep.subr.bf16.mxu0 0
        %768 = vmatpush1.bf16.msra.mxu0 0
        %769 = vmatprep.subr.bf16.mxu0 0
        %770 = vmatpush1.bf16.msra.mxu0 0
        %771 = vmatprep.subr.bf16.mxu0 0
        %772 = vmatpush1.bf16.msra.mxu0 0
        %773 = vmatprep.subr.bf16.mxu0 0
        %774 = vmatpush1.bf16.msra.mxu0 0
        %775 = vmatprep.subr.bf16.mxu0 0
        %776 = vmatpush1.bf16.msra.mxu0 0
        %777 = vmatprep.subr.bf16.mxu0 0
        %778 = vmatpush1.bf16.msra.mxu0 %v759
        %779 = vmatprep.subr.bf16.mxu0 0
        %780 = vmatpush2.bf16.msra.mxu0 0
        %781 = vmatprep.subr.bf16.mxu0 0
        %782 = vmatpush2.bf16.msra.mxu0 0
        %783 = vmatprep.subr.bf16.mxu0 0
        %784 = vmatpush2.bf16.msra.mxu0 0
        %785 = vmatprep.subr.bf16.mxu0 0
        %786 = vmatpush2.bf16.msra.mxu0 0
        %787 = vmatprep.subr.bf16.mxu0 0
        %788 = vmatpush2.bf16.msra.mxu0 0
        %789 = vmatprep.subr.bf16.mxu0 0
        %790 = vmatpush2.bf16.msra.mxu0 0
        %791 = vmatprep.subr.bf16.mxu0 0
        %792 = vmatpush2.bf16.msra.mxu0 0
        %793 = vmatprep.subr.bf16.mxu0 0
        %794 = vmatpush2.bf16.msra.mxu0 0
        %795 = vmatprep.mubr.bf16.mxu0 0
        %796 = vmatmul.mubr.bf16.gmra.mxu0 %v761
        %v797 = vpop.f32.mrf.mxu0
        %v798 = vadd.f32 0.0, %v797
        %v799 = vpop.f32.mrf.mxu0
        %v800 = vpop.f32.mrf.mxu0
        %v801 = vpop.f32.mrf.mxu0
        %802 = vdwg.mxu0
        %v803 = vsel %vm508, %v798, 0.0
        %v804 = vadd.f32 %v753, %v803
        %v805 = vld [vmem:[%s4] sm:$0x1]
        %v807 = vlaneseq
        %v808 = vshrl.u32 %v807, 7
        %v809 = vsub.s32 0, %v808
        %v810 = vrot.slane %v805, %v809
        %v812 = vadd.f32 %v804, %v810
        %813 = vst.msk [vmem:[%s264] sm:$0xf] %vm333, %v812
        %p814 = scmp.lt.s32.totalorder %s22, 1
        %s815 = scalar_select %p814, %s22, 1
        %s816 = smul.addr %s815, 4
        %s817 = scalar_lea.vmem %s5, %s816
        %s818 = sand.u32 %s166, 1
        %s819 = scalar_lea.sflag [#allocation5], %s818
        %s820 = sand.u32 %s166, 1
        %s821 = smul.addr %s820, 4
        %s822 = scalar_lea.vmem [#allocation6], %s821
        // Predicated region
        $region45: #{fpn_forward_pallas.4} parent=39 // pred_check
          %p823 = pneg %p150
        $region46: #{fpn_forward_pallas.4} parent=39 // pred_check_branch
          %825 = sbr.rel (%p823) target = $region48
        $region47: #{fpn_forward_pallas.4} parent=39 // pred_region
          _
        $region48: #{fpn_forward_pallas.4} parent=39 // pred_fallthru
          _
        // Predicated region
        $region49: #{fpn_forward_pallas.4} parent=39 // pred_check
          %p826 = pneg %p176
        $region50: #{fpn_forward_pallas.4} parent=39 // pred_check_branch
          %828 = sbr.rel (%p826) target = $region52
        $region51: #{fpn_forward_pallas.4} parent=39 // pred_region
          %s830 = ssub.s32 64, 64
          %831 = vsyncadd %s819, %s830
          %s832 = smul.addr %s22, 64
          %s833 = scalar_lea.hbm %s6, %s832
          %s835 = sshll.u32 %s822, 4
          %s836 = int_to_ptr.vmem [resolvable:$true] %s835
          %838 = dma.vmem_to_hbm [thread:$0]  %s836, 64, %s833, %s819
        $region52: #{fpn_forward_pallas.4} parent=39 // pred_fallthru
          _
      $region40: #{fpn_forward_pallas.4} parent=5 // pred_fallthru
        _
      %p839 = scmp.le.s32.totalorder 2, %s17
      // Predicated region
      $region53: #{fpn_forward_pallas.4} parent=5 // pred_check
        %p840 = pneg %p839
      $region54: #{fpn_forward_pallas.4} parent=5 // pred_check_branch
        %842 = sbr.rel (%p840) target = $region56
      $region55: #{fpn_forward_pallas.4} parent=5 // pred_region
        %s843 = ssub.s32 %s17, 2
        // Predicated region
        $region57: #{fpn_forward_pallas.4} parent=55 // pred_check
          %p844 = pneg %p156
        $region58: #{fpn_forward_pallas.4} parent=55 // pred_check_branch
          %846 = sbr.rel (%p844) target = $region60
        $region59: #{fpn_forward_pallas.4} parent=55 // pred_region
          %p847 = scmp.lt.s32.totalorder %s23, 1
          %s848 = scalar_select %p847, %s23, 1
          %s849 = smul.addr %s848, 4
          %s850 = scalar_lea.vmem %s5, %s849
        $region60: #{fpn_forward_pallas.4} parent=55 // pred_fallthru
          _
        // Predicated region
        $region61: #{fpn_forward_pallas.4} parent=55 // pred_check
          %p851 = pneg %p182
        $region62: #{fpn_forward_pallas.4} parent=55 // pred_check_branch
          %853 = sbr.rel (%p851) target = $region64
        $region63: #{fpn_forward_pallas.4} parent=55 // pred_region
          %s854 = sand.u32 %s167, 1
          %s855 = scalar_lea.sflag [#allocation5], %s854
          %s856 = sand.u32 %s167, 1
          %s857 = smul.addr %s856, 4
          %s858 = scalar_lea.vmem [#allocation6], %s857
          %859 = dma.done %s855, 64
        $region64: #{fpn_forward_pallas.4} parent=55 // pred_fallthru
          _
      $region56: #{fpn_forward_pallas.4} parent=5 // pred_fallthru
        _
    $region6: #{fpn_forward_pallas.4} parent=1 // loop_footer
      %s21 = sadd.s32 1, %s17
    $region7: #{fpn_forward_pallas.4} parent=1 // loop_footer_branch
      %16 = sbr.rel target = $region3
    $region8: #{fpn_forward_pallas.4} parent=1 // loop_exit
      _
    %860 = vsyncpa [#allocation4], 1
    %s861 = scalar_lea.sflag [#allocation4], 1
    %862 = vsyncpa %s861, 1
    %863 = vsyncpa [#allocation5], 1
    %s864 = scalar_lea.sflag [#allocation5], 1
    %865 = vsyncpa %s864, 1

// kernel: fpn_forward_pallas.6
$region0: #{fpn_forward_pallas.6}
  #allocation0 [shape = 'u32[]', space=smem, size = 0x4, offset = 0x4, fixed_abs, tag = 'smem constant byte address 0x4 - core index']
  #allocation1 [shape = 'u32[144,128]{1,0:T(1,128)}', space=vmem, size = 0x12000, scoped, tag = 'internal scratch']
  #allocation2 [shape = 'f32[96,16]{1,0:T(8,128)}', space=vmem, size = 0xc000, scoped, tag = 'scratch operand']
  %s0 = inlined_call_operand.vmem [shape: f32[2,64,8], index: 0, kind: input, shape index: {}]
  %s1 = inlined_call_operand.vmem [shape: f32[2,64,16], index: 1, kind: input, shape index: {}]
  %s2 = inlined_call_operand.vmem [shape: f32[2,64,1], index: 2, kind: input, shape index: {}]
  %s3 = inlined_call_operand.vmem [shape: f32[8,16], index: 3, kind: input, shape index: {}]
  %s4 = inlined_call_operand.vmem [shape: f32[1,16], index: 4, kind: input, shape index: {}]
  %s5 = inlined_call_operand.vmem [shape: f32[9,16,16], index: 5, kind: input, shape index: {}]
  %s6 = inlined_call_operand.vmem [shape: f32[1,16], index: 6, kind: input, shape index: {}]
  %s7 = inlined_call_operand.vmem [shape: f32[2,64,16], index: 7, kind: output, shape index: {0}]
  %s8 = inlined_call_operand.hbm [shape: f32[2,64,16], index: 8, kind: output, shape index: {1}]
  %9 = xla_tuple %s7, %s8
  %s10 = sld [smem:[#allocation0]]
  $region69: #{fpn_forward_pallas.6} parent=0
    _
  %s12 = ssub.s32 1, %s10
  %s13 = scalar_select 0, %s12, %s10
  $region1: #{fpn_forward_pallas.6} parent=0
    #allocation3 [shape = 'u8[65536]{0}', space=vmem, size = 0x10000, scoped, tag = 'output window, operand 1']
    #allocation4 [shape = 's32[2]{0}', space=sflag, size = 0x8, scoped, tag = 'scoped memory for fpn_forward_pallas.6']
    %14 = vsyncpa [#allocation4], 0
    %s15 = scalar_lea.sflag [#allocation4], 1
    %16 = vsyncpa %s15, 0
    loop: start=0, step=1, limit=4
    $region2: #{fpn_forward_pallas.6} parent=1 // loop_pre_header
      _
    $region3: #{fpn_forward_pallas.6} parent=1 // loop_header
      %s18 = sphi 0, %s22
      %p19 = scmp.ge.s32.totalorder %s18, 4
      %s28 = sphi 0, %s30
      %s31 = sphi 0, %s28
      %s32 = sphi 0, %s31
      %s48 = sphi 0, %s32
      %s54 = sphi 0, %s56
      %s57 = sphi 0, %s54
      %s58 = sphi 0, %s57
      %s74 = sphi 0, %s58
      %s80 = sphi 0, %s82
      %s83 = sphi 0, %s80
      %s84 = sphi 0, %s83
      %s100 = sphi 0, %s84
      %s104 = sphi 0, %s104
      %s106 = sphi 0, %s104
      %s107 = sphi 0, %s106
      %s121 = sphi 0, %s107
      %s125 = sphi 0, %s125
      %s127 = sphi 0, %s125
      %s128 = sphi 0, %s127
      %s142 = sphi 0, %s128
      %s146 = sphi 0, %s146
      %s148 = sphi 0, %s146
      %s149 = sphi 0, %s148
      %s163 = sphi 0, %s149
      %s167 = sphi 0, %s167
      %s169 = sphi 0, %s167
      %s170 = sphi 0, %s169
      %s184 = sphi 0, %s170
      %s190 = sphi 0, %s192
      %s193 = sphi 0, %s190
      %s194 = sphi 0, %s193
      %s210 = sphi 0, %s194
      %s216 = sphi 0, %s218
      %s219 = sphi 0, %s216
      %s220 = sphi 0, %s219
      %s236 = sphi 0, %s220
    $region4: #{fpn_forward_pallas.6} parent=1 // loop_header_branch
      %21 = sbr.rel (%p19) target = $region8
    $region5: #{fpn_forward_pallas.6} parent=1 // loop_body
      %s23 = ssub.s32 %s18, 1
      %s24 = ssub.s32 %s18, 2
      %s25 = sadd.s32 %s18, 1
      %s26 = ssub.s32 %s18, %s25
      %p27 = scmp.eq.s32.totalorder %s26, 0
      %s29 = sadd.s32 %s28, 1
      %s30 = scalar_select %p27, %s28, %s29
      %p33 = pneg %p27
      %p34 = scmp.eq.s32.totalorder %s18, 1
      %p35 = por %p33, %p34
      %p36 = scmp.ne.s32.totalorder %s28, %s31
      %p37 = scmp.eq.s32.totalorder %s18, 0
      %p38 = por %p36, %p37
      %p39 = scmp.ne.s32.totalorder %s28, %s31
      %p40 = scmp.eq.s32.totalorder %s23, 1
      %p41 = por %p39, %p40
      %p42 = scmp.ne.s32.totalorder %s31, %s32
      %p43 = scmp.eq.s32.totalorder %s23, 0
      %p44 = por %p42, %p43
      %p45 = scmp.ne.s32.totalorder %s31, %s32
      %p46 = scmp.eq.s32.totalorder %s24, 1
      %p47 = por %p45, %p46
      %p49 = scmp.ne.s32.totalorder %s32, %s48
      %p50 = scmp.eq.s32.totalorder %s24, 0
      %p51 = por %p49, %p50
      %s52 = ssub.s32 %s18, %s25
      %p53 = scmp.eq.s32.totalorder %s52, 0
      %s55 = sadd.s32 %s54, 1
      %s56 = scalar_select %p53, %s54, %s55
      %p59 = pneg %p53
      %p60 = scmp.eq.s32.totalorder %s18, 1
      %p61 = por %p59, %p60
      %p62 = scmp.ne.s32.totalorder %s54, %s57
      %p63 = scmp.eq.s32.totalorder %s18, 0
      %p64 = por %p62, %p63
      %p65 = scmp.ne.s32.totalorder %s54, %s57
      %p66 = scmp.eq.s32.totalorder %s23, 1
      %p67 = por %p65, %p66
      %p68 = scmp.ne.s32.totalorder %s57, %s58
      %p69 = scmp.eq.s32.totalorder %s23, 0
      %p70 = por %p68, %p69
      %p71 = scmp.ne.s32.totalorder %s57, %s58
      %p72 = scmp.eq.s32.totalorder %s24, 1
      %p73 = por %p71, %p72
      %p75 = scmp.ne.s32.totalorder %s58, %s74
      %p76 = scmp.eq.s32.totalorder %s24, 0
      %p77 = por %p75, %p76
      %s78 = ssub.s32 %s18, %s25
      %p79 = scmp.eq.s32.totalorder %s78, 0
      %s81 = sadd.s32 %s80, 1
      %s82 = scalar_select %p79, %s80, %s81
      %p85 = pneg %p79
      %p86 = scmp.eq.s32.totalorder %s18, 1
      %p87 = por %p85, %p86
      %p88 = scmp.ne.s32.totalorder %s80, %s83
      %p89 = scmp.eq.s32.totalorder %s18, 0
      %p90 = por %p88, %p89
      %p91 = scmp.ne.s32.totalorder %s80, %s83
      %p92 = scmp.eq.s32.totalorder %s23, 1
      %p93 = por %p91, %p92
      %p94 = scmp.ne.s32.totalorder %s83, %s84
      %p95 = scmp.eq.s32.totalorder %s23, 0
      %p96 = por %p94, %p95
      %p97 = scmp.ne.s32.totalorder %s83, %s84
      %p98 = scmp.eq.s32.totalorder %s24, 1
      %p99 = por %p97, %p98
      %p101 = scmp.ne.s32.totalorder %s84, %s100
      %p102 = scmp.eq.s32.totalorder %s24, 0
      %p103 = por %p101, %p102
      %s105 = sadd.s32 %s104, 1
      %p108 = scmp.eq.s32.totalorder %s18, 1
      %p109 = scmp.ne.s32.totalorder %s104, %s106
      %p110 = scmp.eq.s32.totalorder %s18, 0
      %p111 = por %p109, %p110
      %p112 = scmp.ne.s32.totalorder %s104, %s106
      %p113 = scmp.eq.s32.totalorder %s23, 1
      %p114 = por %p112, %p113
      %p115 = scmp.ne.s32.totalorder %s106, %s107
      %p116 = scmp.eq.s32.totalorder %s23, 0
      %p117 = por %p115, %p116
      %p118 = scmp.ne.s32.totalorder %s106, %s107
      %p119 = scmp.eq.s32.totalorder %s24, 1
      %p120 = por %p118, %p119
      %p122 = scmp.ne.s32.totalorder %s107, %s121
      %p123 = scmp.eq.s32.totalorder %s24, 0
      %p124 = por %p122, %p123
      %s126 = sadd.s32 %s125, 1
      %p129 = scmp.eq.s32.totalorder %s18, 1
      %p130 = scmp.ne.s32.totalorder %s125, %s127
      %p131 = scmp.eq.s32.totalorder %s18, 0
      %p132 = por %p130, %p131
      %p133 = scmp.ne.s32.totalorder %s125, %s127
      %p134 = scmp.eq.s32.totalorder %s23, 1
      %p135 = por %p133, %p134
      %p136 = scmp.ne.s32.totalorder %s127, %s128
      %p137 = scmp.eq.s32.totalorder %s23, 0
      %p138 = por %p136, %p137
      %p139 = scmp.ne.s32.totalorder %s127, %s128
      %p140 = scmp.eq.s32.totalorder %s24, 1
      %p141 = por %p139, %p140
      %p143 = scmp.ne.s32.totalorder %s128, %s142
      %p144 = scmp.eq.s32.totalorder %s24, 0
      %p145 = por %p143, %p144
      %s147 = sadd.s32 %s146, 1
      %p150 = scmp.eq.s32.totalorder %s18, 1
      %p151 = scmp.ne.s32.totalorder %s146, %s148
      %p152 = scmp.eq.s32.totalorder %s18, 0
      %p153 = por %p151, %p152
      %p154 = scmp.ne.s32.totalorder %s146, %s148
      %p155 = scmp.eq.s32.totalorder %s23, 1
      %p156 = por %p154, %p155
      %p157 = scmp.ne.s32.totalorder %s148, %s149
      %p158 = scmp.eq.s32.totalorder %s23, 0
      %p159 = por %p157, %p158
      %p160 = scmp.ne.s32.totalorder %s148, %s149
      %p161 = scmp.eq.s32.totalorder %s24, 1
      %p162 = por %p160, %p161
      %p164 = scmp.ne.s32.totalorder %s149, %s163
      %p165 = scmp.eq.s32.totalorder %s24, 0
      %p166 = por %p164, %p165
      %s168 = sadd.s32 %s167, 1
      %p171 = scmp.eq.s32.totalorder %s18, 1
      %p172 = scmp.ne.s32.totalorder %s167, %s169
      %p173 = scmp.eq.s32.totalorder %s18, 0
      %p174 = por %p172, %p173
      %p175 = scmp.ne.s32.totalorder %s167, %s169
      %p176 = scmp.eq.s32.totalorder %s23, 1
      %p177 = por %p175, %p176
      %p178 = scmp.ne.s32.totalorder %s169, %s170
      %p179 = scmp.eq.s32.totalorder %s23, 0
      %p180 = por %p178, %p179
      %p181 = scmp.ne.s32.totalorder %s169, %s170
      %p182 = scmp.eq.s32.totalorder %s24, 1
      %p183 = por %p181, %p182
      %p185 = scmp.ne.s32.totalorder %s170, %s184
      %p186 = scmp.eq.s32.totalorder %s24, 0
      %p187 = por %p185, %p186
      %s188 = ssub.s32 %s18, %s25
      %p189 = scmp.eq.s32.totalorder %s188, 0
      %s191 = sadd.s32 %s190, 1
      %s192 = scalar_select %p189, %s190, %s191
      %p195 = pneg %p189
      %p196 = scmp.eq.s32.totalorder %s18, 1
      %p197 = por %p195, %p196
      %p198 = scmp.ne.s32.totalorder %s190, %s193
      %p199 = scmp.eq.s32.totalorder %s18, 0
      %p200 = por %p198, %p199
      %p201 = scmp.ne.s32.totalorder %s190, %s193
      %p202 = scmp.eq.s32.totalorder %s23, 1
      %p203 = por %p201, %p202
      %p204 = scmp.ne.s32.totalorder %s193, %s194
      %p205 = scmp.eq.s32.totalorder %s23, 0
      %p206 = por %p204, %p205
      %p207 = scmp.ne.s32.totalorder %s193, %s194
      %p208 = scmp.eq.s32.totalorder %s24, 1
      %p209 = por %p207, %p208
      %p211 = scmp.ne.s32.totalorder %s194, %s210
      %p212 = scmp.eq.s32.totalorder %s24, 0
      %p213 = por %p211, %p212
      %s214 = ssub.s32 %s18, %s25
      %p215 = scmp.eq.s32.totalorder %s214, 0
      %s217 = sadd.s32 %s216, 1
      %s218 = scalar_select %p215, %s216, %s217
      %p221 = pneg %p215
      %p222 = scmp.eq.s32.totalorder %s18, 1
      %p223 = por %p221, %p222
      %p224 = scmp.ne.s32.totalorder %s216, %s219
      %p225 = scmp.eq.s32.totalorder %s18, 0
      %p226 = por %p224, %p225
      %p227 = scmp.ne.s32.totalorder %s216, %s219
      %p228 = scmp.eq.s32.totalorder %s23, 1
      %p229 = por %p227, %p228
      %p230 = scmp.ne.s32.totalorder %s219, %s220
      %p231 = scmp.eq.s32.totalorder %s23, 0
      %p232 = por %p230, %p231
      %p233 = scmp.ne.s32.totalorder %s219, %s220
      %p234 = scmp.eq.s32.totalorder %s24, 1
      %p235 = por %p233, %p234
      %p237 = scmp.ne.s32.totalorder %s220, %s236
      %p238 = scmp.eq.s32.totalorder %s24, 0
      %p239 = por %p237, %p238
      %p240 = scmp.le.s32.totalorder 1, %s18
      %p241 = scmp.lt.s32.totalorder %s18, 3
      %p242 = pnand %p240, %p241
      %p243 = pneg %p242
      // Predicated region
      $region9: #{fpn_forward_pallas.6} parent=5 // pred_check
        _
      $region10: #{fpn_forward_pallas.6} parent=5 // pred_check_branch
        %245 = sbr.rel (%p242) target = $region12
      $region11: #{fpn_forward_pallas.6} parent=5 // pred_region
        %s246 = ssub.s32 %s18, 1
        // Predicated region
        $region13: #{fpn_forward_pallas.6} parent=11 // pred_check
          %p247 = pneg %p117
        $region14: #{fpn_forward_pallas.6} parent=11 // pred_check_branch
          %249 = sbr.rel (%p247) target = $region16
        $region15: #{fpn_forward_pallas.6} parent=11 // pred_region
          _
        $region16: #{fpn_forward_pallas.6} parent=11 // pred_fallthru
          _
        // Predicated region
        $region17: #{fpn_forward_pallas.6} parent=11 // pred_check
          %p250 = pneg %p138
        $region18: #{fpn_forward_pallas.6} parent=11 // pred_check_branch
          %252 = sbr.rel (%p250) target = $region20
        $region19: #{fpn_forward_pallas.6} parent=11 // pred_region
          _
        $region20: #{fpn_forward_pallas.6} parent=11 // pred_fallthru
          _
        // Predicated region
        $region21: #{fpn_forward_pallas.6} parent=11 // pred_check
          %p253 = pneg %p159
        $region22: #{fpn_forward_pallas.6} parent=11 // pred_check_branch
          %255 = sbr.rel (%p253) target = $region24
        $region23: #{fpn_forward_pallas.6} parent=11 // pred_region
          _
        $region24: #{fpn_forward_pallas.6} parent=11 // pred_fallthru
          _
        // Predicated region
        $region25: #{fpn_forward_pallas.6} parent=11 // pred_check
          %p256 = pneg %p180
        $region26: #{fpn_forward_pallas.6} parent=11 // pred_check_branch
          %258 = sbr.rel (%p256) target = $region28
        $region27: #{fpn_forward_pallas.6} parent=11 // pred_region
          _
        $region28: #{fpn_forward_pallas.6} parent=11 // pred_fallthru
          _
      $region12: #{fpn_forward_pallas.6} parent=5 // pred_fallthru
        _
      %p259 = scmp.lt.s32.totalorder %s18, 2
      // Predicated region
      $region29: #{fpn_forward_pallas.6} parent=5 // pred_check
        %p260 = pneg %p259
      $region30: #{fpn_forward_pallas.6} parent=5 // pred_check_branch
        %262 = sbr.rel (%p260) target = $region32
      $region31: #{fpn_forward_pallas.6} parent=5 // pred_region
        // Predicated region
        $region33: #{fpn_forward_pallas.6} parent=31 // pred_check
          %p263 = pneg %p38
        $region34: #{fpn_forward_pallas.6} parent=31 // pred_check_branch
          %265 = sbr.rel (%p263) target = $region36
        $region35: #{fpn_forward_pallas.6} parent=31 // pred_region
          %p266 = scmp.lt.s32.totalorder %s18, 1
          %s267 = scalar_select %p266, %s18, 1
          %s268 = smul.addr %s267, 8
          %s269 = smul.addr %s268, 8
          %s270 = scalar_lea.vmem %s0, %s269
        $region36: #{fpn_forward_pallas.6} parent=31 // pred_fallthru
          _
        // Predicated region
        $region37: #{fpn_forward_pallas.6} parent=31 // pred_check
          %p271 = pneg %p64
        $region38: #{fpn_forward_pallas.6} parent=31 // pred_check_branch
          %273 = sbr.rel (%p271) target = $region40
        $region39: #{fpn_forward_pallas.6} parent=31 // pred_region
          %p274 = scmp.lt.s32.totalorder %s18, 1
          %s275 = scalar_select %p274, %s18, 1
          %s276 = smul.addr %s275, 8
          %s277 = smul.addr %s276, 8
          %s278 = scalar_lea.vmem %s1, %s277
        $region40: #{fpn_forward_pallas.6} parent=31 // pred_fallthru
          _
        // Predicated region
        $region41: #{fpn_forward_pallas.6} parent=31 // pred_check
          %p279 = pneg %p90
        $region42: #{fpn_forward_pallas.6} parent=31 // pred_check_branch
          %281 = sbr.rel (%p279) target = $region44
        $region43: #{fpn_forward_pallas.6} parent=31 // pred_region
          %p282 = scmp.lt.s32.totalorder %s18, 1
          %s283 = scalar_select %p282, %s18, 1
          %s284 = smul.addr %s283, 8
          %s285 = smul.addr %s284, 8
          %s286 = scalar_lea.vmem %s2, %s285
        $region44: #{fpn_forward_pallas.6} parent=31 // pred_fallthru
          _
      $region32: #{fpn_forward_pallas.6} parent=5 // pred_fallthru
        _
      %p287 = scmp.le.s32.totalorder 1, %s18
      %p288 = scmp.lt.s32.totalorder %s18, 3
      %p289 = pnand %p287, %p288
      %p290 = pneg %p289
      // Predicated region
      $region45: #{fpn_forward_pallas.6} parent=5 // pred_check
        _
      $region46: #{fpn_forward_pallas.6} parent=5 // pred_check_branch
        %292 = sbr.rel (%p289) target = $region48
      $region47: #{fpn_forward_pallas.6} parent=5 // pred_region
        %s293 = ssub.s32 %s18, 1
        %p294 = scmp.lt.s32.totalorder %s23, 1
        %s295 = scalar_select %p294, %s23, 1
        %s296 = smul.addr %s295, 8
        %s297 = smul.addr %s296, 8
        %s298 = scalar_lea.vmem %s0, %s297
        %p299 = pneg %p44
        %p300 = pneg %p41
        %p301 = scmp.lt.s32.totalorder %s23, 1
        %s302 = scalar_select %p301, %s23, 1
        %s303 = smul.addr %s302, 8
        %s304 = smul.addr %s303, 8
        %s305 = scalar_lea.vmem %s1, %s304
        %p306 = pneg %p70
        %p307 = pneg %p67
        %p308 = scmp.lt.s32.totalorder %s23, 1
        %s309 = scalar_select %p308, %s23, 1
        %s310 = smul.addr %s309, 8
        %s311 = smul.addr %s310, 8
        %s312 = scalar_lea.vmem %s2, %s311
        %p313 = pneg %p96
        %p314 = pneg %p93
        %p315 = pneg %p117
        %p316 = pneg %p114
        %p317 = pneg %p138
        %p318 = pneg %p135
        %p319 = pneg %p159
        %p320 = pneg %p156
        %p321 = pneg %p180
        %p322 = pneg %p177
        %p323 = pneg %p206
        %p324 = pneg %p203
        %p325 = scmp.lt.s32.totalorder %s23, 1
        %s326 = scalar_select %p325, %s23, 1
        %s327 = smul.addr %s326, 8
        %s328 = smul.addr %s327, 8
        %s329 = scalar_lea.vmem %s7, %s328
        %p330 = pneg %p232
        %p331 = pneg %p229
        %s332 = sand.u32 %s219, 1
        %s333 = scalar_lea.sflag [#allocation4], %s332
        %s334 = sand.u32 %s219, 1
        %s335 = smul.addr %s334, 64
        %s336 = scalar_lea.vmem [#allocation3], %s335
        %p337 = scmp.lt.s32.totalorder %s23, 1
        %s338 = scalar_select %p337, %s23, 1
        %s339 = smul.addr %s338, 8
        %s340 = smul.addr %s339, 8
        %s341 = scalar_lea.vmem %s0, %s340
        %p342 = scmp.lt.s32.totalorder %s23, 1
        %s343 = scalar_select %p342, %s23, 1
        %s344 = smul.addr %s343, 8
        %s345 = smul.addr %s344, 8
        %s346 = scalar_lea.vmem %s1, %s345
        %p347 = scmp.lt.s32.totalorder %s23, 1
        %s348 = scalar_select %p347, %s23, 1
        %s349 = smul.addr %s348, 8
        %s350 = smul.addr %s349, 8
        %s351 = scalar_lea.vmem %s2, %s350
        %p352 = scmp.lt.s32.totalorder %s23, 1
        %s353 = scalar_select %p352, %s23, 1
        %s354 = smul.addr %s353, 8
        %s355 = smul.addr %s354, 8
        %s356 = scalar_lea.vmem %s7, %s355
        %v358 = vld [vmem:[%s341] sm:$0xff]
        %v359 = vld [vmem:[%s341 + $0x8] sm:$0xff]
        %v360 = vld [vmem:[%s341 + $0x10] sm:$0xff]
        %v361 = vld [vmem:[%s341 + $0x18] sm:$0xff]
        %v362 = vld [vmem:[%s341 + $0x20] sm:$0xff]
        %v363 = vld [vmem:[%s341 + $0x28] sm:$0xff]
        %v364 = vld [vmem:[%s341 + $0x30] sm:$0xff]
        %v365 = vld [vmem:[%s341 + $0x38] sm:$0xff]
        %v366 = vpack.c.bf16 %v359, %v358
        %v367 = vpack.c.bf16 %v361, %v360
        %v368 = vpack.c.bf16 %v363, %v362
        %v369 = vpack.c.bf16 %v365, %v364
        %v370 = vld [vmem:[%s3] sm:$0xff]
        %v371 = vpack.c.bf16 %v370, %v370
        %v372 = vld [vmem:[%s4] sm:$0x1]
        %v374 = vlaneseq
        %v375 = vshrl.u32 %v374, 7
        %v376 = vsub.s32 0, %v375
        %v377 = vrot.slane %v372, %v376
        %vm379 = vcmask 64512
        %v381 = vsel %vm379, %v366, 0
        %v384 = vsel %vm379, %v367, 0
        %v387 = vsel %vm379, %v368, 0
        %v390 = vsel %vm379, %v369, 0
        %vm392 = vcmask 1043456
        %v394 = vsel %vm392, %v371, 0
        %396 = vmatprep.subr.bf16.mxu0 0
        %397 = vmatpush1.bf16.msra.mxu0 0
        %398 = vmatprep.subr.bf16.mxu0 0
        %399 = vmatpush1.bf16.msra.mxu0 0
        %400 = vmatprep.subr.bf16.mxu0 0
        %401 = vmatpush1.bf16.msra.mxu0 0
        %402 = vmatprep.subr.bf16.mxu0 0
        %403 = vmatpush1.bf16.msra.mxu0 0
        %404 = vmatprep.subr.bf16.mxu0 0
        %405 = vmatpush1.bf16.msra.mxu0 0
        %406 = vmatprep.subr.bf16.mxu0 0
        %407 = vmatpush1.bf16.msra.mxu0 0
        %408 = vmatprep.subr.bf16.mxu0 0
        %409 = vmatpush1.bf16.msra.mxu0 0
        %410 = vmatprep.subr.bf16.mxu0 0
        %411 = vmatpush1.bf16.msra.mxu0 %v394
        %412 = vmatprep.subr.bf16.mxu0 0
        %413 = vmatpush2.bf16.msra.mxu0 0
        %414 = vmatprep.subr.bf16.mxu0 0
        %415 = vmatpush2.bf16.msra.mxu0 0
        %416 = vmatprep.subr.bf16.mxu0 0
        %417 = vmatpush2.bf16.msra.mxu0 0
        %418 = vmatprep.subr.bf16.mxu0 0
        %419 = vmatpush2.bf16.msra.mxu0 0
        %420 = vmatprep.subr.bf16.mxu0 0
        %421 = vmatpush2.bf16.msra.mxu0 0
        %422 = vmatprep.subr.bf16.mxu0 0
        %423 = vmatpush2.bf16.msra.mxu0 0
        %424 = vmatprep.subr.bf16.mxu0 0
        %425 = vmatpush2.bf16.msra.mxu0 0
        %426 = vmatprep.subr.bf16.mxu0 0
        %427 = vmatpush2.bf16.msra.mxu0 0
        %428 = vmatprep.mubr.bf16.mxu0 0
        %429 = vmatmul.mubr.bf16.gmra.mxu0 %v381
        %v430 = vpop.f32.mrf.mxu0
        %v431 = vadd.f32 %v377, %v430
        %v432 = vpop.f32.mrf.mxu0
        %v433 = vpop.f32.mrf.mxu0
        %v434 = vadd.f32 %v377, %v433
        %v435 = vpop.f32.mrf.mxu0
        %436 = vmatprep.mubr.bf16.mxu0 0
        %437 = vmatmul.mubr.bf16.gmra.mxu0 %v384
        %v438 = vpop.f32.mrf.mxu0
        %v439 = vadd.f32 %v377, %v438
        %v440 = vpop.f32.mrf.mxu0
        %v441 = vpop.f32.mrf.mxu0
        %v442 = vadd.f32 %v377, %v441
        %v443 = vpop.f32.mrf.mxu0
        %444 = vmatprep.mubr.bf16.mxu0 0
        %445 = vmatmul.mubr.bf16.gmra.mxu0 %v387
        %v446 = vpop.f32.mrf.mxu0
        %v447 = vadd.f32 %v377, %v446
        %v448 = vpop.f32.mrf.mxu0
        %v449 = vpop.f32.mrf.mxu0
        %v450 = vadd.f32 %v377, %v449
        %v451 = vpop.f32.mrf.mxu0
        %452 = vmatprep.mubr.bf16.mxu0 0
        %453 = vmatmul.mubr.bf16.gmra.mxu0 %v390
        %v454 = vpop.f32.mrf.mxu0
        %v455 = vadd.f32 %v377, %v454
        %v456 = vpop.f32.mrf.mxu0
        %v457 = vpop.f32.mrf.mxu0
        %v458 = vadd.f32 %v377, %v457
        %v459 = vpop.f32.mrf.mxu0
        %460 = vdwg.mxu0
        %v461 = vld [vmem:[%s346] sm:$0xff]
        %v462 = vld [vmem:[%s346 + $0x8] sm:$0xff]
        %v463 = vld [vmem:[%s346 + $0x10] sm:$0xff]
        %v464 = vld [vmem:[%s346 + $0x18] sm:$0xff]
        %v465 = vld [vmem:[%s346 + $0x20] sm:$0xff]
        %v466 = vld [vmem:[%s346 + $0x28] sm:$0xff]
        %v467 = vld [vmem:[%s346 + $0x30] sm:$0xff]
        %v468 = vld [vmem:[%s346 + $0x38] sm:$0xff]
        %v469 = vadd.f32 %v431, %v461
        %v470 = vadd.f32 %v434, %v462
        %v471 = vadd.f32 %v439, %v463
        %v472 = vadd.f32 %v442, %v464
        %v473 = vadd.f32 %v447, %v465
        %v474 = vadd.f32 %v450, %v466
        %v475 = vadd.f32 %v455, %v467
        %v476 = vadd.f32 %v458, %v468
        %vm477 = vcmask 130048
        %478 = vst.msk [vmem:[%s356] sm:$0xff] %vm477, %v469
        %479 = vst.msk [vmem:[%s356 + $0x8] sm:$0xff] %vm477, %v470
        %480 = vst.msk [vmem:[%s356 + $0x10] sm:$0xff] %vm477, %v471
        %481 = vst.msk [vmem:[%s356 + $0x18] sm:$0xff] %vm477, %v472
        %482 = vst.msk [vmem:[%s356 + $0x20] sm:$0xff] %vm477, %v473
        %483 = vst.msk [vmem:[%s356 + $0x28] sm:$0xff] %vm477, %v474
        %484 = vst.msk [vmem:[%s356 + $0x30] sm:$0xff] %vm477, %v475
        %485 = vst.msk [vmem:[%s356 + $0x38] sm:$0xff] %vm477, %v476
        %v486 = vld [vmem:[%s351] sm:$0xff]
        %v487 = vld [vmem:[%s351 + $0x8] sm:$0xff]
        %v488 = vld [vmem:[%s351 + $0x10] sm:$0xff]
        %v489 = vld [vmem:[%s351 + $0x18] sm:$0xff]
        %v490 = vld [vmem:[%s351 + $0x20] sm:$0xff]
        %v491 = vld [vmem:[%s351 + $0x28] sm:$0xff]
        %v492 = vld [vmem:[%s351 + $0x30] sm:$0xff]
        %v493 = vld [vmem:[%s351 + $0x38] sm:$0xff]
        %vm494 = vcmp.eq.f32.partialorder %v486, 0.0
        %vm495 = vcmp.eq.f32.partialorder %v487, 0.0
        %vm496 = vcmp.eq.f32.partialorder %v488, 0.0
        %vm497 = vcmp.eq.f32.partialorder %v489, 0.0
        %vm498 = vcmp.eq.f32.partialorder %v490, 0.0
        %vm499 = vcmp.eq.f32.partialorder %v491, 0.0
        %vm500 = vcmp.eq.f32.partialorder %v492, 0.0
        %vm501 = vcmp.eq.f32.partialorder %v493, 0.0
        %v502 = vsel %vm494, 0.5, %v486
        %v503 = vsel %vm495, 0.5, %v487
        %v504 = vsel %vm496, 0.5, %v488
        %v505 = vsel %vm497, 0.5, %v489
        %v506 = vsel %vm498, 0.5, %v490
        %v507 = vsel %vm499, 0.5, %v491
        %v508 = vsel %vm500, 0.5, %v492
        %v509 = vsel %vm501, 0.5, %v493
        %511 = vset.pattern.permute.xlu0 0
        %512 = vperm.xlu0 %511, %v502
        %v513 = vpop.permute.xlu0 %512
        %516 = vset.pattern.permute.xlu0 0
        %517 = vperm.xlu0 %516, %v503
        %v518 = vpop.permute.xlu0 %517
        %521 = vset.pattern.permute.xlu0 0
        %522 = vperm.xlu0 %521, %v504
        %v523 = vpop.permute.xlu0 %522
        %526 = vset.pattern.permute.xlu0 0
        %527 = vperm.xlu0 %526, %v505
        %v528 = vpop.permute.xlu0 %527
        %531 = vset.pattern.permute.xlu0 0
        %532 = vperm.xlu0 %531, %v506
        %v533 = vpop.permute.xlu0 %532
        %536 = vset.pattern.permute.xlu0 0
        %537 = vperm.xlu0 %536, %v507
        %v538 = vpop.permute.xlu0 %537
        %541 = vset.pattern.permute.xlu0 0
        %542 = vperm.xlu0 %541, %v508
        %v543 = vpop.permute.xlu0 %542
        %546 = vset.pattern.permute.xlu0 0
        %547 = vperm.xlu0 %546, %v509
        %v548 = vpop.permute.xlu0 %547
        %v550 = vmul.f32 %v469, %v513
        %v551 = vmul.f32 %v470, %v518
        %v552 = vmul.f32 %v471, %v523
        %v553 = vmul.f32 %v472, %v528
        %v554 = vmul.f32 %v473, %v533
        %v555 = vmul.f32 %v474, %v538
        %v556 = vmul.f32 %v475, %v543
        %v557 = vmul.f32 %v476, %v548
        %558 = vst.msk [vmem:[#allocation2] sm:$0xff] %vm477, 0.0
        %559 = vst.msk [vmem:[#allocation2 + $0x8] sm:$0xff] %vm477, 0.0
        %560 = vst.msk [vmem:[#allocation2 + $0x10] sm:$0xff] %vm477, 0.0
        %561 = vst.msk [vmem:[#allocation2 + $0x18] sm:$0xff] %vm477, 0.0
        %562 = vst.msk [vmem:[#allocation2 + $0x20] sm:$0xff] %vm477, 0.0
        %563 = vst.msk [vmem:[#allocation2 + $0x28] sm:$0xff] %vm477, 0.0
        %564 = vst.msk [vmem:[#allocation2 + $0x30] sm:$0xff] %vm477, 0.0
        %565 = vst.msk [vmem:[#allocation2 + $0x38] sm:$0xff] %vm477, 0.0
        %566 = vst.msk [vmem:[#allocation2 + $0x40] sm:$0xff] %vm477, 0.0
        %567 = vst.msk [vmem:[#allocation2 + $0x48] sm:$0xff] %vm477, 0.0
        %568 = vst.msk [vmem:[#allocation2 + $0x50] sm:$0xff] %vm477, 0.0
        %569 = vst.msk [vmem:[#allocation2 + $0x58] sm:$0xff] %vm477, 0.0
        %570 = vst.msk [vmem:[#allocation2 + $0x10] sm:$0xff] %vm477, %v550
        %571 = vst.msk [vmem:[#allocation2 + $0x18] sm:$0xff] %vm477, %v551
        %572 = vst.msk [vmem:[#allocation2 + $0x20] sm:$0xff] %vm477, %v552
        %573 = vst.msk [vmem:[#allocation2 + $0x28] sm:$0xff] %vm477, %v553
        %574 = vst.msk [vmem:[#allocation2 + $0x30] sm:$0xff] %vm477, %v554
        %575 = vst.msk [vmem:[#allocation2 + $0x38] sm:$0xff] %vm477, %v555
        %576 = vst.msk [vmem:[#allocation2 + $0x40] sm:$0xff] %vm477, %v556
        %577 = vst.msk [vmem:[#allocation2 + $0x48] sm:$0xff] %vm477, %v557
        %v578 = vlaneseq
        %v579 = vshrl.u32 %v578, 7
        %v580 = vadd.s32 %v579, 8
        %v581 = vadd.s32 %v579, 16
        %v582 = vadd.s32 %v579, 24
        %v583 = vadd.s32 %v579, 32
        %v584 = vadd.s32 %v579, 40
        %v585 = vadd.s32 %v579, 48
        %v586 = vadd.s32 %v579, 56
        %vm587 = vcmp.lt.s32.totalorder %v579, 0
        %v588 = vsub.s32 0, %v579
        %v589 = vsel %vm587, %v588, %v579
        %v590 = vshrl.u32 %v589, 3
        %v591 = vand.u32 %v589, 7
        %v592 = vsub.s32 0, %v591
        %v593 = vsel %vm587, %v592, %v591
        %vm594 = vcmp.lt.s32.totalorder %v580, 0
        %v595 = vsub.s32 0, %v580
        %v596 = vsel %vm594, %v595, %v580
        %v597 = vshrl.u32 %v596, 3
        %v598 = vand.u32 %v596, 7
        %v599 = vsub.s32 0, %v598
        %v600 = vsel %vm594, %v599, %v598
        %vm601 = vcmp.lt.s32.totalorder %v581, 0
        %v602 = vsub.s32 0, %v581
        %v603 = vsel %vm601, %v602, %v581
        %v604 = vshrl.u32 %v603, 3
        %v605 = vand.u32 %v603, 7
        %v606 = vsub.s32 0, %v605
        %v607 = vsel %vm601, %v606, %v605
        %vm608 = vcmp.lt.s32.totalorder %v582, 0
        %v609 = vsub.s32 0, %v582
        %v610 = vsel %vm608, %v609, %v582
        %v611 = vshrl.u32 %v610, 3
        %v612 = vand.u32 %v610, 7
        %v613 = vsub.s32 0, %v612
        %v614 = vsel %vm608, %v613, %v612
        %vm615 = vcmp.lt.s32.totalorder %v583, 0
        %v616 = vsub.s32 0, %v583
        %v617 = vsel %vm615, %v616, %v583
        %v618 = vshrl.u32 %v617, 3
        %v619 = vand.u32 %v617, 7
        %v620 = vsub.s32 0, %v619
        %v621 = vsel %vm615, %v620, %v619
        %vm622 = vcmp.lt.s32.totalorder %v584, 0
        %v623 = vsub.s32 0, %v584
        %v624 = vsel %vm622, %v623, %v584
        %v625 = vshrl.u32 %v624, 3
        %v626 = vand.u32 %v624, 7
        %v627 = vsub.s32 0, %v626
        %v628 = vsel %vm622, %v627, %v626
        %vm629 = vcmp.lt.s32.totalorder %v585, 0
        %v630 = vsub.s32 0, %v585
        %v631 = vsel %vm629, %v630, %v585
        %v632 = vshrl.u32 %v631, 3
        %v633 = vand.u32 %v631, 7
        %v634 = vsub.s32 0, %v633
        %v635 = vsel %vm629, %v634, %v633
        %vm636 = vcmp.lt.s32.totalorder %v586, 0
        %v637 = vsub.s32 0, %v586
        %v638 = vsel %vm636, %v637, %v586
        %v639 = vshrl.u32 %v638, 3
        %v640 = vand.u32 %v638, 7
        %v641 = vsub.s32 0, %v640
        %v642 = vsel %vm636, %v641, %v640
        %vm643 = vcmp.ne.s32.totalorder %v593, 0
        %vm644 = vcmp.ne.s32.totalorder %v600, 0
        %vm645 = vcmp.ne.s32.totalorder %v607, 0
        %vm646 = vcmp.ne.s32.totalorder %v614, 0
        %vm647 = vcmp.ne.s32.totalorder %v621, 0
        %vm648 = vcmp.ne.s32.totalorder %v628, 0
        %vm649 = vcmp.ne.s32.totalorder %v635, 0
        %vm650 = vcmp.ne.s32.totalorder %v642, 0
        %vm651 = vcmp.lt.s32.totalorder %v593, 0
        %vm652 = vcmp.lt.s32.totalorder %v600, 0
        %vm653 = vcmp.lt.s32.totalorder %v607, 0
        %vm654 = vcmp.lt.s32.totalorder %v614, 0
        %vm655 = vcmp.lt.s32.totalorder %v621, 0
        %vm656 = vcmp.lt.s32.totalorder %v628, 0
        %vm657 = vcmp.lt.s32.totalorder %v635, 0
        %vm658 = vcmp.lt.s32.totalorder %v642, 0
        %vm659 = vmand %vm651, %vm643
        %vm660 = vmand %vm652, %vm644
        %vm661 = vmand %vm653, %vm645
        %vm662 = vmand %vm654, %vm646
        %vm663 = vmand %vm655, %vm647
        %vm664 = vmand %vm656, %vm648
        %vm665 = vmand %vm657, %vm649
        %vm666 = vmand %vm658, %vm650
        %v667 = vadd.s32 %v593, 8
        %v668 = vadd.s32 %v600, 8
        %v669 = vadd.s32 %v607, 8
        %v670 = vadd.s32 %v614, 8
        %v671 = vadd.s32 %v621, 8
        %v672 = vadd.s32 %v628, 8
        %v673 = vadd.s32 %v635, 8
        %v674 = vadd.s32 %v642, 8
        %v675 = vsel %vm659, %v667, %v593
        %v676 = vsel %vm660, %v668, %v600
        %v677 = vsel %vm661, %v669, %v607
        %v678 = vsel %vm662, %v670, %v614
        %v679 = vsel %vm663, %v671, %v621
        %v680 = vsel %vm664, %v672, %v628
        %v681 = vsel %vm665, %v673, %v635
        %v682 = vsel %vm666, %v674, %v642
        %vm683 = vcmp.ne.s32.totalorder %v675, 0
        %vm684 = vcmp.ne.s32.totalorder %v676, 0
        %vm685 = vcmp.ne.s32.totalorder %v677, 0
        %vm686 = vcmp.ne.s32.totalorder %v678, 0
        %vm687 = vcmp.ne.s32.totalorder %v679, 0
        %vm688 = vcmp.ne.s32.totalorder %v680, 0
        %vm689 = vcmp.ne.s32.totalorder %v681, 0
        %vm690 = vcmp.ne.s32.totalorder %v682, 0
        %vm691 = vcmp.ne.s32.totalorder %v675, 7
        %vm692 = vcmp.ne.s32.totalorder %v676, 7
        %vm693 = vcmp.ne.s32.totalorder %v677, 7
        %vm694 = vcmp.ne.s32.totalorder %v678, 7
        %vm695 = vcmp.ne.s32.totalorder %v679, 7
        %vm696 = vcmp.ne.s32.totalorder %v680, 7
        %vm697 = vcmp.ne.s32.totalorder %v681, 7
        %vm698 = vcmp.ne.s32.totalorder %v682, 7
        %v699 = vld [vmem:[#allocation2 + $0x7] sm:$0xff]
        %v700 = vld [vmem:[#allocation2 + $0xf] sm:$0xff]
        %v701 = vld [vmem:[#allocation2 + $0x17] sm:$0xff]
        %v702 = vld [vmem:[#allocation2 + $0x1f] sm:$0xff]
        %v703 = vld [vmem:[#allocation2 + $0x27] sm:$0xff]
        %v704 = vld [vmem:[#allocation2 + $0x2f] sm:$0xff]
        %v705 = vld [vmem:[#allocation2 + $0x37] sm:$0xff]
        %v706 = vld [vmem:[#allocation2 + $0x3f] sm:$0xff]
        %v707 = vpack.c.bf16 %v700, %v699
        %v708 = vpack.c.bf16 %v702, %v701
        %v709 = vpack.c.bf16 %v704, %v703
        %v710 = vpack.c.bf16 %v706, %v705
        %v711 = vld [vmem:[%s5] sm:$0xff]
        %v712 = vld [vmem:[%s5 + $0x8] sm:$0xff]
        %v713 = vpack.c.bf16 %v712, %v711
        %v715 = vsel %vm477, %v707, 0
        %v718 = vsel %vm477, %v708, 0
        %v721 = vsel %vm477, %v709, 0
        %v724 = vsel %vm477, %v710, 0
        %726 = vmatprep.subr.bf16.mxu0 0
        %727 = vmatpush1.bf16.msra.mxu0 0
        %728 = vmatprep.subr.bf16.mxu0 0
        %729 = vmatpush1.bf16.msra.mxu0 0
        %730 = vmatprep.subr.bf16.mxu0 0
        %731 = vmatpush1.bf16.msra.mxu0 0
        %732 = vmatprep.subr.bf16.mxu0 0
        %733 = vmatpush1.bf16.msra.mxu0 0
        %734 = vmatprep.subr.bf16.mxu0 0
        %735 = vmatpush1.bf16.msra.mxu0 0
        %736 = vmatprep.subr.bf16.mxu0 0
        %737 = vmatpush1.bf16.msra.mxu0 0
        %738 = vmatprep.subr.bf16.mxu0 0
        %739 = vmatpush1.bf16.msra.mxu0 0
        %740 = vmatprep.subr.bf16.mxu0 0
        %741 = vmatpush1.bf16.msra.mxu0 %v713
        %742 = vmatprep.subr.bf16.mxu0 0
        %743 = vmatpush2.bf16.msra.mxu0 0
        %744 = vmatprep.subr.bf16.mxu0 0
        %745 = vmatpush2.bf16.msra.mxu0 0
        %746 = vmatprep.subr.bf16.mxu0 0
        %747 = vmatpush2.bf16.msra.mxu0 0
        %748 = vmatprep.subr.bf16.mxu0 0
        %749 = vmatpush2.bf16.msra.mxu0 0
        %750 = vmatprep.subr.bf16.mxu0 0
        %751 = vmatpush2.bf16.msra.mxu0 0
        %752 = vmatprep.subr.bf16.mxu0 0
        %753 = vmatpush2.bf16.msra.mxu0 0
        %754 = vmatprep.subr.bf16.mxu0 0
        %755 = vmatpush2.bf16.msra.mxu0 0
        %756 = vmatprep.subr.bf16.mxu0 0
        %757 = vmatpush2.bf16.msra.mxu0 0
        %758 = vmatprep.mubr.bf16.mxu0 0
        %759 = vmatmul.mubr.bf16.gmra.mxu0 %v715
        %v760 = vpop.f32.mrf.mxu0
        %v761 = vadd.f32 0.0, %v760
        %v762 = vpop.f32.mrf.mxu0
        %v763 = vpop.f32.mrf.mxu0
        %v764 = vadd.f32 0.0, %v763
        %v765 = vpop.f32.mrf.mxu0
        %766 = vmatprep.mubr.bf16.mxu0 0
        %767 = vmatmul.mubr.bf16.gmra.mxu0 %v718
        %v768 = vpop.f32.mrf.mxu0
        %v769 = vadd.f32 0.0, %v768
        %v770 = vpop.f32.mrf.mxu0
        %v771 = vpop.f32.mrf.mxu0
        %v772 = vadd.f32 0.0, %v771
        %v773 = vpop.f32.mrf.mxu0
        %774 = vmatprep.mubr.bf16.mxu0 0
        %775 = vmatmul.mubr.bf16.gmra.mxu0 %v721
        %v776 = vpop.f32.mrf.mxu0
        %v777 = vadd.f32 0.0, %v776
        %v778 = vpop.f32.mrf.mxu0
        %v779 = vpop.f32.mrf.mxu0
        %v780 = vadd.f32 0.0, %v779
        %v781 = vpop.f32.mrf.mxu0
        %782 = vmatprep.mubr.bf16.mxu0 0
        %783 = vmatmul.mubr.bf16.gmra.mxu0 %v724
        %v784 = vpop.f32.mrf.mxu0
        %v785 = vadd.f32 0.0, %v784
        %v786 = vpop.f32.mrf.mxu0
        %v787 = vpop.f32.mrf.mxu0
        %v788 = vadd.f32 0.0, %v787
        %v789 = vpop.f32.mrf.mxu0
        %790 = vdwg.mxu0
        %v791 = vsel %vm683, 1, 0
        %v792 = vsel %vm684, 1, 0
        %v793 = vsel %vm685, 1, 0
        %v794 = vsel %vm686, 1, 0
        %v795 = vsel %vm687, 1, 0
        %v796 = vsel %vm688, 1, 0
        %v797 = vsel %vm689, 1, 0
        %v798 = vsel %vm690, 1, 0
        %vm799 = vcmp.eq.s32.totalorder %v791, 1
        %vm800 = vcmp.eq.s32.totalorder %v792, 1
        %vm801 = vcmp.eq.s32.totalorder %v793, 1
        %vm802 = vcmp.eq.s32.totalorder %v794, 1
        %vm803 = vcmp.eq.s32.totalorder %v795, 1
        %vm804 = vcmp.eq.s32.totalorder %v796, 1
        %vm805 = vcmp.eq.s32.totalorder %v797, 1
        %vm806 = vcmp.eq.s32.totalorder %v798, 1
        %v807 = vsel %vm799, %v761, 0.0
        %v808 = vsel %vm800, %v764, 0.0
        %v809 = vsel %vm801, %v769, 0.0
        %v810 = vsel %vm802, %v772, 0.0
        %v811 = vsel %vm803, %v777, 0.0
        %v812 = vsel %vm804, %v780, 0.0
        %v813 = vsel %vm805, %v785, 0.0
        %v814 = vsel %vm806, %v788, 0.0
        %v815 = vadd.f32 %v807, 0.0
        %v816 = vadd.f32 %v808, 0.0
        %v817 = vadd.f32 %v809, 0.0
        %v818 = vadd.f32 %v810, 0.0
        %v819 = vadd.f32 %v811, 0.0
        %v820 = vadd.f32 %v812, 0.0
        %v821 = vadd.f32 %v813, 0.0
        %v822 = vadd.f32 %v814, 0.0
        %v823 = vld [vmem:[#allocation2 + $0x8] sm:$0xff]
        %v824 = vld [vmem:[#allocation2 + $0x10] sm:$0xff]
        %v825 = vld [vmem:[#allocation2 + $0x18] sm:$0xff]
        %v826 = vld [vmem:[#allocation2 + $0x20] sm:$0xff]
        %v827 = vld [vmem:[#allocation2 + $0x28] sm:$0xff]
        %v828 = vld [vmem:[#allocation2 + $0x30] sm:$0xff]
        %v829 = vld [vmem:[#allocation2 + $0x38] sm:$0xff]
        %v830 = vld [vmem:[#allocation2 + $0x40] sm:$0xff]
        %v831 = vpack.c.bf16 %v824, %v823
        %v832 = vpack.c.bf16 %v826, %v825
        %v833 = vpack.c.bf16 %v828, %v827
        %v834 = vpack.c.bf16 %v830, %v829
        %s835 = scalar_lea.vmem %s5, 16
        %v836 = vld [vmem:[%s835] sm:$0xff]
        %v837 = vld [vmem:[%s835 + $0x8] sm:$0xff]
        %v838 = vpack.c.bf16 %v837, %v836
        %v840 = vsel %vm477, %v831, 0
        %v843 = vsel %vm477, %v832, 0
        %v846 = vsel %vm477, %v833, 0
        %v849 = vsel %vm477, %v834, 0
        %851 = vmatprep.subr.bf16.mxu0 0
        %852 = vmatpush1.bf16.msra.mxu0 0
        %853 = vmatprep.subr.bf16.mxu0 0
        %854 = vmatpush1.bf16.msra.mxu0 0
        %855 = vmatprep.subr.bf16.mxu0 0
        %856 = vmatpush1.bf16.msra.mxu0 0
        %857 = vmatprep.subr.bf16.mxu0 0
        %858 = vmatpush1.bf16.msra.mxu0 0
        %859 = vmatprep.subr.bf16.mxu0 0
        %860 = vmatpush1.bf16.msra.mxu0 0
        %861 = vmatprep.subr.bf16.mxu0 0
        %862 = vmatpush1.bf16.msra.mxu0 0
        %863 = vmatprep.subr.bf16.mxu0 0
        %864 = vmatpush1.bf16.msra.mxu0 0
        %865 = vmatprep.subr.bf16.mxu0 0
        %866 = vmatpush1.bf16.msra.mxu0 %v838
        %867 = vmatprep.subr.bf16.mxu0 0
        %868 = vmatpush2.bf16.msra.mxu0 0
        %869 = vmatprep.subr.bf16.mxu0 0
        %870 = vmatpush2.bf16.msra.mxu0 0
        %871 = vmatprep.subr.bf16.mxu0 0
        %872 = vmatpush2.bf16.msra.mxu0 0
        %873 = vmatprep.subr.bf16.mxu0 0
        %874 = vmatpush2.bf16.msra.mxu0 0
        %875 = vmatprep.subr.bf16.mxu0 0
        %876 = vmatpush2.bf16.msra.mxu0 0
        %877 = vmatprep.subr.bf16.mxu0 0
        %878 = vmatpush2.bf16.msra.mxu0 0
        %879 = vmatprep.subr.bf16.mxu0 0
        %880 = vmatpush2.bf16.msra.mxu0 0
        %881 = vmatprep.subr.bf16.mxu0 0
        %882 = vmatpush2.bf16.msra.mxu0 0
        %883 = vmatprep.mubr.bf16.mxu0 0
        %884 = vmatmul.mubr.bf16.gmra.mxu0 %v840
        %v885 = vpop.f32.mrf.mxu0
        %v886 = vadd.f32 0.0, %v885
        %v887 = vpop.f32.mrf.mxu0
        %v888 = vpop.f32.mrf.mxu0
        %v889 = vadd.f32 0.0, %v888
        %v890 = vpop.f32.mrf.mxu0
        %891 = vmatprep.mubr.bf16.mxu0 0
        %892 = vmatmul.mubr.bf16.gmra.mxu0 %v843
        %v893 = vpop.f32.mrf.mxu0
        %v894 = vadd.f32 0.0, %v893
        %v895 = vpop.f32.mrf.mxu0
        %v896 = vpop.f32.mrf.mxu0
        %v897 = vadd.f32 0.0, %v896
        %v898 = vpop.f32.mrf.mxu0
        %899 = vmatprep.mubr.bf16.mxu0 0
        %900 = vmatmul.mubr.bf16.gmra.mxu0 %v846
        %v901 = vpop.f32.mrf.mxu0
        %v902 = vadd.f32 0.0, %v901
        %v903 = vpop.f32.mrf.mxu0
        %v904 = vpop.f32.mrf.mxu0
        %v905 = vadd.f32 0.0, %v904
        %v906 = vpop.f32.mrf.mxu0
        %907 = vmatprep.mubr.bf16.mxu0 0
        %908 = vmatmul.mubr.bf16.gmra.mxu0 %v849
        %v909 = vpop.f32.mrf.mxu0
        %v910 = vadd.f32 0.0, %v909
        %v911 = vpop.f32.mrf.mxu0
        %v912 = vpop.f32.mrf.mxu0
        %v913 = vadd.f32 0.0, %v912
        %v914 = vpop.f32.mrf.mxu0
        %915 = vdwg.mxu0
        %v916 = vadd.f32 %v815, %v886
        %v917 = vadd.f32 %v816, %v889
        %v918 = vadd.f32 %v817, %v894
        %v919 = vadd.f32 %v818, %v897
        %v920 = vadd.f32 %v819, %v902
        %v921 = vadd.f32 %v820, %v905
        %v922 = vadd.f32 %v821, %v910
        %v923 = vadd.f32 %v822, %v913
        %v924 = vld [vmem:[#allocation2 + $0x9] sm:$0xff]
        %v925 = vld [vmem:[#allocation2 + $0x11] sm:$0xff]
        %v926 = vld [vmem:[#allocation2 + $0x19] sm:$0xff]
        %v927 = vld [vmem:[#allocation2 + $0x21] sm:$0xff]
        %v928 = vld [vmem:[#allocation2 + $0x29] sm:$0xff]
        %v929 = vld [vmem:[#allocation2 + $0x31] sm:$0xff]
        %v930 = vld [vmem:[#allocation2 + $0x39] sm:$0xff]
        %v931 = vld [vmem:[#allocation2 + $0x41] sm:$0xff]
        %v932 = vpack.c.bf16 %v925, %v924
        %v933 = vpack.c.bf16 %v927, %v926
        %v934 = vpack.c.bf16 %v929, %v928
        %v935 = vpack.c.bf16 %v931, %v930
        %s936 = scalar_lea.vmem %s5, 32
        %v937 = vld [vmem:[%s936] sm:$0xff]
        %v938 = vld [vmem:[%s936 + $0x8] sm:$0xff]
        %v939 = vpack.c.bf16 %v938, %v937
        %v941 = vsel %vm477, %v932, 0
        %v944 = vsel %vm477, %v933, 0
        %v947 = vsel %vm477, %v934, 0
        %v950 = vsel %vm477, %v935, 0
        %952 = vmatprep.subr.bf16.mxu0 0
        %953 = vmatpush1.bf16.msra.mxu0 0
        %954 = vmatprep.subr.bf16.mxu0 0
        %955 = vmatpush1.bf16.msra.mxu0 0
        %956 = vmatprep.subr.bf16.mxu0 0
        %957 = vmatpush1.bf16.msra.mxu0 0
        %958 = vmatprep.subr.bf16.mxu0 0
        %959 = vmatpush1.bf16.msra.mxu0 0
        %960 = vmatprep.subr.bf16.mxu0 0
        %961 = vmatpush1.bf16.msra.mxu0 0
        %962 = vmatprep.subr.bf16.mxu0 0
        %963 = vmatpush1.bf16.msra.mxu0 0
        %964 = vmatprep.subr.bf16.mxu0 0
        %965 = vmatpush1.bf16.msra.mxu0 0
        %966 = vmatprep.subr.bf16.mxu0 0
        %967 = vmatpush1.bf16.msra.mxu0 %v939
        %968 = vmatprep.subr.bf16.mxu0 0
        %969 = vmatpush2.bf16.msra.mxu0 0
        %970 = vmatprep.subr.bf16.mxu0 0
        %971 = vmatpush2.bf16.msra.mxu0 0
        %972 = vmatprep.subr.bf16.mxu0 0
        %973 = vmatpush2.bf16.msra.mxu0 0
        %974 = vmatprep.subr.bf16.mxu0 0
        %975 = vmatpush2.bf16.msra.mxu0 0
        %976 = vmatprep.subr.bf16.mxu0 0
        %977 = vmatpush2.bf16.msra.mxu0 0
        %978 = vmatprep.subr.bf16.mxu0 0
        %979 = vmatpush2.bf16.msra.mxu0 0
        %980 = vmatprep.subr.bf16.mxu0 0
        %981 = vmatpush2.bf16.msra.mxu0 0
        %982 = vmatprep.subr.bf16.mxu0 0
        %983 = vmatpush2.bf16.msra.mxu0 0
        %984 = vmatprep.mubr.bf16.mxu0 0
        %985 = vmatmul.mubr.bf16.gmra.mxu0 %v941
        %v986 = vpop.f32.mrf.mxu0
        %v987 = vadd.f32 0.0, %v986
        %v988 = vpop.f32.mrf.mxu0
        %v989 = vpop.f32.mrf.mxu0
        %v990 = vadd.f32 0.0, %v989
        %v991 = vpop.f32.mrf.mxu0
        %992 = vmatprep.mubr.bf16.mxu0 0
        %993 = vmatmul.mubr.bf16.gmra.mxu0 %v944
        %v994 = vpop.f32.mrf.mxu0
        %v995 = vadd.f32 0.0, %v994
        %v996 = vpop.f32.mrf.mxu0
        %v997 = vpop.f32.mrf.mxu0
        %v998 = vadd.f32 0.0, %v997
        %v999 = vpop.f32.mrf.mxu0
        %1000 = vmatprep.mubr.bf16.mxu0 0
        %1001 = vmatmul.mubr.bf16.gmra.mxu0 %v947
        %v1002 = vpop.f32.mrf.mxu0
        %v1003 = vadd.f32 0.0, %v1002
        %v1004 = vpop.f32.mrf.mxu0
        %v1005 = vpop.f32.mrf.mxu0
        %v1006 = vadd.f32 0.0, %v1005
        %v1007 = vpop.f32.mrf.mxu0
        %1008 = vmatprep.mubr.bf16.mxu0 0
        %1009 = vmatmul.mubr.bf16.gmra.mxu0 %v950
        %v1010 = vpop.f32.mrf.mxu0
        %v1011 = vadd.f32 0.0, %v1010
        %v1012 = vpop.f32.mrf.mxu0
        %v1013 = vpop.f32.mrf.mxu0
        %v1014 = vadd.f32 0.0, %v1013
        %v1015 = vpop.f32.mrf.mxu0
        %1016 = vdwg.mxu0
        %v1017 = vsel %vm691, 1, 0
        %v1018 = vsel %vm692, 1, 0
        %v1019 = vsel %vm693, 1, 0
        %v1020 = vsel %vm694, 1, 0
        %v1021 = vsel %vm695, 1, 0
        %v1022 = vsel %vm696, 1, 0
        %v1023 = vsel %vm697, 1, 0
        %v1024 = vsel %vm698, 1, 0
        %vm1025 = vcmp.eq.s32.totalorder %v1017, 1
        %vm1026 = vcmp.eq.s32.totalorder %v1018, 1
        %vm1027 = vcmp.eq.s32.totalorder %v1019, 1
        %vm1028 = vcmp.eq.s32.totalorder %v1020, 1
        %vm1029 = vcmp.eq.s32.totalorder %v1021, 1
        %vm1030 = vcmp.eq.s32.totalorder %v1022, 1
        %vm1031 = vcmp.eq.s32.totalorder %v1023, 1
        %vm1032 = vcmp.eq.s32.totalorder %v1024, 1
        %v1033 = vsel %vm1025, %v987, 0.0
        %v1034 = vsel %vm1026, %v990, 0.0
        %v1035 = vsel %vm1027, %v995, 0.0
        %v1036 = vsel %vm1028, %v998, 0.0
        %v1037 = vsel %vm1029, %v1003, 0.0
        %v1038 = vsel %vm1030, %v1006, 0.0
        %v1039 = vsel %vm1031, %v1011, 0.0
        %v1040 = vsel %vm1032, %v1014, 0.0
        %v1041 = vadd.f32 %v916, %v1033
        %v1042 = vadd.f32 %v917, %v1034
        %v1043 = vadd.f32 %v918, %v1035
        %v1044 = vadd.f32 %v919, %v1036
        %v1045 = vadd.f32 %v920, %v1037
        %v1046 = vadd.f32 %v921, %v1038
        %v1047 = vadd.f32 %v922, %v1039
        %v1048 = vadd.f32 %v923, %v1040
        %v1049 = vld [vmem:[#allocation2 + $0xf] sm:$0xff]
        %v1050 = vld [vmem:[#allocation2 + $0x17] sm:$0xff]
        %v1051 = vld [vmem:[#allocation2 + $0x1f] sm:$0xff]
        %v1052 = vld [vmem:[#allocation2 + $0x27] sm:$0xff]
        %v1053 = vld [vmem:[#allocation2 + $0x2f] sm:$0xff]
        %v1054 = vld [vmem:[#allocation2 + $0x37] sm:$0xff]
        %v1055 = vld [vmem:[#allocation2 + $0x3f] sm:$0xff]
        %v1056 = vld [vmem:[#allocation2 + $0x47] sm:$0xff]
        %v1057 = vpack.c.bf16 %v1050, %v1049
        %v1058 = vpack.c.bf16 %v1052, %v1051
        %v1059 = vpack.c.bf16 %v1054, %v1053
        %v1060 = vpack.c.bf16 %v1056, %v1055
        %s1061 = scalar_lea.vmem %s5, 48
        %v1062 = vld [vmem:[%s1061] sm:$0xff]
        %v1063 = vld [vmem:[%s1061 + $0x8] sm:$0xff]
        %v1064 = vpack.c.bf16 %v1063, %v1062
        %v1066 = vsel %vm477, %v1057, 0
        %v1069 = vsel %vm477, %v1058, 0
        %v1072 = vsel %vm477, %v1059, 0
        %v1075 = vsel %vm477, %v1060, 0
        %1077 = vmatprep.subr.bf16.mxu0 0
        %1078 = vmatpush1.bf16.msra.mxu0 0
        %1079 = vmatprep.subr.bf16.mxu0 0
        %1080 = vmatpush1.bf16.msra.mxu0 0
        %1081 = vmatprep.subr.bf16.mxu0 0
        %1082 = vmatpush1.bf16.msra.mxu0 0
        %1083 = vmatprep.subr.bf16.mxu0 0
        %1084 = vmatpush1.bf16.msra.mxu0 0
        %1085 = vmatprep.subr.bf16.mxu0 0
        %1086 = vmatpush1.bf16.msra.mxu0 0
        %1087 = vmatprep.subr.bf16.mxu0 0
        %1088 = vmatpush1.bf16.msra.mxu0 0
        %1089 = vmatprep.subr.bf16.mxu0 0
        %1090 = vmatpush1.bf16.msra.mxu0 0
        %1091 = vmatprep.subr.bf16.mxu0 0
        %1092 = vmatpush1.bf16.msra.mxu0 %v1064
        %1093 = vmatprep.subr.bf16.mxu0 0
        %1094 = vmatpush2.bf16.msra.mxu0 0
        %1095 = vmatprep.subr.bf16.mxu0 0
        %1096 = vmatpush2.bf16.msra.mxu0 0
        %1097 = vmatprep.subr.bf16.mxu0 0
        %1098 = vmatpush2.bf16.msra.mxu0 0
        %1099 = vmatprep.subr.bf16.mxu0 0
        %1100 = vmatpush2.bf16.msra.mxu0 0
        %1101 = vmatprep.subr.bf16.mxu0 0
        %1102 = vmatpush2.bf16.msra.mxu0 0
        %1103 = vmatprep.subr.bf16.mxu0 0
        %1104 = vmatpush2.bf16.msra.mxu0 0
        %1105 = vmatprep.subr.bf16.mxu0 0
        %1106 = vmatpush2.bf16.msra.mxu0 0
        %1107 = vmatprep.subr.bf16.mxu0 0
        %1108 = vmatpush2.bf16.msra.mxu0 0
        %1109 = vmatprep.mubr.bf16.mxu0 0
        %1110 = vmatmul.mubr.bf16.gmra.mxu0 %v1066
        %v1111 = vpop.f32.mrf.mxu0
        %v1112 = vadd.f32 0.0, %v1111
        %v1113 = vpop.f32.mrf.mxu0
        %v1114 = vpop.f32.mrf.mxu0
        %v1115 = vadd.f32 0.0, %v1114
        %v1116 = vpop.f32.mrf.mxu0
        %1117 = vmatprep.mubr.bf16.mxu0 0
        %1118 = vmatmul.mubr.bf16.gmra.mxu0 %v1069
        %v1119 = vpop.f32.mrf.mxu0
        %v1120 = vadd.f32 0.0, %v1119
        %v1121 = vpop.f32.mrf.mxu0
        %v1122 = vpop.f32.mrf.mxu0
        %v1123 = vadd.f32 0.0, %v1122
        %v1124 = vpop.f32.mrf.mxu0
        %1125 = vmatprep.mubr.bf16.mxu0 0
        %1126 = vmatmul.mubr.bf16.gmra.mxu0 %v1072
        %v1127 = vpop.f32.mrf.mxu0
        %v1128 = vadd.f32 0.0, %v1127
        %v1129 = vpop.f32.mrf.mxu0
        %v1130 = vpop.f32.mrf.mxu0
        %v1131 = vadd.f32 0.0, %v1130
        %v1132 = vpop.f32.mrf.mxu0
        %1133 = vmatprep.mubr.bf16.mxu0 0
        %1134 = vmatmul.mubr.bf16.gmra.mxu0 %v1075
        %v1135 = vpop.f32.mrf.mxu0
        %v1136 = vadd.f32 0.0, %v1135
        %v1137 = vpop.f32.mrf.mxu0
        %v1138 = vpop.f32.mrf.mxu0
        %v1139 = vadd.f32 0.0, %v1138
        %v1140 = vpop.f32.mrf.mxu0
        %1141 = vdwg.mxu0
        %v1142 = vsel %vm799, %v1112, 0.0
        %v1143 = vsel %vm800, %v1115, 0.0
        %v1144 = vsel %vm801, %v1120, 0.0
        %v1145 = vsel %vm802, %v1123, 0.0
        %v1146 = vsel %vm803, %v1128, 0.0
        %v1147 = vsel %vm804, %v1131, 0.0
        %v1148 = vsel %vm805, %v1136, 0.0
        %v1149 = vsel %vm806, %v1139, 0.0
        %v1150 = vadd.f32 %v1041, %v1142
        %v1151 = vadd.f32 %v1042, %v1143
        %v1152 = vadd.f32 %v1043, %v1144
        %v1153 = vadd.f32 %v1044, %v1145
        %v1154 = vadd.f32 %v1045, %v1146
        %v1155 = vadd.f32 %v1046, %v1147
        %v1156 = vadd.f32 %v1047, %v1148
        %v1157 = vadd.f32 %v1048, %v1149
        %v1158 = vld [vmem:[#allocation2 + $0x10] sm:$0xff]
        %v1159 = vld [vmem:[#allocation2 + $0x18] sm:$0xff]
        %v1160 = vld [vmem:[#allocation2 + $0x20] sm:$0xff]
        %v1161 = vld [vmem:[#allocation2 + $0x28] sm:$0xff]
        %v1162 = vld [vmem:[#allocation2 + $0x30] sm:$0xff]
        %v1163 = vld [vmem:[#allocation2 + $0x38] sm:$0xff]
        %v1164 = vld [vmem:[#allocation2 + $0x40] sm:$0xff]
        %v1165 = vld [vmem:[#allocation2 + $0x48] sm:$0xff]
        %v1166 = vpack.c.bf16 %v1159, %v1158
        %v1167 = vpack.c.bf16 %v1161, %v1160
        %v1168 = vpack.c.bf16 %v1163, %v1162
        %v1169 = vpack.c.bf16 %v1165, %v1164
        %s1170 = scalar_lea.vmem %s5, 64
        %v1171 = vld [vmem:[%s1170] sm:$0xff]
        %v1172 = vld [vmem:[%s1170 + $0x8] sm:$0xff]
        %v1173 = vpack.c.bf16 %v1172, %v1171
        %v1175 = vsel %vm477, %v1166, 0
        %v1178 = vsel %vm477, %v1167, 0
        %v1181 = vsel %vm477, %v1168, 0
        %v1184 = vsel %vm477, %v1169, 0
        %1186 = vmatprep.subr.bf16.mxu0 0
        %1187 = vmatpush1.bf16.msra.mxu0 0
        %1188 = vmatprep.subr.bf16.mxu0 0
        %1189 = vmatpush1.bf16.msra.mxu0 0
        %1190 = vmatprep.subr.bf16.mxu0 0
        %1191 = vmatpush1.bf16.msra.mxu0 0
        %1192 = vmatprep.subr.bf16.mxu0 0
        %1193 = vmatpush1.bf16.msra.mxu0 0
        %1194 = vmatprep.subr.bf16.mxu0 0
        %1195 = vmatpush1.bf16.msra.mxu0 0
        %1196 = vmatprep.subr.bf16.mxu0 0
        %1197 = vmatpush1.bf16.msra.mxu0 0
        %1198 = vmatprep.subr.bf16.mxu0 0
        %1199 = vmatpush1.bf16.msra.mxu0 0
        %1200 = vmatprep.subr.bf16.mxu0 0
        %1201 = vmatpush1.bf16.msra.mxu0 %v1173
        %1202 = vmatprep.subr.bf16.mxu0 0
        %1203 = vmatpush2.bf16.msra.mxu0 0
        %1204 = vmatprep.subr.bf16.mxu0 0
        %1205 = vmatpush2.bf16.msra.mxu0 0
        %1206 = vmatprep.subr.bf16.mxu0 0
        %1207 = vmatpush2.bf16.msra.mxu0 0
        %1208 = vmatprep.subr.bf16.mxu0 0
        %1209 = vmatpush2.bf16.msra.mxu0 0
        %1210 = vmatprep.subr.bf16.mxu0 0
        %1211 = vmatpush2.bf16.msra.mxu0 0
        %1212 = vmatprep.subr.bf16.mxu0 0
        %1213 = vmatpush2.bf16.msra.mxu0 0
        %1214 = vmatprep.subr.bf16.mxu0 0
        %1215 = vmatpush2.bf16.msra.mxu0 0
        %1216 = vmatprep.subr.bf16.mxu0 0
        %1217 = vmatpush2.bf16.msra.mxu0 0
        %1218 = vmatprep.mubr.bf16.mxu0 0
        %1219 = vmatmul.mubr.bf16.gmra.mxu0 %v1175
        %v1220 = vpop.f32.mrf.mxu0
        %v1221 = vadd.f32 0.0, %v1220
        %v1222 = vpop.f32.mrf.mxu0
        %v1223 = vpop.f32.mrf.mxu0
        %v1224 = vadd.f32 0.0, %v1223
        %v1225 = vpop.f32.mrf.mxu0
        %1226 = vmatprep.mubr.bf16.mxu0 0
        %1227 = vmatmul.mubr.bf16.gmra.mxu0 %v1178
        %v1228 = vpop.f32.mrf.mxu0
        %v1229 = vadd.f32 0.0, %v1228
        %v1230 = vpop.f32.mrf.mxu0
        %v1231 = vpop.f32.mrf.mxu0
        %v1232 = vadd.f32 0.0, %v1231
        %v1233 = vpop.f32.mrf.mxu0
        %1234 = vmatprep.mubr.bf16.mxu0 0
        %1235 = vmatmul.mubr.bf16.gmra.mxu0 %v1181
        %v1236 = vpop.f32.mrf.mxu0
        %v1237 = vadd.f32 0.0, %v1236
        %v1238 = vpop.f32.mrf.mxu0
        %v1239 = vpop.f32.mrf.mxu0
        %v1240 = vadd.f32 0.0, %v1239
        %v1241 = vpop.f32.mrf.mxu0
        %1242 = vmatprep.mubr.bf16.mxu0 0
        %1243 = vmatmul.mubr.bf16.gmra.mxu0 %v1184
        %v1244 = vpop.f32.mrf.mxu0
        %v1245 = vadd.f32 0.0, %v1244
        %v1246 = vpop.f32.mrf.mxu0
        %v1247 = vpop.f32.mrf.mxu0
        %v1248 = vadd.f32 0.0, %v1247
        %v1249 = vpop.f32.mrf.mxu0
        %1250 = vdwg.mxu0
        %v1251 = vadd.f32 %v1150, %v1221
        %v1252 = vadd.f32 %v1151, %v1224
        %v1253 = vadd.f32 %v1152, %v1229
        %v1254 = vadd.f32 %v1153, %v1232
        %v1255 = vadd.f32 %v1154, %v1237
        %v1256 = vadd.f32 %v1155, %v1240
        %v1257 = vadd.f32 %v1156, %v1245
        %v1258 = vadd.f32 %v1157, %v1248
        %v1259 = vld [vmem:[#allocation2 + $0x11] sm:$0xff]
        %v1260 = vld [vmem:[#allocation2 + $0x19] sm:$0xff]
        %v1261 = vld [vmem:[#allocation2 + $0x21] sm:$0xff]
        %v1262 = vld [vmem:[#allocation2 + $0x29] sm:$0xff]
        %v1263 = vld [vmem:[#allocation2 + $0x31] sm:$0xff]
        %v1264 = vld [vmem:[#allocation2 + $0x39] sm:$0xff]
        %v1265 = vld [vmem:[#allocation2 + $0x41] sm:$0xff]
        %v1266 = vld [vmem:[#allocation2 + $0x49] sm:$0xff]
        %v1267 = vpack.c.bf16 %v1260, %v1259
        %v1268 = vpack.c.bf16 %v1262, %v1261
        %v1269 = vpack.c.bf16 %v1264, %v1263
        %v1270 = vpack.c.bf16 %v1266, %v1265
        %s1271 = scalar_lea.vmem %s5, 80
        %v1272 = vld [vmem:[%s1271] sm:$0xff]
        %v1273 = vld [vmem:[%s1271 + $0x8] sm:$0xff]
        %v1274 = vpack.c.bf16 %v1273, %v1272
        %v1276 = vsel %vm477, %v1267, 0
        %v1279 = vsel %vm477, %v1268, 0
        %v1282 = vsel %vm477, %v1269, 0
        %v1285 = vsel %vm477, %v1270, 0
        %1287 = vmatprep.subr.bf16.mxu0 0
        %1288 = vmatpush1.bf16.msra.mxu0 0
        %1289 = vmatprep.subr.bf16.mxu0 0
        %1290 = vmatpush1.bf16.msra.mxu0 0
        %1291 = vmatprep.subr.bf16.mxu0 0
        %1292 = vmatpush1.bf16.msra.mxu0 0
        %1293 = vmatprep.subr.bf16.mxu0 0
        %1294 = vmatpush1.bf16.msra.mxu0 0
        %1295 = vmatprep.subr.bf16.mxu0 0
        %1296 = vmatpush1.bf16.msra.mxu0 0
        %1297 = vmatprep.subr.bf16.mxu0 0
        %1298 = vmatpush1.bf16.msra.mxu0 0
        %1299 = vmatprep.subr.bf16.mxu0 0
        %1300 = vmatpush1.bf16.msra.mxu0 0
        %1301 = vmatprep.subr.bf16.mxu0 0
        %1302 = vmatpush1.bf16.msra.mxu0 %v1274
        %1303 = vmatprep.subr.bf16.mxu0 0
        %1304 = vmatpush2.bf16.msra.mxu0 0
        %1305 = vmatprep.subr.bf16.mxu0 0
        %1306 = vmatpush2.bf16.msra.mxu0 0
        %1307 = vmatprep.subr.bf16.mxu0 0
        %1308 = vmatpush2.bf16.msra.mxu0 0
        %1309 = vmatprep.subr.bf16.mxu0 0
        %1310 = vmatpush2.bf16.msra.mxu0 0
        %1311 = vmatprep.subr.bf16.mxu0 0
        %1312 = vmatpush2.bf16.msra.mxu0 0
        %1313 = vmatprep.subr.bf16.mxu0 0
        %1314 = vmatpush2.bf16.msra.mxu0 0
        %1315 = vmatprep.subr.bf16.mxu0 0
        %1316 = vmatpush2.bf16.msra.mxu0 0
        %1317 = vmatprep.subr.bf16.mxu0 0
        %1318 = vmatpush2.bf16.msra.mxu0 0
        %1319 = vmatprep.mubr.bf16.mxu0 0
        %1320 = vmatmul.mubr.bf16.gmra.mxu0 %v1276
        %v1321 = vpop.f32.mrf.mxu0
        %v1322 = vadd.f32 0.0, %v1321
        %v1323 = vpop.f32.mrf.mxu0
        %v1324 = vpop.f32.mrf.mxu0
        %v1325 = vadd.f32 0.0, %v1324
        %v1326 = vpop.f32.mrf.mxu0
        %1327 = vmatprep.mubr.bf16.mxu0 0
        %1328 = vmatmul.mubr.bf16.gmra.mxu0 %v1279
        %v1329 = vpop.f32.mrf.mxu0
        %v1330 = vadd.f32 0.0, %v1329
        %v1331 = vpop.f32.mrf.mxu0
        %v1332 = vpop.f32.mrf.mxu0
        %v1333 = vadd.f32 0.0, %v1332
        %v1334 = vpop.f32.mrf.mxu0
        %1335 = vmatprep.mubr.bf16.mxu0 0
        %1336 = vmatmul.mubr.bf16.gmra.mxu0 %v1282
        %v1337 = vpop.f32.mrf.mxu0
        %v1338 = vadd.f32 0.0, %v1337
        %v1339 = vpop.f32.mrf.mxu0
        %v1340 = vpop.f32.mrf.mxu0
        %v1341 = vadd.f32 0.0, %v1340
        %v1342 = vpop.f32.mrf.mxu0
        %1343 = vmatprep.mubr.bf16.mxu0 0
        %1344 = vmatmul.mubr.bf16.gmra.mxu0 %v1285
        %v1345 = vpop.f32.mrf.mxu0
        %v1346 = vadd.f32 0.0, %v1345
        %v1347 = vpop.f32.mrf.mxu0
        %v1348 = vpop.f32.mrf.mxu0
        %v1349 = vadd.f32 0.0, %v1348
        %v1350 = vpop.f32.mrf.mxu0
        %1351 = vdwg.mxu0
        %v1352 = vsel %vm1025, %v1322, 0.0
        %v1353 = vsel %vm1026, %v1325, 0.0
        %v1354 = vsel %vm1027, %v1330, 0.0
        %v1355 = vsel %vm1028, %v1333, 0.0
        %v1356 = vsel %vm1029, %v1338, 0.0
        %v1357 = vsel %vm1030, %v1341, 0.0
        %v1358 = vsel %vm1031, %v1346, 0.0
        %v1359 = vsel %vm1032, %v1349, 0.0
        %v1360 = vadd.f32 %v1251, %v1352
        %v1361 = vadd.f32 %v1252, %v1353
        %v1362 = vadd.f32 %v1253, %v1354
        %v1363 = vadd.f32 %v1254, %v1355
        %v1364 = vadd.f32 %v1255, %v1356
        %v1365 = vadd.f32 %v1256, %v1357
        %v1366 = vadd.f32 %v1257, %v1358
        %v1367 = vadd.f32 %v1258, %v1359
        %v1368 = vld [vmem:[#allocation2 + $0x17] sm:$0xff]
        %v1369 = vld [vmem:[#allocation2 + $0x1f] sm:$0xff]
        %v1370 = vld [vmem:[#allocation2 + $0x27] sm:$0xff]
        %v1371 = vld [vmem:[#allocation2 + $0x2f] sm:$0xff]
        %v1372 = vld [vmem:[#allocation2 + $0x37] sm:$0xff]
        %v1373 = vld [vmem:[#allocation2 + $0x3f] sm:$0xff]
        %v1374 = vld [vmem:[#allocation2 + $0x47] sm:$0xff]
        %v1375 = vld [vmem:[#allocation2 + $0x4f] sm:$0xff]
        %v1376 = vpack.c.bf16 %v1369, %v1368
        %v1377 = vpack.c.bf16 %v1371, %v1370
        %v1378 = vpack.c.bf16 %v1373, %v1372
        %v1379 = vpack.c.bf16 %v1375, %v1374
        %s1380 = scalar_lea.vmem %s5, 96
        %v1381 = vld [vmem:[%s1380] sm:$0xff]
        %v1382 = vld [vmem:[%s1380 + $0x8] sm:$0xff]
        %v1383 = vpack.c.bf16 %v1382, %v1381
        %v1385 = vsel %vm477, %v1376, 0
        %v1388 = vsel %vm477, %v1377, 0
        %v1391 = vsel %vm477, %v1378, 0
        %v1394 = vsel %vm477, %v1379, 0
        %1396 = vmatprep.subr.bf16.mxu0 0
        %1397 = vmatpush1.bf16.msra.mxu0 0
        %1398 = vmatprep.subr.bf16.mxu0 0
        %1399 = vmatpush1.bf16.msra.mxu0 0
        %1400 = vmatprep.subr.bf16.mxu0 0
        %1401 = vmatpush1.bf16.msra.mxu0 0
        %1402 = vmatprep.subr.bf16.mxu0 0
        %1403 = vmatpush1.bf16.msra.mxu0 0
        %1404 = vmatprep.subr.bf16.mxu0 0
        %1405 = vmatpush1.bf16.msra.mxu0 0
        %1406 = vmatprep.subr.bf16.mxu0 0
        %1407 = vmatpush1.bf16.msra.mxu0 0
        %1408 = vmatprep.subr.bf16.mxu0 0
        %1409 = vmatpush1.bf16.msra.mxu0 0
        %1410 = vmatprep.subr.bf16.mxu0 0
        %1411 = vmatpush1.bf16.msra.mxu0 %v1383
        %1412 = vmatprep.subr.bf16.mxu0 0
        %1413 = vmatpush2.bf16.msra.mxu0 0
        %1414 = vmatprep.subr.bf16.mxu0 0
        %1415 = vmatpush2.bf16.msra.mxu0 0
        %1416 = vmatprep.subr.bf16.mxu0 0
        %1417 = vmatpush2.bf16.msra.mxu0 0
        %1418 = vmatprep.subr.bf16.mxu0 0
        %1419 = vmatpush2.bf16.msra.mxu0 0
        %1420 = vmatprep.subr.bf16.mxu0 0
        %1421 = vmatpush2.bf16.msra.mxu0 0
        %1422 = vmatprep.subr.bf16.mxu0 0
        %1423 = vmatpush2.bf16.msra.mxu0 0
        %1424 = vmatprep.subr.bf16.mxu0 0
        %1425 = vmatpush2.bf16.msra.mxu0 0
        %1426 = vmatprep.subr.bf16.mxu0 0
        %1427 = vmatpush2.bf16.msra.mxu0 0
        %1428 = vmatprep.mubr.bf16.mxu0 0
        %1429 = vmatmul.mubr.bf16.gmra.mxu0 %v1385
        %v1430 = vpop.f32.mrf.mxu0
        %v1431 = vadd.f32 0.0, %v1430
        %v1432 = vpop.f32.mrf.mxu0
        %v1433 = vpop.f32.mrf.mxu0
        %v1434 = vadd.f32 0.0, %v1433
        %v1435 = vpop.f32.mrf.mxu0
        %1436 = vmatprep.mubr.bf16.mxu0 0
        %1437 = vmatmul.mubr.bf16.gmra.mxu0 %v1388
        %v1438 = vpop.f32.mrf.mxu0
        %v1439 = vadd.f32 0.0, %v1438
        %v1440 = vpop.f32.mrf.mxu0
        %v1441 = vpop.f32.mrf.mxu0
        %v1442 = vadd.f32 0.0, %v1441
        %v1443 = vpop.f32.mrf.mxu0
        %1444 = vmatprep.mubr.bf16.mxu0 0
        %1445 = vmatmul.mubr.bf16.gmra.mxu0 %v1391
        %v1446 = vpop.f32.mrf.mxu0
        %v1447 = vadd.f32 0.0, %v1446
        %v1448 = vpop.f32.mrf.mxu0
        %v1449 = vpop.f32.mrf.mxu0
        %v1450 = vadd.f32 0.0, %v1449
        %v1451 = vpop.f32.mrf.mxu0
        %1452 = vmatprep.mubr.bf16.mxu0 0
        %1453 = vmatmul.mubr.bf16.gmra.mxu0 %v1394
        %v1454 = vpop.f32.mrf.mxu0
        %v1455 = vadd.f32 0.0, %v1454
        %v1456 = vpop.f32.mrf.mxu0
        %v1457 = vpop.f32.mrf.mxu0
        %v1458 = vadd.f32 0.0, %v1457
        %v1459 = vpop.f32.mrf.mxu0
        %1460 = vdwg.mxu0
        %v1461 = vsel %vm799, %v1431, 0.0
        %v1462 = vsel %vm800, %v1434, 0.0
        %v1463 = vsel %vm801, %v1439, 0.0
        %v1464 = vsel %vm802, %v1442, 0.0
        %v1465 = vsel %vm803, %v1447, 0.0
        %v1466 = vsel %vm804, %v1450, 0.0
        %v1467 = vsel %vm805, %v1455, 0.0
        %v1468 = vsel %vm806, %v1458, 0.0
        %v1469 = vadd.f32 %v1360, %v1461
        %v1470 = vadd.f32 %v1361, %v1462
        %v1471 = vadd.f32 %v1362, %v1463
        %v1472 = vadd.f32 %v1363, %v1464
        %v1473 = vadd.f32 %v1364, %v1465
        %v1474 = vadd.f32 %v1365, %v1466
        %v1475 = vadd.f32 %v1366, %v1467
        %v1476 = vadd.f32 %v1367, %v1468
        %v1477 = vld [vmem:[#allocation2 + $0x18] sm:$0xff]
        %v1478 = vld [vmem:[#allocation2 + $0x20] sm:$0xff]
        %v1479 = vld [vmem:[#allocation2 + $0x28] sm:$0xff]
        %v1480 = vld [vmem:[#allocation2 + $0x30] sm:$0xff]
        %v1481 = vld [vmem:[#allocation2 + $0x38] sm:$0xff]
        %v1482 = vld [vmem:[#allocation2 + $0x40] sm:$0xff]
        %v1483 = vld [vmem:[#allocation2 + $0x48] sm:$0xff]
        %v1484 = vld [vmem:[#allocation2 + $0x50] sm:$0xff]
        %v1485 = vpack.c.bf16 %v1478, %v1477
        %v1486 = vpack.c.bf16 %v1480, %v1479
        %v1487 = vpack.c.bf16 %v1482, %v1481
        %v1488 = vpack.c.bf16 %v1484, %v1483
        %s1489 = scalar_lea.vmem %s5, 112
        %v1490 = vld [vmem:[%s1489] sm:$0xff]
        %v1491 = vld [vmem:[%s1489 + $0x8] sm:$0xff]
        %v1492 = vpack.c.bf16 %v1491, %v1490
        %v1494 = vsel %vm477, %v1485, 0
        %v1497 = vsel %vm477, %v1486, 0
        %v1500 = vsel %vm477, %v1487, 0
        %v1503 = vsel %vm477, %v1488, 0
        %1505 = vmatprep.subr.bf16.mxu0 0
        %1506 = vmatpush1.bf16.msra.mxu0 0
        %1507 = vmatprep.subr.bf16.mxu0 0
        %1508 = vmatpush1.bf16.msra.mxu0 0
        %1509 = vmatprep.subr.bf16.mxu0 0
        %1510 = vmatpush1.bf16.msra.mxu0 0
        %1511 = vmatprep.subr.bf16.mxu0 0
        %1512 = vmatpush1.bf16.msra.mxu0 0
        %1513 = vmatprep.subr.bf16.mxu0 0
        %1514 = vmatpush1.bf16.msra.mxu0 0
        %1515 = vmatprep.subr.bf16.mxu0 0
        %1516 = vmatpush1.bf16.msra.mxu0 0
        %1517 = vmatprep.subr.bf16.mxu0 0
        %1518 = vmatpush1.bf16.msra.mxu0 0
        %1519 = vmatprep.subr.bf16.mxu0 0
        %1520 = vmatpush1.bf16.msra.mxu0 %v1492
        %1521 = vmatprep.subr.bf16.mxu0 0
        %1522 = vmatpush2.bf16.msra.mxu0 0
        %1523 = vmatprep.subr.bf16.mxu0 0
        %1524 = vmatpush2.bf16.msra.mxu0 0
        %1525 = vmatprep.subr.bf16.mxu0 0
        %1526 = vmatpush2.bf16.msra.mxu0 0
        %1527 = vmatprep.subr.bf16.mxu0 0
        %1528 = vmatpush2.bf16.msra.mxu0 0
        %1529 = vmatprep.subr.bf16.mxu0 0
        %1530 = vmatpush2.bf16.msra.mxu0 0
        %1531 = vmatprep.subr.bf16.mxu0 0
        %1532 = vmatpush2.bf16.msra.mxu0 0
        %1533 = vmatprep.subr.bf16.mxu0 0
        %1534 = vmatpush2.bf16.msra.mxu0 0
        %1535 = vmatprep.subr.bf16.mxu0 0
        %1536 = vmatpush2.bf16.msra.mxu0 0
        %1537 = vmatprep.mubr.bf16.mxu0 0
        %1538 = vmatmul.mubr.bf16.gmra.mxu0 %v1494
        %v1539 = vpop.f32.mrf.mxu0
        %v1540 = vadd.f32 0.0, %v1539
        %v1541 = vpop.f32.mrf.mxu0
        %v1542 = vpop.f32.mrf.mxu0
        %v1543 = vadd.f32 0.0, %v1542
        %v1544 = vpop.f32.mrf.mxu0
        %1545 = vmatprep.mubr.bf16.mxu0 0
        %1546 = vmatmul.mubr.bf16.gmra.mxu0 %v1497
        %v1547 = vpop.f32.mrf.mxu0
        %v1548 = vadd.f32 0.0, %v1547
        %v1549 = vpop.f32.mrf.mxu0
        %v1550 = vpop.f32.mrf.mxu0
        %v1551 = vadd.f32 0.0, %v1550
        %v1552 = vpop.f32.mrf.mxu0
        %1553 = vmatprep.mubr.bf16.mxu0 0
        %1554 = vmatmul.mubr.bf16.gmra.mxu0 %v1500
        %v1555 = vpop.f32.mrf.mxu0
        %v1556 = vadd.f32 0.0, %v1555
        %v1557 = vpop.f32.mrf.mxu0
        %v1558 = vpop.f32.mrf.mxu0
        %v1559 = vadd.f32 0.0, %v1558
        %v1560 = vpop.f32.mrf.mxu0
        %1561 = vmatprep.mubr.bf16.mxu0 0
        %1562 = vmatmul.mubr.bf16.gmra.mxu0 %v1503
        %v1563 = vpop.f32.mrf.mxu0
        %v1564 = vadd.f32 0.0, %v1563
        %v1565 = vpop.f32.mrf.mxu0
        %v1566 = vpop.f32.mrf.mxu0
        %v1567 = vadd.f32 0.0, %v1566
        %v1568 = vpop.f32.mrf.mxu0
        %1569 = vdwg.mxu0
        %v1570 = vadd.f32 %v1469, %v1540
        %v1571 = vadd.f32 %v1470, %v1543
        %v1572 = vadd.f32 %v1471, %v1548
        %v1573 = vadd.f32 %v1472, %v1551
        %v1574 = vadd.f32 %v1473, %v1556
        %v1575 = vadd.f32 %v1474, %v1559
        %v1576 = vadd.f32 %v1475, %v1564
        %v1577 = vadd.f32 %v1476, %v1567
        %v1578 = vld [vmem:[#allocation2 + $0x19] sm:$0xff]
        %v1579 = vld [vmem:[#allocation2 + $0x21] sm:$0xff]
        %v1580 = vld [vmem:[#allocation2 + $0x29] sm:$0xff]
        %v1581 = vld [vmem:[#allocation2 + $0x31] sm:$0xff]
        %v1582 = vld [vmem:[#allocation2 + $0x39] sm:$0xff]
        %v1583 = vld [vmem:[#allocation2 + $0x41] sm:$0xff]
        %v1584 = vld [vmem:[#allocation2 + $0x49] sm:$0xff]
        %v1585 = vld [vmem:[#allocation2 + $0x51] sm:$0xff]
        %v1586 = vpack.c.bf16 %v1579, %v1578
        %v1587 = vpack.c.bf16 %v1581, %v1580
        %v1588 = vpack.c.bf16 %v1583, %v1582
        %v1589 = vpack.c.bf16 %v1585, %v1584
        %s1590 = scalar_lea.vmem %s5, 128
        %v1591 = vld [vmem:[%s1590] sm:$0xff]
        %v1592 = vld [vmem:[%s1590 + $0x8] sm:$0xff]
        %v1593 = vpack.c.bf16 %v1592, %v1591
        %v1595 = vsel %vm477, %v1586, 0
        %v1598 = vsel %vm477, %v1587, 0
        %v1601 = vsel %vm477, %v1588, 0
        %v1604 = vsel %vm477, %v1589, 0
        %1606 = vmatprep.subr.bf16.mxu0 0
        %1607 = vmatpush1.bf16.msra.mxu0 0
        %1608 = vmatprep.subr.bf16.mxu0 0
        %1609 = vmatpush1.bf16.msra.mxu0 0
        %1610 = vmatprep.subr.bf16.mxu0 0
        %1611 = vmatpush1.bf16.msra.mxu0 0
        %1612 = vmatprep.subr.bf16.mxu0 0
        %1613 = vmatpush1.bf16.msra.mxu0 0
        %1614 = vmatprep.subr.bf16.mxu0 0
        %1615 = vmatpush1.bf16.msra.mxu0 0
        %1616 = vmatprep.subr.bf16.mxu0 0
        %1617 = vmatpush1.bf16.msra.mxu0 0
        %1618 = vmatprep.subr.bf16.mxu0 0
        %1619 = vmatpush1.bf16.msra.mxu0 0
        %1620 = vmatprep.subr.bf16.mxu0 0
        %1621 = vmatpush1.bf16.msra.mxu0 %v1593
        %1622 = vmatprep.subr.bf16.mxu0 0
        %1623 = vmatpush2.bf16.msra.mxu0 0
        %1624 = vmatprep.subr.bf16.mxu0 0
        %1625 = vmatpush2.bf16.msra.mxu0 0
        %1626 = vmatprep.subr.bf16.mxu0 0
        %1627 = vmatpush2.bf16.msra.mxu0 0
        %1628 = vmatprep.subr.bf16.mxu0 0
        %1629 = vmatpush2.bf16.msra.mxu0 0
        %1630 = vmatprep.subr.bf16.mxu0 0
        %1631 = vmatpush2.bf16.msra.mxu0 0
        %1632 = vmatprep.subr.bf16.mxu0 0
        %1633 = vmatpush2.bf16.msra.mxu0 0
        %1634 = vmatprep.subr.bf16.mxu0 0
        %1635 = vmatpush2.bf16.msra.mxu0 0
        %1636 = vmatprep.subr.bf16.mxu0 0
        %1637 = vmatpush2.bf16.msra.mxu0 0
        %1638 = vmatprep.mubr.bf16.mxu0 0
        %1639 = vmatmul.mubr.bf16.gmra.mxu0 %v1595
        %v1640 = vpop.f32.mrf.mxu0
        %v1641 = vadd.f32 0.0, %v1640
        %v1642 = vpop.f32.mrf.mxu0
        %v1643 = vpop.f32.mrf.mxu0
        %v1644 = vadd.f32 0.0, %v1643
        %v1645 = vpop.f32.mrf.mxu0
        %1646 = vmatprep.mubr.bf16.mxu0 0
        %1647 = vmatmul.mubr.bf16.gmra.mxu0 %v1598
        %v1648 = vpop.f32.mrf.mxu0
        %v1649 = vadd.f32 0.0, %v1648
        %v1650 = vpop.f32.mrf.mxu0
        %v1651 = vpop.f32.mrf.mxu0
        %v1652 = vadd.f32 0.0, %v1651
        %v1653 = vpop.f32.mrf.mxu0
        %1654 = vmatprep.mubr.bf16.mxu0 0
        %1655 = vmatmul.mubr.bf16.gmra.mxu0 %v1601
        %v1656 = vpop.f32.mrf.mxu0
        %v1657 = vadd.f32 0.0, %v1656
        %v1658 = vpop.f32.mrf.mxu0
        %v1659 = vpop.f32.mrf.mxu0
        %v1660 = vadd.f32 0.0, %v1659
        %v1661 = vpop.f32.mrf.mxu0
        %1662 = vmatprep.mubr.bf16.mxu0 0
        %1663 = vmatmul.mubr.bf16.gmra.mxu0 %v1604
        %v1664 = vpop.f32.mrf.mxu0
        %v1665 = vadd.f32 0.0, %v1664
        %v1666 = vpop.f32.mrf.mxu0
        %v1667 = vpop.f32.mrf.mxu0
        %v1668 = vadd.f32 0.0, %v1667
        %v1669 = vpop.f32.mrf.mxu0
        %1670 = vdwg.mxu0
        %v1671 = vsel %vm1025, %v1641, 0.0
        %v1672 = vsel %vm1026, %v1644, 0.0
        %v1673 = vsel %vm1027, %v1649, 0.0
        %v1674 = vsel %vm1028, %v1652, 0.0
        %v1675 = vsel %vm1029, %v1657, 0.0
        %v1676 = vsel %vm1030, %v1660, 0.0
        %v1677 = vsel %vm1031, %v1665, 0.0
        %v1678 = vsel %vm1032, %v1668, 0.0
        %v1679 = vadd.f32 %v1570, %v1671
        %v1680 = vadd.f32 %v1571, %v1672
        %v1681 = vadd.f32 %v1572, %v1673
        %v1682 = vadd.f32 %v1573, %v1674
        %v1683 = vadd.f32 %v1574, %v1675
        %v1684 = vadd.f32 %v1575, %v1676
        %v1685 = vadd.f32 %v1576, %v1677
        %v1686 = vadd.f32 %v1577, %v1678
        %v1687 = vld [vmem:[%s6] sm:$0x1]
        %v1689 = vlaneseq
        %v1690 = vshrl.u32 %v1689, 7
        %v1691 = vsub.s32 0, %v1690
        %v1692 = vrot.slane %v1687, %v1691
        %v1694 = vadd.f32 %v1679, %v1692
        %v1695 = vadd.f32 %v1680, %v1692
        %v1696 = vadd.f32 %v1681, %v1692
        %v1697 = vadd.f32 %v1682, %v1692
        %v1698 = vadd.f32 %v1683, %v1692
        %v1699 = vadd.f32 %v1684, %v1692
        %v1700 = vadd.f32 %v1685, %v1692
        %v1701 = vadd.f32 %v1686, %v1692
        %1702 = vst.msk [vmem:[%s336] sm:$0xff] %vm477, %v1694
        %1703 = vst.msk [vmem:[%s336 + $0x8] sm:$0xff] %vm477, %v1695
        %1704 = vst.msk [vmem:[%s336 + $0x10] sm:$0xff] %vm477, %v1696
        %1705 = vst.msk [vmem:[%s336 + $0x18] sm:$0xff] %vm477, %v1697
        %1706 = vst.msk [vmem:[%s336 + $0x20] sm:$0xff] %vm477, %v1698
        %1707 = vst.msk [vmem:[%s336 + $0x28] sm:$0xff] %vm477, %v1699
        %1708 = vst.msk [vmem:[%s336 + $0x30] sm:$0xff] %vm477, %v1700
        %1709 = vst.msk [vmem:[%s336 + $0x38] sm:$0xff] %vm477, %v1701
        %p1710 = scmp.lt.s32.totalorder %s23, 1
        %s1711 = scalar_select %p1710, %s23, 1
        %s1712 = smul.addr %s1711, 8
        %s1713 = smul.addr %s1712, 8
        %s1714 = scalar_lea.vmem %s7, %s1713
        %s1715 = sand.u32 %s219, 1
        %s1716 = scalar_lea.sflag [#allocation4], %s1715
        %s1717 = sand.u32 %s219, 1
        %s1718 = smul.addr %s1717, 64
        %s1719 = scalar_lea.vmem [#allocation3], %s1718
        // Predicated region
        $region49: #{fpn_forward_pallas.6} parent=47 // pred_check
          %p1720 = pneg %p203
        $region50: #{fpn_forward_pallas.6} parent=47 // pred_check_branch
          %1722 = sbr.rel (%p1720) target = $region52
        $region51: #{fpn_forward_pallas.6} parent=47 // pred_region
          _
        $region52: #{fpn_forward_pallas.6} parent=47 // pred_fallthru
          _
        // Predicated region
        $region53: #{fpn_forward_pallas.6} parent=47 // pred_check
          %p1723 = pneg %p229
        $region54: #{fpn_forward_pallas.6} parent=47 // pred_check_branch
          %1725 = sbr.rel (%p1723) target = $region56
        $region55: #{fpn_forward_pallas.6} parent=47 // pred_region
          %s1727 = ssub.s32 1024, 1024
          %1728 = vsyncadd %s1716, %s1727
          %s1729 = smul.addr %s23, 8
          %s1730 = smul.addr %s1729, 128
          %s1731 = scalar_lea.hbm %s8, %s1730
          %s1732 = sshll.u32 %s1719, 4
          %s1733 = int_to_ptr.vmem [resolvable:$true] %s1732
          %1738 = dma.vmem_to_hbm [thread:$0]  %s1733, 1024, %s1731, %s1716, 128, 128, 8
        $region56: #{fpn_forward_pallas.6} parent=47 // pred_fallthru
          _
      $region48: #{fpn_forward_pallas.6} parent=5 // pred_fallthru
        _
      %p1739 = scmp.le.s32.totalorder 2, %s18
      // Predicated region
      $region57: #{fpn_forward_pallas.6} parent=5 // pred_check
        %p1740 = pneg %p1739
      $region58: #{fpn_forward_pallas.6} parent=5 // pred_check_branch
        %1742 = sbr.rel (%p1740) target = $region60
      $region59: #{fpn_forward_pallas.6} parent=5 // pred_region
        %s1743 = ssub.s32 %s18, 2
        // Predicated region
        $region61: #{fpn_forward_pallas.6} parent=59 // pred_check
          %p1744 = pneg %p209
        $region62: #{fpn_forward_pallas.6} parent=59 // pred_check_branch
          %1746 = sbr.rel (%p1744) target = $region64
        $region63: #{fpn_forward_pallas.6} parent=59 // pred_region
          %p1747 = scmp.lt.s32.totalorder %s24, 1
          %s1748 = scalar_select %p1747, %s24, 1
          %s1749 = smul.addr %s1748, 8
          %s1750 = smul.addr %s1749, 8
          %s1751 = scalar_lea.vmem %s7, %s1750
        $region64: #{fpn_forward_pallas.6} parent=59 // pred_fallthru
          _
        // Predicated region
        $region65: #{fpn_forward_pallas.6} parent=59 // pred_check
          %p1752 = pneg %p235
        $region66: #{fpn_forward_pallas.6} parent=59 // pred_check_branch
          %1754 = sbr.rel (%p1752) target = $region68
        $region67: #{fpn_forward_pallas.6} parent=59 // pred_region
          %s1755 = sand.u32 %s220, 1
          %s1756 = scalar_lea.sflag [#allocation4], %s1755
          %s1757 = sand.u32 %s220, 1
          %s1758 = smul.addr %s1757, 64
          %s1759 = scalar_lea.vmem [#allocation3], %s1758
          %1760 = dma.done %s1756, 1024
        $region68: #{fpn_forward_pallas.6} parent=59 // pred_fallthru
          _
      $region60: #{fpn_forward_pallas.6} parent=5 // pred_fallthru
        _
    $region6: #{fpn_forward_pallas.6} parent=1 // loop_footer
      %s22 = sadd.s32 1, %s18
    $region7: #{fpn_forward_pallas.6} parent=1 // loop_footer_branch
      %17 = sbr.rel target = $region3
    $region8: #{fpn_forward_pallas.6} parent=1 // loop_exit
      _
    %1761 = vsyncpa [#allocation4], 1
    %s1762 = scalar_lea.sflag [#allocation4], 1
    %1763 = vsyncpa %s1762, 1

// kernel: fpn_forward_pallas.7
$region0: #{fpn_forward_pallas.7}
  #allocation0 [shape = 'u32[]', space=smem, size = 0x4, offset = 0x4, fixed_abs, tag = 'smem constant byte address 0x4 - core index']
  #allocation1 [shape = 'u32[144,128]{1,0:T(1,128)}', space=vmem, size = 0x12000, scoped, tag = 'internal scratch']
  #allocation2 [shape = 'f32[304,16]{1,0:T(8,128)}', space=vmem, size = 0x26000, scoped, tag = 'scratch operand']
  %s0 = inlined_call_operand.vmem [shape: f32[2,256,4], index: 0, kind: input, shape index: {}]
  %s1 = inlined_call_operand.vmem [shape: f32[2,256,16], index: 1, kind: input, shape index: {}]
  %s2 = inlined_call_operand.vmem [shape: f32[2,256,1], index: 2, kind: input, shape index: {}]
  %s3 = inlined_call_operand.vmem [shape: f32[4,16], index: 3, kind: input, shape index: {}]
  %s4 = inlined_call_operand.vmem [shape: f32[1,16], index: 4, kind: input, shape index: {}]
  %s5 = inlined_call_operand.vmem [shape: f32[9,16,16], index: 5, kind: input, shape index: {}]
  %s6 = inlined_call_operand.vmem [shape: f32[1,16], index: 6, kind: input, shape index: {}]
  %s7 = inlined_call_operand.hbm [shape: f32[2,256,16], index: 7, kind: output, shape index: {0}]
  %s8 = inlined_call_operand.vmem [shape: f32[2,256,16], index: 8, kind: output, shape index: {1}]
  %9 = xla_tuple %s7, %s8
  %s10 = sld [smem:[#allocation0]]
  $region69: #{fpn_forward_pallas.7} parent=0
    _
  %s12 = ssub.s32 1, %s10
  %s13 = scalar_select 0, %s12, %s10
  $region1: #{fpn_forward_pallas.7} parent=0
    #allocation3 [shape = 'u8[262144]{0}', space=vmem, size = 0x40000, scoped, tag = 'output window, operand 0']
    #allocation4 [shape = 's32[2]{0}', space=sflag, size = 0x8, scoped, tag = 'scoped memory for fpn_forward_pallas.7']
    %14 = vsyncpa [#allocation4], 0
    %s15 = scalar_lea.sflag [#allocation4], 1
    %16 = vsyncpa %s15, 0
    loop: start=0, step=1, limit=4
    $region2: #{fpn_forward_pallas.7} parent=1 // loop_pre_header
      _
    $region3: #{fpn_forward_pallas.7} parent=1 // loop_header
      %s18 = sphi 0, %s22
      %p19 = scmp.ge.s32.totalorder %s18, 4
      %s28 = sphi 0, %s30
      %s31 = sphi 0, %s28
      %s32 = sphi 0, %s31
      %s48 = sphi 0, %s32
      %s54 = sphi 0, %s56
      %s57 = sphi 0, %s54
      %s58 = sphi 0, %s57
      %s74 = sphi 0, %s58
      %s80 = sphi 0, %s82
      %s83 = sphi 0, %s80
      %s84 = sphi 0, %s83
      %s100 = sphi 0, %s84
      %s104 = sphi 0, %s104
      %s106 = sphi 0, %s104
      %s107 = sphi 0, %s106
      %s121 = sphi 0, %s107
      %s125 = sphi 0, %s125
      %s127 = sphi 0, %s125
      %s128 = sphi 0, %s127
      %s142 = sphi 0, %s128
      %s146 = sphi 0, %s146
      %s148 = sphi 0, %s146
      %s149 = sphi 0, %s148
      %s163 = sphi 0, %s149
      %s167 = sphi 0, %s167
      %s169 = sphi 0, %s167
      %s170 = sphi 0, %s169
      %s184 = sphi 0, %s170
      %s190 = sphi 0, %s192
      %s193 = sphi 0, %s190
      %s194 = sphi 0, %s193
      %s210 = sphi 0, %s194
      %s216 = sphi 0, %s218
      %s219 = sphi 0, %s216
      %s220 = sphi 0, %s219
      %s236 = sphi 0, %s220
    $region4: #{fpn_forward_pallas.7} parent=1 // loop_header_branch
      %21 = sbr.rel (%p19) target = $region8
    $region5: #{fpn_forward_pallas.7} parent=1 // loop_body
      %s23 = ssub.s32 %s18, 1
      %s24 = ssub.s32 %s18, 2
      %s25 = sadd.s32 %s18, 1
      %s26 = ssub.s32 %s18, %s25
      %p27 = scmp.eq.s32.totalorder %s26, 0
      %s29 = sadd.s32 %s28, 1
      %s30 = scalar_select %p27, %s28, %s29
      %p33 = pneg %p27
      %p34 = scmp.eq.s32.totalorder %s18, 1
      %p35 = por %p33, %p34
      %p36 = scmp.ne.s32.totalorder %s28, %s31
      %p37 = scmp.eq.s32.totalorder %s18, 0
      %p38 = por %p36, %p37
      %p39 = scmp.ne.s32.totalorder %s28, %s31
      %p40 = scmp.eq.s32.totalorder %s23, 1
      %p41 = por %p39, %p40
      %p42 = scmp.ne.s32.totalorder %s31, %s32
      %p43 = scmp.eq.s32.totalorder %s23, 0
      %p44 = por %p42, %p43
      %p45 = scmp.ne.s32.totalorder %s31, %s32
      %p46 = scmp.eq.s32.totalorder %s24, 1
      %p47 = por %p45, %p46
      %p49 = scmp.ne.s32.totalorder %s32, %s48
      %p50 = scmp.eq.s32.totalorder %s24, 0
      %p51 = por %p49, %p50
      %s52 = ssub.s32 %s18, %s25
      %p53 = scmp.eq.s32.totalorder %s52, 0
      %s55 = sadd.s32 %s54, 1
      %s56 = scalar_select %p53, %s54, %s55
      %p59 = pneg %p53
      %p60 = scmp.eq.s32.totalorder %s18, 1
      %p61 = por %p59, %p60
      %p62 = scmp.ne.s32.totalorder %s54, %s57
      %p63 = scmp.eq.s32.totalorder %s18, 0
      %p64 = por %p62, %p63
      %p65 = scmp.ne.s32.totalorder %s54, %s57
      %p66 = scmp.eq.s32.totalorder %s23, 1
      %p67 = por %p65, %p66
      %p68 = scmp.ne.s32.totalorder %s57, %s58
      %p69 = scmp.eq.s32.totalorder %s23, 0
      %p70 = por %p68, %p69
      %p71 = scmp.ne.s32.totalorder %s57, %s58
      %p72 = scmp.eq.s32.totalorder %s24, 1
      %p73 = por %p71, %p72
      %p75 = scmp.ne.s32.totalorder %s58, %s74
      %p76 = scmp.eq.s32.totalorder %s24, 0
      %p77 = por %p75, %p76
      %s78 = ssub.s32 %s18, %s25
      %p79 = scmp.eq.s32.totalorder %s78, 0
      %s81 = sadd.s32 %s80, 1
      %s82 = scalar_select %p79, %s80, %s81
      %p85 = pneg %p79
      %p86 = scmp.eq.s32.totalorder %s18, 1
      %p87 = por %p85, %p86
      %p88 = scmp.ne.s32.totalorder %s80, %s83
      %p89 = scmp.eq.s32.totalorder %s18, 0
      %p90 = por %p88, %p89
      %p91 = scmp.ne.s32.totalorder %s80, %s83
      %p92 = scmp.eq.s32.totalorder %s23, 1
      %p93 = por %p91, %p92
      %p94 = scmp.ne.s32.totalorder %s83, %s84
      %p95 = scmp.eq.s32.totalorder %s23, 0
      %p96 = por %p94, %p95
      %p97 = scmp.ne.s32.totalorder %s83, %s84
      %p98 = scmp.eq.s32.totalorder %s24, 1
      %p99 = por %p97, %p98
      %p101 = scmp.ne.s32.totalorder %s84, %s100
      %p102 = scmp.eq.s32.totalorder %s24, 0
      %p103 = por %p101, %p102
      %s105 = sadd.s32 %s104, 1
      %p108 = scmp.eq.s32.totalorder %s18, 1
      %p109 = scmp.ne.s32.totalorder %s104, %s106
      %p110 = scmp.eq.s32.totalorder %s18, 0
      %p111 = por %p109, %p110
      %p112 = scmp.ne.s32.totalorder %s104, %s106
      %p113 = scmp.eq.s32.totalorder %s23, 1
      %p114 = por %p112, %p113
      %p115 = scmp.ne.s32.totalorder %s106, %s107
      %p116 = scmp.eq.s32.totalorder %s23, 0
      %p117 = por %p115, %p116
      %p118 = scmp.ne.s32.totalorder %s106, %s107
      %p119 = scmp.eq.s32.totalorder %s24, 1
      %p120 = por %p118, %p119
      %p122 = scmp.ne.s32.totalorder %s107, %s121
      %p123 = scmp.eq.s32.totalorder %s24, 0
      %p124 = por %p122, %p123
      %s126 = sadd.s32 %s125, 1
      %p129 = scmp.eq.s32.totalorder %s18, 1
      %p130 = scmp.ne.s32.totalorder %s125, %s127
      %p131 = scmp.eq.s32.totalorder %s18, 0
      %p132 = por %p130, %p131
      %p133 = scmp.ne.s32.totalorder %s125, %s127
      %p134 = scmp.eq.s32.totalorder %s23, 1
      %p135 = por %p133, %p134
      %p136 = scmp.ne.s32.totalorder %s127, %s128
      %p137 = scmp.eq.s32.totalorder %s23, 0
      %p138 = por %p136, %p137
      %p139 = scmp.ne.s32.totalorder %s127, %s128
      %p140 = scmp.eq.s32.totalorder %s24, 1
      %p141 = por %p139, %p140
      %p143 = scmp.ne.s32.totalorder %s128, %s142
      %p144 = scmp.eq.s32.totalorder %s24, 0
      %p145 = por %p143, %p144
      %s147 = sadd.s32 %s146, 1
      %p150 = scmp.eq.s32.totalorder %s18, 1
      %p151 = scmp.ne.s32.totalorder %s146, %s148
      %p152 = scmp.eq.s32.totalorder %s18, 0
      %p153 = por %p151, %p152
      %p154 = scmp.ne.s32.totalorder %s146, %s148
      %p155 = scmp.eq.s32.totalorder %s23, 1
      %p156 = por %p154, %p155
      %p157 = scmp.ne.s32.totalorder %s148, %s149
      %p158 = scmp.eq.s32.totalorder %s23, 0
      %p159 = por %p157, %p158
      %p160 = scmp.ne.s32.totalorder %s148, %s149
      %p161 = scmp.eq.s32.totalorder %s24, 1
      %p162 = por %p160, %p161
      %p164 = scmp.ne.s32.totalorder %s149, %s163
      %p165 = scmp.eq.s32.totalorder %s24, 0
      %p166 = por %p164, %p165
      %s168 = sadd.s32 %s167, 1
      %p171 = scmp.eq.s32.totalorder %s18, 1
      %p172 = scmp.ne.s32.totalorder %s167, %s169
      %p173 = scmp.eq.s32.totalorder %s18, 0
      %p174 = por %p172, %p173
      %p175 = scmp.ne.s32.totalorder %s167, %s169
      %p176 = scmp.eq.s32.totalorder %s23, 1
      %p177 = por %p175, %p176
      %p178 = scmp.ne.s32.totalorder %s169, %s170
      %p179 = scmp.eq.s32.totalorder %s23, 0
      %p180 = por %p178, %p179
      %p181 = scmp.ne.s32.totalorder %s169, %s170
      %p182 = scmp.eq.s32.totalorder %s24, 1
      %p183 = por %p181, %p182
      %p185 = scmp.ne.s32.totalorder %s170, %s184
      %p186 = scmp.eq.s32.totalorder %s24, 0
      %p187 = por %p185, %p186
      %s188 = ssub.s32 %s18, %s25
      %p189 = scmp.eq.s32.totalorder %s188, 0
      %s191 = sadd.s32 %s190, 1
      %s192 = scalar_select %p189, %s190, %s191
      %p195 = pneg %p189
      %p196 = scmp.eq.s32.totalorder %s18, 1
      %p197 = por %p195, %p196
      %p198 = scmp.ne.s32.totalorder %s190, %s193
      %p199 = scmp.eq.s32.totalorder %s18, 0
      %p200 = por %p198, %p199
      %p201 = scmp.ne.s32.totalorder %s190, %s193
      %p202 = scmp.eq.s32.totalorder %s23, 1
      %p203 = por %p201, %p202
      %p204 = scmp.ne.s32.totalorder %s193, %s194
      %p205 = scmp.eq.s32.totalorder %s23, 0
      %p206 = por %p204, %p205
      %p207 = scmp.ne.s32.totalorder %s193, %s194
      %p208 = scmp.eq.s32.totalorder %s24, 1
      %p209 = por %p207, %p208
      %p211 = scmp.ne.s32.totalorder %s194, %s210
      %p212 = scmp.eq.s32.totalorder %s24, 0
      %p213 = por %p211, %p212
      %s214 = ssub.s32 %s18, %s25
      %p215 = scmp.eq.s32.totalorder %s214, 0
      %s217 = sadd.s32 %s216, 1
      %s218 = scalar_select %p215, %s216, %s217
      %p221 = pneg %p215
      %p222 = scmp.eq.s32.totalorder %s18, 1
      %p223 = por %p221, %p222
      %p224 = scmp.ne.s32.totalorder %s216, %s219
      %p225 = scmp.eq.s32.totalorder %s18, 0
      %p226 = por %p224, %p225
      %p227 = scmp.ne.s32.totalorder %s216, %s219
      %p228 = scmp.eq.s32.totalorder %s23, 1
      %p229 = por %p227, %p228
      %p230 = scmp.ne.s32.totalorder %s219, %s220
      %p231 = scmp.eq.s32.totalorder %s23, 0
      %p232 = por %p230, %p231
      %p233 = scmp.ne.s32.totalorder %s219, %s220
      %p234 = scmp.eq.s32.totalorder %s24, 1
      %p235 = por %p233, %p234
      %p237 = scmp.ne.s32.totalorder %s220, %s236
      %p238 = scmp.eq.s32.totalorder %s24, 0
      %p239 = por %p237, %p238
      %p240 = scmp.le.s32.totalorder 1, %s18
      %p241 = scmp.lt.s32.totalorder %s18, 3
      %p242 = pnand %p240, %p241
      %p243 = pneg %p242
      // Predicated region
      $region9: #{fpn_forward_pallas.7} parent=5 // pred_check
        _
      $region10: #{fpn_forward_pallas.7} parent=5 // pred_check_branch
        %245 = sbr.rel (%p242) target = $region12
      $region11: #{fpn_forward_pallas.7} parent=5 // pred_region
        %s246 = ssub.s32 %s18, 1
        // Predicated region
        $region13: #{fpn_forward_pallas.7} parent=11 // pred_check
          %p247 = pneg %p117
        $region14: #{fpn_forward_pallas.7} parent=11 // pred_check_branch
          %249 = sbr.rel (%p247) target = $region16
        $region15: #{fpn_forward_pallas.7} parent=11 // pred_region
          _
        $region16: #{fpn_forward_pallas.7} parent=11 // pred_fallthru
          _
        // Predicated region
        $region17: #{fpn_forward_pallas.7} parent=11 // pred_check
          %p250 = pneg %p138
        $region18: #{fpn_forward_pallas.7} parent=11 // pred_check_branch
          %252 = sbr.rel (%p250) target = $region20
        $region19: #{fpn_forward_pallas.7} parent=11 // pred_region
          _
        $region20: #{fpn_forward_pallas.7} parent=11 // pred_fallthru
          _
        // Predicated region
        $region21: #{fpn_forward_pallas.7} parent=11 // pred_check
          %p253 = pneg %p159
        $region22: #{fpn_forward_pallas.7} parent=11 // pred_check_branch
          %255 = sbr.rel (%p253) target = $region24
        $region23: #{fpn_forward_pallas.7} parent=11 // pred_region
          _
        $region24: #{fpn_forward_pallas.7} parent=11 // pred_fallthru
          _
        // Predicated region
        $region25: #{fpn_forward_pallas.7} parent=11 // pred_check
          %p256 = pneg %p180
        $region26: #{fpn_forward_pallas.7} parent=11 // pred_check_branch
          %258 = sbr.rel (%p256) target = $region28
        $region27: #{fpn_forward_pallas.7} parent=11 // pred_region
          _
        $region28: #{fpn_forward_pallas.7} parent=11 // pred_fallthru
          _
      $region12: #{fpn_forward_pallas.7} parent=5 // pred_fallthru
        _
      %p259 = scmp.lt.s32.totalorder %s18, 2
      // Predicated region
      $region29: #{fpn_forward_pallas.7} parent=5 // pred_check
        %p260 = pneg %p259
      $region30: #{fpn_forward_pallas.7} parent=5 // pred_check_branch
        %262 = sbr.rel (%p260) target = $region32
      $region31: #{fpn_forward_pallas.7} parent=5 // pred_region
        // Predicated region
        $region33: #{fpn_forward_pallas.7} parent=31 // pred_check
          %p263 = pneg %p38
        $region34: #{fpn_forward_pallas.7} parent=31 // pred_check_branch
          %265 = sbr.rel (%p263) target = $region36
        $region35: #{fpn_forward_pallas.7} parent=31 // pred_region
          %p266 = scmp.lt.s32.totalorder %s18, 1
          %s267 = scalar_select %p266, %s18, 1
          %s268 = smul.addr %s267, 32
          %s269 = smul.addr %s268, 8
          %s270 = scalar_lea.vmem %s0, %s269
        $region36: #{fpn_forward_pallas.7} parent=31 // pred_fallthru
          _
        // Predicated region
        $region37: #{fpn_forward_pallas.7} parent=31 // pred_check
          %p271 = pneg %p64
        $region38: #{fpn_forward_pallas.7} parent=31 // pred_check_branch
          %273 = sbr.rel (%p271) target = $region40
        $region39: #{fpn_forward_pallas.7} parent=31 // pred_region
          %p274 = scmp.lt.s32.totalorder %s18, 1
          %s275 = scalar_select %p274, %s18, 1
          %s276 = smul.addr %s275, 32
          %s277 = smul.addr %s276, 8
          %s278 = scalar_lea.vmem %s1, %s277
        $region40: #{fpn_forward_pallas.7} parent=31 // pred_fallthru
          _
        // Predicated region
        $region41: #{fpn_forward_pallas.7} parent=31 // pred_check
          %p279 = pneg %p90
        $region42: #{fpn_forward_pallas.7} parent=31 // pred_check_branch
          %281 = sbr.rel (%p279) target = $region44
        $region43: #{fpn_forward_pallas.7} parent=31 // pred_region
          %p282 = scmp.lt.s32.totalorder %s18, 1
          %s283 = scalar_select %p282, %s18, 1
          %s284 = smul.addr %s283, 32
          %s285 = smul.addr %s284, 8
          %s286 = scalar_lea.vmem %s2, %s285
        $region44: #{fpn_forward_pallas.7} parent=31 // pred_fallthru
          _
      $region32: #{fpn_forward_pallas.7} parent=5 // pred_fallthru
        _
      %p287 = scmp.le.s32.totalorder 1, %s18
      %p288 = scmp.lt.s32.totalorder %s18, 3
      %p289 = pnand %p287, %p288
      %p290 = pneg %p289
      // Predicated region
      $region45: #{fpn_forward_pallas.7} parent=5 // pred_check
        _
      $region46: #{fpn_forward_pallas.7} parent=5 // pred_check_branch
        %292 = sbr.rel (%p289) target = $region48
      $region47: #{fpn_forward_pallas.7} parent=5 // pred_region
        %s293 = ssub.s32 %s18, 1
        %p294 = scmp.lt.s32.totalorder %s23, 1
        %s295 = scalar_select %p294, %s23, 1
        %s296 = smul.addr %s295, 32
        %s297 = smul.addr %s296, 8
        %s298 = scalar_lea.vmem %s0, %s297
        %p299 = pneg %p44
        %p300 = pneg %p41
        %p301 = scmp.lt.s32.totalorder %s23, 1
        %s302 = scalar_select %p301, %s23, 1
        %s303 = smul.addr %s302, 32
        %s304 = smul.addr %s303, 8
        %s305 = scalar_lea.vmem %s1, %s304
        %p306 = pneg %p70
        %p307 = pneg %p67
        %p308 = scmp.lt.s32.totalorder %s23, 1
        %s309 = scalar_select %p308, %s23, 1
        %s310 = smul.addr %s309, 32
        %s311 = smul.addr %s310, 8
        %s312 = scalar_lea.vmem %s2, %s311
        %p313 = pneg %p96
        %p314 = pneg %p93
        %p315 = pneg %p117
        %p316 = pneg %p114
        %p317 = pneg %p138
        %p318 = pneg %p135
        %p319 = pneg %p159
        %p320 = pneg %p156
        %p321 = pneg %p180
        %p322 = pneg %p177
        %p323 = pneg %p206
        %p324 = pneg %p203
        %s325 = sand.u32 %s193, 1
        %s326 = scalar_lea.sflag [#allocation4], %s325
        %s327 = sand.u32 %s193, 1
        %s328 = smul.addr %s327, 256
        %s329 = scalar_lea.vmem [#allocation3], %s328
        %p330 = pneg %p232
        %p331 = pneg %p229
        %p332 = scmp.lt.s32.totalorder %s23, 1
        %s333 = scalar_select %p332, %s23, 1
        %s334 = smul.addr %s333, 32
        %s335 = smul.addr %s334, 8
        %s336 = scalar_lea.vmem %s8, %s335
        %p337 = scmp.lt.s32.totalorder %s23, 1
        %s338 = scalar_select %p337, %s23, 1
        %s339 = smul.addr %s338, 32
        %s340 = smul.addr %s339, 8
        %s341 = scalar_lea.vmem %s0, %s340
        %p342 = scmp.lt.s32.totalorder %s23, 1
        %s343 = scalar_select %p342, %s23, 1
        %s344 = smul.addr %s343, 32
        %s345 = smul.addr %s344, 8
        %s346 = scalar_lea.vmem %s1, %s345
        %p347 = scmp.lt.s32.totalorder %s23, 1
        %s348 = scalar_select %p347, %s23, 1
        %s349 = smul.addr %s348, 32
        %s350 = smul.addr %s349, 8
        %s351 = scalar_lea.vmem %s2, %s350
        %p352 = scmp.lt.s32.totalorder %s23, 1
        %s353 = scalar_select %p352, %s23, 1
        %s354 = smul.addr %s353, 32
        %s355 = smul.addr %s354, 8
        %s356 = scalar_lea.vmem %s8, %s355
        %v358 = vld [vmem:[%s341] sm:$0xff]
        %v359 = vld [vmem:[%s341 + $0x8] sm:$0xff]
        %v360 = vld [vmem:[%s341 + $0x10] sm:$0xff]
        %v361 = vld [vmem:[%s341 + $0x18] sm:$0xff]
        %v362 = vld [vmem:[%s341 + $0x20] sm:$0xff]
        %v363 = vld [vmem:[%s341 + $0x28] sm:$0xff]
        %v364 = vld [vmem:[%s341 + $0x30] sm:$0xff]
        %v365 = vld [vmem:[%s341 + $0x38] sm:$0xff]
        %v366 = vld [vmem:[%s341 + $0x40] sm:$0xff]
        %v367 = vld [vmem:[%s341 + $0x48] sm:$0xff]
        %v368 = vld [vmem:[%s341 + $0x50] sm:$0xff]
        %v369 = vld [vmem:[%s341 + $0x58] sm:$0xff]
        %v370 = vld [vmem:[%s341 + $0x60] sm:$0xff]
        %v371 = vld [vmem:[%s341 + $0x68] sm:$0xff]
        %v372 = vld [vmem:[%s341 + $0x70] sm:$0xff]
        %v373 = vld [vmem:[%s341 + $0x78] sm:$0xff]
        %v374 = vld [vmem:[%s341 + $0x80] sm:$0xff]
        %v375 = vld [vmem:[%s341 + $0x88] sm:$0xff]
        %v376 = vld [vmem:[%s341 + $0x90] sm:$0xff]
        %v377 = vld [vmem:[%s341 + $0x98] sm:$0xff]
        %v378 = vld [vmem:[%s341 + $0xa0] sm:$0xff]
        %v379 = vld [vmem:[%s341 + $0xa8] sm:$0xff]
        %v380 = vld [vmem:[%s341 + $0xb0] sm:$0xff]
        %v381 = vld [vmem:[%s341 + $0xb8] sm:$0xff]
        %v382 = vld [vmem:[%s341 + $0xc0] sm:$0xff]
        %v383 = vld [vmem:[%s341 + $0xc8] sm:$0xff]
        %v384 = vld [vmem:[%s341 + $0xd0] sm:$0xff]
        %v385 = vld [vmem:[%s341 + $0xd8] sm:$0xff]
        %v386 = vld [vmem:[%s341 + $0xe0] sm:$0xff]
        %v387 = vld [vmem:[%s341 + $0xe8] sm:$0xff]
        %v388 = vld [vmem:[%s341 + $0xf0] sm:$0xff]
        %v389 = vld [vmem:[%s341 + $0xf8] sm:$0xff]
        %v390 = vpack.c.bf16 %v359, %v358
        %v391 = vpack.c.bf16 %v361, %v360
        %v392 = vpack.c.bf16 %v363, %v362
        %v393 = vpack.c.bf16 %v365, %v364
        %v394 = vpack.c.bf16 %v367, %v366
        %v395 = vpack.c.bf16 %v369, %v368
        %v396 = vpack.c.bf16 %v371, %v370
        %v397 = vpack.c.bf16 %v373, %v372
        %v398 = vpack.c.bf16 %v375, %v374
        %v399 = vpack.c.bf16 %v377, %v376
        %v400 = vpack.c.bf16 %v379, %v378
        %v401 = vpack.c.bf16 %v381, %v380
        %v402 = vpack.c.bf16 %v383, %v382
        %v403 = vpack.c.bf16 %v385, %v384
        %v404 = vpack.c.bf16 %v387, %v386
        %v405 = vpack.c.bf16 %v389, %v388
        %v406 = vld [vmem:[%s3] sm:$0xf]
        %v407 = vpack.c.bf16 %v406, %v406
        %v408 = vld [vmem:[%s4] sm:$0x1]
        %v410 = vlaneseq
        %v411 = vshrl.u32 %v410, 7
        %v412 = vsub.s32 0, %v411
        %v413 = vrot.slane %v408, %v412
        %vm415 = vcmask 31744
        %v417 = vsel %vm415, %v390, 0
        %v420 = vsel %vm415, %v391, 0
        %v423 = vsel %vm415, %v392, 0
        %v426 = vsel %vm415, %v393, 0
        %v429 = vsel %vm415, %v394, 0
        %v432 = vsel %vm415, %v395, 0
        %v435 = vsel %vm415, %v396, 0
        %v438 = vsel %vm415, %v397, 0
        %v441 = vsel %vm415, %v398, 0
        %v444 = vsel %vm415, %v399, 0
        %v447 = vsel %vm415, %v400, 0
        %v450 = vsel %vm415, %v401, 0
        %v453 = vsel %vm415, %v402, 0
        %v456 = vsel %vm415, %v403, 0
        %v459 = vsel %vm415, %v404, 0
        %v462 = vsel %vm415, %v405, 0
        %vm464 = vcmask 1041408
        %v466 = vsel %vm464, %v407, 0
        %468 = vmatprep.subr.bf16.mxu0 0
        %469 = vmatpush1.bf16.msra.mxu0 0
        %470 = vmatprep.subr.bf16.mxu0 0
        %471 = vmatpush1.bf16.msra.mxu0 0
        %472 = vmatprep.subr.bf16.mxu0 0
        %473 = vmatpush1.bf16.msra.mxu0 0
        %474 = vmatprep.subr.bf16.mxu0 0
        %475 = vmatpush1.bf16.msra.mxu0 0
        %476 = vmatprep.subr.bf16.mxu0 0
        %477 = vmatpush1.bf16.msra.mxu0 0
        %478 = vmatprep.subr.bf16.mxu0 0
        %479 = vmatpush1.bf16.msra.mxu0 0
        %480 = vmatprep.subr.bf16.mxu0 0
        %481 = vmatpush1.bf16.msra.mxu0 0
        %482 = vmatprep.subr.bf16.mxu0 0
        %483 = vmatpush1.bf16.msra.mxu0 %v466
        %484 = vmatprep.subr.bf16.mxu0 0
        %485 = vmatpush2.bf16.msra.mxu0 0
        %486 = vmatprep.subr.bf16.mxu0 0
        %487 = vmatpush2.bf16.msra.mxu0 0
        %488 = vmatprep.subr.bf16.mxu0 0
        %489 = vmatpush2.bf16.msra.mxu0 0
        %490 = vmatprep.subr.bf16.mxu0 0
        %491 = vmatpush2.bf16.msra.mxu0 0
        %492 = vmatprep.subr.bf16.mxu0 0
        %493 = vmatpush2.bf16.msra.mxu0 0
        %494 = vmatprep.subr.bf16.mxu0 0
        %495 = vmatpush2.bf16.msra.mxu0 0
        %496 = vmatprep.subr.bf16.mxu0 0
        %497 = vmatpush2.bf16.msra.mxu0 0
        %498 = vmatprep.subr.bf16.mxu0 0
        %499 = vmatpush2.bf16.msra.mxu0 0
        %500 = vmatprep.mubr.bf16.mxu0 0
        %501 = vmatmul.mubr.bf16.gmra.mxu0 %v417
        %v502 = vpop.f32.mrf.mxu0
        %v503 = vadd.f32 %v413, %v502
        %v504 = vpop.f32.mrf.mxu0
        %v505 = vpop.f32.mrf.mxu0
        %v506 = vadd.f32 %v413, %v505
        %v507 = vpop.f32.mrf.mxu0
        %508 = vmatprep.mubr.bf16.mxu0 0
        %509 = vmatmul.mubr.bf16.gmra.mxu0 %v420
        %v510 = vpop.f32.mrf.mxu0
        %v511 = vadd.f32 %v413, %v510
        %v512 = vpop.f32.mrf.mxu0
        %v513 = vpop.f32.mrf.mxu0
        %v514 = vadd.f32 %v413, %v513
        %v515 = vpop.f32.mrf.mxu0
        %516 = vmatprep.mubr.bf16.mxu0 0
        %517 = vmatmul.mubr.bf16.gmra.mxu0 %v423
        %v518 = vpop.f32.mrf.mxu0
        %v519 = vadd.f32 %v413, %v518
        %v520 = vpop.f32.mrf.mxu0
        %v521 = vpop.f32.mrf.mxu0
        %v522 = vadd.f32 %v413, %v521
        %v523 = vpop.f32.mrf.mxu0
        %524 = vmatprep.mubr.bf16.mxu0 0
        %525 = vmatmul.mubr.bf16.gmra.mxu0 %v426
        %v526 = vpop.f32.mrf.mxu0
        %v527 = vadd.f32 %v413, %v526
        %v528 = vpop.f32.mrf.mxu0
        %v529 = vpop.f32.mrf.mxu0
        %v530 = vadd.f32 %v413, %v529
        %v531 = vpop.f32.mrf.mxu0
        %532 = vmatprep.mubr.bf16.mxu0 0
        %533 = vmatmul.mubr.bf16.gmra.mxu0 %v429
        %v534 = vpop.f32.mrf.mxu0
        %v535 = vadd.f32 %v413, %v534
        %v536 = vpop.f32.mrf.mxu0
        %v537 = vpop.f32.mrf.mxu0
        %v538 = vadd.f32 %v413, %v537
        %v539 = vpop.f32.mrf.mxu0
        %540 = vmatprep.mubr.bf16.mxu0 0
        %541 = vmatmul.mubr.bf16.gmra.mxu0 %v432
        %v542 = vpop.f32.mrf.mxu0
        %v543 = vadd.f32 %v413, %v542
        %v544 = vpop.f32.mrf.mxu0
        %v545 = vpop.f32.mrf.mxu0
        %v546 = vadd.f32 %v413, %v545
        %v547 = vpop.f32.mrf.mxu0
        %548 = vmatprep.mubr.bf16.mxu0 0
        %549 = vmatmul.mubr.bf16.gmra.mxu0 %v435
        %v550 = vpop.f32.mrf.mxu0
        %v551 = vadd.f32 %v413, %v550
        %v552 = vpop.f32.mrf.mxu0
        %v553 = vpop.f32.mrf.mxu0
        %v554 = vadd.f32 %v413, %v553
        %v555 = vpop.f32.mrf.mxu0
        %556 = vmatprep.mubr.bf16.mxu0 0
        %557 = vmatmul.mubr.bf16.gmra.mxu0 %v438
        %v558 = vpop.f32.mrf.mxu0
        %v559 = vadd.f32 %v413, %v558
        %v560 = vpop.f32.mrf.mxu0
        %v561 = vpop.f32.mrf.mxu0
        %v562 = vadd.f32 %v413, %v561
        %v563 = vpop.f32.mrf.mxu0
        %564 = vmatprep.mubr.bf16.mxu0 0
        %565 = vmatmul.mubr.bf16.gmra.mxu0 %v441
        %v566 = vpop.f32.mrf.mxu0
        %v567 = vadd.f32 %v413, %v566
        %v568 = vpop.f32.mrf.mxu0
        %v569 = vpop.f32.mrf.mxu0
        %v570 = vadd.f32 %v413, %v569
        %v571 = vpop.f32.mrf.mxu0
        %572 = vmatprep.mubr.bf16.mxu0 0
        %573 = vmatmul.mubr.bf16.gmra.mxu0 %v444
        %v574 = vpop.f32.mrf.mxu0
        %v575 = vadd.f32 %v413, %v574
        %v576 = vpop.f32.mrf.mxu0
        %v577 = vpop.f32.mrf.mxu0
        %v578 = vadd.f32 %v413, %v577
        %v579 = vpop.f32.mrf.mxu0
        %580 = vmatprep.mubr.bf16.mxu0 0
        %581 = vmatmul.mubr.bf16.gmra.mxu0 %v447
        %v582 = vpop.f32.mrf.mxu0
        %v583 = vadd.f32 %v413, %v582
        %v584 = vpop.f32.mrf.mxu0
        %v585 = vpop.f32.mrf.mxu0
        %v586 = vadd.f32 %v413, %v585
        %v587 = vpop.f32.mrf.mxu0
        %588 = vmatprep.mubr.bf16.mxu0 0
        %589 = vmatmul.mubr.bf16.gmra.mxu0 %v450
        %v590 = vpop.f32.mrf.mxu0
        %v591 = vadd.f32 %v413, %v590
        %v592 = vpop.f32.mrf.mxu0
        %v593 = vpop.f32.mrf.mxu0
        %v594 = vadd.f32 %v413, %v593
        %v595 = vpop.f32.mrf.mxu0
        %596 = vmatprep.mubr.bf16.mxu0 0
        %597 = vmatmul.mubr.bf16.gmra.mxu0 %v453
        %v598 = vpop.f32.mrf.mxu0
        %v599 = vadd.f32 %v413, %v598
        %v600 = vpop.f32.mrf.mxu0
        %v601 = vpop.f32.mrf.mxu0
        %v602 = vadd.f32 %v413, %v601
        %v603 = vpop.f32.mrf.mxu0
        %604 = vmatprep.mubr.bf16.mxu0 0
        %605 = vmatmul.mubr.bf16.gmra.mxu0 %v456
        %v606 = vpop.f32.mrf.mxu0
        %v607 = vadd.f32 %v413, %v606
        %v608 = vpop.f32.mrf.mxu0
        %v609 = vpop.f32.mrf.mxu0
        %v610 = vadd.f32 %v413, %v609
        %v611 = vpop.f32.mrf.mxu0
        %612 = vmatprep.mubr.bf16.mxu0 0
        %613 = vmatmul.mubr.bf16.gmra.mxu0 %v459
        %v614 = vpop.f32.mrf.mxu0
        %v615 = vadd.f32 %v413, %v614
        %v616 = vpop.f32.mrf.mxu0
        %v617 = vpop.f32.mrf.mxu0
        %v618 = vadd.f32 %v413, %v617
        %v619 = vpop.f32.mrf.mxu0
        %620 = vmatprep.mubr.bf16.mxu0 0
        %621 = vmatmul.mubr.bf16.gmra.mxu0 %v462
        %v622 = vpop.f32.mrf.mxu0
        %v623 = vadd.f32 %v413, %v622
        %v624 = vpop.f32.mrf.mxu0
        %v625 = vpop.f32.mrf.mxu0
        %v626 = vadd.f32 %v413, %v625
        %v627 = vpop.f32.mrf.mxu0
        %628 = vdwg.mxu0
        %v629 = vld [vmem:[%s346] sm:$0xff]
        %v630 = vld [vmem:[%s346 + $0x8] sm:$0xff]
        %v631 = vld [vmem:[%s346 + $0x10] sm:$0xff]
        %v632 = vld [vmem:[%s346 + $0x18] sm:$0xff]
        %v633 = vld [vmem:[%s346 + $0x20] sm:$0xff]
        %v634 = vld [vmem:[%s346 + $0x28] sm:$0xff]
        %v635 = vld [vmem:[%s346 + $0x30] sm:$0xff]
        %v636 = vld [vmem:[%s346 + $0x38] sm:$0xff]
        %v637 = vld [vmem:[%s346 + $0x40] sm:$0xff]
        %v638 = vld [vmem:[%s346 + $0x48] sm:$0xff]
        %v639 = vld [vmem:[%s346 + $0x50] sm:$0xff]
        %v640 = vld [vmem:[%s346 + $0x58] sm:$0xff]
        %v641 = vld [vmem:[%s346 + $0x60] sm:$0xff]
        %v642 = vld [vmem:[%s346 + $0x68] sm:$0xff]
        %v643 = vld [vmem:[%s346 + $0x70] sm:$0xff]
        %v644 = vld [vmem:[%s346 + $0x78] sm:$0xff]
        %v645 = vld [vmem:[%s346 + $0x80] sm:$0xff]
        %v646 = vld [vmem:[%s346 + $0x88] sm:$0xff]
        %v647 = vld [vmem:[%s346 + $0x90] sm:$0xff]
        %v648 = vld [vmem:[%s346 + $0x98] sm:$0xff]
        %v649 = vld [vmem:[%s346 + $0xa0] sm:$0xff]
        %v650 = vld [vmem:[%s346 + $0xa8] sm:$0xff]
        %v651 = vld [vmem:[%s346 + $0xb0] sm:$0xff]
        %v652 = vld [vmem:[%s346 + $0xb8] sm:$0xff]
        %v653 = vld [vmem:[%s346 + $0xc0] sm:$0xff]
        %v654 = vld [vmem:[%s346 + $0xc8] sm:$0xff]
        %v655 = vld [vmem:[%s346 + $0xd0] sm:$0xff]
        %v656 = vld [vmem:[%s346 + $0xd8] sm:$0xff]
        %v657 = vld [vmem:[%s346 + $0xe0] sm:$0xff]
        %v658 = vld [vmem:[%s346 + $0xe8] sm:$0xff]
        %v659 = vld [vmem:[%s346 + $0xf0] sm:$0xff]
        %v660 = vld [vmem:[%s346 + $0xf8] sm:$0xff]
        %v661 = vadd.f32 %v503, %v629
        %v662 = vadd.f32 %v506, %v630
        %v663 = vadd.f32 %v511, %v631
        %v664 = vadd.f32 %v514, %v632
        %v665 = vadd.f32 %v519, %v633
        %v666 = vadd.f32 %v522, %v634
        %v667 = vadd.f32 %v527, %v635
        %v668 = vadd.f32 %v530, %v636
        %v669 = vadd.f32 %v535, %v637
        %v670 = vadd.f32 %v538, %v638
        %v671 = vadd.f32 %v543, %v639
        %v672 = vadd.f32 %v546, %v640
        %v673 = vadd.f32 %v551, %v641
        %v674 = vadd.f32 %v554, %v642
        %v675 = vadd.f32 %v559, %v643
        %v676 = vadd.f32 %v562, %v644
        %v677 = vadd.f32 %v567, %v645
        %v678 = vadd.f32 %v570, %v646
        %v679 = vadd.f32 %v575, %v647
        %v680 = vadd.f32 %v578, %v648
        %v681 = vadd.f32 %v583, %v649
        %v682 = vadd.f32 %v586, %v650
        %v683 = vadd.f32 %v591, %v651
        %v684 = vadd.f32 %v594, %v652
        %v685 = vadd.f32 %v599, %v653
        %v686 = vadd.f32 %v602, %v654
        %v687 = vadd.f32 %v607, %v655
        %v688 = vadd.f32 %v610, %v656
        %v689 = vadd.f32 %v615, %v657
        %v690 = vadd.f32 %v618, %v658
        %v691 = vadd.f32 %v623, %v659
        %v692 = vadd.f32 %v626, %v660
        %vm693 = vcmask 130048
        %694 = vst.msk [vmem:[%s329] sm:$0xff] %vm693, %v661
        %695 = vst.msk [vmem:[%s329 + $0x8] sm:$0xff] %vm693, %v662
        %696 = vst.msk [vmem:[%s329 + $0x10] sm:$0xff] %vm693, %v663
        %697 = vst.msk [vmem:[%s329 + $0x18] sm:$0xff] %vm693, %v664
        %698 = vst.msk [vmem:[%s329 + $0x20] sm:$0xff] %vm693, %v665
        %699 = vst.msk [vmem:[%s329 + $0x28] sm:$0xff] %vm693, %v666
        %700 = vst.msk [vmem:[%s329 + $0x30] sm:$0xff] %vm693, %v667
        %701 = vst.msk [vmem:[%s329 + $0x38] sm:$0xff] %vm693, %v668
        %702 = vst.msk [vmem:[%s329 + $0x40] sm:$0xff] %vm693, %v669
        %703 = vst.msk [vmem:[%s329 + $0x48] sm:$0xff] %vm693, %v670
        %704 = vst.msk [vmem:[%s329 + $0x50] sm:$0xff] %vm693, %v671
        %705 = vst.msk [vmem:[%s329 + $0x58] sm:$0xff] %vm693, %v672
        %706 = vst.msk [vmem:[%s329 + $0x60] sm:$0xff] %vm693, %v673
        %707 = vst.msk [vmem:[%s329 + $0x68] sm:$0xff] %vm693, %v674
        %708 = vst.msk [vmem:[%s329 + $0x70] sm:$0xff] %vm693, %v675
        %709 = vst.msk [vmem:[%s329 + $0x78] sm:$0xff] %vm693, %v676
        %710 = vst.msk [vmem:[%s329 + $0x80] sm:$0xff] %vm693, %v677
        %711 = vst.msk [vmem:[%s329 + $0x88] sm:$0xff] %vm693, %v678
        %712 = vst.msk [vmem:[%s329 + $0x90] sm:$0xff] %vm693, %v679
        %713 = vst.msk [vmem:[%s329 + $0x98] sm:$0xff] %vm693, %v680
        %714 = vst.msk [vmem:[%s329 + $0xa0] sm:$0xff] %vm693, %v681
        %715 = vst.msk [vmem:[%s329 + $0xa8] sm:$0xff] %vm693, %v682
        %716 = vst.msk [vmem:[%s329 + $0xb0] sm:$0xff] %vm693, %v683
        %717 = vst.msk [vmem:[%s329 + $0xb8] sm:$0xff] %vm693, %v684
        %718 = vst.msk [vmem:[%s329 + $0xc0] sm:$0xff] %vm693, %v685
        %719 = vst.msk [vmem:[%s329 + $0xc8] sm:$0xff] %vm693, %v686
        %720 = vst.msk [vmem:[%s329 + $0xd0] sm:$0xff] %vm693, %v687
        %721 = vst.msk [vmem:[%s329 + $0xd8] sm:$0xff] %vm693, %v688
        %722 = vst.msk [vmem:[%s329 + $0xe0] sm:$0xff] %vm693, %v689
        %723 = vst.msk [vmem:[%s329 + $0xe8] sm:$0xff] %vm693, %v690
        %724 = vst.msk [vmem:[%s329 + $0xf0] sm:$0xff] %vm693, %v691
        %725 = vst.msk [vmem:[%s329 + $0xf8] sm:$0xff] %vm693, %v692
        %v726 = vld [vmem:[%s351] sm:$0xff]
        %v727 = vld [vmem:[%s351 + $0x8] sm:$0xff]
        %v728 = vld [vmem:[%s351 + $0x10] sm:$0xff]
        %v729 = vld [vmem:[%s351 + $0x18] sm:$0xff]
        %v730 = vld [vmem:[%s351 + $0x20] sm:$0xff]
        %v731 = vld [vmem:[%s351 + $0x28] sm:$0xff]
        %v732 = vld [vmem:[%s351 + $0x30] sm:$0xff]
        %v733 = vld [vmem:[%s351 + $0x38] sm:$0xff]
        %v734 = vld [vmem:[%s351 + $0x40] sm:$0xff]
        %v735 = vld [vmem:[%s351 + $0x48] sm:$0xff]
        %v736 = vld [vmem:[%s351 + $0x50] sm:$0xff]
        %v737 = vld [vmem:[%s351 + $0x58] sm:$0xff]
        %v738 = vld [vmem:[%s351 + $0x60] sm:$0xff]
        %v739 = vld [vmem:[%s351 + $0x68] sm:$0xff]
        %v740 = vld [vmem:[%s351 + $0x70] sm:$0xff]
        %v741 = vld [vmem:[%s351 + $0x78] sm:$0xff]
        %v742 = vld [vmem:[%s351 + $0x80] sm:$0xff]
        %v743 = vld [vmem:[%s351 + $0x88] sm:$0xff]
        %v744 = vld [vmem:[%s351 + $0x90] sm:$0xff]
        %v745 = vld [vmem:[%s351 + $0x98] sm:$0xff]
        %v746 = vld [vmem:[%s351 + $0xa0] sm:$0xff]
        %v747 = vld [vmem:[%s351 + $0xa8] sm:$0xff]
        %v748 = vld [vmem:[%s351 + $0xb0] sm:$0xff]
        %v749 = vld [vmem:[%s351 + $0xb8] sm:$0xff]
        %v750 = vld [vmem:[%s351 + $0xc0] sm:$0xff]
        %v751 = vld [vmem:[%s351 + $0xc8] sm:$0xff]
        %v752 = vld [vmem:[%s351 + $0xd0] sm:$0xff]
        %v753 = vld [vmem:[%s351 + $0xd8] sm:$0xff]
        %v754 = vld [vmem:[%s351 + $0xe0] sm:$0xff]
        %v755 = vld [vmem:[%s351 + $0xe8] sm:$0xff]
        %v756 = vld [vmem:[%s351 + $0xf0] sm:$0xff]
        %v757 = vld [vmem:[%s351 + $0xf8] sm:$0xff]
        %vm758 = vcmp.eq.f32.partialorder %v726, 0.0
        %vm759 = vcmp.eq.f32.partialorder %v727, 0.0
        %vm760 = vcmp.eq.f32.partialorder %v728, 0.0
        %vm761 = vcmp.eq.f32.partialorder %v729, 0.0
        %vm762 = vcmp.eq.f32.partialorder %v730, 0.0
        %vm763 = vcmp.eq.f32.partialorder %v731, 0.0
        %vm764 = vcmp.eq.f32.partialorder %v732, 0.0
        %vm765 = vcmp.eq.f32.partialorder %v733, 0.0
        %vm766 = vcmp.eq.f32.partialorder %v734, 0.0
        %vm767 = vcmp.eq.f32.partialorder %v735, 0.0
        %vm768 = vcmp.eq.f32.partialorder %v736, 0.0
        %vm769 = vcmp.eq.f32.partialorder %v737, 0.0
        %vm770 = vcmp.eq.f32.partialorder %v738, 0.0
        %vm771 = vcmp.eq.f32.partialorder %v739, 0.0
        %vm772 = vcmp.eq.f32.partialorder %v740, 0.0
        %vm773 = vcmp.eq.f32.partialorder %v741, 0.0
        %vm774 = vcmp.eq.f32.partialorder %v742, 0.0
        %vm775 = vcmp.eq.f32.partialorder %v743, 0.0
        %vm776 = vcmp.eq.f32.partialorder %v744, 0.0
        %vm777 = vcmp.eq.f32.partialorder %v745, 0.0
        %vm778 = vcmp.eq.f32.partialorder %v746, 0.0
        %vm779 = vcmp.eq.f32.partialorder %v747, 0.0
        %vm780 = vcmp.eq.f32.partialorder %v748, 0.0
        %vm781 = vcmp.eq.f32.partialorder %v749, 0.0
        %vm782 = vcmp.eq.f32.partialorder %v750, 0.0
        %vm783 = vcmp.eq.f32.partialorder %v751, 0.0
        %vm784 = vcmp.eq.f32.partialorder %v752, 0.0
        %vm785 = vcmp.eq.f32.partialorder %v753, 0.0
        %vm786 = vcmp.eq.f32.partialorder %v754, 0.0
        %vm787 = vcmp.eq.f32.partialorder %v755, 0.0
        %vm788 = vcmp.eq.f32.partialorder %v756, 0.0
        %vm789 = vcmp.eq.f32.partialorder %v757, 0.0
        %v790 = vsel %vm758, 0.5, %v726
        %v791 = vsel %vm759, 0.5, %v727
        %v792 = vsel %vm760, 0.5, %v728
        %v793 = vsel %vm761, 0.5, %v729
        %v794 = vsel %vm762, 0.5, %v730
        %v795 = vsel %vm763, 0.5, %v731
        %v796 = vsel %vm764, 0.5, %v732
        %v797 = vsel %vm765, 0.5, %v733
        %v798 = vsel %vm766, 0.5, %v734
        %v799 = vsel %vm767, 0.5, %v735
        %v800 = vsel %vm768, 0.5, %v736
        %v801 = vsel %vm769, 0.5, %v737
        %v802 = vsel %vm770, 0.5, %v738
        %v803 = vsel %vm771, 0.5, %v739
        %v804 = vsel %vm772, 0.5, %v740
        %v805 = vsel %vm773, 0.5, %v741
        %v806 = vsel %vm774, 0.5, %v742
        %v807 = vsel %vm775, 0.5, %v743
        %v808 = vsel %vm776, 0.5, %v744
        %v809 = vsel %vm777, 0.5, %v745
        %v810 = vsel %vm778, 0.5, %v746
        %v811 = vsel %vm779, 0.5, %v747
        %v812 = vsel %vm780, 0.5, %v748
        %v813 = vsel %vm781, 0.5, %v749
        %v814 = vsel %vm782, 0.5, %v750
        %v815 = vsel %vm783, 0.5, %v751
        %v816 = vsel %vm784, 0.5, %v752
        %v817 = vsel %vm785, 0.5, %v753
        %v818 = vsel %vm786, 0.5, %v754
        %v819 = vsel %vm787, 0.5, %v755
        %v820 = vsel %vm788, 0.5, %v756
        %v821 = vsel %vm789, 0.5, %v757
        %823 = vset.pattern.permute.xlu0 0
        %824 = vperm.xlu0 %823, %v790
        %v825 = vpop.permute.xlu0 %824
        %828 = vset.pattern.permute.xlu0 0
        %829 = vperm.xlu0 %828, %v791
        %v830 = vpop.permute.xlu0 %829
        %833 = vset.pattern.permute.xlu0 0
        %834 = vperm.xlu0 %833, %v792
        %v835 = vpop.permute.xlu0 %834
        %838 = vset.pattern.permute.xlu0 0
        %839 = vperm.xlu0 %838, %v793
        %v840 = vpop.permute.xlu0 %839
        %843 = vset.pattern.permute.xlu0 0
        %844 = vperm.xlu0 %843, %v794
        %v845 = vpop.permute.xlu0 %844
        %848 = vset.pattern.permute.xlu0 0
        %849 = vperm.xlu0 %848, %v795
        %v850 = vpop.permute.xlu0 %849
        %853 = vset.pattern.permute.xlu0 0
        %854 = vperm.xlu0 %853, %v796
        %v855 = vpop.permute.xlu0 %854
        %858 = vset.pattern.permute.xlu0 0
        %859 = vperm.xlu0 %858, %v797
        %v860 = vpop.permute.xlu0 %859
        %863 = vset.pattern.permute.xlu0 0
        %864 = vperm.xlu0 %863, %v798
        %v865 = vpop.permute.xlu0 %864
        %868 = vset.pattern.permute.xlu0 0
        %869 = vperm.xlu0 %868, %v799
        %v870 = vpop.permute.xlu0 %869
        %873 = vset.pattern.permute.xlu0 0
        %874 = vperm.xlu0 %873, %v800
        %v875 = vpop.permute.xlu0 %874
        %878 = vset.pattern.permute.xlu0 0
        %879 = vperm.xlu0 %878, %v801
        %v880 = vpop.permute.xlu0 %879
        %883 = vset.pattern.permute.xlu0 0
        %884 = vperm.xlu0 %883, %v802
        %v885 = vpop.permute.xlu0 %884
        %888 = vset.pattern.permute.xlu0 0
        %889 = vperm.xlu0 %888, %v803
        %v890 = vpop.permute.xlu0 %889
        %893 = vset.pattern.permute.xlu0 0
        %894 = vperm.xlu0 %893, %v804
        %v895 = vpop.permute.xlu0 %894
        %898 = vset.pattern.permute.xlu0 0
        %899 = vperm.xlu0 %898, %v805
        %v900 = vpop.permute.xlu0 %899
        %903 = vset.pattern.permute.xlu0 0
        %904 = vperm.xlu0 %903, %v806
        %v905 = vpop.permute.xlu0 %904
        %908 = vset.pattern.permute.xlu0 0
        %909 = vperm.xlu0 %908, %v807
        %v910 = vpop.permute.xlu0 %909
        %913 = vset.pattern.permute.xlu0 0
        %914 = vperm.xlu0 %913, %v808
        %v915 = vpop.permute.xlu0 %914
        %918 = vset.pattern.permute.xlu0 0
        %919 = vperm.xlu0 %918, %v809
        %v920 = vpop.permute.xlu0 %919
        %923 = vset.pattern.permute.xlu0 0
        %924 = vperm.xlu0 %923, %v810
        %v925 = vpop.permute.xlu0 %924
        %928 = vset.pattern.permute.xlu0 0
        %929 = vperm.xlu0 %928, %v811
        %v930 = vpop.permute.xlu0 %929
        %933 = vset.pattern.permute.xlu0 0
        %934 = vperm.xlu0 %933, %v812
        %v935 = vpop.permute.xlu0 %934
        %938 = vset.pattern.permute.xlu0 0
        %939 = vperm.xlu0 %938, %v813
        %v940 = vpop.permute.xlu0 %939
        %943 = vset.pattern.permute.xlu0 0
        %944 = vperm.xlu0 %943, %v814
        %v945 = vpop.permute.xlu0 %944
        %948 = vset.pattern.permute.xlu0 0
        %949 = vperm.xlu0 %948, %v815
        %v950 = vpop.permute.xlu0 %949
        %953 = vset.pattern.permute.xlu0 0
        %954 = vperm.xlu0 %953, %v816
        %v955 = vpop.permute.xlu0 %954
        %958 = vset.pattern.permute.xlu0 0
        %959 = vperm.xlu0 %958, %v817
        %v960 = vpop.permute.xlu0 %959
        %963 = vset.pattern.permute.xlu0 0
        %964 = vperm.xlu0 %963, %v818
        %v965 = vpop.permute.xlu0 %964
        %968 = vset.pattern.permute.xlu0 0
        %969 = vperm.xlu0 %968, %v819
        %v970 = vpop.permute.xlu0 %969
        %973 = vset.pattern.permute.xlu0 0
        %974 = vperm.xlu0 %973, %v820
        %v975 = vpop.permute.xlu0 %974
        %978 = vset.pattern.permute.xlu0 0
        %979 = vperm.xlu0 %978, %v821
        %v980 = vpop.permute.xlu0 %979
        %v982 = vmul.f32 %v661, %v825
        %v983 = vmul.f32 %v662, %v830
        %v984 = vmul.f32 %v663, %v835
        %v985 = vmul.f32 %v664, %v840
        %v986 = vmul.f32 %v665, %v845
        %v987 = vmul.f32 %v666, %v850
        %v988 = vmul.f32 %v667, %v855
        %v989 = vmul.f32 %v668, %v860
        %v990 = vmul.f32 %v669, %v865
        %v991 = vmul.f32 %v670, %v870
        %v992 = vmul.f32 %v671, %v875
        %v993 = vmul.f32 %v672, %v880
        %v994 = vmul.f32 %v673, %v885
        %v995 = vmul.f32 %v674, %v890
        %v996 = vmul.f32 %v675, %v895
        %v997 = vmul.f32 %v676, %v900
        %v998 = vmul.f32 %v677, %v905
        %v999 = vmul.f32 %v678, %v910
        %v1000 = vmul.f32 %v679, %v915
        %v1001 = vmul.f32 %v680, %v920
        %v1002 = vmul.f32 %v681, %v925
        %v1003 = vmul.f32 %v682, %v930
        %v1004 = vmul.f32 %v683, %v935
        %v1005 = vmul.f32 %v684, %v940
        %v1006 = vmul.f32 %v685, %v945
        %v1007 = vmul.f32 %v686, %v950
        %v1008 = vmul.f32 %v687, %v955
        %v1009 = vmul.f32 %v688, %v960
        %v1010 = vmul.f32 %v689, %v965
        %v1011 = vmul.f32 %v690, %v970
        %v1012 = vmul.f32 %v691, %v975
        %v1013 = vmul.f32 %v692, %v980
        %1014 = vst.msk [vmem:[#allocation2] sm:$0xff] %vm693, 0.0
        %1015 = vst.msk [vmem:[#allocation2 + $0x8] sm:$0xff] %vm693, 0.0
        %1016 = vst.msk [vmem:[#allocation2 + $0x10] sm:$0xff] %vm693, 0.0
        %1017 = vst.msk [vmem:[#allocation2 + $0x18] sm:$0xff] %vm693, 0.0
        %1018 = vst.msk [vmem:[#allocation2 + $0x20] sm:$0xff] %vm693, 0.0
        %1019 = vst.msk [vmem:[#allocation2 + $0x28] sm:$0xff] %vm693, 0.0
        %1020 = vst.msk [vmem:[#allocation2 + $0x30] sm:$0xff] %vm693, 0.0
        %1021 = vst.msk [vmem:[#allocation2 + $0x38] sm:$0xff] %vm693, 0.0
        %1022 = vst.msk [vmem:[#allocation2 + $0x40] sm:$0xff] %vm693, 0.0
        %1023 = vst.msk [vmem:[#allocation2 + $0x48] sm:$0xff] %vm693, 0.0
        %1024 = vst.msk [vmem:[#allocation2 + $0x50] sm:$0xff] %vm693, 0.0
        %1025 = vst.msk [vmem:[#allocation2 + $0x58] sm:$0xff] %vm693, 0.0
        %1026 = vst.msk [vmem:[#allocation2 + $0x60] sm:$0xff] %vm693, 0.0
        %1027 = vst.msk [vmem:[#allocation2 + $0x68] sm:$0xff] %vm693, 0.0
        %1028 = vst.msk [vmem:[#allocation2 + $0x70] sm:$0xff] %vm693, 0.0
        %1029 = vst.msk [vmem:[#allocation2 + $0x78] sm:$0xff] %vm693, 0.0
        %1030 = vst.msk [vmem:[#allocation2 + $0x80] sm:$0xff] %vm693, 0.0
        %1031 = vst.msk [vmem:[#allocation2 + $0x88] sm:$0xff] %vm693, 0.0
        %1032 = vst.msk [vmem:[#allocation2 + $0x90] sm:$0xff] %vm693, 0.0
        %1033 = vst.msk [vmem:[#allocation2 + $0x98] sm:$0xff] %vm693, 0.0
        %1034 = vst.msk [vmem:[#allocation2 + $0xa0] sm:$0xff] %vm693, 0.0
        %1035 = vst.msk [vmem:[#allocation2 + $0xa8] sm:$0xff] %vm693, 0.0
        %1036 = vst.msk [vmem:[#allocation2 + $0xb0] sm:$0xff] %vm693, 0.0
        %1037 = vst.msk [vmem:[#allocation2 + $0xb8] sm:$0xff] %vm693, 0.0
        %1038 = vst.msk [vmem:[#allocation2 + $0xc0] sm:$0xff] %vm693, 0.0
        %1039 = vst.msk [vmem:[#allocation2 + $0xc8] sm:$0xff] %vm693, 0.0
        %1040 = vst.msk [vmem:[#allocation2 + $0xd0] sm:$0xff] %vm693, 0.0
        %1041 = vst.msk [vmem:[#allocation2 + $0xd8] sm:$0xff] %vm693, 0.0
        %1042 = vst.msk [vmem:[#allocation2 + $0xe0] sm:$0xff] %vm693, 0.0
        %1043 = vst.msk [vmem:[#allocation2 + $0xe8] sm:$0xff] %vm693, 0.0
        %1044 = vst.msk [vmem:[#allocation2 + $0xf0] sm:$0xff] %vm693, 0.0
        %1045 = vst.msk [vmem:[#allocation2 + $0xf8] sm:$0xff] %vm693, 0.0
        %1046 = vst.msk [vmem:[#allocation2 + $0x100] sm:$0xff] %vm693, 0.0
        %1047 = vst.msk [vmem:[#allocation2 + $0x108] sm:$0xff] %vm693, 0.0
        %1048 = vst.msk [vmem:[#allocation2 + $0x110] sm:$0xff] %vm693, 0.0
        %1049 = vst.msk [vmem:[#allocation2 + $0x118] sm:$0xff] %vm693, 0.0
        %1050 = vst.msk [vmem:[#allocation2 + $0x120] sm:$0xff] %vm693, 0.0
        %1051 = vst.msk [vmem:[#allocation2 + $0x128] sm:$0xff] %vm693, 0.0
        %1052 = vst.msk [vmem:[#allocation2 + $0x18] sm:$0xff] %vm693, %v982
        %1053 = vst.msk [vmem:[#allocation2 + $0x20] sm:$0xff] %vm693, %v983
        %1054 = vst.msk [vmem:[#allocation2 + $0x28] sm:$0xff] %vm693, %v984
        %1055 = vst.msk [vmem:[#allocation2 + $0x30] sm:$0xff] %vm693, %v985
        %1056 = vst.msk [vmem:[#allocation2 + $0x38] sm:$0xff] %vm693, %v986
        %1057 = vst.msk [vmem:[#allocation2 + $0x40] sm:$0xff] %vm693, %v987
        %1058 = vst.msk [vmem:[#allocation2 + $0x48] sm:$0xff] %vm693, %v988
        %1059 = vst.msk [vmem:[#allocation2 + $0x50] sm:$0xff] %vm693, %v989
        %1060 = vst.msk [vmem:[#allocation2 + $0x58] sm:$0xff] %vm693, %v990
        %1061 = vst.msk [vmem:[#allocation2 + $0x60] sm:$0xff] %vm693, %v991
        %1062 = vst.msk [vmem:[#allocation2 + $0x68] sm:$0xff] %vm693, %v992
        %1063 = vst.msk [vmem:[#allocation2 + $0x70] sm:$0xff] %vm693, %v993
        %1064 = vst.msk [vmem:[#allocation2 + $0x78] sm:$0xff] %vm693, %v994
        %1065 = vst.msk [vmem:[#allocation2 + $0x80] sm:$0xff] %vm693, %v995
        %1066 = vst.msk [vmem:[#allocation2 + $0x88] sm:$0xff] %vm693, %v996
        %1067 = vst.msk [vmem:[#allocation2 + $0x90] sm:$0xff] %vm693, %v997
        %1068 = vst.msk [vmem:[#allocation2 + $0x98] sm:$0xff] %vm693, %v998
        %1069 = vst.msk [vmem:[#allocation2 + $0xa0] sm:$0xff] %vm693, %v999
        %1070 = vst.msk [vmem:[#allocation2 + $0xa8] sm:$0xff] %vm693, %v1000
        %1071 = vst.msk [vmem:[#allocation2 + $0xb0] sm:$0xff] %vm693, %v1001
        %1072 = vst.msk [vmem:[#allocation2 + $0xb8] sm:$0xff] %vm693, %v1002
        %1073 = vst.msk [vmem:[#allocation2 + $0xc0] sm:$0xff] %vm693, %v1003
        %1074 = vst.msk [vmem:[#allocation2 + $0xc8] sm:$0xff] %vm693, %v1004
        %1075 = vst.msk [vmem:[#allocation2 + $0xd0] sm:$0xff] %vm693, %v1005
        %1076 = vst.msk [vmem:[#allocation2 + $0xd8] sm:$0xff] %vm693, %v1006
        %1077 = vst.msk [vmem:[#allocation2 + $0xe0] sm:$0xff] %vm693, %v1007
        %1078 = vst.msk [vmem:[#allocation2 + $0xe8] sm:$0xff] %vm693, %v1008
        %1079 = vst.msk [vmem:[#allocation2 + $0xf0] sm:$0xff] %vm693, %v1009
        %1080 = vst.msk [vmem:[#allocation2 + $0xf8] sm:$0xff] %vm693, %v1010
        %1081 = vst.msk [vmem:[#allocation2 + $0x100] sm:$0xff] %vm693, %v1011
        %1082 = vst.msk [vmem:[#allocation2 + $0x108] sm:$0xff] %vm693, %v1012
        %1083 = vst.msk [vmem:[#allocation2 + $0x110] sm:$0xff] %vm693, %v1013
        %v1084 = vlaneseq
        %v1085 = vshrl.u32 %v1084, 7
        %v1086 = vadd.s32 %v1085, 8
        %v1087 = vadd.s32 %v1085, 16
        %v1088 = vadd.s32 %v1085, 24
        %v1089 = vadd.s32 %v1085, 32
        %v1090 = vadd.s32 %v1085, 40
        %v1091 = vadd.s32 %v1085, 48
        %v1092 = vadd.s32 %v1085, 56
        %v1093 = vadd.s32 %v1085, 64
        %v1094 = vadd.s32 %v1085, 72
        %v1095 = vadd.s32 %v1085, 80
        %v1096 = vadd.s32 %v1085, 88
        %v1097 = vadd.s32 %v1085, 96
        %v1098 = vadd.s32 %v1085, 104
        %v1099 = vadd.s32 %v1085, 112
        %v1100 = vadd.s32 %v1085, 120
        %v1101 = vadd.s32 %v1085, 128
        %v1102 = vadd.s32 %v1085, 136
        %v1103 = vadd.s32 %v1085, 144
        %v1104 = vadd.s32 %v1085, 152
        %v1105 = vadd.s32 %v1085, 160
        %v1106 = vadd.s32 %v1085, 168
        %v1107 = vadd.s32 %v1085, 176
        %v1108 = vadd.s32 %v1085, 184
        %v1109 = vadd.s32 %v1085, 192
        %v1110 = vadd.s32 %v1085, 200
        %v1111 = vadd.s32 %v1085, 208
        %v1112 = vadd.s32 %v1085, 216
        %v1113 = vadd.s32 %v1085, 224
        %v1114 = vadd.s32 %v1085, 232
        %v1115 = vadd.s32 %v1085, 240
        %v1116 = vadd.s32 %v1085, 248
        %vm1117 = vcmp.lt.s32.totalorder %v1085, 0
        %v1118 = vsub.s32 0, %v1085
        %v1119 = vsel %vm1117, %v1118, %v1085
        %v1120 = vshrl.u32 %v1119, 4
        %v1121 = vand.u32 %v1119, 15
        %v1122 = vsub.s32 0, %v1121
        %v1123 = vsel %vm1117, %v1122, %v1121
        %vm1124 = vcmp.lt.s32.totalorder %v1086, 0
        %v1125 = vsub.s32 0, %v1086
        %v1126 = vsel %vm1124, %v1125, %v1086
        %v1127 = vshrl.u32 %v1126, 4
        %v1128 = vand.u32 %v1126, 15
        %v1129 = vsub.s32 0, %v1128
        %v1130 = vsel %vm1124, %v1129, %v1128
        %vm1131 = vcmp.lt.s32.totalorder %v1087, 0
        %v1132 = vsub.s32 0, %v1087
        %v1133 = vsel %vm1131, %v1132, %v1087
        %v1134 = vshrl.u32 %v1133, 4
        %v1135 = vand.u32 %v1133, 15
        %v1136 = vsub.s32 0, %v1135
        %v1137 = vsel %vm1131, %v1136, %v1135
        %vm1138 = vcmp.lt.s32.totalorder %v1088, 0
        %v1139 = vsub.s32 0, %v1088
        %v1140 = vsel %vm1138, %v1139, %v1088
        %v1141 = vshrl.u32 %v1140, 4
        %v1142 = vand.u32 %v1140, 15
        %v1143 = vsub.s32 0, %v1142
        %v1144 = vsel %vm1138, %v1143, %v1142
        %vm1145 = vcmp.lt.s32.totalorder %v1089, 0
        %v1146 = vsub.s32 0, %v1089
        %v1147 = vsel %vm1145, %v1146, %v1089
        %v1148 = vshrl.u32 %v1147, 4
        %v1149 = vand.u32 %v1147, 15
        %v1150 = vsub.s32 0, %v1149
        %v1151 = vsel %vm1145, %v1150, %v1149
        %vm1152 = vcmp.lt.s32.totalorder %v1090, 0
        %v1153 = vsub.s32 0, %v1090
        %v1154 = vsel %vm1152, %v1153, %v1090
        %v1155 = vshrl.u32 %v1154, 4
        %v1156 = vand.u32 %v1154, 15
        %v1157 = vsub.s32 0, %v1156
        %v1158 = vsel %vm1152, %v1157, %v1156
        %vm1159 = vcmp.lt.s32.totalorder %v1091, 0
        %v1160 = vsub.s32 0, %v1091
        %v1161 = vsel %vm1159, %v1160, %v1091
        %v1162 = vshrl.u32 %v1161, 4
        %v1163 = vand.u32 %v1161, 15
        %v1164 = vsub.s32 0, %v1163
        %v1165 = vsel %vm1159, %v1164, %v1163
        %vm1166 = vcmp.lt.s32.totalorder %v1092, 0
        %v1167 = vsub.s32 0, %v1092
        %v1168 = vsel %vm1166, %v1167, %v1092
        %v1169 = vshrl.u32 %v1168, 4
        %v1170 = vand.u32 %v1168, 15
        %v1171 = vsub.s32 0, %v1170
        %v1172 = vsel %vm1166, %v1171, %v1170
        %vm1173 = vcmp.lt.s32.totalorder %v1093, 0
        %v1174 = vsub.s32 0, %v1093
        %v1175 = vsel %vm1173, %v1174, %v1093
        %v1176 = vshrl.u32 %v1175, 4
        %v1177 = vand.u32 %v1175, 15
        %v1178 = vsub.s32 0, %v1177
        %v1179 = vsel %vm1173, %v1178, %v1177
        %vm1180 = vcmp.lt.s32.totalorder %v1094, 0
        %v1181 = vsub.s32 0, %v1094
        %v1182 = vsel %vm1180, %v1181, %v1094
        %v1183 = vshrl.u32 %v1182, 4
        %v1184 = vand.u32 %v1182, 15
        %v1185 = vsub.s32 0, %v1184
        %v1186 = vsel %vm1180, %v1185, %v1184
        %vm1187 = vcmp.lt.s32.totalorder %v1095, 0
        %v1188 = vsub.s32 0, %v1095
        %v1189 = vsel %vm1187, %v1188, %v1095
        %v1190 = vshrl.u32 %v1189, 4
        %v1191 = vand.u32 %v1189, 15
        %v1192 = vsub.s32 0, %v1191
        %v1193 = vsel %vm1187, %v1192, %v1191
        %vm1194 = vcmp.lt.s32.totalorder %v1096, 0
        %v1195 = vsub.s32 0, %v1096
        %v1196 = vsel %vm1194, %v1195, %v1096
        %v1197 = vshrl.u32 %v1196, 4
        %v1198 = vand.u32 %v1196, 15
        %v1199 = vsub.s32 0, %v1198
        %v1200 = vsel %vm1194, %v1199, %v1198
        %vm1201 = vcmp.lt.s32.totalorder %v1097, 0
        %v1202 = vsub.s32 0, %v1097
        %v1203 = vsel %vm1201, %v1202, %v1097
        %v1204 = vshrl.u32 %v1203, 4
        %v1205 = vand.u32 %v1203, 15
        %v1206 = vsub.s32 0, %v1205
        %v1207 = vsel %vm1201, %v1206, %v1205
        %vm1208 = vcmp.lt.s32.totalorder %v1098, 0
        %v1209 = vsub.s32 0, %v1098
        %v1210 = vsel %vm1208, %v1209, %v1098
        %v1211 = vshrl.u32 %v1210, 4
        %v1212 = vand.u32 %v1210, 15
        %v1213 = vsub.s32 0, %v1212
        %v1214 = vsel %vm1208, %v1213, %v1212
        %vm1215 = vcmp.lt.s32.totalorder %v1099, 0
        %v1216 = vsub.s32 0, %v1099
        %v1217 = vsel %vm1215, %v1216, %v1099
        %v1218 = vshrl.u32 %v1217, 4
        %v1219 = vand.u32 %v1217, 15
        %v1220 = vsub.s32 0, %v1219
        %v1221 = vsel %vm1215, %v1220, %v1219
        %vm1222 = vcmp.lt.s32.totalorder %v1100, 0
        %v1223 = vsub.s32 0, %v1100
        %v1224 = vsel %vm1222, %v1223, %v1100
        %v1225 = vshrl.u32 %v1224, 4
        %v1226 = vand.u32 %v1224, 15
        %v1227 = vsub.s32 0, %v1226
        %v1228 = vsel %vm1222, %v1227, %v1226
        %vm1229 = vcmp.lt.s32.totalorder %v1101, 0
        %v1230 = vsub.s32 0, %v1101
        %v1231 = vsel %vm1229, %v1230, %v1101
        %v1232 = vshrl.u32 %v1231, 4
        %v1233 = vand.u32 %v1231, 15
        %v1234 = vsub.s32 0, %v1233
        %v1235 = vsel %vm1229, %v1234, %v1233
        %vm1236 = vcmp.lt.s32.totalorder %v1102, 0
        %v1237 = vsub.s32 0, %v1102
        %v1238 = vsel %vm1236, %v1237, %v1102
        %v1239 = vshrl.u32 %v1238, 4
        %v1240 = vand.u32 %v1238, 15
        %v1241 = vsub.s32 0, %v1240
        %v1242 = vsel %vm1236, %v1241, %v1240
        %vm1243 = vcmp.lt.s32.totalorder %v1103, 0
        %v1244 = vsub.s32 0, %v1103
        %v1245 = vsel %vm1243, %v1244, %v1103
        %v1246 = vshrl.u32 %v1245, 4
        %v1247 = vand.u32 %v1245, 15
        %v1248 = vsub.s32 0, %v1247
        %v1249 = vsel %vm1243, %v1248, %v1247
        %vm1250 = vcmp.lt.s32.totalorder %v1104, 0
        %v1251 = vsub.s32 0, %v1104
        %v1252 = vsel %vm1250, %v1251, %v1104
        %v1253 = vshrl.u32 %v1252, 4
        %v1254 = vand.u32 %v1252, 15
        %v1255 = vsub.s32 0, %v1254
        %v1256 = vsel %vm1250, %v1255, %v1254
        %vm1257 = vcmp.lt.s32.totalorder %v1105, 0
        %v1258 = vsub.s32 0, %v1105
        %v1259 = vsel %vm1257, %v1258, %v1105
        %v1260 = vshrl.u32 %v1259, 4
        %v1261 = vand.u32 %v1259, 15
        %v1262 = vsub.s32 0, %v1261
        %v1263 = vsel %vm1257, %v1262, %v1261
        %vm1264 = vcmp.lt.s32.totalorder %v1106, 0
        %v1265 = vsub.s32 0, %v1106
        %v1266 = vsel %vm1264, %v1265, %v1106
        %v1267 = vshrl.u32 %v1266, 4
        %v1268 = vand.u32 %v1266, 15
        %v1269 = vsub.s32 0, %v1268
        %v1270 = vsel %vm1264, %v1269, %v1268
        %vm1271 = vcmp.lt.s32.totalorder %v1107, 0
        %v1272 = vsub.s32 0, %v1107
        %v1273 = vsel %vm1271, %v1272, %v1107
        %v1274 = vshrl.u32 %v1273, 4
        %v1275 = vand.u32 %v1273, 15
        %v1276 = vsub.s32 0, %v1275
        %v1277 = vsel %vm1271, %v1276, %v1275
        %vm1278 = vcmp.lt.s32.totalorder %v1108, 0
        %v1279 = vsub.s32 0, %v1108
        %v1280 = vsel %vm1278, %v1279, %v1108
        %v1281 = vshrl.u32 %v1280, 4
        %v1282 = vand.u32 %v1280, 15
        %v1283 = vsub.s32 0, %v1282
        %v1284 = vsel %vm1278, %v1283, %v1282
        %vm1285 = vcmp.lt.s32.totalorder %v1109, 0
        %v1286 = vsub.s32 0, %v1109
        %v1287 = vsel %vm1285, %v1286, %v1109
        %v1288 = vshrl.u32 %v1287, 4
        %v1289 = vand.u32 %v1287, 15
        %v1290 = vsub.s32 0, %v1289
        %v1291 = vsel %vm1285, %v1290, %v1289
        %vm1292 = vcmp.lt.s32.totalorder %v1110, 0
        %v1293 = vsub.s32 0, %v1110
        %v1294 = vsel %vm1292, %v1293, %v1110
        %v1295 = vshrl.u32 %v1294, 4
        %v1296 = vand.u32 %v1294, 15
        %v1297 = vsub.s32 0, %v1296
        %v1298 = vsel %vm1292, %v1297, %v1296
        %vm1299 = vcmp.lt.s32.totalorder %v1111, 0
        %v1300 = vsub.s32 0, %v1111
        %v1301 = vsel %vm1299, %v1300, %v1111
        %v1302 = vshrl.u32 %v1301, 4
        %v1303 = vand.u32 %v1301, 15
        %v1304 = vsub.s32 0, %v1303
        %v1305 = vsel %vm1299, %v1304, %v1303
        %vm1306 = vcmp.lt.s32.totalorder %v1112, 0
        %v1307 = vsub.s32 0, %v1112
        %v1308 = vsel %vm1306, %v1307, %v1112
        %v1309 = vshrl.u32 %v1308, 4
        %v1310 = vand.u32 %v1308, 15
        %v1311 = vsub.s32 0, %v1310
        %v1312 = vsel %vm1306, %v1311, %v1310
        %vm1313 = vcmp.lt.s32.totalorder %v1113, 0
        %v1314 = vsub.s32 0, %v1113
        %v1315 = vsel %vm1313, %v1314, %v1113
        %v1316 = vshrl.u32 %v1315, 4
        %v1317 = vand.u32 %v1315, 15
        %v1318 = vsub.s32 0, %v1317
        %v1319 = vsel %vm1313, %v1318, %v1317
        %vm1320 = vcmp.lt.s32.totalorder %v1114, 0
        %v1321 = vsub.s32 0, %v1114
        %v1322 = vsel %vm1320, %v1321, %v1114
        %v1323 = vshrl.u32 %v1322, 4
        %v1324 = vand.u32 %v1322, 15
        %v1325 = vsub.s32 0, %v1324
        %v1326 = vsel %vm1320, %v1325, %v1324
        %vm1327 = vcmp.lt.s32.totalorder %v1115, 0
        %v1328 = vsub.s32 0, %v1115
        %v1329 = vsel %vm1327, %v1328, %v1115
        %v1330 = vshrl.u32 %v1329, 4
        %v1331 = vand.u32 %v1329, 15
        %v1332 = vsub.s32 0, %v1331
        %v1333 = vsel %vm1327, %v1332, %v1331
        %vm1334 = vcmp.lt.s32.totalorder %v1116, 0
        %v1335 = vsub.s32 0, %v1116
        %v1336 = vsel %vm1334, %v1335, %v1116
        %v1337 = vshrl.u32 %v1336, 4
        %v1338 = vand.u32 %v1336, 15
        %v1339 = vsub.s32 0, %v1338
        %v1340 = vsel %vm1334, %v1339, %v1338
        %vm1341 = vcmp.ne.s32.totalorder %v1123, 0
        %vm1342 = vcmp.ne.s32.totalorder %v1130, 0
        %vm1343 = vcmp.ne.s32.totalorder %v1137, 0
        %vm1344 = vcmp.ne.s32.totalorder %v1144, 0
        %vm1345 = vcmp.ne.s32.totalorder %v1151, 0
        %vm1346 = vcmp.ne.s32.totalorder %v1158, 0
        %vm1347 = vcmp.ne.s32.totalorder %v1165, 0
        %vm1348 = vcmp.ne.s32.totalorder %v1172, 0
        %vm1349 = vcmp.ne.s32.totalorder %v1179, 0
        %vm1350 = vcmp.ne.s32.totalorder %v1186, 0
        %vm1351 = vcmp.ne.s32.totalorder %v1193, 0
        %vm1352 = vcmp.ne.s32.totalorder %v1200, 0
        %vm1353 = vcmp.ne.s32.totalorder %v1207, 0
        %vm1354 = vcmp.ne.s32.totalorder %v1214, 0
        %vm1355 = vcmp.ne.s32.totalorder %v1221, 0
        %vm1356 = vcmp.ne.s32.totalorder %v1228, 0
        %vm1357 = vcmp.ne.s32.totalorder %v1235, 0
        %vm1358 = vcmp.ne.s32.totalorder %v1242, 0
        %vm1359 = vcmp.ne.s32.totalorder %v1249, 0
        %vm1360 = vcmp.ne.s32.totalorder %v1256, 0
        %vm1361 = vcmp.ne.s32.totalorder %v1263, 0
        %vm1362 = vcmp.ne.s32.totalorder %v1270, 0
        %vm1363 = vcmp.ne.s32.totalorder %v1277, 0
        %vm1364 = vcmp.ne.s32.totalorder %v1284, 0
        %vm1365 = vcmp.ne.s32.totalorder %v1291, 0
        %vm1366 = vcmp.ne.s32.totalorder %v1298, 0
        %vm1367 = vcmp.ne.s32.totalorder %v1305, 0
        %vm1368 = vcmp.ne.s32.totalorder %v1312, 0
        %vm1369 = vcmp.ne.s32.totalorder %v1319, 0
        %vm1370 = vcmp.ne.s32.totalorder %v1326, 0
        %vm1371 = vcmp.ne.s32.totalorder %v1333, 0
        %vm1372 = vcmp.ne.s32.totalorder %v1340, 0
        %vm1373 = vcmp.lt.s32.totalorder %v1123, 0
        %vm1374 = vcmp.lt.s32.totalorder %v1130, 0
        %vm1375 = vcmp.lt.s32.totalorder %v1137, 0
        %vm1376 = vcmp.lt.s32.totalorder %v1144, 0
        %vm1377 = vcmp.lt.s32.totalorder %v1151, 0
        %vm1378 = vcmp.lt.s32.totalorder %v1158, 0
        %vm1379 = vcmp.lt.s32.totalorder %v1165, 0
        %vm1380 = vcmp.lt.s32.totalorder %v1172, 0
        %vm1381 = vcmp.lt.s32.totalorder %v1179, 0
        %vm1382 = vcmp.lt.s32.totalorder %v1186, 0
        %vm1383 = vcmp.lt.s32.totalorder %v1193, 0
        %vm1384 = vcmp.lt.s32.totalorder %v1200, 0
        %vm1385 = vcmp.lt.s32.totalorder %v1207, 0
        %vm1386 = vcmp.lt.s32.totalorder %v1214, 0
        %vm1387 = vcmp.lt.s32.totalorder %v1221, 0
        %vm1388 = vcmp.lt.s32.totalorder %v1228, 0
        %vm1389 = vcmp.lt.s32.totalorder %v1235, 0
        %vm1390 = vcmp.lt.s32.totalorder %v1242, 0
        %vm1391 = vcmp.lt.s32.totalorder %v1249, 0
        %vm1392 = vcmp.lt.s32.totalorder %v1256, 0
        %vm1393 = vcmp.lt.s32.totalorder %v1263, 0
        %vm1394 = vcmp.lt.s32.totalorder %v1270, 0
        %vm1395 = vcmp.lt.s32.totalorder %v1277, 0
        %vm1396 = vcmp.lt.s32.totalorder %v1284, 0
        %vm1397 = vcmp.lt.s32.totalorder %v1291, 0
        %vm1398 = vcmp.lt.s32.totalorder %v1298, 0
        %vm1399 = vcmp.lt.s32.totalorder %v1305, 0
        %vm1400 = vcmp.lt.s32.totalorder %v1312, 0
        %vm1401 = vcmp.lt.s32.totalorder %v1319, 0
        %vm1402 = vcmp.lt.s32.totalorder %v1326, 0
        %vm1403 = vcmp.lt.s32.totalorder %v1333, 0
        %vm1404 = vcmp.lt.s32.totalorder %v1340, 0
        %vm1405 = vmand %vm1373, %vm1341
        %vm1406 = vmand %vm1374, %vm1342
        %vm1407 = vmand %vm1375, %vm1343
        %vm1408 = vmand %vm1376, %vm1344
        %vm1409 = vmand %vm1377, %vm1345
        %vm1410 = vmand %vm1378, %vm1346
        %vm1411 = vmand %vm1379, %vm1347
        %vm1412 = vmand %vm1380, %vm1348
        %vm1413 = vmand %vm1381, %vm1349
        %vm1414 = vmand %vm1382, %vm1350
        %vm1415 = vmand %vm1383, %vm1351
        %vm1416 = vmand %vm1384, %vm1352
        %vm1417 = vmand %vm1385, %vm1353
        %vm1418 = vmand %vm1386, %vm1354
        %vm1419 = vmand %vm1387, %vm1355
        %vm1420 = vmand %vm1388, %vm1356
        %vm1421 = vmand %vm1389, %vm1357
        %vm1422 = vmand %vm1390, %vm1358
        %vm1423 = vmand %vm1391, %vm1359
        %vm1424 = vmand %vm1392, %vm1360
        %vm1425 = vmand %vm1393, %vm1361
        %vm1426 = vmand %vm1394, %vm1362
        %vm1427 = vmand %vm1395, %vm1363
        %vm1428 = vmand %vm1396, %vm1364
        %vm1429 = vmand %vm1397, %vm1365
        %vm1430 = vmand %vm1398, %vm1366
        %vm1431 = vmand %vm1399, %vm1367
        %vm1432 = vmand %vm1400, %vm1368
        %vm1433 = vmand %vm1401, %vm1369
        %vm1434 = vmand %vm1402, %vm1370
        %vm1435 = vmand %vm1403, %vm1371
        %vm1436 = vmand %vm1404, %vm1372
        %v1437 = vadd.s32 %v1123, 16
        %v1438 = vadd.s32 %v1130, 16
        %v1439 = vadd.s32 %v1137, 16
        %v1440 = vadd.s32 %v1144, 16
        %v1441 = vadd.s32 %v1151, 16
        %v1442 = vadd.s32 %v1158, 16
        %v1443 = vadd.s32 %v1165, 16
        %v1444 = vadd.s32 %v1172, 16
        %v1445 = vadd.s32 %v1179, 16
        %v1446 = vadd.s32 %v1186, 16
        %v1447 = vadd.s32 %v1193, 16
        %v1448 = vadd.s32 %v1200, 16
        %v1449 = vadd.s32 %v1207, 16
        %v1450 = vadd.s32 %v1214, 16
        %v1451 = vadd.s32 %v1221, 16
        %v1452 = vadd.s32 %v1228, 16
        %v1453 = vadd.s32 %v1235, 16
        %v1454 = vadd.s32 %v1242, 16
        %v1455 = vadd.s32 %v1249, 16
        %v1456 = vadd.s32 %v1256, 16
        %v1457 = vadd.s32 %v1263, 16
        %v1458 = vadd.s32 %v1270, 16
        %v1459 = vadd.s32 %v1277, 16
        %v1460 = vadd.s32 %v1284, 16
        %v1461 = vadd.s32 %v1291, 16
        %v1462 = vadd.s32 %v1298, 16
        %v1463 = vadd.s32 %v1305, 16
        %v1464 = vadd.s32 %v1312, 16
        %v1465 = vadd.s32 %v1319, 16
        %v1466 = vadd.s32 %v1326, 16
        %v1467 = vadd.s32 %v1333, 16
        %v1468 = vadd.s32 %v1340, 16
        %v1469 = vsel %vm1405, %v1437, %v1123
        %v1470 = vsel %vm1406, %v1438, %v1130
        %v1471 = vsel %vm1407, %v1439, %v1137
        %v1472 = vsel %vm1408, %v1440, %v1144
        %v1473 = vsel %vm1409, %v1441, %v1151
        %v1474 = vsel %vm1410, %v1442, %v1158
        %v1475 = vsel %vm1411, %v1443, %v1165
        %v1476 = vsel %vm1412, %v1444, %v1172
        %v1477 = vsel %vm1413, %v1445, %v1179
        %v1478 = vsel %vm1414, %v1446, %v1186
        %v1479 = vsel %vm1415, %v1447, %v1193
        %v1480 = vsel %vm1416, %v1448, %v1200
        %v1481 = vsel %vm1417, %v1449, %v1207
        %v1482 = vsel %vm1418, %v1450, %v1214
        %v1483 = vsel %vm1419, %v1451, %v1221
        %v1484 = vsel %vm1420, %v1452, %v1228
        %v1485 = vsel %vm1421, %v1453, %v1235
        %v1486 = vsel %vm1422, %v1454, %v1242
        %v1487 = vsel %vm1423, %v1455, %v1249
        %v1488 = vsel %vm1424, %v1456, %v1256
        %v1489 = vsel %vm1425, %v1457, %v1263
        %v1490 = vsel %vm1426, %v1458, %v1270
        %v1491 = vsel %vm1427, %v1459, %v1277
        %v1492 = vsel %vm1428, %v1460, %v1284
        %v1493 = vsel %vm1429, %v1461, %v1291
        %v1494 = vsel %vm1430, %v1462, %v1298
        %v1495 = vsel %vm1431, %v1463, %v1305
        %v1496 = vsel %vm1432, %v1464, %v1312
        %v1497 = vsel %vm1433, %v1465, %v1319
        %v1498 = vsel %vm1434, %v1466, %v1326
        %v1499 = vsel %vm1435, %v1467, %v1333
        %v1500 = vsel %vm1436, %v1468, %v1340
        %vm1501 = vcmp.ne.s32.totalorder %v1469, 0
        %vm1502 = vcmp.ne.s32.totalorder %v1470, 0
        %vm1503 = vcmp.ne.s32.totalorder %v1471, 0
        %vm1504 = vcmp.ne.s32.totalorder %v1472, 0
        %vm1505 = vcmp.ne.s32.totalorder %v1473, 0
        %vm1506 = vcmp.ne.s32.totalorder %v1474, 0
        %vm1507 = vcmp.ne.s32.totalorder %v1475, 0
        %vm1508 = vcmp.ne.s32.totalorder %v1476, 0
        %vm1509 = vcmp.ne.s32.totalorder %v1477, 0
        %vm1510 = vcmp.ne.s32.totalorder %v1478, 0
        %vm1511 = vcmp.ne.s32.totalorder %v1479, 0
        %vm1512 = vcmp.ne.s32.totalorder %v1480, 0
        %vm1513 = vcmp.ne.s32.totalorder %v1481, 0
        %vm1514 = vcmp.ne.s32.totalorder %v1482, 0
        %vm1515 = vcmp.ne.s32.totalorder %v1483, 0
        %vm1516 = vcmp.ne.s32.totalorder %v1484, 0
        %vm1517 = vcmp.ne.s32.totalorder %v1485, 0
        %vm1518 = vcmp.ne.s32.totalorder %v1486, 0
        %vm1519 = vcmp.ne.s32.totalorder %v1487, 0
        %vm1520 = vcmp.ne.s32.totalorder %v1488, 0
        %vm1521 = vcmp.ne.s32.totalorder %v1489, 0
        %vm1522 = vcmp.ne.s32.totalorder %v1490, 0
        %vm1523 = vcmp.ne.s32.totalorder %v1491, 0
        %vm1524 = vcmp.ne.s32.totalorder %v1492, 0
        %vm1525 = vcmp.ne.s32.totalorder %v1493, 0
        %vm1526 = vcmp.ne.s32.totalorder %v1494, 0
        %vm1527 = vcmp.ne.s32.totalorder %v1495, 0
        %vm1528 = vcmp.ne.s32.totalorder %v1496, 0
        %vm1529 = vcmp.ne.s32.totalorder %v1497, 0
        %vm1530 = vcmp.ne.s32.totalorder %v1498, 0
        %vm1531 = vcmp.ne.s32.totalorder %v1499, 0
        %vm1532 = vcmp.ne.s32.totalorder %v1500, 0
        %vm1533 = vcmp.ne.s32.totalorder %v1469, 15
        %vm1534 = vcmp.ne.s32.totalorder %v1470, 15
        %vm1535 = vcmp.ne.s32.totalorder %v1471, 15
        %vm1536 = vcmp.ne.s32.totalorder %v1472, 15
        %vm1537 = vcmp.ne.s32.totalorder %v1473, 15
        %vm1538 = vcmp.ne.s32.totalorder %v1474, 15
        %vm1539 = vcmp.ne.s32.totalorder %v1475, 15
        %vm1540 = vcmp.ne.s32.totalorder %v1476, 15
        %vm1541 = vcmp.ne.s32.totalorder %v1477, 15
        %vm1542 = vcmp.ne.s32.totalorder %v1478, 15
        %vm1543 = vcmp.ne.s32.totalorder %v1479, 15
        %vm1544 = vcmp.ne.s32.totalorder %v1480, 15
        %vm1545 = vcmp.ne.s32.totalorder %v1481, 15
        %vm1546 = vcmp.ne.s32.totalorder %v1482, 15
        %vm1547 = vcmp.ne.s32.totalorder %v1483, 15
        %vm1548 = vcmp.ne.s32.totalorder %v1484, 15
        %vm1549 = vcmp.ne.s32.totalorder %v1485, 15
        %vm1550 = vcmp.ne.s32.totalorder %v1486, 15
        %vm1551 = vcmp.ne.s32.totalorder %v1487, 15
        %vm1552 = vcmp.ne.s32.totalorder %v1488, 15
        %vm1553 = vcmp.ne.s32.totalorder %v1489, 15
        %vm1554 = vcmp.ne.s32.totalorder %v1490, 15
        %vm1555 = vcmp.ne.s32.totalorder %v1491, 15
        %vm1556 = vcmp.ne.s32.totalorder %v1492, 15
        %vm1557 = vcmp.ne.s32.totalorder %v1493, 15
        %vm1558 = vcmp.ne.s32.totalorder %v1494, 15
        %vm1559 = vcmp.ne.s32.totalorder %v1495, 15
        %vm1560 = vcmp.ne.s32.totalorder %v1496, 15
        %vm1561 = vcmp.ne.s32.totalorder %v1497, 15
        %vm1562 = vcmp.ne.s32.totalorder %v1498, 15
        %vm1563 = vcmp.ne.s32.totalorder %v1499, 15
        %vm1564 = vcmp.ne.s32.totalorder %v1500, 15
        %v1565 = vld [vmem:[#allocation2 + $0x7] sm:$0xff]
        %v1566 = vld [vmem:[#allocation2 + $0xf] sm:$0xff]
        %v1567 = vld [vmem:[#allocation2 + $0x17] sm:$0xff]
        %v1568 = vld [vmem:[#allocation2 + $0x1f] sm:$0xff]
        %v1569 = vld [vmem:[#allocation2 + $0x27] sm:$0xff]
        %v1570 = vld [vmem:[#allocation2 + $0x2f] sm:$0xff]
        %v1571 = vld [vmem:[#allocation2 + $0x37] sm:$0xff]
        %v1572 = vld [vmem:[#allocation2 + $0x3f] sm:$0xff]
        %v1573 = vld [vmem:[#allocation2 + $0x47] sm:$0xff]
        %v1574 = vld [vmem:[#allocation2 + $0x4f] sm:$0xff]
        %v1575 = vld [vmem:[#allocation2 + $0x57] sm:$0xff]
        %v1576 = vld [vmem:[#allocation2 + $0x5f] sm:$0xff]
        %v1577 = vld [vmem:[#allocation2 + $0x67] sm:$0xff]
        %v1578 = vld [vmem:[#allocation2 + $0x6f] sm:$0xff]
        %v1579 = vld [vmem:[#allocation2 + $0x77] sm:$0xff]
        %v1580 = vld [vmem:[#allocation2 + $0x7f] sm:$0xff]
        %v1581 = vld [vmem:[#allocation2 + $0x87] sm:$0xff]
        %v1582 = vld [vmem:[#allocation2 + $0x8f] sm:$0xff]
        %v1583 = vld [vmem:[#allocation2 + $0x97] sm:$0xff]
        %v1584 = vld [vmem:[#allocation2 + $0x9f] sm:$0xff]
        %v1585 = vld [vmem:[#allocation2 + $0xa7] sm:$0xff]
        %v1586 = vld [vmem:[#allocation2 + $0xaf] sm:$0xff]
        %v1587 = vld [vmem:[#allocation2 + $0xb7] sm:$0xff]
        %v1588 = vld [vmem:[#allocation2 + $0xbf] sm:$0xff]
        %v1589 = vld [vmem:[#allocation2 + $0xc7] sm:$0xff]
        %v1590 = vld [vmem:[#allocation2 + $0xcf] sm:$0xff]
        %v1591 = vld [vmem:[#allocation2 + $0xd7] sm:$0xff]
        %v1592 = vld [vmem:[#allocation2 + $0xdf] sm:$0xff]
        %v1593 = vld [vmem:[#allocation2 + $0xe7] sm:$0xff]
        %v1594 = vld [vmem:[#allocation2 + $0xef] sm:$0xff]
        %v1595 = vld [vmem:[#allocation2 + $0xf7] sm:$0xff]
        %v1596 = vld [vmem:[#allocation2 + $0xff] sm:$0xff]
        %v1597 = vpack.c.bf16 %v1566, %v1565
        %v1598 = vpack.c.bf16 %v1568, %v1567
        %v1599 = vpack.c.bf16 %v1570, %v1569
        %v1600 = vpack.c.bf16 %v1572, %v1571
        %v1601 = vpack.c.bf16 %v1574, %v1573
        %v1602 = vpack.c.bf16 %v1576, %v1575
        %v1603 = vpack.c.bf16 %v1578, %v1577
        %v1604 = vpack.c.bf16 %v1580, %v1579
        %v1605 = vpack.c.bf16 %v1582, %v1581
        %v1606 = vpack.c.bf16 %v1584, %v1583
        %v1607 = vpack.c.bf16 %v1586, %v1585
        %v1608 = vpack.c.bf16 %v1588, %v1587
        %v1609 = vpack.c.bf16 %v1590, %v1589
        %v1610 = vpack.c.bf16 %v1592, %v1591
        %v1611 = vpack.c.bf16 %v1594, %v1593
        %v1612 = vpack.c.bf16 %v1596, %v1595
        %v1613 = vld [vmem:[%s5] sm:$0xff]
        %v1614 = vld [vmem:[%s5 + $0x8] sm:$0xff]
        %v1615 = vpack.c.bf16 %v1614, %v1613
        %v1617 = vsel %vm693, %v1597, 0
        %v1620 = vsel %vm693, %v1598, 0
        %v1623 = vsel %vm693, %v1599, 0
        %v1626 = vsel %vm693, %v1600, 0
        %v1629 = vsel %vm693, %v1601, 0
        %v1632 = vsel %vm693, %v1602, 0
        %v1635 = vsel %vm693, %v1603, 0
        %v1638 = vsel %vm693, %v1604, 0
        %v1641 = vsel %vm693, %v1605, 0
        %v1644 = vsel %vm693, %v1606, 0
        %v1647 = vsel %vm693, %v1607, 0
        %v1650 = vsel %vm693, %v1608, 0
        %v1653 = vsel %vm693, %v1609, 0
        %v1656 = vsel %vm693, %v1610, 0
        %v1659 = vsel %vm693, %v1611, 0
        %v1662 = vsel %vm693, %v1612, 0
        %1664 = vmatprep.subr.bf16.mxu0 0
        %1665 = vmatpush1.bf16.msra.mxu0 0
        %1666 = vmatprep.subr.bf16.mxu0 0
        %1667 = vmatpush1.bf16.msra.mxu0 0
        %1668 = vmatprep.subr.bf16.mxu0 0
        %1669 = vmatpush1.bf16.msra.mxu0 0
        %1670 = vmatprep.subr.bf16.mxu0 0
        %1671 = vmatpush1.bf16.msra.mxu0 0
        %1672 = vmatprep.subr.bf16.mxu0 0
        %1673 = vmatpush1.bf16.msra.mxu0 0
        %1674 = vmatprep.subr.bf16.mxu0 0
        %1675 = vmatpush1.bf16.msra.mxu0 0
        %1676 = vmatprep.subr.bf16.mxu0 0
        %1677 = vmatpush1.bf16.msra.mxu0 0
        %1678 = vmatprep.subr.bf16.mxu0 0
        %1679 = vmatpush1.bf16.msra.mxu0 %v1615
        %1680 = vmatprep.subr.bf16.mxu0 0
        %1681 = vmatpush2.bf16.msra.mxu0 0
        %1682 = vmatprep.subr.bf16.mxu0 0
        %1683 = vmatpush2.bf16.msra.mxu0 0
        %1684 = vmatprep.subr.bf16.mxu0 0
        %1685 = vmatpush2.bf16.msra.mxu0 0
        %1686 = vmatprep.subr.bf16.mxu0 0
        %1687 = vmatpush2.bf16.msra.mxu0 0
        %1688 = vmatprep.subr.bf16.mxu0 0
        %1689 = vmatpush2.bf16.msra.mxu0 0
        %1690 = vmatprep.subr.bf16.mxu0 0
        %1691 = vmatpush2.bf16.msra.mxu0 0
        %1692 = vmatprep.subr.bf16.mxu0 0
        %1693 = vmatpush2.bf16.msra.mxu0 0
        %1694 = vmatprep.subr.bf16.mxu0 0
        %1695 = vmatpush2.bf16.msra.mxu0 0
        %1696 = vmatprep.mubr.bf16.mxu0 0
        %1697 = vmatmul.mubr.bf16.gmra.mxu0 %v1617
        %v1698 = vpop.f32.mrf.mxu0
        %v1699 = vadd.f32 0.0, %v1698
        %v1700 = vpop.f32.mrf.mxu0
        %v1701 = vpop.f32.mrf.mxu0
        %v1702 = vadd.f32 0.0, %v1701
        %v1703 = vpop.f32.mrf.mxu0
        %1704 = vmatprep.mubr.bf16.mxu0 0
        %1705 = vmatmul.mubr.bf16.gmra.mxu0 %v1620
        %v1706 = vpop.f32.mrf.mxu0
        %v1707 = vadd.f32 0.0, %v1706
        %v1708 = vpop.f32.mrf.mxu0
        %v1709 = vpop.f32.mrf.mxu0
        %v1710 = vadd.f32 0.0, %v1709
        %v1711 = vpop.f32.mrf.mxu0
        %1712 = vmatprep.mubr.bf16.mxu0 0
        %1713 = vmatmul.mubr.bf16.gmra.mxu0 %v1623
        %v1714 = vpop.f32.mrf.mxu0
        %v1715 = vadd.f32 0.0, %v1714
        %v1716 = vpop.f32.mrf.mxu0
        %v1717 = vpop.f32.mrf.mxu0
        %v1718 = vadd.f32 0.0, %v1717
        %v1719 = vpop.f32.mrf.mxu0
        %1720 = vmatprep.mubr.bf16.mxu0 0
        %1721 = vmatmul.mubr.bf16.gmra.mxu0 %v1626
        %v1722 = vpop.f32.mrf.mxu0
        %v1723 = vadd.f32 0.0, %v1722
        %v1724 = vpop.f32.mrf.mxu0
        %v1725 = vpop.f32.mrf.mxu0
        %v1726 = vadd.f32 0.0, %v1725
        %v1727 = vpop.f32.mrf.mxu0
        %1728 = vmatprep.mubr.bf16.mxu0 0
        %1729 = vmatmul.mubr.bf16.gmra.mxu0 %v1629
        %v1730 = vpop.f32.mrf.mxu0
        %v1731 = vadd.f32 0.0, %v1730
        %v1732 = vpop.f32.mrf.mxu0
        %v1733 = vpop.f32.mrf.mxu0
        %v1734 = vadd.f32 0.0, %v1733
        %v1735 = vpop.f32.mrf.mxu0
        %1736 = vmatprep.mubr.bf16.mxu0 0
        %1737 = vmatmul.mubr.bf16.gmra.mxu0 %v1632
        %v1738 = vpop.f32.mrf.mxu0
        %v1739 = vadd.f32 0.0, %v1738
        %v1740 = vpop.f32.mrf.mxu0
        %v1741 = vpop.f32.mrf.mxu0
        %v1742 = vadd.f32 0.0, %v1741
        %v1743 = vpop.f32.mrf.mxu0
        %1744 = vmatprep.mubr.bf16.mxu0 0
        %1745 = vmatmul.mubr.bf16.gmra.mxu0 %v1635
        %v1746 = vpop.f32.mrf.mxu0
        %v1747 = vadd.f32 0.0, %v1746
        %v1748 = vpop.f32.mrf.mxu0
        %v1749 = vpop.f32.mrf.mxu0
        %v1750 = vadd.f32 0.0, %v1749
        %v1751 = vpop.f32.mrf.mxu0
        %1752 = vmatprep.mubr.bf16.mxu0 0
        %1753 = vmatmul.mubr.bf16.gmra.mxu0 %v1638
        %v1754 = vpop.f32.mrf.mxu0
        %v1755 = vadd.f32 0.0, %v1754
        %v1756 = vpop.f32.mrf.mxu0
        %v1757 = vpop.f32.mrf.mxu0
        %v1758 = vadd.f32 0.0, %v1757
        %v1759 = vpop.f32.mrf.mxu0
        %1760 = vmatprep.mubr.bf16.mxu0 0
        %1761 = vmatmul.mubr.bf16.gmra.mxu0 %v1641
        %v1762 = vpop.f32.mrf.mxu0
        %v1763 = vadd.f32 0.0, %v1762
        %v1764 = vpop.f32.mrf.mxu0
        %v1765 = vpop.f32.mrf.mxu0
        %v1766 = vadd.f32 0.0, %v1765
        %v1767 = vpop.f32.mrf.mxu0
        %1768 = vmatprep.mubr.bf16.mxu0 0
        %1769 = vmatmul.mubr.bf16.gmra.mxu0 %v1644
        %v1770 = vpop.f32.mrf.mxu0
        %v1771 = vadd.f32 0.0, %v1770
        %v1772 = vpop.f32.mrf.mxu0
        %v1773 = vpop.f32.mrf.mxu0
        %v1774 = vadd.f32 0.0, %v1773
        %v1775 = vpop.f32.mrf.mxu0
        %1776 = vmatprep.mubr.bf16.mxu0 0
        %1777 = vmatmul.mubr.bf16.gmra.mxu0 %v1647
        %v1778 = vpop.f32.mrf.mxu0
        %v1779 = vadd.f32 0.0, %v1778
        %v1780 = vpop.f32.mrf.mxu0
        %v1781 = vpop.f32.mrf.mxu0
        %v1782 = vadd.f32 0.0, %v1781
        %v1783 = vpop.f32.mrf.mxu0
        %1784 = vmatprep.mubr.bf16.mxu0 0
        %1785 = vmatmul.mubr.bf16.gmra.mxu0 %v1650
        %v1786 = vpop.f32.mrf.mxu0
        %v1787 = vadd.f32 0.0, %v1786
        %v1788 = vpop.f32.mrf.mxu0
        %v1789 = vpop.f32.mrf.mxu0
        %v1790 = vadd.f32 0.0, %v1789
        %v1791 = vpop.f32.mrf.mxu0
        %1792 = vmatprep.mubr.bf16.mxu0 0
        %1793 = vmatmul.mubr.bf16.gmra.mxu0 %v1653
        %v1794 = vpop.f32.mrf.mxu0
        %v1795 = vadd.f32 0.0, %v1794
        %v1796 = vpop.f32.mrf.mxu0
        %v1797 = vpop.f32.mrf.mxu0
        %v1798 = vadd.f32 0.0, %v1797
        %v1799 = vpop.f32.mrf.mxu0
        %1800 = vmatprep.mubr.bf16.mxu0 0
        %1801 = vmatmul.mubr.bf16.gmra.mxu0 %v1656
        %v1802 = vpop.f32.mrf.mxu0
        %v1803 = vadd.f32 0.0, %v1802
        %v1804 = vpop.f32.mrf.mxu0
        %v1805 = vpop.f32.mrf.mxu0
        %v1806 = vadd.f32 0.0, %v1805
        %v1807 = vpop.f32.mrf.mxu0
        %1808 = vmatprep.mubr.bf16.mxu0 0
        %1809 = vmatmul.mubr.bf16.gmra.mxu0 %v1659
        %v1810 = vpop.f32.mrf.mxu0
        %v1811 = vadd.f32 0.0, %v1810
        %v1812 = vpop.f32.mrf.mxu0
        %v1813 = vpop.f32.mrf.mxu0
        %v1814 = vadd.f32 0.0, %v1813
        %v1815 = vpop.f32.mrf.mxu0
        %1816 = vmatprep.mubr.bf16.mxu0 0
        %1817 = vmatmul.mubr.bf16.gmra.mxu0 %v1662
        %v1818 = vpop.f32.mrf.mxu0
        %v1819 = vadd.f32 0.0, %v1818
        %v1820 = vpop.f32.mrf.mxu0
        %v1821 = vpop.f32.mrf.mxu0
        %v1822 = vadd.f32 0.0, %v1821
        %v1823 = vpop.f32.mrf.mxu0
        %1824 = vdwg.mxu0
        %v1825 = vsel %vm1501, 1, 0
        %v1826 = vsel %vm1502, 1, 0
        %v1827 = vsel %vm1503, 1, 0
        %v1828 = vsel %vm1504, 1, 0
        %v1829 = vsel %vm1505, 1, 0
        %v1830 = vsel %vm1506, 1, 0
        %v1831 = vsel %vm1507, 1, 0
        %v1832 = vsel %vm1508, 1, 0
        %v1833 = vsel %vm1509, 1, 0
        %v1834 = vsel %vm1510, 1, 0
        %v1835 = vsel %vm1511, 1, 0
        %v1836 = vsel %vm1512, 1, 0
        %v1837 = vsel %vm1513, 1, 0
        %v1838 = vsel %vm1514, 1, 0
        %v1839 = vsel %vm1515, 1, 0
        %v1840 = vsel %vm1516, 1, 0
        %v1841 = vsel %vm1517, 1, 0
        %v1842 = vsel %vm1518, 1, 0
        %v1843 = vsel %vm1519, 1, 0
        %v1844 = vsel %vm1520, 1, 0
        %v1845 = vsel %vm1521, 1, 0
        %v1846 = vsel %vm1522, 1, 0
        %v1847 = vsel %vm1523, 1, 0
        %v1848 = vsel %vm1524, 1, 0
        %v1849 = vsel %vm1525, 1, 0
        %v1850 = vsel %vm1526, 1, 0
        %v1851 = vsel %vm1527, 1, 0
        %v1852 = vsel %vm1528, 1, 0
        %v1853 = vsel %vm1529, 1, 0
        %v1854 = vsel %vm1530, 1, 0
        %v1855 = vsel %vm1531, 1, 0
        %v1856 = vsel %vm1532, 1, 0
        %vm1857 = vcmp.eq.s32.totalorder %v1825, 1
        %vm1858 = vcmp.eq.s32.totalorder %v1826, 1
        %vm1859 = vcmp.eq.s32.totalorder %v1827, 1
        %vm1860 = vcmp.eq.s32.totalorder %v1828, 1
        %vm1861 = vcmp.eq.s32.totalorder %v1829, 1
        %vm1862 = vcmp.eq.s32.totalorder %v1830, 1
        %vm1863 = vcmp.eq.s32.totalorder %v1831, 1
        %vm1864 = vcmp.eq.s32.totalorder %v1832, 1
        %vm1865 = vcmp.eq.s32.totalorder %v1833, 1
        %vm1866 = vcmp.eq.s32.totalorder %v1834, 1
        %vm1867 = vcmp.eq.s32.totalorder %v1835, 1
        %vm1868 = vcmp.eq.s32.totalorder %v1836, 1
        %vm1869 = vcmp.eq.s32.totalorder %v1837, 1
        %vm1870 = vcmp.eq.s32.totalorder %v1838, 1
        %vm1871 = vcmp.eq.s32.totalorder %v1839, 1
        %vm1872 = vcmp.eq.s32.totalorder %v1840, 1
        %vm1873 = vcmp.eq.s32.totalorder %v1841, 1
        %vm1874 = vcmp.eq.s32.totalorder %v1842, 1
        %vm1875 = vcmp.eq.s32.totalorder %v1843, 1
        %vm1876 = vcmp.eq.s32.totalorder %v1844, 1
        %vm1877 = vcmp.eq.s32.totalorder %v1845, 1
        %vm1878 = vcmp.eq.s32.totalorder %v1846, 1
        %vm1879 = vcmp.eq.s32.totalorder %v1847, 1
        %vm1880 = vcmp.eq.s32.totalorder %v1848, 1
        %vm1881 = vcmp.eq.s32.totalorder %v1849, 1
        %vm1882 = vcmp.eq.s32.totalorder %v1850, 1
        %vm1883 = vcmp.eq.s32.totalorder %v1851, 1
        %vm1884 = vcmp.eq.s32.totalorder %v1852, 1
        %vm1885 = vcmp.eq.s32.totalorder %v1853, 1
        %vm1886 = vcmp.eq.s32.totalorder %v1854, 1
        %vm1887 = vcmp.eq.s32.totalorder %v1855, 1
        %vm1888 = vcmp.eq.s32.totalorder %v1856, 1
        %v1889 = vsel %vm1857, %v1699, 0.0
        %v1890 = vsel %vm1858, %v1702, 0.0
        %v1891 = vsel %vm1859, %v1707, 0.0
        %v1892 = vsel %vm1860, %v1710, 0.0
        %v1893 = vsel %vm1861, %v1715, 0.0
        %v1894 = vsel %vm1862, %v1718, 0.0
        %v1895 = vsel %vm1863, %v1723, 0.0
        %v1896 = vsel %vm1864, %v1726, 0.0
        %v1897 = vsel %vm1865, %v1731, 0.0
        %v1898 = vsel %vm1866, %v1734, 0.0
        %v1899 = vsel %vm1867, %v1739, 0.0
        %v1900 = vsel %vm1868, %v1742, 0.0
        %v1901 = vsel %vm1869, %v1747, 0.0
        %v1902 = vsel %vm1870, %v1750, 0.0
        %v1903 = vsel %vm1871, %v1755, 0.0
        %v1904 = vsel %vm1872, %v1758, 0.0
        %v1905 = vsel %vm1873, %v1763, 0.0
        %v1906 = vsel %vm1874, %v1766, 0.0
        %v1907 = vsel %vm1875, %v1771, 0.0
        %v1908 = vsel %vm1876, %v1774, 0.0
        %v1909 = vsel %vm1877, %v1779, 0.0
        %v1910 = vsel %vm1878, %v1782, 0.0
        %v1911 = vsel %vm1879, %v1787, 0.0
        %v1912 = vsel %vm1880, %v1790, 0.0
        %v1913 = vsel %vm1881, %v1795, 0.0
        %v1914 = vsel %vm1882, %v1798, 0.0
        %v1915 = vsel %vm1883, %v1803, 0.0
        %v1916 = vsel %vm1884, %v1806, 0.0
        %v1917 = vsel %vm1885, %v1811, 0.0
        %v1918 = vsel %vm1886, %v1814, 0.0
        %v1919 = vsel %vm1887, %v1819, 0.0
        %v1920 = vsel %vm1888, %v1822, 0.0
        %v1921 = vadd.f32 %v1889, 0.0
        %v1922 = vadd.f32 %v1890, 0.0
        %v1923 = vadd.f32 %v1891, 0.0
        %v1924 = vadd.f32 %v1892, 0.0
        %v1925 = vadd.f32 %v1893, 0.0
        %v1926 = vadd.f32 %v1894, 0.0
        %v1927 = vadd.f32 %v1895, 0.0
        %v1928 = vadd.f32 %v1896, 0.0
        %v1929 = vadd.f32 %v1897, 0.0
        %v1930 = vadd.f32 %v1898, 0.0
        %v1931 = vadd.f32 %v1899, 0.0
        %v1932 = vadd.f32 %v1900, 0.0
        %v1933 = vadd.f32 %v1901, 0.0
        %v1934 = vadd.f32 %v1902, 0.0
        %v1935 = vadd.f32 %v1903, 0.0
        %v1936 = vadd.f32 %v1904, 0.0
        %v1937 = vadd.f32 %v1905, 0.0
        %v1938 = vadd.f32 %v1906, 0.0
        %v1939 = vadd.f32 %v1907, 0.0
        %v1940 = vadd.f32 %v1908, 0.0
        %v1941 = vadd.f32 %v1909, 0.0
        %v1942 = vadd.f32 %v1910, 0.0
        %v1943 = vadd.f32 %v1911, 0.0
        %v1944 = vadd.f32 %v1912, 0.0
        %v1945 = vadd.f32 %v1913, 0.0
        %v1946 = vadd.f32 %v1914, 0.0
        %v1947 = vadd.f32 %v1915, 0.0
        %v1948 = vadd.f32 %v1916, 0.0
        %v1949 = vadd.f32 %v1917, 0.0
        %v1950 = vadd.f32 %v1918, 0.0
        %v1951 = vadd.f32 %v1919, 0.0
        %v1952 = vadd.f32 %v1920, 0.0
        %v1953 = vld [vmem:[#allocation2 + $0x8] sm:$0xff]
        %v1954 = vld [vmem:[#allocation2 + $0x10] sm:$0xff]
        %v1955 = vld [vmem:[#allocation2 + $0x18] sm:$0xff]
        %v1956 = vld [vmem:[#allocation2 + $0x20] sm:$0xff]
        %v1957 = vld [vmem:[#allocation2 + $0x28] sm:$0xff]
        %v1958 = vld [vmem:[#allocation2 + $0x30] sm:$0xff]
        %v1959 = vld [vmem:[#allocation2 + $0x38] sm:$0xff]
        %v1960 = vld [vmem:[#allocation2 + $0x40] sm:$0xff]
        %v1961 = vld [vmem:[#allocation2 + $0x48] sm:$0xff]
        %v1962 = vld [vmem:[#allocation2 + $0x50] sm:$0xff]
        %v1963 = vld [vmem:[#allocation2 + $0x58] sm:$0xff]
        %v1964 = vld [vmem:[#allocation2 + $0x60] sm:$0xff]
        %v1965 = vld [vmem:[#allocation2 + $0x68] sm:$0xff]
        %v1966 = vld [vmem:[#allocation2 + $0x70] sm:$0xff]
        %v1967 = vld [vmem:[#allocation2 + $0x78] sm:$0xff]
        %v1968 = vld [vmem:[#allocation2 + $0x80] sm:$0xff]
        %v1969 = vld [vmem:[#allocation2 + $0x88] sm:$0xff]
        %v1970 = vld [vmem:[#allocation2 + $0x90] sm:$0xff]
        %v1971 = vld [vmem:[#allocation2 + $0x98] sm:$0xff]
        %v1972 = vld [vmem:[#allocation2 + $0xa0] sm:$0xff]
        %v1973 = vld [vmem:[#allocation2 + $0xa8] sm:$0xff]
        %v1974 = vld [vmem:[#allocation2 + $0xb0] sm:$0xff]
        %v1975 = vld [vmem:[#allocation2 + $0xb8] sm:$0xff]
        %v1976 = vld [vmem:[#allocation2 + $0xc0] sm:$0xff]
        %v1977 = vld [vmem:[#allocation2 + $0xc8] sm:$0xff]
        %v1978 = vld [vmem:[#allocation2 + $0xd0] sm:$0xff]
        %v1979 = vld [vmem:[#allocation2 + $0xd8] sm:$0xff]
        %v1980 = vld [vmem:[#allocation2 + $0xe0] sm:$0xff]
        %v1981 = vld [vmem:[#allocation2 + $0xe8] sm:$0xff]
        %v1982 = vld [vmem:[#allocation2 + $0xf0] sm:$0xff]
        %v1983 = vld [vmem:[#allocation2 + $0xf8] sm:$0xff]
        %v1984 = vld [vmem:[#allocation2 + $0x100] sm:$0xff]
        %v1985 = vpack.c.bf16 %v1954, %v1953
        %v1986 = vpack.c.bf16 %v1956, %v1955
        %v1987 = vpack.c.bf16 %v1958, %v1957
        %v1988 = vpack.c.bf16 %v1960, %v1959
        %v1989 = vpack.c.bf16 %v1962, %v1961
        %v1990 = vpack.c.bf16 %v1964, %v1963
        %v1991 = vpack.c.bf16 %v1966, %v1965
        %v1992 = vpack.c.bf16 %v1968, %v1967
        %v1993 = vpack.c.bf16 %v1970, %v1969
        %v1994 = vpack.c.bf16 %v1972, %v1971
        %v1995 = vpack.c.bf16 %v1974, %v1973
        %v1996 = vpack.c.bf16 %v1976, %v1975
        %v1997 = vpack.c.bf16 %v1978, %v1977
        %v1998 = vpack.c.bf16 %v1980, %v1979
        %v1999 = vpack.c.bf16 %v1982, %v1981
        %v2000 = vpack.c.bf16 %v1984, %v1983
        %s2001 = scalar_lea.vmem %s5, 16
        %v2002 = vld [vmem:[%s2001] sm:$0xff]
        %v2003 = vld [vmem:[%s2001 + $0x8] sm:$0xff]
        %v2004 = vpack.c.bf16 %v2003, %v2002
        %v2006 = vsel %vm693, %v1985, 0
        %v2009 = vsel %vm693, %v1986, 0
        %v2012 = vsel %vm693, %v1987, 0
        %v2015 = vsel %vm693, %v1988, 0
        %v2018 = vsel %vm693, %v1989, 0
        %v2021 = vsel %vm693, %v1990, 0
        %v2024 = vsel %vm693, %v1991, 0
        %v2027 = vsel %vm693, %v1992, 0
        %v2030 = vsel %vm693, %v1993, 0
        %v2033 = vsel %vm693, %v1994, 0
        %v2036 = vsel %vm693, %v1995, 0
        %v2039 = vsel %vm693, %v1996, 0
        %v2042 = vsel %vm693, %v1997, 0
        %v2045 = vsel %vm693, %v1998, 0
        %v2048 = vsel %vm693, %v1999, 0
        %v2051 = vsel %vm693, %v2000, 0
        %2053 = vmatprep.subr.bf16.mxu0 0
        %2054 = vmatpush1.bf16.msra.mxu0 0
        %2055 = vmatprep.subr.bf16.mxu0 0
        %2056 = vmatpush1.bf16.msra.mxu0 0
        %2057 = vmatprep.subr.bf16.mxu0 0
        %2058 = vmatpush1.bf16.msra.mxu0 0
        %2059 = vmatprep.subr.bf16.mxu0 0
        %2060 = vmatpush1.bf16.msra.mxu0 0
        %2061 = vmatprep.subr.bf16.mxu0 0
        %2062 = vmatpush1.bf16.msra.mxu0 0
        %2063 = vmatprep.subr.bf16.mxu0 0
        %2064 = vmatpush1.bf16.msra.mxu0 0
        %2065 = vmatprep.subr.bf16.mxu0 0
        %2066 = vmatpush1.bf16.msra.mxu0 0
        %2067 = vmatprep.subr.bf16.mxu0 0
        %2068 = vmatpush1.bf16.msra.mxu0 %v2004
        %2069 = vmatprep.subr.bf16.mxu0 0
        %2070 = vmatpush2.bf16.msra.mxu0 0
        %2071 = vmatprep.subr.bf16.mxu0 0
        %2072 = vmatpush2.bf16.msra.mxu0 0
        %2073 = vmatprep.subr.bf16.mxu0 0
        %2074 = vmatpush2.bf16.msra.mxu0 0
        %2075 = vmatprep.subr.bf16.mxu0 0
        %2076 = vmatpush2.bf16.msra.mxu0 0
        %2077 = vmatprep.subr.bf16.mxu0 0
        %2078 = vmatpush2.bf16.msra.mxu0 0
        %2079 = vmatprep.subr.bf16.mxu0 0
        %2080 = vmatpush2.bf16.msra.mxu0 0
        %2081 = vmatprep.subr.bf16.mxu0 0
        %2082 = vmatpush2.bf16.msra.mxu0 0
        %2083 = vmatprep.subr.bf16.mxu0 0
        %2084 = vmatpush2.bf16.msra.mxu0 0
        %2085 = vmatprep.mubr.bf16.mxu0 0
        %2086 = vmatmul.mubr.bf16.gmra.mxu0 %v2006
        %v2087 = vpop.f32.mrf.mxu0
        %v2088 = vadd.f32 0.0, %v2087
        %v2089 = vpop.f32.mrf.mxu0
        %v2090 = vpop.f32.mrf.mxu0
        %v2091 = vadd.f32 0.0, %v2090
        %v2092 = vpop.f32.mrf.mxu0
        %2093 = vmatprep.mubr.bf16.mxu0 0
        %2094 = vmatmul.mubr.bf16.gmra.mxu0 %v2009
        %v2095 = vpop.f32.mrf.mxu0
        %v2096 = vadd.f32 0.0, %v2095
        %v2097 = vpop.f32.mrf.mxu0
        %v2098 = vpop.f32.mrf.mxu0
        %v2099 = vadd.f32 0.0, %v2098
        %v2100 = vpop.f32.mrf.mxu0
        %2101 = vmatprep.mubr.bf16.mxu0 0
        %2102 = vmatmul.mubr.bf16.gmra.mxu0 %v2012
        %v2103 = vpop.f32.mrf.mxu0
        %v2104 = vadd.f32 0.0, %v2103
        %v2105 = vpop.f32.mrf.mxu0
        %v2106 = vpop.f32.mrf.mxu0
        %v2107 = vadd.f32 0.0, %v2106
        %v2108 = vpop.f32.mrf.mxu0
        %2109 = vmatprep.mubr.bf16.mxu0 0
        %2110 = vmatmul.mubr.bf16.gmra.mxu0 %v2015
        %v2111 = vpop.f32.mrf.mxu0
        %v2112 = vadd.f32 0.0, %v2111
        %v2113 = vpop.f32.mrf.mxu0
        %v2114 = vpop.f32.mrf.mxu0
        %v2115 = vadd.f32 0.0, %v2114
        %v2116 = vpop.f32.mrf.mxu0
        %2117 = vmatprep.mubr.bf16.mxu0 0
        %2118 = vmatmul.mubr.bf16.gmra.mxu0 %v2018
        %v2119 = vpop.f32.mrf.mxu0
        %v2120 = vadd.f32 0.0, %v2119
        %v2121 = vpop.f32.mrf.mxu0
        %v2122 = vpop.f32.mrf.mxu0
        %v2123 = vadd.f32 0.0, %v2122
        %v2124 = vpop.f32.mrf.mxu0
        %2125 = vmatprep.mubr.bf16.mxu0 0
        %2126 = vmatmul.mubr.bf16.gmra.mxu0 %v2021
        %v2127 = vpop.f32.mrf.mxu0
        %v2128 = vadd.f32 0.0, %v2127
        %v2129 = vpop.f32.mrf.mxu0
        %v2130 = vpop.f32.mrf.mxu0
        %v2131 = vadd.f32 0.0, %v2130
        %v2132 = vpop.f32.mrf.mxu0
        %2133 = vmatprep.mubr.bf16.mxu0 0
        %2134 = vmatmul.mubr.bf16.gmra.mxu0 %v2024
        %v2135 = vpop.f32.mrf.mxu0
        %v2136 = vadd.f32 0.0, %v2135
        %v2137 = vpop.f32.mrf.mxu0
        %v2138 = vpop.f32.mrf.mxu0
        %v2139 = vadd.f32 0.0, %v2138
        %v2140 = vpop.f32.mrf.mxu0
        %2141 = vmatprep.mubr.bf16.mxu0 0
        %2142 = vmatmul.mubr.bf16.gmra.mxu0 %v2027
        %v2143 = vpop.f32.mrf.mxu0
        %v2144 = vadd.f32 0.0, %v2143
        %v2145 = vpop.f32.mrf.mxu0
        %v2146 = vpop.f32.mrf.mxu0
        %v2147 = vadd.f32 0.0, %v2146
        %v2148 = vpop.f32.mrf.mxu0
        %2149 = vmatprep.mubr.bf16.mxu0 0
        %2150 = vmatmul.mubr.bf16.gmra.mxu0 %v2030
        %v2151 = vpop.f32.mrf.mxu0
        %v2152 = vadd.f32 0.0, %v2151
        %v2153 = vpop.f32.mrf.mxu0
        %v2154 = vpop.f32.mrf.mxu0
        %v2155 = vadd.f32 0.0, %v2154
        %v2156 = vpop.f32.mrf.mxu0
        %2157 = vmatprep.mubr.bf16.mxu0 0
        %2158 = vmatmul.mubr.bf16.gmra.mxu0 %v2033
        %v2159 = vpop.f32.mrf.mxu0
        %v2160 = vadd.f32 0.0, %v2159
        %v2161 = vpop.f32.mrf.mxu0
        %v2162 = vpop.f32.mrf.mxu0
        %v2163 = vadd.f32 0.0, %v2162
        %v2164 = vpop.f32.mrf.mxu0
        %2165 = vmatprep.mubr.bf16.mxu0 0
        %2166 = vmatmul.mubr.bf16.gmra.mxu0 %v2036
        %v2167 = vpop.f32.mrf.mxu0
        %v2168 = vadd.f32 0.0, %v2167
        %v2169 = vpop.f32.mrf.mxu0
        %v2170 = vpop.f32.mrf.mxu0
        %v2171 = vadd.f32 0.0, %v2170
        %v2172 = vpop.f32.mrf.mxu0
        %2173 = vmatprep.mubr.bf16.mxu0 0
        %2174 = vmatmul.mubr.bf16.gmra.mxu0 %v2039
        %v2175 = vpop.f32.mrf.mxu0
        %v2176 = vadd.f32 0.0, %v2175
        %v2177 = vpop.f32.mrf.mxu0
        %v2178 = vpop.f32.mrf.mxu0
        %v2179 = vadd.f32 0.0, %v2178
        %v2180 = vpop.f32.mrf.mxu0
        %2181 = vmatprep.mubr.bf16.mxu0 0
        %2182 = vmatmul.mubr.bf16.gmra.mxu0 %v2042
        %v2183 = vpop.f32.mrf.mxu0
        %v2184 = vadd.f32 0.0, %v2183
        %v2185 = vpop.f32.mrf.mxu0
        %v2186 = vpop.f32.mrf.mxu0
        %v2187 = vadd.f32 0.0, %v2186
        %v2188 = vpop.f32.mrf.mxu0
        %2189 = vmatprep.mubr.bf16.mxu0 0
        %2190 = vmatmul.mubr.bf16.gmra.mxu0 %v2045
        %v2191 = vpop.f32.mrf.mxu0
        %v2192 = vadd.f32 0.0, %v2191
        %v2193 = vpop.f32.mrf.mxu0
        %v2194 = vpop.f32.mrf.mxu0
        %v2195 = vadd.f32 0.0, %v2194
        %v2196 = vpop.f32.mrf.mxu0
        %2197 = vmatprep.mubr.bf16.mxu0 0
        %2198 = vmatmul.mubr.bf16.gmra.mxu0 %v2048
        %v2199 = vpop.f32.mrf.mxu0
        %v2200 = vadd.f32 0.0, %v2199
        %v2201 = vpop.f32.mrf.mxu0
        %v2202 = vpop.f32.mrf.mxu0
        %v2203 = vadd.f32 0.0, %v2202
        %v2204 = vpop.f32.mrf.mxu0
        %2205 = vmatprep.mubr.bf16.mxu0 0
        %2206 = vmatmul.mubr.bf16.gmra.mxu0 %v2051
        %v2207 = vpop.f32.mrf.mxu0
        %v2208 = vadd.f32 0.0, %v2207
        %v2209 = vpop.f32.mrf.mxu0
        %v2210 = vpop.f32.mrf.mxu0
        %v2211 = vadd.f32 0.0, %v2210
        %v2212 = vpop.f32.mrf.mxu0
        %2213 = vdwg.mxu0
        %v2214 = vadd.f32 %v1921, %v2088
        %v2215 = vadd.f32 %v1922, %v2091
        %v2216 = vadd.f32 %v1923, %v2096
        %v2217 = vadd.f32 %v1924, %v2099
        %v2218 = vadd.f32 %v1925, %v2104
        %v2219 = vadd.f32 %v1926, %v2107
        %v2220 = vadd.f32 %v1927, %v2112
        %v2221 = vadd.f32 %v1928, %v2115
        %v2222 = vadd.f32 %v1929, %v2120
        %v2223 = vadd.f32 %v1930, %v2123
        %v2224 = vadd.f32 %v1931, %v2128
        %v2225 = vadd.f32 %v1932, %v2131
        %v2226 = vadd.f32 %v1933, %v2136
        %v2227 = vadd.f32 %v1934, %v2139
        %v2228 = vadd.f32 %v1935, %v2144
        %v2229 = vadd.f32 %v1936, %v2147
        %v2230 = vadd.f32 %v1937, %v2152
        %v2231 = vadd.f32 %v1938, %v2155
        %v2232 = vadd.f32 %v1939, %v2160
        %v2233 = vadd.f32 %v1940, %v2163
        %v2234 = vadd.f32 %v1941, %v2168
        %v2235 = vadd.f32 %v1942, %v2171
        %v2236 = vadd.f32 %v1943, %v2176
        %v2237 = vadd.f32 %v1944, %v2179
        %v2238 = vadd.f32 %v1945, %v2184
        %v2239 = vadd.f32 %v1946, %v2187
        %v2240 = vadd.f32 %v1947, %v2192
        %v2241 = vadd.f32 %v1948, %v2195
        %v2242 = vadd.f32 %v1949, %v2200
        %v2243 = vadd.f32 %v1950, %v2203
        %v2244 = vadd.f32 %v1951, %v2208
        %v2245 = vadd.f32 %v1952, %v2211
        %v2246 = vld [vmem:[#allocation2 + $0x9] sm:$0xff]
        %v2247 = vld [vmem:[#allocation2 + $0x11] sm:$0xff]
        %v2248 = vld [vmem:[#allocation2 + $0x19] sm:$0xff]
        %v2249 = vld [vmem:[#allocation2 + $0x21] sm:$0xff]
        %v2250 = vld [vmem:[#allocation2 + $0x29] sm:$0xff]
        %v2251 = vld [vmem:[#allocation2 + $0x31] sm:$0xff]
        %v2252 = vld [vmem:[#allocation2 + $0x39] sm:$0xff]
        %v2253 = vld [vmem:[#allocation2 + $0x41] sm:$0xff]
        %v2254 = vld [vmem:[#allocation2 + $0x49] sm:$0xff]
        %v2255 = vld [vmem:[#allocation2 + $0x51] sm:$0xff]
        %v2256 = vld [vmem:[#allocation2 + $0x59] sm:$0xff]
        %v2257 = vld [vmem:[#allocation2 + $0x61] sm:$0xff]
        %v2258 = vld [vmem:[#allocation2 + $0x69] sm:$0xff]
        %v2259 = vld [vmem:[#allocation2 + $0x71] sm:$0xff]
        %v2260 = vld [vmem:[#allocation2 + $0x79] sm:$0xff]
        %v2261 = vld [vmem:[#allocation2 + $0x81] sm:$0xff]
        %v2262 = vld [vmem:[#allocation2 + $0x89] sm:$0xff]
        %v2263 = vld [vmem:[#allocation2 + $0x91] sm:$0xff]
        %v2264 = vld [vmem:[#allocation2 + $0x99] sm:$0xff]
        %v2265 = vld [vmem:[#allocation2 + $0xa1] sm:$0xff]
        %v2266 = vld [vmem:[#allocation2 + $0xa9] sm:$0xff]
        %v2267 = vld [vmem:[#allocation2 + $0xb1] sm:$0xff]
        %v2268 = vld [vmem:[#allocation2 + $0xb9] sm:$0xff]
        %v2269 = vld [vmem:[#allocation2 + $0xc1] sm:$0xff]
        %v2270 = vld [vmem:[#allocation2 + $0xc9] sm:$0xff]
        %v2271 = vld [vmem:[#allocation2 + $0xd1] sm:$0xff]
        %v2272 = vld [vmem:[#allocation2 + $0xd9] sm:$0xff]
        %v2273 = vld [vmem:[#allocation2 + $0xe1] sm:$0xff]
        %v2274 = vld [vmem:[#allocation2 + $0xe9] sm:$0xff]
        %v2275 = vld [vmem:[#allocation2 + $0xf1] sm:$0xff]
        %v2276 = vld [vmem:[#allocation2 + $0xf9] sm:$0xff]
        %v2277 = vld [vmem:[#allocation2 + $0x101] sm:$0xff]
        %v2278 = vpack.c.bf16 %v2247, %v2246
        %v2279 = vpack.c.bf16 %v2249, %v2248
        %v2280 = vpack.c.bf16 %v2251, %v2250
        %v2281 = vpack.c.bf16 %v2253, %v2252
        %v2282 = vpack.c.bf16 %v2255, %v2254
        %v2283 = vpack.c.bf16 %v2257, %v2256
        %v2284 = vpack.c.bf16 %v2259, %v2258
        %v2285 = vpack.c.bf16 %v2261, %v2260
        %v2286 = vpack.c.bf16 %v2263, %v2262
        %v2287 = vpack.c.bf16 %v2265, %v2264
        %v2288 = vpack.c.bf16 %v2267, %v2266
        %v2289 = vpack.c.bf16 %v2269, %v2268
        %v2290 = vpack.c.bf16 %v2271, %v2270
        %v2291 = vpack.c.bf16 %v2273, %v2272
        %v2292 = vpack.c.bf16 %v2275, %v2274
        %v2293 = vpack.c.bf16 %v2277, %v2276
        %s2294 = scalar_lea.vmem %s5, 32
        %v2295 = vld [vmem:[%s2294] sm:$0xff]
        %v2296 = vld [vmem:[%s2294 + $0x8] sm:$0xff]
        %v2297 = vpack.c.bf16 %v2296, %v2295
        %v2299 = vsel %vm693, %v2278, 0
        %v2302 = vsel %vm693, %v2279, 0
        %v2305 = vsel %vm693, %v2280, 0
        %v2308 = vsel %vm693, %v2281, 0
        %v2311 = vsel %vm693, %v2282, 0
        %v2314 = vsel %vm693, %v2283, 0
        %v2317 = vsel %vm693, %v2284, 0
        %v2320 = vsel %vm693, %v2285, 0
        %v2323 = vsel %vm693, %v2286, 0
        %v2326 = vsel %vm693, %v2287, 0
        %v2329 = vsel %vm693, %v2288, 0
        %v2332 = vsel %vm693, %v2289, 0
        %v2335 = vsel %vm693, %v2290, 0
        %v2338 = vsel %vm693, %v2291, 0
        %v2341 = vsel %vm693, %v2292, 0
        %v2344 = vsel %vm693, %v2293, 0
        %2346 = vmatprep.subr.bf16.mxu0 0
        %2347 = vmatpush1.bf16.msra.mxu0 0
        %2348 = vmatprep.subr.bf16.mxu0 0
        %2349 = vmatpush1.bf16.msra.mxu0 0
        %2350 = vmatprep.subr.bf16.mxu0 0
        %2351 = vmatpush1.bf16.msra.mxu0 0
        %2352 = vmatprep.subr.bf16.mxu0 0
        %2353 = vmatpush1.bf16.msra.mxu0 0
        %2354 = vmatprep.subr.bf16.mxu0 0
        %2355 = vmatpush1.bf16.msra.mxu0 0
        %2356 = vmatprep.subr.bf16.mxu0 0
        %2357 = vmatpush1.bf16.msra.mxu0 0
        %2358 = vmatprep.subr.bf16.mxu0 0
        %2359 = vmatpush1.bf16.msra.mxu0 0
        %2360 = vmatprep.subr.bf16.mxu0 0
        %2361 = vmatpush1.bf16.msra.mxu0 %v2297
        %2362 = vmatprep.subr.bf16.mxu0 0
        %2363 = vmatpush2.bf16.msra.mxu0 0
        %2364 = vmatprep.subr.bf16.mxu0 0
        %2365 = vmatpush2.bf16.msra.mxu0 0
        %2366 = vmatprep.subr.bf16.mxu0 0
        %2367 = vmatpush2.bf16.msra.mxu0 0
        %2368 = vmatprep.subr.bf16.mxu0 0
        %2369 = vmatpush2.bf16.msra.mxu0 0
        %2370 = vmatprep.subr.bf16.mxu0 0
        %2371 = vmatpush2.bf16.msra.mxu0 0
        %2372 = vmatprep.subr.bf16.mxu0 0
        %2373 = vmatpush2.bf16.msra.mxu0 0
        %2374 = vmatprep.subr.bf16.mxu0 0
        %2375 = vmatpush2.bf16.msra.mxu0 0
        %2376 = vmatprep.subr.bf16.mxu0 0
        %2377 = vmatpush2.bf16.msra.mxu0 0
        %2378 = vmatprep.mubr.bf16.mxu0 0
        %2379 = vmatmul.mubr.bf16.gmra.mxu0 %v2299
        %v2380 = vpop.f32.mrf.mxu0
        %v2381 = vadd.f32 0.0, %v2380
        %v2382 = vpop.f32.mrf.mxu0
        %v2383 = vpop.f32.mrf.mxu0
        %v2384 = vadd.f32 0.0, %v2383
        %v2385 = vpop.f32.mrf.mxu0
        %2386 = vmatprep.mubr.bf16.mxu0 0
        %2387 = vmatmul.mubr.bf16.gmra.mxu0 %v2302
        %v2388 = vpop.f32.mrf.mxu0
        %v2389 = vadd.f32 0.0, %v2388
        %v2390 = vpop.f32.mrf.mxu0
        %v2391 = vpop.f32.mrf.mxu0
        %v2392 = vadd.f32 0.0, %v2391
        %v2393 = vpop.f32.mrf.mxu0
        %2394 = vmatprep.mubr.bf16.mxu0 0
        %2395 = vmatmul.mubr.bf16.gmra.mxu0 %v2305
        %v2396 = vpop.f32.mrf.mxu0
        %v2397 = vadd.f32 0.0, %v2396
        %v2398 = vpop.f32.mrf.mxu0
        %v2399 = vpop.f32.mrf.mxu0
        %v2400 = vadd.f32 0.0, %v2399
        %v2401 = vpop.f32.mrf.mxu0
        %2402 = vmatprep.mubr.bf16.mxu0 0
        %2403 = vmatmul.mubr.bf16.gmra.mxu0 %v2308
        %v2404 = vpop.f32.mrf.mxu0
        %v2405 = vadd.f32 0.0, %v2404
        %v2406 = vpop.f32.mrf.mxu0
        %v2407 = vpop.f32.mrf.mxu0
        %v2408 = vadd.f32 0.0, %v2407
        %v2409 = vpop.f32.mrf.mxu0
        %2410 = vmatprep.mubr.bf16.mxu0 0
        %2411 = vmatmul.mubr.bf16.gmra.mxu0 %v2311
        %v2412 = vpop.f32.mrf.mxu0
        %v2413 = vadd.f32 0.0, %v2412
        %v2414 = vpop.f32.mrf.mxu0
        %v2415 = vpop.f32.mrf.mxu0
        %v2416 = vadd.f32 0.0, %v2415
        %v2417 = vpop.f32.mrf.mxu0
        %2418 = vmatprep.mubr.bf16.mxu0 0
        %2419 = vmatmul.mubr.bf16.gmra.mxu0 %v2314
        %v2420 = vpop.f32.mrf.mxu0
        %v2421 = vadd.f32 0.0, %v2420
        %v2422 = vpop.f32.mrf.mxu0
        %v2423 = vpop.f32.mrf.mxu0
        %v2424 = vadd.f32 0.0, %v2423
        %v2425 = vpop.f32.mrf.mxu0
        %2426 = vmatprep.mubr.bf16.mxu0 0
        %2427 = vmatmul.mubr.bf16.gmra.mxu0 %v2317
        %v2428 = vpop.f32.mrf.mxu0
        %v2429 = vadd.f32 0.0, %v2428
        %v2430 = vpop.f32.mrf.mxu0
        %v2431 = vpop.f32.mrf.mxu0
        %v2432 = vadd.f32 0.0, %v2431
        %v2433 = vpop.f32.mrf.mxu0
        %2434 = vmatprep.mubr.bf16.mxu0 0
        %2435 = vmatmul.mubr.bf16.gmra.mxu0 %v2320
        %v2436 = vpop.f32.mrf.mxu0
        %v2437 = vadd.f32 0.0, %v2436
        %v2438 = vpop.f32.mrf.mxu0
        %v2439 = vpop.f32.mrf.mxu0
        %v2440 = vadd.f32 0.0, %v2439
        %v2441 = vpop.f32.mrf.mxu0
        %2442 = vmatprep.mubr.bf16.mxu0 0
        %2443 = vmatmul.mubr.bf16.gmra.mxu0 %v2323
        %v2444 = vpop.f32.mrf.mxu0
        %v2445 = vadd.f32 0.0, %v2444
        %v2446 = vpop.f32.mrf.mxu0
        %v2447 = vpop.f32.mrf.mxu0
        %v2448 = vadd.f32 0.0, %v2447
        %v2449 = vpop.f32.mrf.mxu0
        %2450 = vmatprep.mubr.bf16.mxu0 0
        %2451 = vmatmul.mubr.bf16.gmra.mxu0 %v2326
        %v2452 = vpop.f32.mrf.mxu0
        %v2453 = vadd.f32 0.0, %v2452
        %v2454 = vpop.f32.mrf.mxu0
        %v2455 = vpop.f32.mrf.mxu0
        %v2456 = vadd.f32 0.0, %v2455
        %v2457 = vpop.f32.mrf.mxu0
        %2458 = vmatprep.mubr.bf16.mxu0 0
        %2459 = vmatmul.mubr.bf16.gmra.mxu0 %v2329
        %v2460 = vpop.f32.mrf.mxu0
        %v2461 = vadd.f32 0.0, %v2460
        %v2462 = vpop.f32.mrf.mxu0
        %v2463 = vpop.f32.mrf.mxu0
        %v2464 = vadd.f32 0.0, %v2463
        %v2465 = vpop.f32.mrf.mxu0
        %2466 = vmatprep.mubr.bf16.mxu0 0
        %2467 = vmatmul.mubr.bf16.gmra.mxu0 %v2332
        %v2468 = vpop.f32.mrf.mxu0
        %v2469 = vadd.f32 0.0, %v2468
        %v2470 = vpop.f32.mrf.mxu0
        %v2471 = vpop.f32.mrf.mxu0
        %v2472 = vadd.f32 0.0, %v2471
        %v2473 = vpop.f32.mrf.mxu0
        %2474 = vmatprep.mubr.bf16.mxu0 0
        %2475 = vmatmul.mubr.bf16.gmra.mxu0 %v2335
        %v2476 = vpop.f32.mrf.mxu0
        %v2477 = vadd.f32 0.0, %v2476
        %v2478 = vpop.f32.mrf.mxu0
        %v2479 = vpop.f32.mrf.mxu0
        %v2480 = vadd.f32 0.0, %v2479
        %v2481 = vpop.f32.mrf.mxu0
        %2482 = vmatprep.mubr.bf16.mxu0 0
        %2483 = vmatmul.mubr.bf16.gmra.mxu0 %v2338
        %v2484 = vpop.f32.mrf.mxu0
        %v2485 = vadd.f32 0.0, %v2484
        %v2486 = vpop.f32.mrf.mxu0
        %v2487 = vpop.f32.mrf.mxu0
        %v2488 = vadd.f32 0.0, %v2487
        %v2489 = vpop.f32.mrf.mxu0
        %2490 = vmatprep.mubr.bf16.mxu0 0
        %2491 = vmatmul.mubr.bf16.gmra.mxu0 %v2341
        %v2492 = vpop.f32.mrf.mxu0
        %v2493 = vadd.f32 0.0, %v2492
        %v2494 = vpop.f32.mrf.mxu0
        %v2495 = vpop.f32.mrf.mxu0
        %v2496 = vadd.f32 0.0, %v2495
        %v2497 = vpop.f32.mrf.mxu0
        %2498 = vmatprep.mubr.bf16.mxu0 0
        %2499 = vmatmul.mubr.bf16.gmra.mxu0 %v2344
        %v2500 = vpop.f32.mrf.mxu0
        %v2501 = vadd.f32 0.0, %v2500
        %v2502 = vpop.f32.mrf.mxu0
        %v2503 = vpop.f32.mrf.mxu0
        %v2504 = vadd.f32 0.0, %v2503
        %v2505 = vpop.f32.mrf.mxu0
        %2506 = vdwg.mxu0
        %v2507 = vsel %vm1533, 1, 0
        %v2508 = vsel %vm1534, 1, 0
        %v2509 = vsel %vm1535, 1, 0
        %v2510 = vsel %vm1536, 1, 0
        %v2511 = vsel %vm1537, 1, 0
        %v2512 = vsel %vm1538, 1, 0
        %v2513 = vsel %vm1539, 1, 0
        %v2514 = vsel %vm1540, 1, 0
        %v2515 = vsel %vm1541, 1, 0
        %v2516 = vsel %vm1542, 1, 0
        %v2517 = vsel %vm1543, 1, 0
        %v2518 = vsel %vm1544, 1, 0
        %v2519 = vsel %vm1545, 1, 0
        %v2520 = vsel %vm1546, 1, 0
        %v2521 = vsel %vm1547, 1, 0
        %v2522 = vsel %vm1548, 1, 0
        %v2523 = vsel %vm1549, 1, 0
        %v2524 = vsel %vm1550, 1, 0
        %v2525 = vsel %vm1551, 1, 0
        %v2526 = vsel %vm1552, 1, 0
        %v2527 = vsel %vm1553, 1, 0
        %v2528 = vsel %vm1554, 1, 0
        %v2529 = vsel %vm1555, 1, 0
        %v2530 = vsel %vm1556, 1, 0
        %v2531 = vsel %vm1557, 1, 0
        %v2532 = vsel %vm1558, 1, 0
        %v2533 = vsel %vm1559, 1, 0
        %v2534 = vsel %vm1560, 1, 0
        %v2535 = vsel %vm1561, 1, 0
        %v2536 = vsel %vm1562, 1, 0
        %v2537 = vsel %vm1563, 1, 0
        %v2538 = vsel %vm1564, 1, 0
        %vm2539 = vcmp.eq.s32.totalorder %v2507, 1
        %vm2540 = vcmp.eq.s32.totalorder %v2508, 1
        %vm2541 = vcmp.eq.s32.totalorder %v2509, 1
        %vm2542 = vcmp.eq.s32.totalorder %v2510, 1
        %vm2543 = vcmp.eq.s32.totalorder %v2511, 1
        %vm2544 = vcmp.eq.s32.totalorder %v2512, 1
        %vm2545 = vcmp.eq.s32.totalorder %v2513, 1
        %vm2546 = vcmp.eq.s32.totalorder %v2514, 1
        %vm2547 = vcmp.eq.s32.totalorder %v2515, 1
        %vm2548 = vcmp.eq.s32.totalorder %v2516, 1
        %vm2549 = vcmp.eq.s32.totalorder %v2517, 1
        %vm2550 = vcmp.eq.s32.totalorder %v2518, 1
        %vm2551 = vcmp.eq.s32.totalorder %v2519, 1
        %vm2552 = vcmp.eq.s32.totalorder %v2520, 1
        %vm2553 = vcmp.eq.s32.totalorder %v2521, 1
        %vm2554 = vcmp.eq.s32.totalorder %v2522, 1
        %vm2555 = vcmp.eq.s32.totalorder %v2523, 1
        %vm2556 = vcmp.eq.s32.totalorder %v2524, 1
        %vm2557 = vcmp.eq.s32.totalorder %v2525, 1
        %vm2558 = vcmp.eq.s32.totalorder %v2526, 1
        %vm2559 = vcmp.eq.s32.totalorder %v2527, 1
        %vm2560 = vcmp.eq.s32.totalorder %v2528, 1
        %vm2561 = vcmp.eq.s32.totalorder %v2529, 1
        %vm2562 = vcmp.eq.s32.totalorder %v2530, 1
        %vm2563 = vcmp.eq.s32.totalorder %v2531, 1
        %vm2564 = vcmp.eq.s32.totalorder %v2532, 1
        %vm2565 = vcmp.eq.s32.totalorder %v2533, 1
        %vm2566 = vcmp.eq.s32.totalorder %v2534, 1
        %vm2567 = vcmp.eq.s32.totalorder %v2535, 1
        %vm2568 = vcmp.eq.s32.totalorder %v2536, 1
        %vm2569 = vcmp.eq.s32.totalorder %v2537, 1
        %vm2570 = vcmp.eq.s32.totalorder %v2538, 1
        %v2571 = vsel %vm2539, %v2381, 0.0
        %v2572 = vsel %vm2540, %v2384, 0.0
        %v2573 = vsel %vm2541, %v2389, 0.0
        %v2574 = vsel %vm2542, %v2392, 0.0
        %v2575 = vsel %vm2543, %v2397, 0.0
        %v2576 = vsel %vm2544, %v2400, 0.0
        %v2577 = vsel %vm2545, %v2405, 0.0
        %v2578 = vsel %vm2546, %v2408, 0.0
        %v2579 = vsel %vm2547, %v2413, 0.0
        %v2580 = vsel %vm2548, %v2416, 0.0
        %v2581 = vsel %vm2549, %v2421, 0.0
        %v2582 = vsel %vm2550, %v2424, 0.0
        %v2583 = vsel %vm2551, %v2429, 0.0
        %v2584 = vsel %vm2552, %v2432, 0.0
        %v2585 = vsel %vm2553, %v2437, 0.0
        %v2586 = vsel %vm2554, %v2440, 0.0
        %v2587 = vsel %vm2555, %v2445, 0.0
        %v2588 = vsel %vm2556, %v2448, 0.0
        %v2589 = vsel %vm2557, %v2453, 0.0
        %v2590 = vsel %vm2558, %v2456, 0.0
        %v2591 = vsel %vm2559, %v2461, 0.0
        %v2592 = vsel %vm2560, %v2464, 0.0
        %v2593 = vsel %vm2561, %v2469, 0.0
        %v2594 = vsel %vm2562, %v2472, 0.0
        %v2595 = vsel %vm2563, %v2477, 0.0
        %v2596 = vsel %vm2564, %v2480, 0.0
        %v2597 = vsel %vm2565, %v2485, 0.0
        %v2598 = vsel %vm2566, %v2488, 0.0
        %v2599 = vsel %vm2567, %v2493, 0.0
        %v2600 = vsel %vm2568, %v2496, 0.0
        %v2601 = vsel %vm2569, %v2501, 0.0
        %v2602 = vsel %vm2570, %v2504, 0.0
        %v2603 = vadd.f32 %v2214, %v2571
        %v2604 = vadd.f32 %v2215, %v2572
        %v2605 = vadd.f32 %v2216, %v2573
        %v2606 = vadd.f32 %v2217, %v2574
        %v2607 = vadd.f32 %v2218, %v2575
        %v2608 = vadd.f32 %v2219, %v2576
        %v2609 = vadd.f32 %v2220, %v2577
        %v2610 = vadd.f32 %v2221, %v2578
        %v2611 = vadd.f32 %v2222, %v2579
        %v2612 = vadd.f32 %v2223, %v2580
        %v2613 = vadd.f32 %v2224, %v2581
        %v2614 = vadd.f32 %v2225, %v2582
        %v2615 = vadd.f32 %v2226, %v2583
        %v2616 = vadd.f32 %v2227, %v2584
        %v2617 = vadd.f32 %v2228, %v2585
        %v2618 = vadd.f32 %v2229, %v2586
        %v2619 = vadd.f32 %v2230, %v2587
        %v2620 = vadd.f32 %v2231, %v2588
        %v2621 = vadd.f32 %v2232, %v2589
        %v2622 = vadd.f32 %v2233, %v2590
        %v2623 = vadd.f32 %v2234, %v2591
        %v2624 = vadd.f32 %v2235, %v2592
        %v2625 = vadd.f32 %v2236, %v2593
        %v2626 = vadd.f32 %v2237, %v2594
        %v2627 = vadd.f32 %v2238, %v2595
        %v2628 = vadd.f32 %v2239, %v2596
        %v2629 = vadd.f32 %v2240, %v2597
        %v2630 = vadd.f32 %v2241, %v2598
        %v2631 = vadd.f32 %v2242, %v2599
        %v2632 = vadd.f32 %v2243, %v2600
        %v2633 = vadd.f32 %v2244, %v2601
        %v2634 = vadd.f32 %v2245, %v2602
        %v2635 = vld [vmem:[#allocation2 + $0x17] sm:$0xff]
        %v2636 = vld [vmem:[#allocation2 + $0x1f] sm:$0xff]
        %v2637 = vld [vmem:[#allocation2 + $0x27] sm:$0xff]
        %v2638 = vld [vmem:[#allocation2 + $0x2f] sm:$0xff]
        %v2639 = vld [vmem:[#allocation2 + $0x37] sm:$0xff]
        %v2640 = vld [vmem:[#allocation2 + $0x3f] sm:$0xff]
        %v2641 = vld [vmem:[#allocation2 + $0x47] sm:$0xff]
        %v2642 = vld [vmem:[#allocation2 + $0x4f] sm:$0xff]
        %v2643 = vld [vmem:[#allocation2 + $0x57] sm:$0xff]
        %v2644 = vld [vmem:[#allocation2 + $0x5f] sm:$0xff]
        %v2645 = vld [vmem:[#allocation2 + $0x67] sm:$0xff]
        %v2646 = vld [vmem:[#allocation2 + $0x6f] sm:$0xff]
        %v2647 = vld [vmem:[#allocation2 + $0x77] sm:$0xff]
        %v2648 = vld [vmem:[#allocation2 + $0x7f] sm:$0xff]
        %v2649 = vld [vmem:[#allocation2 + $0x87] sm:$0xff]
        %v2650 = vld [vmem:[#allocation2 + $0x8f] sm:$0xff]
        %v2651 = vld [vmem:[#allocation2 + $0x97] sm:$0xff]
        %v2652 = vld [vmem:[#allocation2 + $0x9f] sm:$0xff]
        %v2653 = vld [vmem:[#allocation2 + $0xa7] sm:$0xff]
        %v2654 = vld [vmem:[#allocation2 + $0xaf] sm:$0xff]
        %v2655 = vld [vmem:[#allocation2 + $0xb7] sm:$0xff]
        %v2656 = vld [vmem:[#allocation2 + $0xbf] sm:$0xff]
        %v2657 = vld [vmem:[#allocation2 + $0xc7] sm:$0xff]
        %v2658 = vld [vmem:[#allocation2 + $0xcf] sm:$0xff]
        %v2659 = vld [vmem:[#allocation2 + $0xd7] sm:$0xff]
        %v2660 = vld [vmem:[#allocation2 + $0xdf] sm:$0xff]
        %v2661 = vld [vmem:[#allocation2 + $0xe7] sm:$0xff]
        %v2662 = vld [vmem:[#allocation2 + $0xef] sm:$0xff]
        %v2663 = vld [vmem:[#allocation2 + $0xf7] sm:$0xff]
        %v2664 = vld [vmem:[#allocation2 + $0xff] sm:$0xff]
        %v2665 = vld [vmem:[#allocation2 + $0x107] sm:$0xff]
        %v2666 = vld [vmem:[#allocation2 + $0x10f] sm:$0xff]
        %v2667 = vpack.c.bf16 %v2636, %v2635
        %v2668 = vpack.c.bf16 %v2638, %v2637
        %v2669 = vpack.c.bf16 %v2640, %v2639
        %v2670 = vpack.c.bf16 %v2642, %v2641
        %v2671 = vpack.c.bf16 %v2644, %v2643
        %v2672 = vpack.c.bf16 %v2646, %v2645
        %v2673 = vpack.c.bf16 %v2648, %v2647
        %v2674 = vpack.c.bf16 %v2650, %v2649
        %v2675 = vpack.c.bf16 %v2652, %v2651
        %v2676 = vpack.c.bf16 %v2654, %v2653
        %v2677 = vpack.c.bf16 %v2656, %v2655
        %v2678 = vpack.c.bf16 %v2658, %v2657
        %v2679 = vpack.c.bf16 %v2660, %v2659
        %v2680 = vpack.c.bf16 %v2662, %v2661
        %v2681 = vpack.c.bf16 %v2664, %v2663
        %v2682 = vpack.c.bf16 %v2666, %v2665
        %s2683 = scalar_lea.vmem %s5, 48
        %v2684 = vld [vmem:[%s2683] sm:$0xff]
        %v2685 = vld [vmem:[%s2683 + $0x8] sm:$0xff]
        %v2686 = vpack.c.bf16 %v2685, %v2684
        %v2688 = vsel %vm693, %v2667, 0
        %v2691 = vsel %vm693, %v2668, 0
        %v2694 = vsel %vm693, %v2669, 0
        %v2697 = vsel %vm693, %v2670, 0
        %v2700 = vsel %vm693, %v2671, 0
        %v2703 = vsel %vm693, %v2672, 0
        %v2706 = vsel %vm693, %v2673, 0
        %v2709 = vsel %vm693, %v2674, 0
        %v2712 = vsel %vm693, %v2675, 0
        %v2715 = vsel %vm693, %v2676, 0
        %v2718 = vsel %vm693, %v2677, 0
        %v2721 = vsel %vm693, %v2678, 0
        %v2724 = vsel %vm693, %v2679, 0
        %v2727 = vsel %vm693, %v2680, 0
        %v2730 = vsel %vm693, %v2681, 0
        %v2733 = vsel %vm693, %v2682, 0
        %2735 = vmatprep.subr.bf16.mxu0 0
        %2736 = vmatpush1.bf16.msra.mxu0 0
        %2737 = vmatprep.subr.bf16.mxu0 0
        %2738 = vmatpush1.bf16.msra.mxu0 0
        %2739 = vmatprep.subr.bf16.mxu0 0
        %2740 = vmatpush1.bf16.msra.mxu0 0
        %2741 = vmatprep.subr.bf16.mxu0 0
        %2742 = vmatpush1.bf16.msra.mxu0 0
        %2743 = vmatprep.subr.bf16.mxu0 0
        %2744 = vmatpush1.bf16.msra.mxu0 0
        %2745 = vmatprep.subr.bf16.mxu0 0
        %2746 = vmatpush1.bf16.msra.mxu0 0
        %2747 = vmatprep.subr.bf16.mxu0 0
        %2748 = vmatpush1.bf16.msra.mxu0 0
        %2749 = vmatprep.subr.bf16.mxu0 0
        %2750 = vmatpush1.bf16.msra.mxu0 %v2686
        %2751 = vmatprep.subr.bf16.mxu0 0
        %2752 = vmatpush2.bf16.msra.mxu0 0
        %2753 = vmatprep.subr.bf16.mxu0 0
        %2754 = vmatpush2.bf16.msra.mxu0 0
        %2755 = vmatprep.subr.bf16.mxu0 0
        %2756 = vmatpush2.bf16.msra.mxu0 0
        %2757 = vmatprep.subr.bf16.mxu0 0
        %2758 = vmatpush2.bf16.msra.mxu0 0
        %2759 = vmatprep.subr.bf16.mxu0 0
        %2760 = vmatpush2.bf16.msra.mxu0 0
        %2761 = vmatprep.subr.bf16.mxu0 0
        %2762 = vmatpush2.bf16.msra.mxu0 0
        %2763 = vmatprep.subr.bf16.mxu0 0
        %2764 = vmatpush2.bf16.msra.mxu0 0
        %2765 = vmatprep.subr.bf16.mxu0 0
        %2766 = vmatpush2.bf16.msra.mxu0 0
        %2767 = vmatprep.mubr.bf16.mxu0 0
        %2768 = vmatmul.mubr.bf16.gmra.mxu0 %v2688
        %v2769 = vpop.f32.mrf.mxu0
        %v2770 = vadd.f32 0.0, %v2769
        %v2771 = vpop.f32.mrf.mxu0
        %v2772 = vpop.f32.mrf.mxu0
        %v2773 = vadd.f32 0.0, %v2772
        %v2774 = vpop.f32.mrf.mxu0
        %2775 = vmatprep.mubr.bf16.mxu0 0
        %2776 = vmatmul.mubr.bf16.gmra.mxu0 %v2691
        %v2777 = vpop.f32.mrf.mxu0
        %v2778 = vadd.f32 0.0, %v2777
        %v2779 = vpop.f32.mrf.mxu0
        %v2780 = vpop.f32.mrf.mxu0
        %v2781 = vadd.f32 0.0, %v2780
        %v2782 = vpop.f32.mrf.mxu0
        %2783 = vmatprep.mubr.bf16.mxu0 0
        %2784 = vmatmul.mubr.bf16.gmra.mxu0 %v2694
        %v2785 = vpop.f32.mrf.mxu0
        %v2786 = vadd.f32 0.0, %v2785
        %v2787 = vpop.f32.mrf.mxu0
        %v2788 = vpop.f32.mrf.mxu0
        %v2789 = vadd.f32 0.0, %v2788
        %v2790 = vpop.f32.mrf.mxu0
        %2791 = vmatprep.mubr.bf16.mxu0 0
        %2792 = vmatmul.mubr.bf16.gmra.mxu0 %v2697
        %v2793 = vpop.f32.mrf.mxu0
        %v2794 = vadd.f32 0.0, %v2793
        %v2795 = vpop.f32.mrf.mxu0
        %v2796 = vpop.f32.mrf.mxu0
        %v2797 = vadd.f32 0.0, %v2796
        %v2798 = vpop.f32.mrf.mxu0
        %2799 = vmatprep.mubr.bf16.mxu0 0
        %2800 = vmatmul.mubr.bf16.gmra.mxu0 %v2700
        %v2801 = vpop.f32.mrf.mxu0
        %v2802 = vadd.f32 0.0, %v2801
        %v2803 = vpop.f32.mrf.mxu0
        %v2804 = vpop.f32.mrf.mxu0
        %v2805 = vadd.f32 0.0, %v2804
        %v2806 = vpop.f32.mrf.mxu0
        %2807 = vmatprep.mubr.bf16.mxu0 0
        %2808 = vmatmul.mubr.bf16.gmra.mxu0 %v2703
        %v2809 = vpop.f32.mrf.mxu0
        %v2810 = vadd.f32 0.0, %v2809
        %v2811 = vpop.f32.mrf.mxu0
        %v2812 = vpop.f32.mrf.mxu0
        %v2813 = vadd.f32 0.0, %v2812
        %v2814 = vpop.f32.mrf.mxu0
        %2815 = vmatprep.mubr.bf16.mxu0 0
        %2816 = vmatmul.mubr.bf16.gmra.mxu0 %v2706
        %v2817 = vpop.f32.mrf.mxu0
        %v2818 = vadd.f32 0.0, %v2817
        %v2819 = vpop.f32.mrf.mxu0
        %v2820 = vpop.f32.mrf.mxu0
        %v2821 = vadd.f32 0.0, %v2820
        %v2822 = vpop.f32.mrf.mxu0
        %2823 = vmatprep.mubr.bf16.mxu0 0
        %2824 = vmatmul.mubr.bf16.gmra.mxu0 %v2709
        %v2825 = vpop.f32.mrf.mxu0
        %v2826 = vadd.f32 0.0, %v2825
        %v2827 = vpop.f32.mrf.mxu0
        %v2828 = vpop.f32.mrf.mxu0
        %v2829 = vadd.f32 0.0, %v2828
        %v2830 = vpop.f32.mrf.mxu0
        %2831 = vmatprep.mubr.bf16.mxu0 0
        %2832 = vmatmul.mubr.bf16.gmra.mxu0 %v2712
        %v2833 = vpop.f32.mrf.mxu0
        %v2834 = vadd.f32 0.0, %v2833
        %v2835 = vpop.f32.mrf.mxu0
        %v2836 = vpop.f32.mrf.mxu0
        %v2837 = vadd.f32 0.0, %v2836
        %v2838 = vpop.f32.mrf.mxu0
        %2839 = vmatprep.mubr.bf16.mxu0 0
        %2840 = vmatmul.mubr.bf16.gmra.mxu0 %v2715
        %v2841 = vpop.f32.mrf.mxu0
        %v2842 = vadd.f32 0.0, %v2841
        %v2843 = vpop.f32.mrf.mxu0
        %v2844 = vpop.f32.mrf.mxu0
        %v2845 = vadd.f32 0.0, %v2844
        %v2846 = vpop.f32.mrf.mxu0
        %2847 = vmatprep.mubr.bf16.mxu0 0
        %2848 = vmatmul.mubr.bf16.gmra.mxu0 %v2718
        %v2849 = vpop.f32.mrf.mxu0
        %v2850 = vadd.f32 0.0, %v2849
        %v2851 = vpop.f32.mrf.mxu0
        %v2852 = vpop.f32.mrf.mxu0
        %v2853 = vadd.f32 0.0, %v2852
        %v2854 = vpop.f32.mrf.mxu0
        %2855 = vmatprep.mubr.bf16.mxu0 0
        %2856 = vmatmul.mubr.bf16.gmra.mxu0 %v2721
        %v2857 = vpop.f32.mrf.mxu0
        %v2858 = vadd.f32 0.0, %v2857
        %v2859 = vpop.f32.mrf.mxu0
        %v2860 = vpop.f32.mrf.mxu0
        %v2861 = vadd.f32 0.0, %v2860
        %v2862 = vpop.f32.mrf.mxu0
        %2863 = vmatprep.mubr.bf16.mxu0 0
        %2864 = vmatmul.mubr.bf16.gmra.mxu0 %v2724
        %v2865 = vpop.f32.mrf.mxu0
        %v2866 = vadd.f32 0.0, %v2865
        %v2867 = vpop.f32.mrf.mxu0
        %v2868 = vpop.f32.mrf.mxu0
        %v2869 = vadd.f32 0.0, %v2868
        %v2870 = vpop.f32.mrf.mxu0
        %2871 = vmatprep.mubr.bf16.mxu0 0
        %2872 = vmatmul.mubr.bf16.gmra.mxu0 %v2727
        %v2873 = vpop.f32.mrf.mxu0
        %v2874 = vadd.f32 0.0, %v2873
        %v2875 = vpop.f32.mrf.mxu0
        %v2876 = vpop.f32.mrf.mxu0
        %v2877 = vadd.f32 0.0, %v2876
        %v2878 = vpop.f32.mrf.mxu0
        %2879 = vmatprep.mubr.bf16.mxu0 0
        %2880 = vmatmul.mubr.bf16.gmra.mxu0 %v2730
        %v2881 = vpop.f32.mrf.mxu0
        %v2882 = vadd.f32 0.0, %v2881
        %v2883 = vpop.f32.mrf.mxu0
        %v2884 = vpop.f32.mrf.mxu0
        %v2885 = vadd.f32 0.0, %v2884
        %v2886 = vpop.f32.mrf.mxu0
        %2887 = vmatprep.mubr.bf16.mxu0 0
        %2888 = vmatmul.mubr.bf16.gmra.mxu0 %v2733
        %v2889 = vpop.f32.mrf.mxu0
        %v2890 = vadd.f32 0.0, %v2889
        %v2891 = vpop.f32.mrf.mxu0
        %v2892 = vpop.f32.mrf.mxu0
        %v2893 = vadd.f32 0.0, %v2892
        %v2894 = vpop.f32.mrf.mxu0
        %2895 = vdwg.mxu0
        %v2896 = vsel %vm1857, %v2770, 0.0
        %v2897 = vsel %vm1858, %v2773, 0.0
        %v2898 = vsel %vm1859, %v2778, 0.0
        %v2899 = vsel %vm1860, %v2781, 0.0
        %v2900 = vsel %vm1861, %v2786, 0.0
        %v2901 = vsel %vm1862, %v2789, 0.0
        %v2902 = vsel %vm1863, %v2794, 0.0
        %v2903 = vsel %vm1864, %v2797, 0.0
        %v2904 = vsel %vm1865, %v2802, 0.0
        %v2905 = vsel %vm1866, %v2805, 0.0
        %v2906 = vsel %vm1867, %v2810, 0.0
        %v2907 = vsel %vm1868, %v2813, 0.0
        %v2908 = vsel %vm1869, %v2818, 0.0
        %v2909 = vsel %vm1870, %v2821, 0.0
        %v2910 = vsel %vm1871, %v2826, 0.0
        %v2911 = vsel %vm1872, %v2829, 0.0
        %v2912 = vsel %vm1873, %v2834, 0.0
        %v2913 = vsel %vm1874, %v2837, 0.0
        %v2914 = vsel %vm1875, %v2842, 0.0
        %v2915 = vsel %vm1876, %v2845, 0.0
        %v2916 = vsel %vm1877, %v2850, 0.0
        %v2917 = vsel %vm1878, %v2853, 0.0
        %v2918 = vsel %vm1879, %v2858, 0.0
        %v2919 = vsel %vm1880, %v2861, 0.0
        %v2920 = vsel %vm1881, %v2866, 0.0
        %v2921 = vsel %vm1882, %v2869, 0.0
        %v2922 = vsel %vm1883, %v2874, 0.0
        %v2923 = vsel %vm1884, %v2877, 0.0
        %v2924 = vsel %vm1885, %v2882, 0.0
        %v2925 = vsel %vm1886, %v2885, 0.0
        %v2926 = vsel %vm1887, %v2890, 0.0
        %v2927 = vsel %vm1888, %v2893, 0.0
        %v2928 = vadd.f32 %v2603, %v2896
        %v2929 = vadd.f32 %v2604, %v2897
        %v2930 = vadd.f32 %v2605, %v2898
        %v2931 = vadd.f32 %v2606, %v2899
        %v2932 = vadd.f32 %v2607, %v2900
        %v2933 = vadd.f32 %v2608, %v2901
        %v2934 = vadd.f32 %v2609, %v2902
        %v2935 = vadd.f32 %v2610, %v2903
        %v2936 = vadd.f32 %v2611, %v2904
        %v2937 = vadd.f32 %v2612, %v2905
        %v2938 = vadd.f32 %v2613, %v2906
        %v2939 = vadd.f32 %v2614, %v2907
        %v2940 = vadd.f32 %v2615, %v2908
        %v2941 = vadd.f32 %v2616, %v2909
        %v2942 = vadd.f32 %v2617, %v2910
        %v2943 = vadd.f32 %v2618, %v2911
        %v2944 = vadd.f32 %v2619, %v2912
        %v2945 = vadd.f32 %v2620, %v2913
        %v2946 = vadd.f32 %v2621, %v2914
        %v2947 = vadd.f32 %v2622, %v2915
        %v2948 = vadd.f32 %v2623, %v2916
        %v2949 = vadd.f32 %v2624, %v2917
        %v2950 = vadd.f32 %v2625, %v2918
        %v2951 = vadd.f32 %v2626, %v2919
        %v2952 = vadd.f32 %v2627, %v2920
        %v2953 = vadd.f32 %v2628, %v2921
        %v2954 = vadd.f32 %v2629, %v2922
        %v2955 = vadd.f32 %v2630, %v2923
        %v2956 = vadd.f32 %v2631, %v2924
        %v2957 = vadd.f32 %v2632, %v2925
        %v2958 = vadd.f32 %v2633, %v2926
        %v2959 = vadd.f32 %v2634, %v2927
        %v2960 = vld [vmem:[#allocation2 + $0x18] sm:$0xff]
        %v2961 = vld [vmem:[#allocation2 + $0x20] sm:$0xff]
        %v2962 = vld [vmem:[#allocation2 + $0x28] sm:$0xff]
        %v2963 = vld [vmem:[#allocation2 + $0x30] sm:$0xff]
        %v2964 = vld [vmem:[#allocation2 + $0x38] sm:$0xff]
        %v2965 = vld [vmem:[#allocation2 + $0x40] sm:$0xff]
        %v2966 = vld [vmem:[#allocation2 + $0x48] sm:$0xff]
        %v2967 = vld [vmem:[#allocation2 + $0x50] sm:$0xff]
        %v2968 = vld [vmem:[#allocation2 + $0x58] sm:$0xff]
        %v2969 = vld [vmem:[#allocation2 + $0x60] sm:$0xff]
        %v2970 = vld [vmem:[#allocation2 + $0x68] sm:$0xff]
        %v2971 = vld [vmem:[#allocation2 + $0x70] sm:$0xff]
        %v2972 = vld [vmem:[#allocation2 + $0x78] sm:$0xff]
        %v2973 = vld [vmem:[#allocation2 + $0x80] sm:$0xff]
        %v2974 = vld [vmem:[#allocation2 + $0x88] sm:$0xff]
        %v2975 = vld [vmem:[#allocation2 + $0x90] sm:$0xff]
        %v2976 = vld [vmem:[#allocation2 + $0x98] sm:$0xff]
        %v2977 = vld [vmem:[#allocation2 + $0xa0] sm:$0xff]
        %v2978 = vld [vmem:[#allocation2 + $0xa8] sm:$0xff]
        %v2979 = vld [vmem:[#allocation2 + $0xb0] sm:$0xff]
        %v2980 = vld [vmem:[#allocation2 + $0xb8] sm:$0xff]
        %v2981 = vld [vmem:[#allocation2 + $0xc0] sm:$0xff]
        %v2982 = vld [vmem:[#allocation2 + $0xc8] sm:$0xff]
        %v2983 = vld [vmem:[#allocation2 + $0xd0] sm:$0xff]
        %v2984 = vld [vmem:[#allocation2 + $0xd8] sm:$0xff]
        %v2985 = vld [vmem:[#allocation2 + $0xe0] sm:$0xff]
        %v2986 = vld [vmem:[#allocation2 + $0xe8] sm:$0xff]
        %v2987 = vld [vmem:[#allocation2 + $0xf0] sm:$0xff]
        %v2988 = vld [vmem:[#allocation2 + $0xf8] sm:$0xff]
        %v2989 = vld [vmem:[#allocation2 + $0x100] sm:$0xff]
        %v2990 = vld [vmem:[#allocation2 + $0x108] sm:$0xff]
        %v2991 = vld [vmem:[#allocation2 + $0x110] sm:$0xff]
        %v2992 = vpack.c.bf16 %v2961, %v2960
        %v2993 = vpack.c.bf16 %v2963, %v2962
        %v2994 = vpack.c.bf16 %v2965, %v2964
        %v2995 = vpack.c.bf16 %v2967, %v2966
        %v2996 = vpack.c.bf16 %v2969, %v2968
        %v2997 = vpack.c.bf16 %v2971, %v2970
        %v2998 = vpack.c.bf16 %v2973, %v2972
        %v2999 = vpack.c.bf16 %v2975, %v2974
        %v3000 = vpack.c.bf16 %v2977, %v2976
        %v3001 = vpack.c.bf16 %v2979, %v2978
        %v3002 = vpack.c.bf16 %v2981, %v2980
        %v3003 = vpack.c.bf16 %v2983, %v2982
        %v3004 = vpack.c.bf16 %v2985, %v2984
        %v3005 = vpack.c.bf16 %v2987, %v2986
        %v3006 = vpack.c.bf16 %v2989, %v2988
        %v3007 = vpack.c.bf16 %v2991, %v2990
        %s3008 = scalar_lea.vmem %s5, 64
        %v3009 = vld [vmem:[%s3008] sm:$0xff]
        %v3010 = vld [vmem:[%s3008 + $0x8] sm:$0xff]
        %v3011 = vpack.c.bf16 %v3010, %v3009
        %v3013 = vsel %vm693, %v2992, 0
        %v3016 = vsel %vm693, %v2993, 0
        %v3019 = vsel %vm693, %v2994, 0
        %v3022 = vsel %vm693, %v2995, 0
        %v3025 = vsel %vm693, %v2996, 0
        %v3028 = vsel %vm693, %v2997, 0
        %v3031 = vsel %vm693, %v2998, 0
        %v3034 = vsel %vm693, %v2999, 0
        %v3037 = vsel %vm693, %v3000, 0
        %v3040 = vsel %vm693, %v3001, 0
        %v3043 = vsel %vm693, %v3002, 0
        %v3046 = vsel %vm693, %v3003, 0
        %v3049 = vsel %vm693, %v3004, 0
        %v3052 = vsel %vm693, %v3005, 0
        %v3055 = vsel %vm693, %v3006, 0
        %v3058 = vsel %vm693, %v3007, 0
        %3060 = vmatprep.subr.bf16.mxu0 0
        %3061 = vmatpush1.bf16.msra.mxu0 0
        %3062 = vmatprep.subr.bf16.mxu0 0
        %3063 = vmatpush1.bf16.msra.mxu0 0
        %3064 = vmatprep.subr.bf16.mxu0 0
        %3065 = vmatpush1.bf16.msra.mxu0 0
        %3066 = vmatprep.subr.bf16.mxu0 0
        %3067 = vmatpush1.bf16.msra.mxu0 0
        %3068 = vmatprep.subr.bf16.mxu0 0
        %3069 = vmatpush1.bf16.msra.mxu0 0
        %3070 = vmatprep.subr.bf16.mxu0 0
        %3071 = vmatpush1.bf16.msra.mxu0 0
        %3072 = vmatprep.subr.bf16.mxu0 0
        %3073 = vmatpush1.bf16.msra.mxu0 0
        %3074 = vmatprep.subr.bf16.mxu0 0
        %3075 = vmatpush1.bf16.msra.mxu0 %v3011
        %3076 = vmatprep.subr.bf16.mxu0 0
        %3077 = vmatpush2.bf16.msra.mxu0 0
        %3078 = vmatprep.subr.bf16.mxu0 0
        %3079 = vmatpush2.bf16.msra.mxu0 0
        %3080 = vmatprep.subr.bf16.mxu0 0
        %3081 = vmatpush2.bf16.msra.mxu0 0
        %3082 = vmatprep.subr.bf16.mxu0 0
        %3083 = vmatpush2.bf16.msra.mxu0 0
        %3084 = vmatprep.subr.bf16.mxu0 0
        %3085 = vmatpush2.bf16.msra.mxu0 0
        %3086 = vmatprep.subr.bf16.mxu0 0
        %3087 = vmatpush2.bf16.msra.mxu0 0
        %3088 = vmatprep.subr.bf16.mxu0 0
        %3089 = vmatpush2.bf16.msra.mxu0 0
        %3090 = vmatprep.subr.bf16.mxu0 0
        %3091 = vmatpush2.bf16.msra.mxu0 0
        %3092 = vmatprep.mubr.bf16.mxu0 0
        %3093 = vmatmul.mubr.bf16.gmra.mxu0 %v3013
        %v3094 = vpop.f32.mrf.mxu0
        %v3095 = vadd.f32 0.0, %v3094
        %v3096 = vpop.f32.mrf.mxu0
        %v3097 = vpop.f32.mrf.mxu0
        %v3098 = vadd.f32 0.0, %v3097
        %v3099 = vpop.f32.mrf.mxu0
        %3100 = vmatprep.mubr.bf16.mxu0 0
        %3101 = vmatmul.mubr.bf16.gmra.mxu0 %v3016
        %v3102 = vpop.f32.mrf.mxu0
        %v3103 = vadd.f32 0.0, %v3102
        %v3104 = vpop.f32.mrf.mxu0
        %v3105 = vpop.f32.mrf.mxu0
        %v3106 = vadd.f32 0.0, %v3105
        %v3107 = vpop.f32.mrf.mxu0
        %3108 = vmatprep.mubr.bf16.mxu0 0
        %3109 = vmatmul.mubr.bf16.gmra.mxu0 %v3019
        %v3110 = vpop.f32.mrf.mxu0
        %v3111 = vadd.f32 0.0, %v3110
        %v3112 = vpop.f32.mrf.mxu0
        %v3113 = vpop.f32.mrf.mxu0
        %v3114 = vadd.f32 0.0, %v3113
        %v3115 = vpop.f32.mrf.mxu0
        %3116 = vmatprep.mubr.bf16.mxu0 0
        %3117 = vmatmul.mubr.bf16.gmra.mxu0 %v3022
        %v3118 = vpop.f32.mrf.mxu0
        %v3119 = vadd.f32 0.0, %v3118
        %v3120 = vpop.f32.mrf.mxu0
        %v3121 = vpop.f32.mrf.mxu0
        %v3122 = vadd.f32 0.0, %v3121
        %v3123 = vpop.f32.mrf.mxu0
        %3124 = vmatprep.mubr.bf16.mxu0 0
        %3125 = vmatmul.mubr.bf16.gmra.mxu0 %v3025
        %v3126 = vpop.f32.mrf.mxu0
        %v3127 = vadd.f32 0.0, %v3126
        %v3128 = vpop.f32.mrf.mxu0
        %v3129 = vpop.f32.mrf.mxu0
        %v3130 = vadd.f32 0.0, %v3129
        %v3131 = vpop.f32.mrf.mxu0
        %3132 = vmatprep.mubr.bf16.mxu0 0
        %3133 = vmatmul.mubr.bf16.gmra.mxu0 %v3028
        %v3134 = vpop.f32.mrf.mxu0
        %v3135 = vadd.f32 0.0, %v3134
        %v3136 = vpop.f32.mrf.mxu0
        %v3137 = vpop.f32.mrf.mxu0
        %v3138 = vadd.f32 0.0, %v3137
        %v3139 = vpop.f32.mrf.mxu0
        %3140 = vmatprep.mubr.bf16.mxu0 0
        %3141 = vmatmul.mubr.bf16.gmra.mxu0 %v3031
        %v3142 = vpop.f32.mrf.mxu0
        %v3143 = vadd.f32 0.0, %v3142
        %v3144 = vpop.f32.mrf.mxu0
        %v3145 = vpop.f32.mrf.mxu0
        %v3146 = vadd.f32 0.0, %v3145
        %v3147 = vpop.f32.mrf.mxu0
        %3148 = vmatprep.mubr.bf16.mxu0 0
        %3149 = vmatmul.mubr.bf16.gmra.mxu0 %v3034
        %v3150 = vpop.f32.mrf.mxu0
        %v3151 = vadd.f32 0.0, %v3150
        %v3152 = vpop.f32.mrf.mxu0
        %v3153 = vpop.f32.mrf.mxu0
        %v3154 = vadd.f32 0.0, %v3153
        %v3155 = vpop.f32.mrf.mxu0
        %3156 = vmatprep.mubr.bf16.mxu0 0
        %3157 = vmatmul.mubr.bf16.gmra.mxu0 %v3037
        %v3158 = vpop.f32.mrf.mxu0
        %v3159 = vadd.f32 0.0, %v3158
        %v3160 = vpop.f32.mrf.mxu0
        %v3161 = vpop.f32.mrf.mxu0
        %v3162 = vadd.f32 0.0, %v3161
        %v3163 = vpop.f32.mrf.mxu0
        %3164 = vmatprep.mubr.bf16.mxu0 0
        %3165 = vmatmul.mubr.bf16.gmra.mxu0 %v3040
        %v3166 = vpop.f32.mrf.mxu0
        %v3167 = vadd.f32 0.0, %v3166
        %v3168 = vpop.f32.mrf.mxu0
        %v3169 = vpop.f32.mrf.mxu0
        %v3170 = vadd.f32 0.0, %v3169
        %v3171 = vpop.f32.mrf.mxu0
        %3172 = vmatprep.mubr.bf16.mxu0 0
        %3173 = vmatmul.mubr.bf16.gmra.mxu0 %v3043
        %v3174 = vpop.f32.mrf.mxu0
        %v3175 = vadd.f32 0.0, %v3174
        %v3176 = vpop.f32.mrf.mxu0
        %v3177 = vpop.f32.mrf.mxu0
        %v3178 = vadd.f32 0.0, %v3177
        %v3179 = vpop.f32.mrf.mxu0
        %3180 = vmatprep.mubr.bf16.mxu0 0
        %3181 = vmatmul.mubr.bf16.gmra.mxu0 %v3046
        %v3182 = vpop.f32.mrf.mxu0
        %v3183 = vadd.f32 0.0, %v3182
        %v3184 = vpop.f32.mrf.mxu0
        %v3185 = vpop.f32.mrf.mxu0
        %v3186 = vadd.f32 0.0, %v3185
        %v3187 = vpop.f32.mrf.mxu0
        %3188 = vmatprep.mubr.bf16.mxu0 0
        %3189 = vmatmul.mubr.bf16.gmra.mxu0 %v3049
        %v3190 = vpop.f32.mrf.mxu0
        %v3191 = vadd.f32 0.0, %v3190
        %v3192 = vpop.f32.mrf.mxu0
        %v3193 = vpop.f32.mrf.mxu0
        %v3194 = vadd.f32 0.0, %v3193
        %v3195 = vpop.f32.mrf.mxu0
        %3196 = vmatprep.mubr.bf16.mxu0 0
        %3197 = vmatmul.mubr.bf16.gmra.mxu0 %v3052
        %v3198 = vpop.f32.mrf.mxu0
        %v3199 = vadd.f32 0.0, %v3198
        %v3200 = vpop.f32.mrf.mxu0
        %v3201 = vpop.f32.mrf.mxu0
        %v3202 = vadd.f32 0.0, %v3201
        %v3203 = vpop.f32.mrf.mxu0
        %3204 = vmatprep.mubr.bf16.mxu0 0
        %3205 = vmatmul.mubr.bf16.gmra.mxu0 %v3055
        %v3206 = vpop.f32.mrf.mxu0
        %v3207 = vadd.f32 0.0, %v3206
        %v3208 = vpop.f32.mrf.mxu0
        %v3209 = vpop.f32.mrf.mxu0
        %v3210 = vadd.f32 0.0, %v3209
        %v3211 = vpop.f32.mrf.mxu0
        %3212 = vmatprep.mubr.bf16.mxu0 0
        %3213 = vmatmul.mubr.bf16.gmra.mxu0 %v3058
        %v3214 = vpop.f32.mrf.mxu0
        %v3215 = vadd.f32 0.0, %v3214
        %v3216 = vpop.f32.mrf.mxu0
        %v3217 = vpop.f32.mrf.mxu0
        %v3218 = vadd.f32 0.0, %v3217
        %v3219 = vpop.f32.mrf.mxu0
        %3220 = vdwg.mxu0
        %v3221 = vadd.f32 %v2928, %v3095
        %v3222 = vadd.f32 %v2929, %v3098
        %v3223 = vadd.f32 %v2930, %v3103
        %v3224 = vadd.f32 %v2931, %v3106
        %v3225 = vadd.f32 %v2932, %v3111
        %v3226 = vadd.f32 %v2933, %v3114
        %v3227 = vadd.f32 %v2934, %v3119
        %v3228 = vadd.f32 %v2935, %v3122
        %v3229 = vadd.f32 %v2936, %v3127
        %v3230 = vadd.f32 %v2937, %v3130
        %v3231 = vadd.f32 %v2938, %v3135
        %v3232 = vadd.f32 %v2939, %v3138
        %v3233 = vadd.f32 %v2940, %v3143
        %v3234 = vadd.f32 %v2941, %v3146
        %v3235 = vadd.f32 %v2942, %v3151
        %v3236 = vadd.f32 %v2943, %v3154
        %v3237 = vadd.f32 %v2944, %v3159
        %v3238 = vadd.f32 %v2945, %v3162
        %v3239 = vadd.f32 %v2946, %v3167
        %v3240 = vadd.f32 %v2947, %v3170
        %v3241 = vadd.f32 %v2948, %v3175
        %v3242 = vadd.f32 %v2949, %v3178
        %v3243 = vadd.f32 %v2950, %v3183
        %v3244 = vadd.f32 %v2951, %v3186
        %v3245 = vadd.f32 %v2952, %v3191
        %v3246 = vadd.f32 %v2953, %v3194
        %v3247 = vadd.f32 %v2954, %v3199
        %v3248 = vadd.f32 %v2955, %v3202
        %v3249 = vadd.f32 %v2956, %v3207
        %v3250 = vadd.f32 %v2957, %v3210
        %v3251 = vadd.f32 %v2958, %v3215
        %v3252 = vadd.f32 %v2959, %v3218
        %v3253 = vld [vmem:[#allocation2 + $0x19] sm:$0xff]
        %v3254 = vld [vmem:[#allocation2 + $0x21] sm:$0xff]
        %v3255 = vld [vmem:[#allocation2 + $0x29] sm:$0xff]
        %v3256 = vld [vmem:[#allocation2 + $0x31] sm:$0xff]
        %v3257 = vld [vmem:[#allocation2 + $0x39] sm:$0xff]
        %v3258 = vld [vmem:[#allocation2 + $0x41] sm:$0xff]
        %v3259 = vld [vmem:[#allocation2 + $0x49] sm:$0xff]
        %v3260 = vld [vmem:[#allocation2 + $0x51] sm:$0xff]
        %v3261 = vld [vmem:[#allocation2 + $0x59] sm:$0xff]
        %v3262 = vld [vmem:[#allocation2 + $0x61] sm:$0xff]
        %v3263 = vld [vmem:[#allocation2 + $0x69] sm:$0xff]
        %v3264 = vld [vmem:[#allocation2 + $0x71] sm:$0xff]
        %v3265 = vld [vmem:[#allocation2 + $0x79] sm:$0xff]
        %v3266 = vld [vmem:[#allocation2 + $0x81] sm:$0xff]
        %v3267 = vld [vmem:[#allocation2 + $0x89] sm:$0xff]
        %v3268 = vld [vmem:[#allocation2 + $0x91] sm:$0xff]
        %v3269 = vld [vmem:[#allocation2 + $0x99] sm:$0xff]
        %v3270 = vld [vmem:[#allocation2 + $0xa1] sm:$0xff]
        %v3271 = vld [vmem:[#allocation2 + $0xa9] sm:$0xff]
        %v3272 = vld [vmem:[#allocation2 + $0xb1] sm:$0xff]
        %v3273 = vld [vmem:[#allocation2 + $0xb9] sm:$0xff]
        %v3274 = vld [vmem:[#allocation2 + $0xc1] sm:$0xff]
        %v3275 = vld [vmem:[#allocation2 + $0xc9] sm:$0xff]
        %v3276 = vld [vmem:[#allocation2 + $0xd1] sm:$0xff]
        %v3277 = vld [vmem:[#allocation2 + $0xd9] sm:$0xff]
        %v3278 = vld [vmem:[#allocation2 + $0xe1] sm:$0xff]
        %v3279 = vld [vmem:[#allocation2 + $0xe9] sm:$0xff]
        %v3280 = vld [vmem:[#allocation2 + $0xf1] sm:$0xff]
        %v3281 = vld [vmem:[#allocation2 + $0xf9] sm:$0xff]
        %v3282 = vld [vmem:[#allocation2 + $0x101] sm:$0xff]
        %v3283 = vld [vmem:[#allocation2 + $0x109] sm:$0xff]
        %v3284 = vld [vmem:[#allocation2 + $0x111] sm:$0xff]
        %v3285 = vpack.c.bf16 %v3254, %v3253
        %v3286 = vpack.c.bf16 %v3256, %v3255
        %v3287 = vpack.c.bf16 %v3258, %v3257
        %v3288 = vpack.c.bf16 %v3260, %v3259
        %v3289 = vpack.c.bf16 %v3262, %v3261
        %v3290 = vpack.c.bf16 %v3264, %v3263
        %v3291 = vpack.c.bf16 %v3266, %v3265
        %v3292 = vpack.c.bf16 %v3268, %v3267
        %v3293 = vpack.c.bf16 %v3270, %v3269
        %v3294 = vpack.c.bf16 %v3272, %v3271
        %v3295 = vpack.c.bf16 %v3274, %v3273
        %v3296 = vpack.c.bf16 %v3276, %v3275
        %v3297 = vpack.c.bf16 %v3278, %v3277
        %v3298 = vpack.c.bf16 %v3280, %v3279
        %v3299 = vpack.c.bf16 %v3282, %v3281
        %v3300 = vpack.c.bf16 %v3284, %v3283
        %s3301 = scalar_lea.vmem %s5, 80
        %v3302 = vld [vmem:[%s3301] sm:$0xff]
        %v3303 = vld [vmem:[%s3301 + $0x8] sm:$0xff]
        %v3304 = vpack.c.bf16 %v3303, %v3302
        %v3306 = vsel %vm693, %v3285, 0
        %v3309 = vsel %vm693, %v3286, 0
        %v3312 = vsel %vm693, %v3287, 0
        %v3315 = vsel %vm693, %v3288, 0
        %v3318 = vsel %vm693, %v3289, 0
        %v3321 = vsel %vm693, %v3290, 0
        %v3324 = vsel %vm693, %v3291, 0
        %v3327 = vsel %vm693, %v3292, 0
        %v3330 = vsel %vm693, %v3293, 0
        %v3333 = vsel %vm693, %v3294, 0
        %v3336 = vsel %vm693, %v3295, 0
        %v3339 = vsel %vm693, %v3296, 0
        %v3342 = vsel %vm693, %v3297, 0
        %v3345 = vsel %vm693, %v3298, 0
        %v3348 = vsel %vm693, %v3299, 0
        %v3351 = vsel %vm693, %v3300, 0
        %3353 = vmatprep.subr.bf16.mxu0 0
        %3354 = vmatpush1.bf16.msra.mxu0 0
        %3355 = vmatprep.subr.bf16.mxu0 0
        %3356 = vmatpush1.bf16.msra.mxu0 0
        %3357 = vmatprep.subr.bf16.mxu0 0
        %3358 = vmatpush1.bf16.msra.mxu0 0
        %3359 = vmatprep.subr.bf16.mxu0 0
        %3360 = vmatpush1.bf16.msra.mxu0 0
        %3361 = vmatprep.subr.bf16.mxu0 0
        %3362 = vmatpush1.bf16.msra.mxu0 0
        %3363 = vmatprep.subr.bf16.mxu0 0
        %3364 = vmatpush1.bf16.msra.mxu0 0
        %3365 = vmatprep.subr.bf16.mxu0 0
        %3366 = vmatpush1.bf16.msra.mxu0 0
        %3367 = vmatprep.subr.bf16.mxu0 0
        %3368 = vmatpush1.bf16.msra.mxu0 %v3304
        %3369 = vmatprep.subr.bf16.mxu0 0
        %3370 = vmatpush2.bf16.msra.mxu0 0
        %3371 = vmatprep.subr.bf16.mxu0 0
        %3372 = vmatpush2.bf16.msra.mxu0 0
        %3373 = vmatprep.subr.bf16.mxu0 0
        %3374 = vmatpush2.bf16.msra.mxu0 0
        %3375 = vmatprep.subr.bf16.mxu0 0
        %3376 = vmatpush2.bf16.msra.mxu0 0
        %3377 = vmatprep.subr.bf16.mxu0 0
        %3378 = vmatpush2.bf16.msra.mxu0 0
        %3379 = vmatprep.subr.bf16.mxu0 0
        %3380 = vmatpush2.bf16.msra.mxu0 0
        %3381 = vmatprep.subr.bf16.mxu0 0
        %3382 = vmatpush2.bf16.msra.mxu0 0
        %3383 = vmatprep.subr.bf16.mxu0 0
        %3384 = vmatpush2.bf16.msra.mxu0 0
        %3385 = vmatprep.mubr.bf16.mxu0 0
        %3386 = vmatmul.mubr.bf16.gmra.mxu0 %v3306
        %v3387 = vpop.f32.mrf.mxu0
        %v3388 = vadd.f32 0.0, %v3387
        %v3389 = vpop.f32.mrf.mxu0
        %v3390 = vpop.f32.mrf.mxu0
        %v3391 = vadd.f32 0.0, %v3390
        %v3392 = vpop.f32.mrf.mxu0
        %3393 = vmatprep.mubr.bf16.mxu0 0
        %3394 = vmatmul.mubr.bf16.gmra.mxu0 %v3309
        %v3395 = vpop.f32.mrf.mxu0
        %v3396 = vadd.f32 0.0, %v3395
        %v3397 = vpop.f32.mrf.mxu0
        %v3398 = vpop.f32.mrf.mxu0
        %v3399 = vadd.f32 0.0, %v3398
        %v3400 = vpop.f32.mrf.mxu0
        %3401 = vmatprep.mubr.bf16.mxu0 0
        %3402 = vmatmul.mubr.bf16.gmra.mxu0 %v3312
        %v3403 = vpop.f32.mrf.mxu0
        %v3404 = vadd.f32 0.0, %v3403
        %v3405 = vpop.f32.mrf.mxu0
        %v3406 = vpop.f32.mrf.mxu0
        %v3407 = vadd.f32 0.0, %v3406
        %v3408 = vpop.f32.mrf.mxu0
        %3409 = vmatprep.mubr.bf16.mxu0 0
        %3410 = vmatmul.mubr.bf16.gmra.mxu0 %v3315
        %v3411 = vpop.f32.mrf.mxu0
        %v3412 = vadd.f32 0.0, %v3411
        %v3413 = vpop.f32.mrf.mxu0
        %v3414 = vpop.f32.mrf.mxu0
        %v3415 = vadd.f32 0.0, %v3414
        %v3416 = vpop.f32.mrf.mxu0
        %3417 = vmatprep.mubr.bf16.mxu0 0
        %3418 = vmatmul.mubr.bf16.gmra.mxu0 %v3318
        %v3419 = vpop.f32.mrf.mxu0
        %v3420 = vadd.f32 0.0, %v3419
        %v3421 = vpop.f32.mrf.mxu0
        %v3422 = vpop.f32.mrf.mxu0
        %v3423 = vadd.f32 0.0, %v3422
        %v3424 = vpop.f32.mrf.mxu0
        %3425 = vmatprep.mubr.bf16.mxu0 0
        %3426 = vmatmul.mubr.bf16.gmra.mxu0 %v3321
        %v3427 = vpop.f32.mrf.mxu0
        %v3428 = vadd.f32 0.0, %v3427
        %v3429 = vpop.f32.mrf.mxu0
        %v3430 = vpop.f32.mrf.mxu0
        %v3431 = vadd.f32 0.0, %v3430
        %v3432 = vpop.f32.mrf.mxu0
        %3433 = vmatprep.mubr.bf16.mxu0 0
        %3434 = vmatmul.mubr.bf16.gmra.mxu0 %v3324
        %v3435 = vpop.f32.mrf.mxu0
        %v3436 = vadd.f32 0.0, %v3435
        %v3437 = vpop.f32.mrf.mxu0
        %v3438 = vpop.f32.mrf.mxu0
        %v3439 = vadd.f32 0.0, %v3438
        %v3440 = vpop.f32.mrf.mxu0
        %3441 = vmatprep.mubr.bf16.mxu0 0
        %3442 = vmatmul.mubr.bf16.gmra.mxu0 %v3327
        %v3443 = vpop.f32.mrf.mxu0
        %v3444 = vadd.f32 0.0, %v3443
        %v3445 = vpop.f32.mrf.mxu0
        %v3446 = vpop.f32.mrf.mxu0
        %v3447 = vadd.f32 0.0, %v3446
        %v3448 = vpop.f32.mrf.mxu0
        %3449 = vmatprep.mubr.bf16.mxu0 0
        %3450 = vmatmul.mubr.bf16.gmra.mxu0 %v3330
        %v3451 = vpop.f32.mrf.mxu0
        %v3452 = vadd.f32 0.0, %v3451
        %v3453 = vpop.f32.mrf.mxu0
        %v3454 = vpop.f32.mrf.mxu0
        %v3455 = vadd.f32 0.0, %v3454
        %v3456 = vpop.f32.mrf.mxu0
        %3457 = vmatprep.mubr.bf16.mxu0 0
        %3458 = vmatmul.mubr.bf16.gmra.mxu0 %v3333
        %v3459 = vpop.f32.mrf.mxu0
        %v3460 = vadd.f32 0.0, %v3459
        %v3461 = vpop.f32.mrf.mxu0
        %v3462 = vpop.f32.mrf.mxu0
        %v3463 = vadd.f32 0.0, %v3462
        %v3464 = vpop.f32.mrf.mxu0
        %3465 = vmatprep.mubr.bf16.mxu0 0
        %3466 = vmatmul.mubr.bf16.gmra.mxu0 %v3336
        %v3467 = vpop.f32.mrf.mxu0
        %v3468 = vadd.f32 0.0, %v3467
        %v3469 = vpop.f32.mrf.mxu0
        %v3470 = vpop.f32.mrf.mxu0
        %v3471 = vadd.f32 0.0, %v3470
        %v3472 = vpop.f32.mrf.mxu0
        %3473 = vmatprep.mubr.bf16.mxu0 0
        %3474 = vmatmul.mubr.bf16.gmra.mxu0 %v3339
        %v3475 = vpop.f32.mrf.mxu0
        %v3476 = vadd.f32 0.0, %v3475
        %v3477 = vpop.f32.mrf.mxu0
        %v3478 = vpop.f32.mrf.mxu0
        %v3479 = vadd.f32 0.0, %v3478
        %v3480 = vpop.f32.mrf.mxu0
        %3481 = vmatprep.mubr.bf16.mxu0 0
        %3482 = vmatmul.mubr.bf16.gmra.mxu0 %v3342
        %v3483 = vpop.f32.mrf.mxu0
        %v3484 = vadd.f32 0.0, %v3483
        %v3485 = vpop.f32.mrf.mxu0
        %v3486 = vpop.f32.mrf.mxu0
        %v3487 = vadd.f32 0.0, %v3486
        %v3488 = vpop.f32.mrf.mxu0
        %3489 = vmatprep.mubr.bf16.mxu0 0
        %3490 = vmatmul.mubr.bf16.gmra.mxu0 %v3345
        %v3491 = vpop.f32.mrf.mxu0
        %v3492 = vadd.f32 0.0, %v3491
        %v3493 = vpop.f32.mrf.mxu0
        %v3494 = vpop.f32.mrf.mxu0
        %v3495 = vadd.f32 0.0, %v3494
        %v3496 = vpop.f32.mrf.mxu0
        %3497 = vmatprep.mubr.bf16.mxu0 0
        %3498 = vmatmul.mubr.bf16.gmra.mxu0 %v3348
        %v3499 = vpop.f32.mrf.mxu0
        %v3500 = vadd.f32 0.0, %v3499
        %v3501 = vpop.f32.mrf.mxu0
        %v3502 = vpop.f32.mrf.mxu0
        %v3503 = vadd.f32 0.0, %v3502
        %v3504 = vpop.f32.mrf.mxu0
        %3505 = vmatprep.mubr.bf16.mxu0 0
        %3506 = vmatmul.mubr.bf16.gmra.mxu0 %v3351
        %v3507 = vpop.f32.mrf.mxu0
        %v3508 = vadd.f32 0.0, %v3507
        %v3509 = vpop.f32.mrf.mxu0
        %v3510 = vpop.f32.mrf.mxu0
        %v3511 = vadd.f32 0.0, %v3510
        %v3512 = vpop.f32.mrf.mxu0
        %3513 = vdwg.mxu0
        %v3514 = vsel %vm2539, %v3388, 0.0
        %v3515 = vsel %vm2540, %v3391, 0.0
        %v3516 = vsel %vm2541, %v3396, 0.0
        %v3517 = vsel %vm2542, %v3399, 0.0
        %v3518 = vsel %vm2543, %v3404, 0.0
        %v3519 = vsel %vm2544, %v3407, 0.0
        %v3520 = vsel %vm2545, %v3412, 0.0
        %v3521 = vsel %vm2546, %v3415, 0.0
        %v3522 = vsel %vm2547, %v3420, 0.0
        %v3523 = vsel %vm2548, %v3423, 0.0
        %v3524 = vsel %vm2549, %v3428, 0.0
        %v3525 = vsel %vm2550, %v3431, 0.0
        %v3526 = vsel %vm2551, %v3436, 0.0
        %v3527 = vsel %vm2552, %v3439, 0.0
        %v3528 = vsel %vm2553, %v3444, 0.0
        %v3529 = vsel %vm2554, %v3447, 0.0
        %v3530 = vsel %vm2555, %v3452, 0.0
        %v3531 = vsel %vm2556, %v3455, 0.0
        %v3532 = vsel %vm2557, %v3460, 0.0
        %v3533 = vsel %vm2558, %v3463, 0.0
        %v3534 = vsel %vm2559, %v3468, 0.0
        %v3535 = vsel %vm2560, %v3471, 0.0
        %v3536 = vsel %vm2561, %v3476, 0.0
        %v3537 = vsel %vm2562, %v3479, 0.0
        %v3538 = vsel %vm2563, %v3484, 0.0
        %v3539 = vsel %vm2564, %v3487, 0.0
        %v3540 = vsel %vm2565, %v3492, 0.0
        %v3541 = vsel %vm2566, %v3495, 0.0
        %v3542 = vsel %vm2567, %v3500, 0.0
        %v3543 = vsel %vm2568, %v3503, 0.0
        %v3544 = vsel %vm2569, %v3508, 0.0
        %v3545 = vsel %vm2570, %v3511, 0.0
        %v3546 = vadd.f32 %v3221, %v3514
        %v3547 = vadd.f32 %v3222, %v3515
        %v3548 = vadd.f32 %v3223, %v3516
        %v3549 = vadd.f32 %v3224, %v3517
        %v3550 = vadd.f32 %v3225, %v3518
        %v3551 = vadd.f32 %v3226, %v3519
        %v3552 = vadd.f32 %v3227, %v3520
        %v3553 = vadd.f32 %v3228, %v3521
        %v3554 = vadd.f32 %v3229, %v3522
        %v3555 = vadd.f32 %v3230, %v3523
        %v3556 = vadd.f32 %v3231, %v3524
        %v3557 = vadd.f32 %v3232, %v3525
        %v3558 = vadd.f32 %v3233, %v3526
        %v3559 = vadd.f32 %v3234, %v3527
        %v3560 = vadd.f32 %v3235, %v3528
        %v3561 = vadd.f32 %v3236, %v3529
        %v3562 = vadd.f32 %v3237, %v3530
        %v3563 = vadd.f32 %v3238, %v3531
        %v3564 = vadd.f32 %v3239, %v3532
        %v3565 = vadd.f32 %v3240, %v3533
        %v3566 = vadd.f32 %v3241, %v3534
        %v3567 = vadd.f32 %v3242, %v3535
        %v3568 = vadd.f32 %v3243, %v3536
        %v3569 = vadd.f32 %v3244, %v3537
        %v3570 = vadd.f32 %v3245, %v3538
        %v3571 = vadd.f32 %v3246, %v3539
        %v3572 = vadd.f32 %v3247, %v3540
        %v3573 = vadd.f32 %v3248, %v3541
        %v3574 = vadd.f32 %v3249, %v3542
        %v3575 = vadd.f32 %v3250, %v3543
        %v3576 = vadd.f32 %v3251, %v3544
        %v3577 = vadd.f32 %v3252, %v3545
        %v3578 = vld [vmem:[#allocation2 + $0x27] sm:$0xff]
        %v3579 = vld [vmem:[#allocation2 + $0x2f] sm:$0xff]
        %v3580 = vld [vmem:[#allocation2 + $0x37] sm:$0xff]
        %v3581 = vld [vmem:[#allocation2 + $0x3f] sm:$0xff]
        %v3582 = vld [vmem:[#allocation2 + $0x47] sm:$0xff]
        %v3583 = vld [vmem:[#allocation2 + $0x4f] sm:$0xff]
        %v3584 = vld [vmem:[#allocation2 + $0x57] sm:$0xff]
        %v3585 = vld [vmem:[#allocation2 + $0x5f] sm:$0xff]
        %v3586 = vld [vmem:[#allocation2 + $0x67] sm:$0xff]
        %v3587 = vld [vmem:[#allocation2 + $0x6f] sm:$0xff]
        %v3588 = vld [vmem:[#allocation2 + $0x77] sm:$0xff]
        %v3589 = vld [vmem:[#allocation2 + $0x7f] sm:$0xff]
        %v3590 = vld [vmem:[#allocation2 + $0x87] sm:$0xff]
        %v3591 = vld [vmem:[#allocation2 + $0x8f] sm:$0xff]
        %v3592 = vld [vmem:[#allocation2 + $0x97] sm:$0xff]
        %v3593 = vld [vmem:[#allocation2 + $0x9f] sm:$0xff]
        %v3594 = vld [vmem:[#allocation2 + $0xa7] sm:$0xff]
        %v3595 = vld [vmem:[#allocation2 + $0xaf] sm:$0xff]
        %v3596 = vld [vmem:[#allocation2 + $0xb7] sm:$0xff]
        %v3597 = vld [vmem:[#allocation2 + $0xbf] sm:$0xff]
        %v3598 = vld [vmem:[#allocation2 + $0xc7] sm:$0xff]
        %v3599 = vld [vmem:[#allocation2 + $0xcf] sm:$0xff]
        %v3600 = vld [vmem:[#allocation2 + $0xd7] sm:$0xff]
        %v3601 = vld [vmem:[#allocation2 + $0xdf] sm:$0xff]
        %v3602 = vld [vmem:[#allocation2 + $0xe7] sm:$0xff]
        %v3603 = vld [vmem:[#allocation2 + $0xef] sm:$0xff]
        %v3604 = vld [vmem:[#allocation2 + $0xf7] sm:$0xff]
        %v3605 = vld [vmem:[#allocation2 + $0xff] sm:$0xff]
        %v3606 = vld [vmem:[#allocation2 + $0x107] sm:$0xff]
        %v3607 = vld [vmem:[#allocation2 + $0x10f] sm:$0xff]
        %v3608 = vld [vmem:[#allocation2 + $0x117] sm:$0xff]
        %v3609 = vld [vmem:[#allocation2 + $0x11f] sm:$0xff]
        %v3610 = vpack.c.bf16 %v3579, %v3578
        %v3611 = vpack.c.bf16 %v3581, %v3580
        %v3612 = vpack.c.bf16 %v3583, %v3582
        %v3613 = vpack.c.bf16 %v3585, %v3584
        %v3614 = vpack.c.bf16 %v3587, %v3586
        %v3615 = vpack.c.bf16 %v3589, %v3588
        %v3616 = vpack.c.bf16 %v3591, %v3590
        %v3617 = vpack.c.bf16 %v3593, %v3592
        %v3618 = vpack.c.bf16 %v3595, %v3594
        %v3619 = vpack.c.bf16 %v3597, %v3596
        %v3620 = vpack.c.bf16 %v3599, %v3598
        %v3621 = vpack.c.bf16 %v3601, %v3600
        %v3622 = vpack.c.bf16 %v3603, %v3602
        %v3623 = vpack.c.bf16 %v3605, %v3604
        %v3624 = vpack.c.bf16 %v3607, %v3606
        %v3625 = vpack.c.bf16 %v3609, %v3608
        %s3626 = scalar_lea.vmem %s5, 96
        %v3627 = vld [vmem:[%s3626] sm:$0xff]
        %v3628 = vld [vmem:[%s3626 + $0x8] sm:$0xff]
        %v3629 = vpack.c.bf16 %v3628, %v3627
        %v3631 = vsel %vm693, %v3610, 0
        %v3634 = vsel %vm693, %v3611, 0
        %v3637 = vsel %vm693, %v3612, 0
        %v3640 = vsel %vm693, %v3613, 0
        %v3643 = vsel %vm693, %v3614, 0
        %v3646 = vsel %vm693, %v3615, 0
        %v3649 = vsel %vm693, %v3616, 0
        %v3652 = vsel %vm693, %v3617, 0
        %v3655 = vsel %vm693, %v3618, 0
        %v3658 = vsel %vm693, %v3619, 0
        %v3661 = vsel %vm693, %v3620, 0
        %v3664 = vsel %vm693, %v3621, 0
        %v3667 = vsel %vm693, %v3622, 0
        %v3670 = vsel %vm693, %v3623, 0
        %v3673 = vsel %vm693, %v3624, 0
        %v3676 = vsel %vm693, %v3625, 0
        %3678 = vmatprep.subr.bf16.mxu0 0
        %3679 = vmatpush1.bf16.msra.mxu0 0
        %3680 = vmatprep.subr.bf16.mxu0 0
        %3681 = vmatpush1.bf16.msra.mxu0 0
        %3682 = vmatprep.subr.bf16.mxu0 0
        %3683 = vmatpush1.bf16.msra.mxu0 0
        %3684 = vmatprep.subr.bf16.mxu0 0
        %3685 = vmatpush1.bf16.msra.mxu0 0
        %3686 = vmatprep.subr.bf16.mxu0 0
        %3687 = vmatpush1.bf16.msra.mxu0 0
        %3688 = vmatprep.subr.bf16.mxu0 0
        %3689 = vmatpush1.bf16.msra.mxu0 0
        %3690 = vmatprep.subr.bf16.mxu0 0
        %3691 = vmatpush1.bf16.msra.mxu0 0
        %3692 = vmatprep.subr.bf16.mxu0 0
        %3693 = vmatpush1.bf16.msra.mxu0 %v3629
        %3694 = vmatprep.subr.bf16.mxu0 0
        %3695 = vmatpush2.bf16.msra.mxu0 0
        %3696 = vmatprep.subr.bf16.mxu0 0
        %3697 = vmatpush2.bf16.msra.mxu0 0
        %3698 = vmatprep.subr.bf16.mxu0 0
        %3699 = vmatpush2.bf16.msra.mxu0 0
        %3700 = vmatprep.subr.bf16.mxu0 0
        %3701 = vmatpush2.bf16.msra.mxu0 0
        %3702 = vmatprep.subr.bf16.mxu0 0
        %3703 = vmatpush2.bf16.msra.mxu0 0
        %3704 = vmatprep.subr.bf16.mxu0 0
        %3705 = vmatpush2.bf16.msra.mxu0 0
        %3706 = vmatprep.subr.bf16.mxu0 0
        %3707 = vmatpush2.bf16.msra.mxu0 0
        %3708 = vmatprep.subr.bf16.mxu0 0
        %3709 = vmatpush2.bf16.msra.mxu0 0
        %3710 = vmatprep.mubr.bf16.mxu0 0
        %3711 = vmatmul.mubr.bf16.gmra.mxu0 %v3631
        %v3712 = vpop.f32.mrf.mxu0
        %v3713 = vadd.f32 0.0, %v3712
        %v3714 = vpop.f32.mrf.mxu0
        %v3715 = vpop.f32.mrf.mxu0
        %v3716 = vadd.f32 0.0, %v3715
        %v3717 = vpop.f32.mrf.mxu0
        %3718 = vmatprep.mubr.bf16.mxu0 0
        %3719 = vmatmul.mubr.bf16.gmra.mxu0 %v3634
        %v3720 = vpop.f32.mrf.mxu0
        %v3721 = vadd.f32 0.0, %v3720
        %v3722 = vpop.f32.mrf.mxu0
        %v3723 = vpop.f32.mrf.mxu0
        %v3724 = vadd.f32 0.0, %v3723
        %v3725 = vpop.f32.mrf.mxu0
        %3726 = vmatprep.mubr.bf16.mxu0 0
        %3727 = vmatmul.mubr.bf16.gmra.mxu0 %v3637
        %v3728 = vpop.f32.mrf.mxu0
        %v3729 = vadd.f32 0.0, %v3728
        %v3730 = vpop.f32.mrf.mxu0
        %v3731 = vpop.f32.mrf.mxu0
        %v3732 = vadd.f32 0.0, %v3731
        %v3733 = vpop.f32.mrf.mxu0
        %3734 = vmatprep.mubr.bf16.mxu0 0
        %3735 = vmatmul.mubr.bf16.gmra.mxu0 %v3640
        %v3736 = vpop.f32.mrf.mxu0
        %v3737 = vadd.f32 0.0, %v3736
        %v3738 = vpop.f32.mrf.mxu0
        %v3739 = vpop.f32.mrf.mxu0
        %v3740 = vadd.f32 0.0, %v3739
        %v3741 = vpop.f32.mrf.mxu0
        %3742 = vmatprep.mubr.bf16.mxu0 0
        %3743 = vmatmul.mubr.bf16.gmra.mxu0 %v3643
        %v3744 = vpop.f32.mrf.mxu0
        %v3745 = vadd.f32 0.0, %v3744
        %v3746 = vpop.f32.mrf.mxu0
        %v3747 = vpop.f32.mrf.mxu0
        %v3748 = vadd.f32 0.0, %v3747
        %v3749 = vpop.f32.mrf.mxu0
        %3750 = vmatprep.mubr.bf16.mxu0 0
        %3751 = vmatmul.mubr.bf16.gmra.mxu0 %v3646
        %v3752 = vpop.f32.mrf.mxu0
        %v3753 = vadd.f32 0.0, %v3752
        %v3754 = vpop.f32.mrf.mxu0
        %v3755 = vpop.f32.mrf.mxu0
        %v3756 = vadd.f32 0.0, %v3755
        %v3757 = vpop.f32.mrf.mxu0
        %3758 = vmatprep.mubr.bf16.mxu0 0
        %3759 = vmatmul.mubr.bf16.gmra.mxu0 %v3649
        %v3760 = vpop.f32.mrf.mxu0
        %v3761 = vadd.f32 0.0, %v3760
        %v3762 = vpop.f32.mrf.mxu0
        %v3763 = vpop.f32.mrf.mxu0
        %v3764 = vadd.f32 0.0, %v3763
        %v3765 = vpop.f32.mrf.mxu0
        %3766 = vmatprep.mubr.bf16.mxu0 0
        %3767 = vmatmul.mubr.bf16.gmra.mxu0 %v3652
        %v3768 = vpop.f32.mrf.mxu0
        %v3769 = vadd.f32 0.0, %v3768
        %v3770 = vpop.f32.mrf.mxu0
        %v3771 = vpop.f32.mrf.mxu0
        %v3772 = vadd.f32 0.0, %v3771
        %v3773 = vpop.f32.mrf.mxu0
        %3774 = vmatprep.mubr.bf16.mxu0 0
        %3775 = vmatmul.mubr.bf16.gmra.mxu0 %v3655
        %v3776 = vpop.f32.mrf.mxu0
        %v3777 = vadd.f32 0.0, %v3776
        %v3778 = vpop.f32.mrf.mxu0
        %v3779 = vpop.f32.mrf.mxu0
        %v3780 = vadd.f32 0.0, %v3779
        %v3781 = vpop.f32.mrf.mxu0
        %3782 = vmatprep.mubr.bf16.mxu0 0
        %3783 = vmatmul.mubr.bf16.gmra.mxu0 %v3658
        %v3784 = vpop.f32.mrf.mxu0
        %v3785 = vadd.f32 0.0, %v3784
        %v3786 = vpop.f32.mrf.mxu0
        %v3787 = vpop.f32.mrf.mxu0
        %v3788 = vadd.f32 0.0, %v3787
        %v3789 = vpop.f32.mrf.mxu0
        %3790 = vmatprep.mubr.bf16.mxu0 0
        %3791 = vmatmul.mubr.bf16.gmra.mxu0 %v3661
        %v3792 = vpop.f32.mrf.mxu0
        %v3793 = vadd.f32 0.0, %v3792
        %v3794 = vpop.f32.mrf.mxu0
        %v3795 = vpop.f32.mrf.mxu0
        %v3796 = vadd.f32 0.0, %v3795
        %v3797 = vpop.f32.mrf.mxu0
        %3798 = vmatprep.mubr.bf16.mxu0 0
        %3799 = vmatmul.mubr.bf16.gmra.mxu0 %v3664
        %v3800 = vpop.f32.mrf.mxu0
        %v3801 = vadd.f32 0.0, %v3800
        %v3802 = vpop.f32.mrf.mxu0
        %v3803 = vpop.f32.mrf.mxu0
        %v3804 = vadd.f32 0.0, %v3803
        %v3805 = vpop.f32.mrf.mxu0
        %3806 = vmatprep.mubr.bf16.mxu0 0
        %3807 = vmatmul.mubr.bf16.gmra.mxu0 %v3667
        %v3808 = vpop.f32.mrf.mxu0
        %v3809 = vadd.f32 0.0, %v3808
        %v3810 = vpop.f32.mrf.mxu0
        %v3811 = vpop.f32.mrf.mxu0
        %v3812 = vadd.f32 0.0, %v3811
        %v3813 = vpop.f32.mrf.mxu0
        %3814 = vmatprep.mubr.bf16.mxu0 0
        %3815 = vmatmul.mubr.bf16.gmra.mxu0 %v3670
        %v3816 = vpop.f32.mrf.mxu0
        %v3817 = vadd.f32 0.0, %v3816
        %v3818 = vpop.f32.mrf.mxu0
        %v3819 = vpop.f32.mrf.mxu0
        %v3820 = vadd.f32 0.0, %v3819
        %v3821 = vpop.f32.mrf.mxu0
        %3822 = vmatprep.mubr.bf16.mxu0 0
        %3823 = vmatmul.mubr.bf16.gmra.mxu0 %v3673
        %v3824 = vpop.f32.mrf.mxu0
        %v3825 = vadd.f32 0.0, %v3824
        %v3826 = vpop.f32.mrf.mxu0
        %v3827 = vpop.f32.mrf.mxu0
        %v3828 = vadd.f32 0.0, %v3827
        %v3829 = vpop.f32.mrf.mxu0
        %3830 = vmatprep.mubr.bf16.mxu0 0
        %3831 = vmatmul.mubr.bf16.gmra.mxu0 %v3676
        %v3832 = vpop.f32.mrf.mxu0
        %v3833 = vadd.f32 0.0, %v3832
        %v3834 = vpop.f32.mrf.mxu0
        %v3835 = vpop.f32.mrf.mxu0
        %v3836 = vadd.f32 0.0, %v3835
        %v3837 = vpop.f32.mrf.mxu0
        %3838 = vdwg.mxu0
        %v3839 = vsel %vm1857, %v3713, 0.0
        %v3840 = vsel %vm1858, %v3716, 0.0
        %v3841 = vsel %vm1859, %v3721, 0.0
        %v3842 = vsel %vm1860, %v3724, 0.0
        %v3843 = vsel %vm1861, %v3729, 0.0
        %v3844 = vsel %vm1862, %v3732, 0.0
        %v3845 = vsel %vm1863, %v3737, 0.0
        %v3846 = vsel %vm1864, %v3740, 0.0
        %v3847 = vsel %vm1865, %v3745, 0.0
        %v3848 = vsel %vm1866, %v3748, 0.0
        %v3849 = vsel %vm1867, %v3753, 0.0
        %v3850 = vsel %vm1868, %v3756, 0.0
        %v3851 = vsel %vm1869, %v3761, 0.0
        %v3852 = vsel %vm1870, %v3764, 0.0
        %v3853 = vsel %vm1871, %v3769, 0.0
        %v3854 = vsel %vm1872, %v3772, 0.0
        %v3855 = vsel %vm1873, %v3777, 0.0
        %v3856 = vsel %vm1874, %v3780, 0.0
        %v3857 = vsel %vm1875, %v3785, 0.0
        %v3858 = vsel %vm1876, %v3788, 0.0
        %v3859 = vsel %vm1877, %v3793, 0.0
        %v3860 = vsel %vm1878, %v3796, 0.0
        %v3861 = vsel %vm1879, %v3801, 0.0
        %v3862 = vsel %vm1880, %v3804, 0.0
        %v3863 = vsel %vm1881, %v3809, 0.0
        %v3864 = vsel %vm1882, %v3812, 0.0
        %v3865 = vsel %vm1883, %v3817, 0.0
        %v3866 = vsel %vm1884, %v3820, 0.0
        %v3867 = vsel %vm1885, %v3825, 0.0
        %v3868 = vsel %vm1886, %v3828, 0.0
        %v3869 = vsel %vm1887, %v3833, 0.0
        %v3870 = vsel %vm1888, %v3836, 0.0
        %v3871 = vadd.f32 %v3546, %v3839
        %v3872 = vadd.f32 %v3547, %v3840
        %v3873 = vadd.f32 %v3548, %v3841
        %v3874 = vadd.f32 %v3549, %v3842
        %v3875 = vadd.f32 %v3550, %v3843
        %v3876 = vadd.f32 %v3551, %v3844
        %v3877 = vadd.f32 %v3552, %v3845
        %v3878 = vadd.f32 %v3553, %v3846
        %v3879 = vadd.f32 %v3554, %v3847
        %v3880 = vadd.f32 %v3555, %v3848
        %v3881 = vadd.f32 %v3556, %v3849
        %v3882 = vadd.f32 %v3557, %v3850
        %v3883 = vadd.f32 %v3558, %v3851
        %v3884 = vadd.f32 %v3559, %v3852
        %v3885 = vadd.f32 %v3560, %v3853
        %v3886 = vadd.f32 %v3561, %v3854
        %v3887 = vadd.f32 %v3562, %v3855
        %v3888 = vadd.f32 %v3563, %v3856
        %v3889 = vadd.f32 %v3564, %v3857
        %v3890 = vadd.f32 %v3565, %v3858
        %v3891 = vadd.f32 %v3566, %v3859
        %v3892 = vadd.f32 %v3567, %v3860
        %v3893 = vadd.f32 %v3568, %v3861
        %v3894 = vadd.f32 %v3569, %v3862
        %v3895 = vadd.f32 %v3570, %v3863
        %v3896 = vadd.f32 %v3571, %v3864
        %v3897 = vadd.f32 %v3572, %v3865
        %v3898 = vadd.f32 %v3573, %v3866
        %v3899 = vadd.f32 %v3574, %v3867
        %v3900 = vadd.f32 %v3575, %v3868
        %v3901 = vadd.f32 %v3576, %v3869
        %v3902 = vadd.f32 %v3577, %v3870
        %v3903 = vld [vmem:[#allocation2 + $0x28] sm:$0xff]
        %v3904 = vld [vmem:[#allocation2 + $0x30] sm:$0xff]
        %v3905 = vld [vmem:[#allocation2 + $0x38] sm:$0xff]
        %v3906 = vld [vmem:[#allocation2 + $0x40] sm:$0xff]
        %v3907 = vld [vmem:[#allocation2 + $0x48] sm:$0xff]
        %v3908 = vld [vmem:[#allocation2 + $0x50] sm:$0xff]
        %v3909 = vld [vmem:[#allocation2 + $0x58] sm:$0xff]
        %v3910 = vld [vmem:[#allocation2 + $0x60] sm:$0xff]
        %v3911 = vld [vmem:[#allocation2 + $0x68] sm:$0xff]
        %v3912 = vld [vmem:[#allocation2 + $0x70] sm:$0xff]
        %v3913 = vld [vmem:[#allocation2 + $0x78] sm:$0xff]
        %v3914 = vld [vmem:[#allocation2 + $0x80] sm:$0xff]
        %v3915 = vld [vmem:[#allocation2 + $0x88] sm:$0xff]
        %v3916 = vld [vmem:[#allocation2 + $0x90] sm:$0xff]
        %v3917 = vld [vmem:[#allocation2 + $0x98] sm:$0xff]
        %v3918 = vld [vmem:[#allocation2 + $0xa0] sm:$0xff]
        %v3919 = vld [vmem:[#allocation2 + $0xa8] sm:$0xff]
        %v3920 = vld [vmem:[#allocation2 + $0xb0] sm:$0xff]
        %v3921 = vld [vmem:[#allocation2 + $0xb8] sm:$0xff]
        %v3922 = vld [vmem:[#allocation2 + $0xc0] sm:$0xff]
        %v3923 = vld [vmem:[#allocation2 + $0xc8] sm:$0xff]
        %v3924 = vld [vmem:[#allocation2 + $0xd0] sm:$0xff]
        %v3925 = vld [vmem:[#allocation2 + $0xd8] sm:$0xff]
        %v3926 = vld [vmem:[#allocation2 + $0xe0] sm:$0xff]
        %v3927 = vld [vmem:[#allocation2 + $0xe8] sm:$0xff]
        %v3928 = vld [vmem:[#allocation2 + $0xf0] sm:$0xff]
        %v3929 = vld [vmem:[#allocation2 + $0xf8] sm:$0xff]
        %v3930 = vld [vmem:[#allocation2 + $0x100] sm:$0xff]
        %v3931 = vld [vmem:[#allocation2 + $0x108] sm:$0xff]
        %v3932 = vld [vmem:[#allocation2 + $0x110] sm:$0xff]
        %v3933 = vld [vmem:[#allocation2 + $0x118] sm:$0xff]
        %v3934 = vld [vmem:[#allocation2 + $0x120] sm:$0xff]
        %v3935 = vpack.c.bf16 %v3904, %v3903
        %v3936 = vpack.c.bf16 %v3906, %v3905
        %v3937 = vpack.c.bf16 %v3908, %v3907
        %v3938 = vpack.c.bf16 %v3910, %v3909
        %v3939 = vpack.c.bf16 %v3912, %v3911
        %v3940 = vpack.c.bf16 %v3914, %v3913
        %v3941 = vpack.c.bf16 %v3916, %v3915
        %v3942 = vpack.c.bf16 %v3918, %v3917
        %v3943 = vpack.c.bf16 %v3920, %v3919
        %v3944 = vpack.c.bf16 %v3922, %v3921
        %v3945 = vpack.c.bf16 %v3924, %v3923
        %v3946 = vpack.c.bf16 %v3926, %v3925
        %v3947 = vpack.c.bf16 %v3928, %v3927
        %v3948 = vpack.c.bf16 %v3930, %v3929
        %v3949 = vpack.c.bf16 %v3932, %v3931
        %v3950 = vpack.c.bf16 %v3934, %v3933
        %s3951 = scalar_lea.vmem %s5, 112
        %v3952 = vld [vmem:[%s3951] sm:$0xff]
        %v3953 = vld [vmem:[%s3951 + $0x8] sm:$0xff]
        %v3954 = vpack.c.bf16 %v3953, %v3952
        %v3956 = vsel %vm693, %v3935, 0
        %v3959 = vsel %vm693, %v3936, 0
        %v3962 = vsel %vm693, %v3937, 0
        %v3965 = vsel %vm693, %v3938, 0
        %v3968 = vsel %vm693, %v3939, 0
        %v3971 = vsel %vm693, %v3940, 0
        %v3974 = vsel %vm693, %v3941, 0
        %v3977 = vsel %vm693, %v3942, 0
        %v3980 = vsel %vm693, %v3943, 0
        %v3983 = vsel %vm693, %v3944, 0
        %v3986 = vsel %vm693, %v3945, 0
        %v3989 = vsel %vm693, %v3946, 0
        %v3992 = vsel %vm693, %v3947, 0
        %v3995 = vsel %vm693, %v3948, 0
        %v3998 = vsel %vm693, %v3949, 0
        %v4001 = vsel %vm693, %v3950, 0
        %4003 = vmatprep.subr.bf16.mxu0 0
        %4004 = vmatpush1.bf16.msra.mxu0 0
        %4005 = vmatprep.subr.bf16.mxu0 0
        %4006 = vmatpush1.bf16.msra.mxu0 0
        %4007 = vmatprep.subr.bf16.mxu0 0
        %4008 = vmatpush1.bf16.msra.mxu0 0
        %4009 = vmatprep.subr.bf16.mxu0 0
        %4010 = vmatpush1.bf16.msra.mxu0 0
        %4011 = vmatprep.subr.bf16.mxu0 0
        %4012 = vmatpush1.bf16.msra.mxu0 0
        %4013 = vmatprep.subr.bf16.mxu0 0
        %4014 = vmatpush1.bf16.msra.mxu0 0
        %4015 = vmatprep.subr.bf16.mxu0 0
        %4016 = vmatpush1.bf16.msra.mxu0 0
        %4017 = vmatprep.subr.bf16.mxu0 0
        %4018 = vmatpush1.bf16.msra.mxu0 %v3954
        %4019 = vmatprep.subr.bf16.mxu0 0
        %4020 = vmatpush2.bf16.msra.mxu0 0
        %4021 = vmatprep.subr.bf16.mxu0 0
        %4022 = vmatpush2.bf16.msra.mxu0 0
        %4023 = vmatprep.subr.bf16.mxu0 0
        %4024 = vmatpush2.bf16.msra.mxu0 0
        %4025 = vmatprep.subr.bf16.mxu0 0
        %4026 = vmatpush2.bf16.msra.mxu0 0
        %4027 = vmatprep.subr.bf16.mxu0 0
        %4028 = vmatpush2.bf16.msra.mxu0 0
        %4029 = vmatprep.subr.bf16.mxu0 0
        %4030 = vmatpush2.bf16.msra.mxu0 0
        %4031 = vmatprep.subr.bf16.mxu0 0
        %4032 = vmatpush2.bf16.msra.mxu0 0
        %4033 = vmatprep.subr.bf16.mxu0 0
        %4034 = vmatpush2.bf16.msra.mxu0 0
        %4035 = vmatprep.mubr.bf16.mxu0 0
        %4036 = vmatmul.mubr.bf16.gmra.mxu0 %v3956
        %v4037 = vpop.f32.mrf.mxu0
        %v4038 = vadd.f32 0.0, %v4037
        %v4039 = vpop.f32.mrf.mxu0
        %v4040 = vpop.f32.mrf.mxu0
        %v4041 = vadd.f32 0.0, %v4040
        %v4042 = vpop.f32.mrf.mxu0
        %4043 = vmatprep.mubr.bf16.mxu0 0
        %4044 = vmatmul.mubr.bf16.gmra.mxu0 %v3959
        %v4045 = vpop.f32.mrf.mxu0
        %v4046 = vadd.f32 0.0, %v4045
        %v4047 = vpop.f32.mrf.mxu0
        %v4048 = vpop.f32.mrf.mxu0
        %v4049 = vadd.f32 0.0, %v4048
        %v4050 = vpop.f32.mrf.mxu0
        %4051 = vmatprep.mubr.bf16.mxu0 0
        %4052 = vmatmul.mubr.bf16.gmra.mxu0 %v3962
        %v4053 = vpop.f32.mrf.mxu0
        %v4054 = vadd.f32 0.0, %v4053
        %v4055 = vpop.f32.mrf.mxu0
        %v4056 = vpop.f32.mrf.mxu0
        %v4057 = vadd.f32 0.0, %v4056
        %v4058 = vpop.f32.mrf.mxu0
        %4059 = vmatprep.mubr.bf16.mxu0 0
        %4060 = vmatmul.mubr.bf16.gmra.mxu0 %v3965
        %v4061 = vpop.f32.mrf.mxu0
        %v4062 = vadd.f32 0.0, %v4061
        %v4063 = vpop.f32.mrf.mxu0
        %v4064 = vpop.f32.mrf.mxu0
        %v4065 = vadd.f32 0.0, %v4064
        %v4066 = vpop.f32.mrf.mxu0
        %4067 = vmatprep.mubr.bf16.mxu0 0
        %4068 = vmatmul.mubr.bf16.gmra.mxu0 %v3968
        %v4069 = vpop.f32.mrf.mxu0
        %v4070 = vadd.f32 0.0, %v4069
        %v4071 = vpop.f32.mrf.mxu0
        %v4072 = vpop.f32.mrf.mxu0
        %v4073 = vadd.f32 0.0, %v4072
        %v4074 = vpop.f32.mrf.mxu0
        %4075 = vmatprep.mubr.bf16.mxu0 0
        %4076 = vmatmul.mubr.bf16.gmra.mxu0 %v3971
        %v4077 = vpop.f32.mrf.mxu0
        %v4078 = vadd.f32 0.0, %v4077
        %v4079 = vpop.f32.mrf.mxu0
        %v4080 = vpop.f32.mrf.mxu0
        %v4081 = vadd.f32 0.0, %v4080
        %v4082 = vpop.f32.mrf.mxu0
        %4083 = vmatprep.mubr.bf16.mxu0 0
        %4084 = vmatmul.mubr.bf16.gmra.mxu0 %v3974
        %v4085 = vpop.f32.mrf.mxu0
        %v4086 = vadd.f32 0.0, %v4085
        %v4087 = vpop.f32.mrf.mxu0
        %v4088 = vpop.f32.mrf.mxu0
        %v4089 = vadd.f32 0.0, %v4088
        %v4090 = vpop.f32.mrf.mxu0
        %4091 = vmatprep.mubr.bf16.mxu0 0
        %4092 = vmatmul.mubr.bf16.gmra.mxu0 %v3977
        %v4093 = vpop.f32.mrf.mxu0
        %v4094 = vadd.f32 0.0, %v4093
        %v4095 = vpop.f32.mrf.mxu0
        %v4096 = vpop.f32.mrf.mxu0
        %v4097 = vadd.f32 0.0, %v4096
        %v4098 = vpop.f32.mrf.mxu0
        %4099 = vmatprep.mubr.bf16.mxu0 0
        %4100 = vmatmul.mubr.bf16.gmra.mxu0 %v3980
        %v4101 = vpop.f32.mrf.mxu0
        %v4102 = vadd.f32 0.0, %v4101
        %v4103 = vpop.f32.mrf.mxu0
        %v4104 = vpop.f32.mrf.mxu0
        %v4105 = vadd.f32 0.0, %v4104
        %v4106 = vpop.f32.mrf.mxu0
        %4107 = vmatprep.mubr.bf16.mxu0 0
        %4108 = vmatmul.mubr.bf16.gmra.mxu0 %v3983
        %v4109 = vpop.f32.mrf.mxu0
        %v4110 = vadd.f32 0.0, %v4109
        %v4111 = vpop.f32.mrf.mxu0
        %v4112 = vpop.f32.mrf.mxu0
        %v4113 = vadd.f32 0.0, %v4112
        %v4114 = vpop.f32.mrf.mxu0
        %4115 = vmatprep.mubr.bf16.mxu0 0
        %4116 = vmatmul.mubr.bf16.gmra.mxu0 %v3986
        %v4117 = vpop.f32.mrf.mxu0
        %v4118 = vadd.f32 0.0, %v4117
        %v4119 = vpop.f32.mrf.mxu0
        %v4120 = vpop.f32.mrf.mxu0
        %v4121 = vadd.f32 0.0, %v4120
        %v4122 = vpop.f32.mrf.mxu0
        %4123 = vmatprep.mubr.bf16.mxu0 0
        %4124 = vmatmul.mubr.bf16.gmra.mxu0 %v3989
        %v4125 = vpop.f32.mrf.mxu0
        %v4126 = vadd.f32 0.0, %v4125
        %v4127 = vpop.f32.mrf.mxu0
        %v4128 = vpop.f32.mrf.mxu0
        %v4129 = vadd.f32 0.0, %v4128
        %v4130 = vpop.f32.mrf.mxu0
        %4131 = vmatprep.mubr.bf16.mxu0 0
        %4132 = vmatmul.mubr.bf16.gmra.mxu0 %v3992
        %v4133 = vpop.f32.mrf.mxu0
        %v4134 = vadd.f32 0.0, %v4133
        %v4135 = vpop.f32.mrf.mxu0
        %v4136 = vpop.f32.mrf.mxu0
        %v4137 = vadd.f32 0.0, %v4136
        %v4138 = vpop.f32.mrf.mxu0
        %4139 = vmatprep.mubr.bf16.mxu0 0
        %4140 = vmatmul.mubr.bf16.gmra.mxu0 %v3995
        %v4141 = vpop.f32.mrf.mxu0
        %v4142 = vadd.f32 0.0, %v4141
        %v4143 = vpop.f32.mrf.mxu0
        %v4144 = vpop.f32.mrf.mxu0
        %v4145 = vadd.f32 0.0, %v4144
        %v4146 = vpop.f32.mrf.mxu0
        %4147 = vmatprep.mubr.bf16.mxu0 0
        %4148 = vmatmul.mubr.bf16.gmra.mxu0 %v3998
        %v4149 = vpop.f32.mrf.mxu0
        %v4150 = vadd.f32 0.0, %v4149
        %v4151 = vpop.f32.mrf.mxu0
        %v4152 = vpop.f32.mrf.mxu0
        %v4153 = vadd.f32 0.0, %v4152
        %v4154 = vpop.f32.mrf.mxu0
        %4155 = vmatprep.mubr.bf16.mxu0 0
        %4156 = vmatmul.mubr.bf16.gmra.mxu0 %v4001
        %v4157 = vpop.f32.mrf.mxu0
        %v4158 = vadd.f32 0.0, %v4157
        %v4159 = vpop.f32.mrf.mxu0
        %v4160 = vpop.f32.mrf.mxu0
        %v4161 = vadd.f32 0.0, %v4160
        %v4162 = vpop.f32.mrf.mxu0
        %4163 = vdwg.mxu0
        %v4164 = vadd.f32 %v3871, %v4038
        %v4165 = vadd.f32 %v3872, %v4041
        %v4166 = vadd.f32 %v3873, %v4046
        %v4167 = vadd.f32 %v3874, %v4049
        %v4168 = vadd.f32 %v3875, %v4054
        %v4169 = vadd.f32 %v3876, %v4057
        %v4170 = vadd.f32 %v3877, %v4062
        %v4171 = vadd.f32 %v3878, %v4065
        %v4172 = vadd.f32 %v3879, %v4070
        %v4173 = vadd.f32 %v3880, %v4073
        %v4174 = vadd.f32 %v3881, %v4078
        %v4175 = vadd.f32 %v3882, %v4081
        %v4176 = vadd.f32 %v3883, %v4086
        %v4177 = vadd.f32 %v3884, %v4089
        %v4178 = vadd.f32 %v3885, %v4094
        %v4179 = vadd.f32 %v3886, %v4097
        %v4180 = vadd.f32 %v3887, %v4102
        %v4181 = vadd.f32 %v3888, %v4105
        %v4182 = vadd.f32 %v3889, %v4110
        %v4183 = vadd.f32 %v3890, %v4113
        %v4184 = vadd.f32 %v3891, %v4118
        %v4185 = vadd.f32 %v3892, %v4121
        %v4186 = vadd.f32 %v3893, %v4126
        %v4187 = vadd.f32 %v3894, %v4129
        %v4188 = vadd.f32 %v3895, %v4134
        %v4189 = vadd.f32 %v3896, %v4137
        %v4190 = vadd.f32 %v3897, %v4142
        %v4191 = vadd.f32 %v3898, %v4145
        %v4192 = vadd.f32 %v3899, %v4150
        %v4193 = vadd.f32 %v3900, %v4153
        %v4194 = vadd.f32 %v3901, %v4158
        %v4195 = vadd.f32 %v3902, %v4161
        %v4196 = vld [vmem:[#allocation2 + $0x29] sm:$0xff]
        %v4197 = vld [vmem:[#allocation2 + $0x31] sm:$0xff]
        %v4198 = vld [vmem:[#allocation2 + $0x39] sm:$0xff]
        %v4199 = vld [vmem:[#allocation2 + $0x41] sm:$0xff]
        %v4200 = vld [vmem:[#allocation2 + $0x49] sm:$0xff]
        %v4201 = vld [vmem:[#allocation2 + $0x51] sm:$0xff]
        %v4202 = vld [vmem:[#allocation2 + $0x59] sm:$0xff]
        %v4203 = vld [vmem:[#allocation2 + $0x61] sm:$0xff]
        %v4204 = vld [vmem:[#allocation2 + $0x69] sm:$0xff]
        %v4205 = vld [vmem:[#allocation2 + $0x71] sm:$0xff]
        %v4206 = vld [vmem:[#allocation2 + $0x79] sm:$0xff]
        %v4207 = vld [vmem:[#allocation2 + $0x81] sm:$0xff]
        %v4208 = vld [vmem:[#allocation2 + $0x89] sm:$0xff]
        %v4209 = vld [vmem:[#allocation2 + $0x91] sm:$0xff]
        %v4210 = vld [vmem:[#allocation2 + $0x99] sm:$0xff]
        %v4211 = vld [vmem:[#allocation2 + $0xa1] sm:$0xff]
        %v4212 = vld [vmem:[#allocation2 + $0xa9] sm:$0xff]
        %v4213 = vld [vmem:[#allocation2 + $0xb1] sm:$0xff]
        %v4214 = vld [vmem:[#allocation2 + $0xb9] sm:$0xff]
        %v4215 = vld [vmem:[#allocation2 + $0xc1] sm:$0xff]
        %v4216 = vld [vmem:[#allocation2 + $0xc9] sm:$0xff]
        %v4217 = vld [vmem:[#allocation2 + $0xd1] sm:$0xff]
        %v4218 = vld [vmem:[#allocation2 + $0xd9] sm:$0xff]
        %v4219 = vld [vmem:[#allocation2 + $0xe1] sm:$0xff]
        %v4220 = vld [vmem:[#allocation2 + $0xe9] sm:$0xff]
        %v4221 = vld [vmem:[#allocation2 + $0xf1] sm:$0xff]
        %v4222 = vld [vmem:[#allocation2 + $0xf9] sm:$0xff]
        %v4223 = vld [vmem:[#allocation2 + $0x101] sm:$0xff]
        %v4224 = vld [vmem:[#allocation2 + $0x109] sm:$0xff]
        %v4225 = vld [vmem:[#allocation2 + $0x111] sm:$0xff]
        %v4226 = vld [vmem:[#allocation2 + $0x119] sm:$0xff]
        %v4227 = vld [vmem:[#allocation2 + $0x121] sm:$0xff]
        %v4228 = vpack.c.bf16 %v4197, %v4196
        %v4229 = vpack.c.bf16 %v4199, %v4198
        %v4230 = vpack.c.bf16 %v4201, %v4200
        %v4231 = vpack.c.bf16 %v4203, %v4202
        %v4232 = vpack.c.bf16 %v4205, %v4204
        %v4233 = vpack.c.bf16 %v4207, %v4206
        %v4234 = vpack.c.bf16 %v4209, %v4208
        %v4235 = vpack.c.bf16 %v4211, %v4210
        %v4236 = vpack.c.bf16 %v4213, %v4212
        %v4237 = vpack.c.bf16 %v4215, %v4214
        %v4238 = vpack.c.bf16 %v4217, %v4216
        %v4239 = vpack.c.bf16 %v4219, %v4218
        %v4240 = vpack.c.bf16 %v4221, %v4220
        %v4241 = vpack.c.bf16 %v4223, %v4222
        %v4242 = vpack.c.bf16 %v4225, %v4224
        %v4243 = vpack.c.bf16 %v4227, %v4226
        %s4244 = scalar_lea.vmem %s5, 128
        %v4245 = vld [vmem:[%s4244] sm:$0xff]
        %v4246 = vld [vmem:[%s4244 + $0x8] sm:$0xff]
        %v4247 = vpack.c.bf16 %v4246, %v4245
        %v4249 = vsel %vm693, %v4228, 0
        %v4252 = vsel %vm693, %v4229, 0
        %v4255 = vsel %vm693, %v4230, 0
        %v4258 = vsel %vm693, %v4231, 0
        %v4261 = vsel %vm693, %v4232, 0
        %v4264 = vsel %vm693, %v4233, 0
        %v4267 = vsel %vm693, %v4234, 0
        %v4270 = vsel %vm693, %v4235, 0
        %v4273 = vsel %vm693, %v4236, 0
        %v4276 = vsel %vm693, %v4237, 0
        %v4279 = vsel %vm693, %v4238, 0
        %v4282 = vsel %vm693, %v4239, 0
        %v4285 = vsel %vm693, %v4240, 0
        %v4288 = vsel %vm693, %v4241, 0
        %v4291 = vsel %vm693, %v4242, 0
        %v4294 = vsel %vm693, %v4243, 0
        %4296 = vmatprep.subr.bf16.mxu0 0
        %4297 = vmatpush1.bf16.msra.mxu0 0
        %4298 = vmatprep.subr.bf16.mxu0 0
        %4299 = vmatpush1.bf16.msra.mxu0 0
        %4300 = vmatprep.subr.bf16.mxu0 0
        %4301 = vmatpush1.bf16.msra.mxu0 0
        %4302 = vmatprep.subr.bf16.mxu0 0
        %4303 = vmatpush1.bf16.msra.mxu0 0
        %4304 = vmatprep.subr.bf16.mxu0 0
        %4305 = vmatpush1.bf16.msra.mxu0 0
        %4306 = vmatprep.subr.bf16.mxu0 0
        %4307 = vmatpush1.bf16.msra.mxu0 0
        %4308 = vmatprep.subr.bf16.mxu0 0
        %4309 = vmatpush1.bf16.msra.mxu0 0
        %4310 = vmatprep.subr.bf16.mxu0 0
        %4311 = vmatpush1.bf16.msra.mxu0 %v4247
        %4312 = vmatprep.subr.bf16.mxu0 0
        %4313 = vmatpush2.bf16.msra.mxu0 0
        %4314 = vmatprep.subr.bf16.mxu0 0
        %4315 = vmatpush2.bf16.msra.mxu0 0
        %4316 = vmatprep.subr.bf16.mxu0 0
        %4317 = vmatpush2.bf16.msra.mxu0 0
        %4318 = vmatprep.subr.bf16.mxu0 0
        %4319 = vmatpush2.bf16.msra.mxu0 0
        %4320 = vmatprep.subr.bf16.mxu0 0
        %4321 = vmatpush2.bf16.msra.mxu0 0
        %4322 = vmatprep.subr.bf16.mxu0 0
        %4323 = vmatpush2.bf16.msra.mxu0 0
        %4324 = vmatprep.subr.bf16.mxu0 0
        %4325 = vmatpush2.bf16.msra.mxu0 0
        %4326 = vmatprep.subr.bf16.mxu0 0
        %4327 = vmatpush2.bf16.msra.mxu0 0
        %4328 = vmatprep.mubr.bf16.mxu0 0
        %4329 = vmatmul.mubr.bf16.gmra.mxu0 %v4249
        %v4330 = vpop.f32.mrf.mxu0
        %v4331 = vadd.f32 0.0, %v4330
        %v4332 = vpop.f32.mrf.mxu0
        %v4333 = vpop.f32.mrf.mxu0
        %v4334 = vadd.f32 0.0, %v4333
        %v4335 = vpop.f32.mrf.mxu0
        %4336 = vmatprep.mubr.bf16.mxu0 0
        %4337 = vmatmul.mubr.bf16.gmra.mxu0 %v4252
        %v4338 = vpop.f32.mrf.mxu0
        %v4339 = vadd.f32 0.0, %v4338
        %v4340 = vpop.f32.mrf.mxu0
        %v4341 = vpop.f32.mrf.mxu0
        %v4342 = vadd.f32 0.0, %v4341
        %v4343 = vpop.f32.mrf.mxu0
        %4344 = vmatprep.mubr.bf16.mxu0 0
        %4345 = vmatmul.mubr.bf16.gmra.mxu0 %v4255
        %v4346 = vpop.f32.mrf.mxu0
        %v4347 = vadd.f32 0.0, %v4346
        %v4348 = vpop.f32.mrf.mxu0
        %v4349 = vpop.f32.mrf.mxu0
        %v4350 = vadd.f32 0.0, %v4349
        %v4351 = vpop.f32.mrf.mxu0
        %4352 = vmatprep.mubr.bf16.mxu0 0
        %4353 = vmatmul.mubr.bf16.gmra.mxu0 %v4258
        %v4354 = vpop.f32.mrf.mxu0
        %v4355 = vadd.f32 0.0, %v4354
        %v4356 = vpop.f32.mrf.mxu0
        %v4357 = vpop.f32.mrf.mxu0
        %v4358 = vadd.f32 0.0, %v4357
        %v4359 = vpop.f32.mrf.mxu0
        %4360 = vmatprep.mubr.bf16.mxu0 0
        %4361 = vmatmul.mubr.bf16.gmra.mxu0 %v4261
        %v4362 = vpop.f32.mrf.mxu0
        %v4363 = vadd.f32 0.0, %v4362
        %v4364 = vpop.f32.mrf.mxu0
        %v4365 = vpop.f32.mrf.mxu0
        %v4366 = vadd.f32 0.0, %v4365
        %v4367 = vpop.f32.mrf.mxu0
        %4368 = vmatprep.mubr.bf16.mxu0 0
        %4369 = vmatmul.mubr.bf16.gmra.mxu0 %v4264
        %v4370 = vpop.f32.mrf.mxu0
        %v4371 = vadd.f32 0.0, %v4370
        %v4372 = vpop.f32.mrf.mxu0
        %v4373 = vpop.f32.mrf.mxu0
        %v4374 = vadd.f32 0.0, %v4373
        %v4375 = vpop.f32.mrf.mxu0
        %4376 = vmatprep.mubr.bf16.mxu0 0
        %4377 = vmatmul.mubr.bf16.gmra.mxu0 %v4267
        %v4378 = vpop.f32.mrf.mxu0
        %v4379 = vadd.f32 0.0, %v4378
        %v4380 = vpop.f32.mrf.mxu0
        %v4381 = vpop.f32.mrf.mxu0
        %v4382 = vadd.f32 0.0, %v4381
        %v4383 = vpop.f32.mrf.mxu0
        %4384 = vmatprep.mubr.bf16.mxu0 0
        %4385 = vmatmul.mubr.bf16.gmra.mxu0 %v4270
        %v4386 = vpop.f32.mrf.mxu0
        %v4387 = vadd.f32 0.0, %v4386
        %v4388 = vpop.f32.mrf.mxu0
        %v4389 = vpop.f32.mrf.mxu0
        %v4390 = vadd.f32 0.0, %v4389
        %v4391 = vpop.f32.mrf.mxu0
        %4392 = vmatprep.mubr.bf16.mxu0 0
        %4393 = vmatmul.mubr.bf16.gmra.mxu0 %v4273
        %v4394 = vpop.f32.mrf.mxu0
        %v4395 = vadd.f32 0.0, %v4394
        %v4396 = vpop.f32.mrf.mxu0
        %v4397 = vpop.f32.mrf.mxu0
        %v4398 = vadd.f32 0.0, %v4397
        %v4399 = vpop.f32.mrf.mxu0
        %4400 = vmatprep.mubr.bf16.mxu0 0
        %4401 = vmatmul.mubr.bf16.gmra.mxu0 %v4276
        %v4402 = vpop.f32.mrf.mxu0
        %v4403 = vadd.f32 0.0, %v4402
        %v4404 = vpop.f32.mrf.mxu0
        %v4405 = vpop.f32.mrf.mxu0
        %v4406 = vadd.f32 0.0, %v4405
        %v4407 = vpop.f32.mrf.mxu0
        %4408 = vmatprep.mubr.bf16.mxu0 0
        %4409 = vmatmul.mubr.bf16.gmra.mxu0 %v4279
        %v4410 = vpop.f32.mrf.mxu0
        %v4411 = vadd.f32 0.0, %v4410
        %v4412 = vpop.f32.mrf.mxu0
        %v4413 = vpop.f32.mrf.mxu0
        %v4414 = vadd.f32 0.0, %v4413
        %v4415 = vpop.f32.mrf.mxu0
        %4416 = vmatprep.mubr.bf16.mxu0 0
        %4417 = vmatmul.mubr.bf16.gmra.mxu0 %v4282
        %v4418 = vpop.f32.mrf.mxu0
        %v4419 = vadd.f32 0.0, %v4418
        %v4420 = vpop.f32.mrf.mxu0
        %v4421 = vpop.f32.mrf.mxu0
        %v4422 = vadd.f32 0.0, %v4421
        %v4423 = vpop.f32.mrf.mxu0
        %4424 = vmatprep.mubr.bf16.mxu0 0
        %4425 = vmatmul.mubr.bf16.gmra.mxu0 %v4285
        %v4426 = vpop.f32.mrf.mxu0
        %v4427 = vadd.f32 0.0, %v4426
        %v4428 = vpop.f32.mrf.mxu0
        %v4429 = vpop.f32.mrf.mxu0
        %v4430 = vadd.f32 0.0, %v4429
        %v4431 = vpop.f32.mrf.mxu0
        %4432 = vmatprep.mubr.bf16.mxu0 0
        %4433 = vmatmul.mubr.bf16.gmra.mxu0 %v4288
        %v4434 = vpop.f32.mrf.mxu0
        %v4435 = vadd.f32 0.0, %v4434
        %v4436 = vpop.f32.mrf.mxu0
        %v4437 = vpop.f32.mrf.mxu0
        %v4438 = vadd.f32 0.0, %v4437
        %v4439 = vpop.f32.mrf.mxu0
        %4440 = vmatprep.mubr.bf16.mxu0 0
        %4441 = vmatmul.mubr.bf16.gmra.mxu0 %v4291
        %v4442 = vpop.f32.mrf.mxu0
        %v4443 = vadd.f32 0.0, %v4442
        %v4444 = vpop.f32.mrf.mxu0
        %v4445 = vpop.f32.mrf.mxu0
        %v4446 = vadd.f32 0.0, %v4445
        %v4447 = vpop.f32.mrf.mxu0
        %4448 = vmatprep.mubr.bf16.mxu0 0
        %4449 = vmatmul.mubr.bf16.gmra.mxu0 %v4294
        %v4450 = vpop.f32.mrf.mxu0
        %v4451 = vadd.f32 0.0, %v4450
        %v4452 = vpop.f32.mrf.mxu0
        %v4453 = vpop.f32.mrf.mxu0
        %v4454 = vadd.f32 0.0, %v4453
        %v4455 = vpop.f32.mrf.mxu0
        %4456 = vdwg.mxu0
        %v4457 = vsel %vm2539, %v4331, 0.0
        %v4458 = vsel %vm2540, %v4334, 0.0
        %v4459 = vsel %vm2541, %v4339, 0.0
        %v4460 = vsel %vm2542, %v4342, 0.0
        %v4461 = vsel %vm2543, %v4347, 0.0
        %v4462 = vsel %vm2544, %v4350, 0.0
        %v4463 = vsel %vm2545, %v4355, 0.0
        %v4464 = vsel %vm2546, %v4358, 0.0
        %v4465 = vsel %vm2547, %v4363, 0.0
        %v4466 = vsel %vm2548, %v4366, 0.0
        %v4467 = vsel %vm2549, %v4371, 0.0
        %v4468 = vsel %vm2550, %v4374, 0.0
        %v4469 = vsel %vm2551, %v4379, 0.0
        %v4470 = vsel %vm2552, %v4382, 0.0
        %v4471 = vsel %vm2553, %v4387, 0.0
        %v4472 = vsel %vm2554, %v4390, 0.0
        %v4473 = vsel %vm2555, %v4395, 0.0
        %v4474 = vsel %vm2556, %v4398, 0.0
        %v4475 = vsel %vm2557, %v4403, 0.0
        %v4476 = vsel %vm2558, %v4406, 0.0
        %v4477 = vsel %vm2559, %v4411, 0.0
        %v4478 = vsel %vm2560, %v4414, 0.0
        %v4479 = vsel %vm2561, %v4419, 0.0
        %v4480 = vsel %vm2562, %v4422, 0.0
        %v4481 = vsel %vm2563, %v4427, 0.0
        %v4482 = vsel %vm2564, %v4430, 0.0
        %v4483 = vsel %vm2565, %v4435, 0.0
        %v4484 = vsel %vm2566, %v4438, 0.0
        %v4485 = vsel %vm2567, %v4443, 0.0
        %v4486 = vsel %vm2568, %v4446, 0.0
        %v4487 = vsel %vm2569, %v4451, 0.0
        %v4488 = vsel %vm2570, %v4454, 0.0
        %v4489 = vadd.f32 %v4164, %v4457
        %v4490 = vadd.f32 %v4165, %v4458
        %v4491 = vadd.f32 %v4166, %v4459
        %v4492 = vadd.f32 %v4167, %v4460
        %v4493 = vadd.f32 %v4168, %v4461
        %v4494 = vadd.f32 %v4169, %v4462
        %v4495 = vadd.f32 %v4170, %v4463
        %v4496 = vadd.f32 %v4171, %v4464
        %v4497 = vadd.f32 %v4172, %v4465
        %v4498 = vadd.f32 %v4173, %v4466
        %v4499 = vadd.f32 %v4174, %v4467
        %v4500 = vadd.f32 %v4175, %v4468
        %v4501 = vadd.f32 %v4176, %v4469
        %v4502 = vadd.f32 %v4177, %v4470
        %v4503 = vadd.f32 %v4178, %v4471
        %v4504 = vadd.f32 %v4179, %v4472
        %v4505 = vadd.f32 %v4180, %v4473
        %v4506 = vadd.f32 %v4181, %v4474
        %v4507 = vadd.f32 %v4182, %v4475
        %v4508 = vadd.f32 %v4183, %v4476
        %v4509 = vadd.f32 %v4184, %v4477
        %v4510 = vadd.f32 %v4185, %v4478
        %v4511 = vadd.f32 %v4186, %v4479
        %v4512 = vadd.f32 %v4187, %v4480
        %v4513 = vadd.f32 %v4188, %v4481
        %v4514 = vadd.f32 %v4189, %v4482
        %v4515 = vadd.f32 %v4190, %v4483
        %v4516 = vadd.f32 %v4191, %v4484
        %v4517 = vadd.f32 %v4192, %v4485
        %v4518 = vadd.f32 %v4193, %v4486
        %v4519 = vadd.f32 %v4194, %v4487
        %v4520 = vadd.f32 %v4195, %v4488
        %v4521 = vld [vmem:[%s6] sm:$0x1]
        %v4523 = vlaneseq
        %v4524 = vshrl.u32 %v4523, 7
        %v4525 = vsub.s32 0, %v4524
        %v4526 = vrot.slane %v4521, %v4525
        %v4528 = vadd.f32 %v4489, %v4526
        %v4529 = vadd.f32 %v4490, %v4526
        %v4530 = vadd.f32 %v4491, %v4526
        %v4531 = vadd.f32 %v4492, %v4526
        %v4532 = vadd.f32 %v4493, %v4526
        %v4533 = vadd.f32 %v4494, %v4526
        %v4534 = vadd.f32 %v4495, %v4526
        %v4535 = vadd.f32 %v4496, %v4526
        %v4536 = vadd.f32 %v4497, %v4526
        %v4537 = vadd.f32 %v4498, %v4526
        %v4538 = vadd.f32 %v4499, %v4526
        %v4539 = vadd.f32 %v4500, %v4526
        %v4540 = vadd.f32 %v4501, %v4526
        %v4541 = vadd.f32 %v4502, %v4526
        %v4542 = vadd.f32 %v4503, %v4526
        %v4543 = vadd.f32 %v4504, %v4526
        %v4544 = vadd.f32 %v4505, %v4526
        %v4545 = vadd.f32 %v4506, %v4526
        %v4546 = vadd.f32 %v4507, %v4526
        %v4547 = vadd.f32 %v4508, %v4526
        %v4548 = vadd.f32 %v4509, %v4526
        %v4549 = vadd.f32 %v4510, %v4526
        %v4550 = vadd.f32 %v4511, %v4526
        %v4551 = vadd.f32 %v4512, %v4526
        %v4552 = vadd.f32 %v4513, %v4526
        %v4553 = vadd.f32 %v4514, %v4526
        %v4554 = vadd.f32 %v4515, %v4526
        %v4555 = vadd.f32 %v4516, %v4526
        %v4556 = vadd.f32 %v4517, %v4526
        %v4557 = vadd.f32 %v4518, %v4526
        %v4558 = vadd.f32 %v4519, %v4526
        %v4559 = vadd.f32 %v4520, %v4526
        %4560 = vst.msk [vmem:[%s356] sm:$0xff] %vm693, %v4528
        %4561 = vst.msk [vmem:[%s356 + $0x8] sm:$0xff] %vm693, %v4529
        %4562 = vst.msk [vmem:[%s356 + $0x10] sm:$0xff] %vm693, %v4530
        %4563 = vst.msk [vmem:[%s356 + $0x18] sm:$0xff] %vm693, %v4531
        %4564 = vst.msk [vmem:[%s356 + $0x20] sm:$0xff] %vm693, %v4532
        %4565 = vst.msk [vmem:[%s356 + $0x28] sm:$0xff] %vm693, %v4533
        %4566 = vst.msk [vmem:[%s356 + $0x30] sm:$0xff] %vm693, %v4534
        %4567 = vst.msk [vmem:[%s356 + $0x38] sm:$0xff] %vm693, %v4535
        %4568 = vst.msk [vmem:[%s356 + $0x40] sm:$0xff] %vm693, %v4536
        %4569 = vst.msk [vmem:[%s356 + $0x48] sm:$0xff] %vm693, %v4537
        %4570 = vst.msk [vmem:[%s356 + $0x50] sm:$0xff] %vm693, %v4538
        %4571 = vst.msk [vmem:[%s356 + $0x58] sm:$0xff] %vm693, %v4539
        %4572 = vst.msk [vmem:[%s356 + $0x60] sm:$0xff] %vm693, %v4540
        %4573 = vst.msk [vmem:[%s356 + $0x68] sm:$0xff] %vm693, %v4541
        %4574 = vst.msk [vmem:[%s356 + $0x70] sm:$0xff] %vm693, %v4542
        %4575 = vst.msk [vmem:[%s356 + $0x78] sm:$0xff] %vm693, %v4543
        %4576 = vst.msk [vmem:[%s356 + $0x80] sm:$0xff] %vm693, %v4544
        %4577 = vst.msk [vmem:[%s356 + $0x88] sm:$0xff] %vm693, %v4545
        %4578 = vst.msk [vmem:[%s356 + $0x90] sm:$0xff] %vm693, %v4546
        %4579 = vst.msk [vmem:[%s356 + $0x98] sm:$0xff] %vm693, %v4547
        %4580 = vst.msk [vmem:[%s356 + $0xa0] sm:$0xff] %vm693, %v4548
        %4581 = vst.msk [vmem:[%s356 + $0xa8] sm:$0xff] %vm693, %v4549
        %4582 = vst.msk [vmem:[%s356 + $0xb0] sm:$0xff] %vm693, %v4550
        %4583 = vst.msk [vmem:[%s356 + $0xb8] sm:$0xff] %vm693, %v4551
        %4584 = vst.msk [vmem:[%s356 + $0xc0] sm:$0xff] %vm693, %v4552
        %4585 = vst.msk [vmem:[%s356 + $0xc8] sm:$0xff] %vm693, %v4553
        %4586 = vst.msk [vmem:[%s356 + $0xd0] sm:$0xff] %vm693, %v4554
        %4587 = vst.msk [vmem:[%s356 + $0xd8] sm:$0xff] %vm693, %v4555
        %4588 = vst.msk [vmem:[%s356 + $0xe0] sm:$0xff] %vm693, %v4556
        %4589 = vst.msk [vmem:[%s356 + $0xe8] sm:$0xff] %vm693, %v4557
        %4590 = vst.msk [vmem:[%s356 + $0xf0] sm:$0xff] %vm693, %v4558
        %4591 = vst.msk [vmem:[%s356 + $0xf8] sm:$0xff] %vm693, %v4559
        %s4592 = sand.u32 %s193, 1
        %s4593 = scalar_lea.sflag [#allocation4], %s4592
        %s4594 = sand.u32 %s193, 1
        %s4595 = smul.addr %s4594, 256
        %s4596 = scalar_lea.vmem [#allocation3], %s4595
        %p4597 = scmp.lt.s32.totalorder %s23, 1
        %s4598 = scalar_select %p4597, %s23, 1
        %s4599 = smul.addr %s4598, 32
        %s4600 = smul.addr %s4599, 8
        %s4601 = scalar_lea.vmem %s8, %s4600
        // Predicated region
        $region49: #{fpn_forward_pallas.7} parent=47 // pred_check
          %p4602 = pneg %p203
        $region50: #{fpn_forward_pallas.7} parent=47 // pred_check_branch
          %4604 = sbr.rel (%p4602) target = $region52
        $region51: #{fpn_forward_pallas.7} parent=47 // pred_region
          %s4606 = ssub.s32 4096, 4096
          %4607 = vsyncadd %s4593, %s4606
          %s4608 = smul.addr %s23, 32
          %s4609 = smul.addr %s4608, 128
          %s4610 = scalar_lea.hbm %s7, %s4609
          %s4611 = sshll.u32 %s4596, 4
          %s4612 = int_to_ptr.vmem [resolvable:$true] %s4611
          %4617 = dma.vmem_to_hbm [thread:$0]  %s4612, 4096, %s4610, %s4593, 128, 128, 8
        $region52: #{fpn_forward_pallas.7} parent=47 // pred_fallthru
          _
        // Predicated region
        $region53: #{fpn_forward_pallas.7} parent=47 // pred_check
          %p4618 = pneg %p229
        $region54: #{fpn_forward_pallas.7} parent=47 // pred_check_branch
          %4620 = sbr.rel (%p4618) target = $region56
        $region55: #{fpn_forward_pallas.7} parent=47 // pred_region
          _
        $region56: #{fpn_forward_pallas.7} parent=47 // pred_fallthru
          _
      $region48: #{fpn_forward_pallas.7} parent=5 // pred_fallthru
        _
      %p4621 = scmp.le.s32.totalorder 2, %s18
      // Predicated region
      $region57: #{fpn_forward_pallas.7} parent=5 // pred_check
        %p4622 = pneg %p4621
      $region58: #{fpn_forward_pallas.7} parent=5 // pred_check_branch
        %4624 = sbr.rel (%p4622) target = $region60
      $region59: #{fpn_forward_pallas.7} parent=5 // pred_region
        %s4625 = ssub.s32 %s18, 2
        // Predicated region
        $region61: #{fpn_forward_pallas.7} parent=59 // pred_check
          %p4626 = pneg %p209
        $region62: #{fpn_forward_pallas.7} parent=59 // pred_check_branch
          %4628 = sbr.rel (%p4626) target = $region64
        $region63: #{fpn_forward_pallas.7} parent=59 // pred_region
          %s4629 = sand.u32 %s194, 1
          %s4630 = scalar_lea.sflag [#allocation4], %s4629
          %s4631 = sand.u32 %s194, 1
          %s4632 = smul.addr %s4631, 256
          %s4633 = scalar_lea.vmem [#allocation3], %s4632
          %4634 = dma.done %s4630, 4096
        $region64: #{fpn_forward_pallas.7} parent=59 // pred_fallthru
          _
        // Predicated region
        $region65: #{fpn_forward_pallas.7} parent=59 // pred_check
          %p4635 = pneg %p235
        $region66: #{fpn_forward_pallas.7} parent=59 // pred_check_branch
          %4637 = sbr.rel (%p4635) target = $region68
        $region67: #{fpn_forward_pallas.7} parent=59 // pred_region
          %p4638 = scmp.lt.s32.totalorder %s24, 1
          %s4639 = scalar_select %p4638, %s24, 1
          %s4640 = smul.addr %s4639, 32
          %s4641 = smul.addr %s4640, 8
          %s4642 = scalar_lea.vmem %s8, %s4641
        $region68: #{fpn_forward_pallas.7} parent=59 // pred_fallthru
          _
      $region60: #{fpn_forward_pallas.7} parent=5 // pred_fallthru
        _
    $region6: #{fpn_forward_pallas.7} parent=1 // loop_footer
      %s22 = sadd.s32 1, %s18
    $region7: #{fpn_forward_pallas.7} parent=1 // loop_footer_branch
      %17 = sbr.rel target = $region3
    $region8: #{fpn_forward_pallas.7} parent=1 // loop_exit
      _
    %4643 = vsyncpa [#allocation4], 1
    %s4644 = scalar_lea.sflag [#allocation4], 1
    %4645 = vsyncpa %s4644, 1

</llo_original>
